<compile_context>
chip_gen: v6e
topology: v6e:2x2x1
jax: 0.10.0
libtpu: 0.0.40
codegen_flags: <defaults>
</compile_context>

<pallas_src>
import functools

import jax
import jax.numpy as jnp
from jax.experimental import pallas as pl
from jax.experimental.pallas import tpu as pltpu


# --------------------------------------------------------------------------- #
# Kernel
# --------------------------------------------------------------------------- #
def bvae_dyn_kernel(
    latent_p,                                  # static: padded latent size
    x_ref, eps_ref,                            # activations (batch-tiled)
    we1_ref, be1_ref, wh_ref, bh_ref,          # encoder (mu/logvar heads fused)
    wd1_ref, bd1_ref, wd2_ref, bd2_ref,        # decoder (shared weights)
    wy1_ref, by1_ref, wy2_ref, by2_ref,        # dynamics MLP_simple
    rec1_ref, mulv_ref, rec2_ref,              # outputs (lane-dense, padded)
):
    f32 = jnp.float32
    mm = we1_ref.dtype                         # matmul operand dtype (f32/bf16)

    x = x_ref[...]                             # already in matmul dtype

    # ---- encoder (single fused heads matmul) ----
    h_e = jnp.maximum(
        jnp.dot(x, we1_ref[...], preferred_element_type=f32) + be1_ref[...], 0.0
    )
    heads = (
        jnp.dot(h_e.astype(mm), wh_ref[...], preferred_element_type=f32)
        + bh_ref[...]
    )
    mulv_ref[...] = heads                      # lane-dense [TB, 2*L_p] store
    mu = heads[:, :latent_p]                   # lane-boundary slice (free)
    logvar = heads[:, latent_p:]

    # ---- reparameterize (f32 elementwise; padded lanes stay exactly 0) ----
    z1 = mu + eps_ref[...] * jnp.exp(0.5 * logvar)

    # ---- dynamics (MLP_simple) ----
    h_y = jnp.maximum(
        jnp.dot(z1.astype(mm), wy1_ref[...], preferred_element_type=f32)
        + by1_ref[...],
        0.0,
    )
    z2 = (
        jnp.dot(h_y.astype(mm), wy2_ref[...], preferred_element_type=f32)
        + by2_ref[...]
    )

    # ---- decoder: decode z1 and z2 together (one [2*TB, .] pass) ----
    z_both = jnp.concatenate([z1, z2], axis=0).astype(mm)
    h_d = jnp.maximum(
        jnp.dot(z_both, wd1_ref[...], preferred_element_type=f32) + bd1_ref[...],
        0.0,
    )
    rec_both = (
        jnp.dot(h_d.astype(mm), wd2_ref[...], preferred_element_type=f32)
        + bd2_ref[...]
    )

    tb = rec1_ref.shape[0]
    rec1_ref[...] = rec_both[:tb]
    rec2_ref[...] = rec_both[tb:]


# --------------------------------------------------------------------------- #
# Helpers
# --------------------------------------------------------------------------- #
def _rup128(n):
    return ((n + 127) // 128) * 128


def _pad2d(a, rows, cols):
    r, c = a.shape
    return jnp.pad(a, ((0, rows - r), (0, cols - c)))


def _pick_block_b(batch, sublane):
    """Largest batch tile <= 256 that divides `batch`; prefers >=2 grid steps
    (v7x dual-TensorCore sharding) when each half is still a big tile."""
    target = 256
    if batch <= target:
        if batch >= 256 and batch % 2 == 0 and (batch // 2) % sublane == 0:
            return batch // 2
        return batch
    for cand in range(target, sublane - 1, -sublane):
        if batch % cand == 0:
            return cand
    return batch


def _vmem_capacity_bytes():
    try:
        cap = getattr(pltpu.get_tpu_info(), "vmem_capacity_bytes", None)
        if cap:
            return int(cap)
    except Exception:
        pass
    return 64 << 20  # conservative: v7x per-TensorCore physical VMEM


# --------------------------------------------------------------------------- #
# Wrapper
# --------------------------------------------------------------------------- #
def bvae_dyn_forward(x, eps, params, *, block_b=None, matmul_dtype=jnp.bfloat16):
    """Run the BVAE_dyn forward pass. Returns (recon_xt1, mu, logvar, recon_xt2)."""
    B, D_in = x.shape
    hidden = params["we1"].shape[1]
    L = params["wmu"].shape[1]
    dyn_hidden = params["wy1"].shape[1]

    D_in_p, H_p, L_p, Hy_p = (_rup128(d) for d in (D_in, hidden, L, dyn_hidden))

    # bf16 packs 16 rows per vreg, f32 packs 8.
    sub = 16 if matmul_dtype == jnp.bfloat16 else 8
    if block_b is None:
        block_b = _pick_block_b(B, sub)
    assert B % block_b == 0, "batch must be divisible by the batch tile"
    assert block_b == B or block_b % sub == 0, "batch tile must be sublane-aligned"
    n_tiles = B // block_b

    # ---- pad feature dims to 128-lane multiples, fuse heads, cast weights ----
    f32 = jnp.float32
    cast_w = lambda w: w.astype(matmul_dtype)
    we1 = cast_w(_pad2d(params["we1"], D_in_p, H_p))
    be1 = _pad2d(params["be1"].astype(f32), 1, H_p)
    wh = cast_w(jnp.concatenate(
        [_pad2d(params["wmu"], H_p, L_p), _pad2d(params["wlv"], H_p, L_p)], axis=1))
    bh = jnp.concatenate(
        [_pad2d(params["bmu"].astype(f32), 1, L_p),
         _pad2d(params["blv"].astype(f32), 1, L_p)], axis=1)
    wd1 = cast_w(_pad2d(params["wd1"], L_p, H_p))
    bd1 = _pad2d(params["bd1"].astype(f32), 1, H_p)
    wd2 = cast_w(_pad2d(params["wd2"], H_p, D_in_p))
    bd2 = _pad2d(params["bd2"].astype(f32), 1, D_in_p)
    wy1 = cast_w(_pad2d(params["wy1"], L_p, Hy_p))
    by1 = _pad2d(params["by1"].astype(f32), 1, Hy_p)
    wy2 = cast_w(_pad2d(params["wy2"], Hy_p, L_p))
    by2 = _pad2d(params["by2"].astype(f32), 1, L_p)
    weights = (we1, be1, wh, bh, wd1, bd1, wd2, bd2, wy1, by1, wy2, by2)

    # Inputs: x padded + cast host-side (halves DMA bytes on the bf16 path),
    # eps padded with zeros (keeps padded latent lanes exactly zero).
    x_p = _pad2d(x, B, D_in_p).astype(matmul_dtype)
    eps_p = _pad2d(eps.astype(f32), B, L_p)

    # ---- block specs ----
    x_spec = pl.BlockSpec((block_b, D_in_p), lambda i: (i, 0))
    eps_spec = pl.BlockSpec((block_b, L_p), lambda i: (i, 0))

    out_shapes = (
        jax.ShapeDtypeStruct((B, D_in_p), f32),    # recon_xt1 (padded)
        jax.ShapeDtypeStruct((B, 2 * L_p), f32),   # mu || logvar (padded)
        jax.ShapeDtypeStruct((B, D_in_p), f32),    # recon_xt2 (padded)
    )
    out_specs = [
        pl.BlockSpec((block_b, D_in_p), lambda i: (i, 0)),
        pl.BlockSpec((block_b, 2 * L_p), lambda i: (i, 0)),
        pl.BlockSpec((block_b, D_in_p), lambda i: (i, 0)),
    ]

    # ---- VMEM budget (weights + double-buffered I/O + f32 intermediates) ----
    nbytes = lambda a: int(a.size) * a.dtype.itemsize
    act_itemsize = jnp.dtype(matmul_dtype).itemsize
    weight_bytes = sum(nbytes(w) for w in weights)
    in_block_bytes = block_b * (D_in_p * act_itemsize + L_p * 4)
    out_block_bytes = 4 * block_b * (2 * D_in_p + 2 * L_p)
    inter_bytes = 4 * block_b * (
        H_p + 2 * L_p + L_p + Hy_p + L_p + 2 * L_p + 2 * H_p + 2 * D_in_p
    )
    est = 2 * weight_bytes + 2 * (in_block_bytes + out_block_bytes) + inter_bytes
    cap = _vmem_capacity_bytes()
    vmem_limit = int(min(max(int(est * 1.5) + (4 << 20), 32 << 20), (cap * 3) // 4))

    # ---- cost estimate (helps XLA schedule surrounding packing ops) ----
    flops = 2 * B * (
        D_in_p * H_p + H_p * (2 * L_p) + L_p * Hy_p + Hy_p * L_p
        + 2 * (L_p * H_p + H_p * D_in_p)
    )
    bytes_accessed = (
        nbytes(x_p) + nbytes(eps_p) + weight_bytes
        + 4 * B * (2 * D_in_p + 2 * L_p)
    )
    cost = pl.CostEstimate(
        flops=int(flops), transcendentals=int(B * L_p),
        bytes_accessed=int(bytes_accessed),
    )

    def make_in_specs(single_buffer_weights):
        wspecs = []
        for w in weights:
            if single_buffer_weights:
                wspecs.append(pl.BlockSpec(w.shape, lambda i: (0, 0),
                                           pipeline_mode=pl.Buffered(1)))
            else:
                wspecs.append(pl.BlockSpec(w.shape, lambda i: (0, 0)))
        return [x_spec, eps_spec] + wspecs

    call_common = dict(
        out_shape=out_shapes,
        grid=(n_tiles,),
        out_specs=out_specs,
        compiler_params=pltpu.CompilerParams(
            dimension_semantics=("parallel",),
            vmem_limit_bytes=vmem_limit,
        ),
        cost_estimate=cost,
    )
    kern = functools.partial(bvae_dyn_kernel, L_p)
    args = (x_p, eps_p) + weights

    try:
        # Weights have a constant index_map -> single-buffer them (halves their
        # resident VMEM footprint; matters on v7x's 64 MiB VMEM).
        rec1_p, mulv_p, rec2_p = pl.pallas_call(
            kern, in_specs=make_in_specs(True), **call_common)(*args)
    except Exception:
        # Fallback for JAX versions without BlockSpec.pipeline_mode / Buffered:
        # default double-buffered resident weights (small VMEM cost only).
        rec1_p, mulv_p, rec2_p = pl.pallas_call(
            kern, in_specs=make_in_specs(False), **call_common)(*args)

    # Un-pad / split in the wrapper (lane-boundary slices).
    rec1 = rec1_p[:, :D_in]
    mu = mulv_p[:, :L]
    logvar = mulv_p[:, L_p:L_p + L]
    rec2 = rec2_p[:, :D_in]
    return rec1, mu, logvar, rec2


# --------------------------------------------------------------------------- #
# Synthetic params + plain-JAX reference
# --------------------------------------------------------------------------- #
def init_params(key, d_in, hidden, latent, dyn_hidden):
    """Deterministic synthetic weights (Glorot-ish scaling)."""
    ks = jax.random.split(key, 8)

    def lin(k, fan_in, fan_out):
        w = jax.random.normal(k, (fan_in, fan_out), jnp.float32) / jnp.sqrt(
            jnp.float32(fan_in))
        b = jnp.zeros((1, fan_out), jnp.float32)
        return w, b

    we1, be1 = lin(ks[0], d_in, hidden)        # encoder hidden
    wmu, bmu = lin(ks[1], hidden, latent)      # encoder mu head
    wlv, blv = lin(ks[2], hidden, latent)      # encoder logvar head
    wd1, bd1 = lin(ks[3], latent, hidden)      # decoder hidden
    wd2, bd2 = lin(ks[4], hidden, d_in)        # decoder output
    wy1, by1 = lin(ks[5], latent, dyn_hidden)  # dynamics hidden
    wy2, by2 = lin(ks[6], dyn_hidden, latent)  # dynamics output
    return dict(
        we1=we1, be1=be1, wmu=wmu, bmu=bmu, wlv=wlv, blv=blv,
        wd1=wd1, bd1=bd1, wd2=wd2, bd2=bd2,
        wy1=wy1, by1=by1, wy2=wy2, by2=by2,
    )


def reference_forward(x, eps, p, mm_dtype=jnp.float32):
    """Plain-JAX reference mirroring the PyTorch module. `mm_dtype` lets the
    reference round matmul operands the same way as the kernel's bf16 path."""
    f32 = jnp.float32
    mm = lambda a, w: jnp.dot(a.astype(mm_dtype), w.astype(mm_dtype),
                              preferred_element_type=f32)
    h_e = jnp.maximum(mm(x, p["we1"]) + p["be1"], 0.0)
    mu = mm(h_e, p["wmu"]) + p["bmu"]
    logvar = mm(h_e, p["wlv"]) + p["blv"]
    z1 = mu + eps * jnp.exp(0.5 * logvar)
    h_y = jnp.maximum(mm(z1, p["wy1"]) + p["by1"], 0.0)
    z2 = mm(h_y, p["wy2"]) + p["by2"]

    def dec(z):
        h = jnp.maximum(mm(z, p["wd1"]) + p["bd1"], 0.0)
        return mm(h, p["wd2"]) + p["bd2"]

    return dec(z1), mu, logvar, dec(z2)


# --------------------------------------------------------------------------- #
if __name__ == "__main__":
    # A PyTorch NCHW input would be flattened to [B, C*H*W] before the MLP
    # encoder; the kernel works on the flattened view. Batch is sized so the
    # auto batch tile is 256 rows with a 2-step "parallel" grid.
    B, D_IN, HIDDEN, LATENT, DYN_HIDDEN = 512, 64, 32, 16, 32

    key = jax.random.PRNGKey(0)
    k_x, k_eps, k_p = jax.random.split(key, 3)
    x = jax.random.normal(k_x, (B, D_IN), jnp.float32)
    # eps is the randn_like(std) noise of reparameterize(), generated host-side
    # so the kernel is deterministic and matches the reference exactly.
    eps = jax.random.normal(k_eps, (B, LATENT), jnp.float32)
    params = init_params(k_p, D_IN, HIDDEN, LATENT, DYN_HIDDEN)

    # f32 MXU operand path: tight check against the f32 reference.
    outs_f32 = jax.block_until_ready(
        bvae_dyn_forward(x, eps, params, matmul_dtype=jnp.float32))
    refs_f32 = reference_forward(x, eps, params, mm_dtype=jnp.float32)
    for o, r in zip(outs_f32, refs_f32):
        assert o.shape == r.shape and o.dtype == r.dtype
        assert jnp.allclose(o, r, atol=1e-4, rtol=1e-4), float(jnp.max(jnp.abs(o - r)))

    # Default bf16 MXU operand path (v6e/v7x native): compared against a
    # reference that rounds matmul operands to bf16 at the same points.
    outs_bf16 = jax.block_until_ready(bvae_dyn_forward(x, eps, params))
    refs_bf16 = reference_forward(x, eps, params, mm_dtype=jnp.bfloat16)
    for o, r in zip(outs_bf16, refs_bf16):
        assert o.shape == r.shape
        assert jnp.allclose(o, r, atol=2e-2, rtol=2e-2), float(jnp.max(jnp.abs(o - r)))

    print("KERNEL_OK")
</pallas_src>

<mosaic_0001>
module attributes {stable_mosaic.version = 11 : i64} {
  func.func @bvae_dyn_kernel(%arg0: i32, %arg1: memref<256x128xf32, #tpu.memory_space<vmem>>, %arg2: memref<256x128xf32, #tpu.memory_space<vmem>>, %arg3: memref<128x128xf32, #tpu.memory_space<vmem>>, %arg4: memref<1x128xf32, #tpu.memory_space<vmem>>, %arg5: memref<128x256xf32, #tpu.memory_space<vmem>>, %arg6: memref<1x256xf32, #tpu.memory_space<vmem>>, %arg7: memref<128x128xf32, #tpu.memory_space<vmem>>, %arg8: memref<1x128xf32, #tpu.memory_space<vmem>>, %arg9: memref<128x128xf32, #tpu.memory_space<vmem>>, %arg10: memref<1x128xf32, #tpu.memory_space<vmem>>, %arg11: memref<128x128xf32, #tpu.memory_space<vmem>>, %arg12: memref<1x128xf32, #tpu.memory_space<vmem>>, %arg13: memref<128x128xf32, #tpu.memory_space<vmem>>, %arg14: memref<1x128xf32, #tpu.memory_space<vmem>>, %arg15: memref<256x128xf32, #tpu.memory_space<vmem>>, %arg16: memref<256x256xf32, #tpu.memory_space<vmem>>, %arg17: memref<256x128xf32, #tpu.memory_space<vmem>>) attributes {dimension_semantics = [#tpu.dimension_semantics<parallel>], iteration_bounds = array<i64: 2>, scalar_prefetch = 0 : i64, scratch_operands = 0 : i64, tpu.core_type = #tpu.core_type<tc>, window_params = [{transform_indices = @transform_0, window_bounds = array<i64: 256, 128>}, {transform_indices = @transform_1, window_bounds = array<i64: 256, 128>}, {pipeline_mode = #tpu.pipeline_mode<synchronous>, transform_indices = @transform_2, window_bounds = array<i64: 128, 128>}, {pipeline_mode = #tpu.pipeline_mode<synchronous>, transform_indices = @transform_3, window_bounds = array<i64: 1, 128>}, {pipeline_mode = #tpu.pipeline_mode<synchronous>, transform_indices = @transform_4, window_bounds = array<i64: 128, 256>}, {pipeline_mode = #tpu.pipeline_mode<synchronous>, transform_indices = @transform_5, window_bounds = array<i64: 1, 256>}, {pipeline_mode = #tpu.pipeline_mode<synchronous>, transform_indices = @transform_6, window_bounds = array<i64: 128, 128>}, {pipeline_mode = #tpu.pipeline_mode<synchronous>, transform_indices = @transform_7, window_bounds = array<i64: 1, 128>}, {pipeline_mode = #tpu.pipeline_mode<synchronous>, transform_indices = @transform_8, window_bounds = array<i64: 128, 128>}, {pipeline_mode = #tpu.pipeline_mode<synchronous>, transform_indices = @transform_9, window_bounds = array<i64: 1, 128>}, {pipeline_mode = #tpu.pipeline_mode<synchronous>, transform_indices = @transform_10, window_bounds = array<i64: 128, 128>}, {pipeline_mode = #tpu.pipeline_mode<synchronous>, transform_indices = @transform_11, window_bounds = array<i64: 1, 128>}, {pipeline_mode = #tpu.pipeline_mode<synchronous>, transform_indices = @transform_12, window_bounds = array<i64: 128, 128>}, {pipeline_mode = #tpu.pipeline_mode<synchronous>, transform_indices = @transform_13, window_bounds = array<i64: 1, 128>}, {transform_indices = @transform_14, window_bounds = array<i64: 256, 128>}, {transform_indices = @transform_15, window_bounds = array<i64: 256, 256>}, {transform_indices = @transform_16, window_bounds = array<i64: 256, 128>}]} {
    %c0 = arith.constant 0 : index
    %c0_0 = arith.constant 0 : index
    %0 = vector.load %arg1[%c0, %c0_0] : memref<256x128xf32, #tpu.memory_space<vmem>>, vector<256x128xf32>
    %c0_1 = arith.constant 0 : index
    %c0_2 = arith.constant 0 : index
    %1 = vector.load %arg3[%c0_1, %c0_2] : memref<128x128xf32, #tpu.memory_space<vmem>>, vector<128x128xf32>
    %cst = arith.constant dense<0.000000e+00> : vector<256x128xf32>
    %2 = tpu.matmul %0, %1, %cst {dimension_numbers = #tpu.dot_dimension_numbers<[1], [0], [0], [1], [0, 0, 1, 1], [], []>} : vector<256x128xf32>, vector<128x128xf32>, vector<256x128xf32> -> vector<256x128xf32>
    %c0_3 = arith.constant 0 : index
    %c0_4 = arith.constant 0 : index
    %3 = vector.load %arg4[%c0_3, %c0_4] : memref<1x128xf32, #tpu.memory_space<vmem>>, vector<1x128xf32>
    %4 = vector.broadcast %3 : vector<1x128xf32> to vector<256x128xf32>
    %5 = arith.addf %2, %4 : vector<256x128xf32>
    %cst_5 = arith.constant 0.000000e+00 : f32
    %6 = vector.broadcast %cst_5 : f32 to vector<256x128xf32>
    %7 = arith.maximumf %5, %6 : vector<256x128xf32>
    %c0_6 = arith.constant 0 : index
    %c0_7 = arith.constant 0 : index
    %8 = vector.load %arg5[%c0_6, %c0_7] : memref<128x256xf32, #tpu.memory_space<vmem>>, vector<128x256xf32>
    %cst_8 = arith.constant dense<0.000000e+00> : vector<256x256xf32>
    %9 = tpu.matmul %7, %8, %cst_8 {dimension_numbers = #tpu.dot_dimension_numbers<[1], [0], [0], [1], [0, 0, 1, 1], [], []>} : vector<256x128xf32>, vector<128x256xf32>, vector<256x256xf32> -> vector<256x256xf32>
    %c0_9 = arith.constant 0 : index
    %c0_10 = arith.constant 0 : index
    %10 = vector.load %arg6[%c0_9, %c0_10] : memref<1x256xf32, #tpu.memory_space<vmem>>, vector<1x256xf32>
    %11 = vector.broadcast %10 : vector<1x256xf32> to vector<256x256xf32>
    %12 = arith.addf %9, %11 : vector<256x256xf32>
    %c0_11 = arith.constant 0 : index
    %c0_12 = arith.constant 0 : index
    %13 = vector.load %arg16[%c0_11, %c0_12] : memref<256x256xf32, #tpu.memory_space<vmem>>, vector<256x256xf32>
    tpu.vector_store %arg16[%c0_11, %c0_12], %12 {strides = array<i32>} : memref<256x256xf32, #tpu.memory_space<vmem>>, vector<256x256xf32>,
    %14 = vector.extract_strided_slice %12 {offsets = [0, 0], sizes = [256, 128], strides = [1, 1]} : vector<256x256xf32> to vector<256x128xf32>
    %15 = vector.extract_strided_slice %12 {offsets = [0, 128], sizes = [256, 128], strides = [1, 1]} : vector<256x256xf32> to vector<256x128xf32>
    %c0_13 = arith.constant 0 : index
    %c0_14 = arith.constant 0 : index
    %16 = vector.load %arg2[%c0_13, %c0_14] : memref<256x128xf32, #tpu.memory_space<vmem>>, vector<256x128xf32>
    %cst_15 = arith.constant 5.000000e-01 : f32
    %17 = vector.broadcast %cst_15 : f32 to vector<256x128xf32>
    %18 = arith.mulf %17, %15 : vector<256x128xf32>
    %19 = math.exp %18 : vector<256x128xf32>
    %20 = arith.mulf %16, %19 : vector<256x128xf32>
    %21 = arith.addf %14, %20 : vector<256x128xf32>
    %c0_16 = arith.constant 0 : index
    %c0_17 = arith.constant 0 : index
    %22 = vector.load %arg11[%c0_16, %c0_17] : memref<128x128xf32, #tpu.memory_space<vmem>>, vector<128x128xf32>
    %cst_18 = arith.constant dense<0.000000e+00> : vector<256x128xf32>
    %23 = tpu.matmul %21, %22, %cst_18 {dimension_numbers = #tpu.dot_dimension_numbers<[1], [0], [0], [1], [0, 0, 1, 1], [], []>} : vector<256x128xf32>, vector<128x128xf32>, vector<256x128xf32> -> vector<256x128xf32>
    %c0_19 = arith.constant 0 : index
    %c0_20 = arith.constant 0 : index
    %24 = vector.load %arg12[%c0_19, %c0_20] : memref<1x128xf32, #tpu.memory_space<vmem>>, vector<1x128xf32>
    %25 = vector.broadcast %24 : vector<1x128xf32> to vector<256x128xf32>
    %26 = arith.addf %23, %25 : vector<256x128xf32>
    %cst_21 = arith.constant 0.000000e+00 : f32
    %27 = vector.broadcast %cst_21 : f32 to vector<256x128xf32>
    %28 = arith.maximumf %26, %27 : vector<256x128xf32>
    %c0_22 = arith.constant 0 : index
    %c0_23 = arith.constant 0 : index
    %29 = vector.load %arg13[%c0_22, %c0_23] : memref<128x128xf32, #tpu.memory_space<vmem>>, vector<128x128xf32>
    %cst_24 = arith.constant dense<0.000000e+00> : vector<256x128xf32>
    %30 = tpu.matmul %28, %29, %cst_24 {dimension_numbers = #tpu.dot_dimension_numbers<[1], [0], [0], [1], [0, 0, 1, 1], [], []>} : vector<256x128xf32>, vector<128x128xf32>, vector<256x128xf32> -> vector<256x128xf32>
    %c0_25 = arith.constant 0 : index
    %c0_26 = arith.constant 0 : index
    %31 = vector.load %arg14[%c0_25, %c0_26] : memref<1x128xf32, #tpu.memory_space<vmem>>, vector<1x128xf32>
    %32 = vector.broadcast %31 : vector<1x128xf32> to vector<256x128xf32>
    %33 = arith.addf %30, %32 : vector<256x128xf32>
    %34 = tpu.concatenate %21, %33 in 0 : vector<256x128xf32>, vector<256x128xf32> -> vector<512x128xf32>
    %c0_27 = arith.constant 0 : index
    %c0_28 = arith.constant 0 : index
    %35 = vector.load %arg7[%c0_27, %c0_28] : memref<128x128xf32, #tpu.memory_space<vmem>>, vector<128x128xf32>
    %cst_29 = arith.constant dense<0.000000e+00> : vector<512x128xf32>
    %36 = tpu.matmul %34, %35, %cst_29 {dimension_numbers = #tpu.dot_dimension_numbers<[1], [0], [0], [1], [0, 0, 1, 1], [], []>} : vector<512x128xf32>, vector<128x128xf32>, vector<512x128xf32> -> vector<512x128xf32>
    %c0_30 = arith.constant 0 : index
    %c0_31 = arith.constant 0 : index
    %37 = vector.load %arg8[%c0_30, %c0_31] : memref<1x128xf32, #tpu.memory_space<vmem>>, vector<1x128xf32>
    %38 = vector.broadcast %37 : vector<1x128xf32> to vector<512x128xf32>
    %39 = arith.addf %36, %38 : vector<512x128xf32>
    %cst_32 = arith.constant 0.000000e+00 : f32
    %40 = vector.broadcast %cst_32 : f32 to vector<512x128xf32>
    %41 = arith.maximumf %39, %40 : vector<512x128xf32>
    %c0_33 = arith.constant 0 : index
    %c0_34 = arith.constant 0 : index
    %42 = vector.load %arg9[%c0_33, %c0_34] : memref<128x128xf32, #tpu.memory_space<vmem>>, vector<128x128xf32>
    %cst_35 = arith.constant dense<0.000000e+00> : vector<512x128xf32>
    %43 = tpu.matmul %41, %42, %cst_35 {dimension_numbers = #tpu.dot_dimension_numbers<[1], [0], [0], [1], [0, 0, 1, 1], [], []>} : vector<512x128xf32>, vector<128x128xf32>, vector<512x128xf32> -> vector<512x128xf32>
    %c0_36 = arith.constant 0 : index
    %c0_37 = arith.constant 0 : index
    %44 = vector.load %arg10[%c0_36, %c0_37] : memref<1x128xf32, #tpu.memory_space<vmem>>, vector<1x128xf32>
    %45 = vector.broadcast %44 : vector<1x128xf32> to vector<512x128xf32>
    %46 = arith.addf %43, %45 : vector<512x128xf32>
    %47 = vector.extract_strided_slice %46 {offsets = [0, 0], sizes = [256, 128], strides = [1, 1]} : vector<512x128xf32> to vector<256x128xf32>
    %c0_38 = arith.constant 0 : index
    %c0_39 = arith.constant 0 : index
    %48 = vector.load %arg15[%c0_38, %c0_39] : memref<256x128xf32, #tpu.memory_space<vmem>>, vector<256x128xf32>
    tpu.vector_store %arg15[%c0_38, %c0_39], %47 {strides = array<i32>} : memref<256x128xf32, #tpu.memory_space<vmem>>, vector<256x128xf32>,
    %49 = vector.extract_strided_slice %46 {offsets = [256, 0], sizes = [256, 128], strides = [1, 1]} : vector<512x128xf32> to vector<256x128xf32>
    %c0_40 = arith.constant 0 : index
    %c0_41 = arith.constant 0 : index
    %50 = vector.load %arg17[%c0_40, %c0_41] : memref<256x128xf32, #tpu.memory_space<vmem>>, vector<256x128xf32>
    tpu.vector_store %arg17[%c0_40, %c0_41], %49 {strides = array<i32>} : memref<256x128xf32, #tpu.memory_space<vmem>>, vector<256x128xf32>,
    return
  }
  func.func @transform_0(%arg0: i32) -> (i32, i32) {
    %c0_i32 = arith.constant 0 : i32
    %c0_i32_0 = arith.constant 0 : i32
    return %arg0, %c0_i32 : i32, i32
  }
  func.func @transform_1(%arg0: i32) -> (i32, i32) {
    %c0_i32 = arith.constant 0 : i32
    %c0_i32_0 = arith.constant 0 : i32
    return %arg0, %c0_i32 : i32, i32
  }
  func.func @transform_2(%arg0: i32) -> (i32, i32) {
    %c0_i32 = arith.constant 0 : i32
    %c0_i32_0 = arith.constant 0 : i32
    %c0_i32_1 = arith.constant 0 : i32
    return %c0_i32, %c0_i32_0 : i32, i32
  }
  func.func @transform_3(%arg0: i32) -> (i32, i32) {
    %c0_i32 = arith.constant 0 : i32
    %c0_i32_0 = arith.constant 0 : i32
    %c0_i32_1 = arith.constant 0 : i32
    return %c0_i32, %c0_i32_0 : i32, i32
  }
  func.func @transform_4(%arg0: i32) -> (i32, i32) {
    %c0_i32 = arith.constant 0 : i32
    %c0_i32_0 = arith.constant 0 : i32
    %c0_i32_1 = arith.constant 0 : i32
    return %c0_i32, %c0_i32_0 : i32, i32
  }
  func.func @transform_5(%arg0: i32) -> (i32, i32) {
    %c0_i32 = arith.constant 0 : i32
    %c0_i32_0 = arith.constant 0 : i32
    %c0_i32_1 = arith.constant 0 : i32
    return %c0_i32, %c0_i32_0 : i32, i32
  }
  func.func @transform_6(%arg0: i32) -> (i32, i32) {
    %c0_i32 = arith.constant 0 : i32
    %c0_i32_0 = arith.constant 0 : i32
    %c0_i32_1 = arith.constant 0 : i32
    return %c0_i32, %c0_i32_0 : i32, i32
  }
  func.func @transform_7(%arg0: i32) -> (i32, i32) {
    %c0_i32 = arith.constant 0 : i32
    %c0_i32_0 = arith.constant 0 : i32
    %c0_i32_1 = arith.constant 0 : i32
    return %c0_i32, %c0_i32_0 : i32, i32
  }
  func.func @transform_8(%arg0: i32) -> (i32, i32) {
    %c0_i32 = arith.constant 0 : i32
    %c0_i32_0 = arith.constant 0 : i32
    %c0_i32_1 = arith.constant 0 : i32
    return %c0_i32, %c0_i32_0 : i32, i32
  }
  func.func @transform_9(%arg0: i32) -> (i32, i32) {
    %c0_i32 = arith.constant 0 : i32
    %c0_i32_0 = arith.constant 0 : i32
    %c0_i32_1 = arith.constant 0 : i32
    return %c0_i32, %c0_i32_0 : i32, i32
  }
  func.func @transform_10(%arg0: i32) -> (i32, i32) {
    %c0_i32 = arith.constant 0 : i32
    %c0_i32_0 = arith.constant 0 : i32
    %c0_i32_1 = arith.constant 0 : i32
    return %c0_i32, %c0_i32_0 : i32, i32
  }
  func.func @transform_11(%arg0: i32) -> (i32, i32) {
    %c0_i32 = arith.constant 0 : i32
    %c0_i32_0 = arith.constant 0 : i32
    %c0_i32_1 = arith.constant 0 : i32
    return %c0_i32, %c0_i32_0 : i32, i32
  }
  func.func @transform_12(%arg0: i32) -> (i32, i32) {
    %c0_i32 = arith.constant 0 : i32
    %c0_i32_0 = arith.constant 0 : i32
    %c0_i32_1 = arith.constant 0 : i32
    return %c0_i32, %c0_i32_0 : i32, i32
  }
  func.func @transform_13(%arg0: i32) -> (i32, i32) {
    %c0_i32 = arith.constant 0 : i32
    %c0_i32_0 = arith.constant 0 : i32
    %c0_i32_1 = arith.constant 0 : i32
    return %c0_i32, %c0_i32_0 : i32, i32
  }
  func.func @transform_14(%arg0: i32) -> (i32, i32) {
    %c0_i32 = arith.constant 0 : i32
    %c0_i32_0 = arith.constant 0 : i32
    return %arg0, %c0_i32 : i32, i32
  }
  func.func @transform_15(%arg0: i32) -> (i32, i32) {
    %c0_i32 = arith.constant 0 : i32
    %c0_i32_0 = arith.constant 0 : i32
    return %arg0, %c0_i32 : i32, i32
  }
  func.func @transform_16(%arg0: i32) -> (i32, i32) {
    %c0_i32 = arith.constant 0 : i32
    %c0_i32_0 = arith.constant 0 : i32
    return %arg0, %c0_i32 : i32, i32
  }
}

module attributes {stable_mosaic.version = 11 : i64} {
  func.func @bvae_dyn_kernel(%arg0: i32, %arg1: memref<256x128xf32, #tpu.memory_space<vmem>>, %arg2: memref<256x128xf32, #tpu.memory_space<vmem>>, %arg3: memref<128x128xf32, #tpu.memory_space<vmem>>, %arg4: memref<1x128xf32, #tpu.memory_space<vmem>>, %arg5: memref<128x256xf32, #tpu.memory_space<vmem>>, %arg6: memref<1x256xf32, #tpu.memory_space<vmem>>, %arg7: memref<128x128xf32, #tpu.memory_space<vmem>>, %arg8: memref<1x128xf32, #tpu.memory_space<vmem>>, %arg9: memref<128x128xf32, #tpu.memory_space<vmem>>, %arg10: memref<1x128xf32, #tpu.memory_space<vmem>>, %arg11: memref<128x128xf32, #tpu.memory_space<vmem>>, %arg12: memref<1x128xf32, #tpu.memory_space<vmem>>, %arg13: memref<128x128xf32, #tpu.memory_space<vmem>>, %arg14: memref<1x128xf32, #tpu.memory_space<vmem>>, %arg15: memref<256x128xf32, #tpu.memory_space<vmem>>, %arg16: memref<256x256xf32, #tpu.memory_space<vmem>>, %arg17: memref<256x128xf32, #tpu.memory_space<vmem>>) attributes {dimension_semantics = [#tpu.dimension_semantics<parallel>], iteration_bounds = array<i64: 2>, scalar_prefetch = 0 : i64, scratch_operands = 0 : i64, tpu.core_type = #tpu.core_type<tc>, window_params = [{transform_indices = @transform_0, window_bounds = array<i64: 256, 128>}, {transform_indices = @transform_1, window_bounds = array<i64: 256, 128>}, {pipeline_mode = #tpu.pipeline_mode<synchronous>, transform_indices = @transform_2, window_bounds = array<i64: 128, 128>}, {pipeline_mode = #tpu.pipeline_mode<synchronous>, transform_indices = @transform_3, window_bounds = array<i64: 1, 128>}, {pipeline_mode = #tpu.pipeline_mode<synchronous>, transform_indices = @transform_4, window_bounds = array<i64: 128, 256>}, {pipeline_mode = #tpu.pipeline_mode<synchronous>, transform_indices = @transform_5, window_bounds = array<i64: 1, 256>}, {pipeline_mode = #tpu.pipeline_mode<synchronous>, transform_indices = @transform_6, window_bounds = array<i64: 128, 128>}, {pipeline_mode = #tpu.pipeline_mode<synchronous>, transform_indices = @transform_7, window_bounds = array<i64: 1, 128>}, {pipeline_mode = #tpu.pipeline_mode<synchronous>, transform_indices = @transform_8, window_bounds = array<i64: 128, 128>}, {pipeline_mode = #tpu.pipeline_mode<synchronous>, transform_indices = @transform_9, window_bounds = array<i64: 1, 128>}, {pipeline_mode = #tpu.pipeline_mode<synchronous>, transform_indices = @transform_10, window_bounds = array<i64: 128, 128>}, {pipeline_mode = #tpu.pipeline_mode<synchronous>, transform_indices = @transform_11, window_bounds = array<i64: 1, 128>}, {pipeline_mode = #tpu.pipeline_mode<synchronous>, transform_indices = @transform_12, window_bounds = array<i64: 128, 128>}, {pipeline_mode = #tpu.pipeline_mode<synchronous>, transform_indices = @transform_13, window_bounds = array<i64: 1, 128>}, {transform_indices = @transform_14, window_bounds = array<i64: 256, 128>}, {transform_indices = @transform_15, window_bounds = array<i64: 256, 256>}, {transform_indices = @transform_16, window_bounds = array<i64: 256, 128>}]} {
    %c0 = arith.constant 0 : index
    %c0_0 = arith.constant 0 : index
    %0 = vector.load %arg1[%c0, %c0_0] : memref<256x128xf32, #tpu.memory_space<vmem>>, vector<256x128xf32>
    %c0_1 = arith.constant 0 : index
    %c0_2 = arith.constant 0 : index
    %1 = vector.load %arg3[%c0_1, %c0_2] : memref<128x128xf32, #tpu.memory_space<vmem>>, vector<128x128xf32>
    %cst = arith.constant dense<0.000000e+00> : vector<256x128xf32>
    %2 = tpu.matmul %0, %1, %cst {dimension_numbers = #tpu.dot_dimension_numbers<[1], [0], [0], [1], [0, 0, 1, 1], [], []>} : vector<256x128xf32>, vector<128x128xf32>, vector<256x128xf32> -> vector<256x128xf32>
    %c0_3 = arith.constant 0 : index
    %c0_4 = arith.constant 0 : index
    %3 = vector.load %arg4[%c0_3, %c0_4] : memref<1x128xf32, #tpu.memory_space<vmem>>, vector<1x128xf32>
    %4 = vector.broadcast %3 : vector<1x128xf32> to vector<256x128xf32>
    %5 = arith.addf %2, %4 : vector<256x128xf32>
    %cst_5 = arith.constant 0.000000e+00 : f32
    %6 = vector.broadcast %cst_5 : f32 to vector<256x128xf32>
    %7 = arith.maximumf %5, %6 : vector<256x128xf32>
    %c0_6 = arith.constant 0 : index
    %c0_7 = arith.constant 0 : index
    %8 = vector.load %arg5[%c0_6, %c0_7] : memref<128x256xf32, #tpu.memory_space<vmem>>, vector<128x256xf32>
    %cst_8 = arith.constant dense<0.000000e+00> : vector<256x256xf32>
    %9 = tpu.matmul %7, %8, %cst_8 {dimension_numbers = #tpu.dot_dimension_numbers<[1], [0], [0], [1], [0, 0, 1, 1], [], []>} : vector<256x128xf32>, vector<128x256xf32>, vector<256x256xf32> -> vector<256x256xf32>
    %c0_9 = arith.constant 0 : index
    %c0_10 = arith.constant 0 : index
    %10 = vector.load %arg6[%c0_9, %c0_10] : memref<1x256xf32, #tpu.memory_space<vmem>>, vector<1x256xf32>
    %11 = vector.broadcast %10 : vector<1x256xf32> to vector<256x256xf32>
    %12 = arith.addf %9, %11 : vector<256x256xf32>
    %c0_11 = arith.constant 0 : index
    %c0_12 = arith.constant 0 : index
    %13 = vector.load %arg16[%c0_11, %c0_12] : memref<256x256xf32, #tpu.memory_space<vmem>>, vector<256x256xf32>
    tpu.vector_store %arg16[%c0_11, %c0_12], %12 {strides = array<i32>} : memref<256x256xf32, #tpu.memory_space<vmem>>, vector<256x256xf32>,
    %14 = vector.extract_strided_slice %12 {offsets = [0, 0], sizes = [256, 128], strides = [1, 1]} : vector<256x256xf32> to vector<256x128xf32>
    %15 = vector.extract_strided_slice %12 {offsets = [0, 128], sizes = [256, 128], strides = [1, 1]} : vector<256x256xf32> to vector<256x128xf32>
    %c0_13 = arith.constant 0 : index
    %c0_14 = arith.constant 0 : index
    %16 = vector.load %arg2[%c0_13, %c0_14] : memref<256x128xf32, #tpu.memory_space<vmem>>, vector<256x128xf32>
    %cst_15 = arith.constant 5.000000e-01 : f32
    %17 = vector.broadcast %cst_15 : f32 to vector<256x128xf32>
    %18 = arith.mulf %17, %15 : vector<256x128xf32>
    %19 = math.exp %18 : vector<256x128xf32>
    %20 = arith.mulf %16, %19 : vector<256x128xf32>
    %21 = arith.addf %14, %20 : vector<256x128xf32>
    %c0_16 = arith.constant 0 : index
    %c0_17 = arith.constant 0 : index
    %22 = vector.load %arg11[%c0_16, %c0_17] : memref<128x128xf32, #tpu.memory_space<vmem>>, vector<128x128xf32>
    %cst_18 = arith.constant dense<0.000000e+00> : vector<256x128xf32>
    %23 = tpu.matmul %21, %22, %cst_18 {dimension_numbers = #tpu.dot_dimension_numbers<[1], [0], [0], [1], [0, 0, 1, 1], [], []>} : vector<256x128xf32>, vector<128x128xf32>, vector<256x128xf32> -> vector<256x128xf32>
    %c0_19 = arith.constant 0 : index
    %c0_20 = arith.constant 0 : index
    %24 = vector.load %arg12[%c0_19, %c0_20] : memref<1x128xf32, #tpu.memory_space<vmem>>, vector<1x128xf32>
    %25 = vector.broadcast %24 : vector<1x128xf32> to vector<256x128xf32>
    %26 = arith.addf %23, %25 : vector<256x128xf32>
    %cst_21 = arith.constant 0.000000e+00 : f32
    %27 = vector.broadcast %cst_21 : f32 to vector<256x128xf32>
    %28 = arith.maximumf %26, %27 : vector<256x128xf32>
    %c0_22 = arith.constant 0 : index
    %c0_23 = arith.constant 0 : index
    %29 = vector.load %arg13[%c0_22, %c0_23] : memref<128x128xf32, #tpu.memory_space<vmem>>, vector<128x128xf32>
    %cst_24 = arith.constant dense<0.000000e+00> : vector<256x128xf32>
    %30 = tpu.matmul %28, %29, %cst_24 {dimension_numbers = #tpu.dot_dimension_numbers<[1], [0], [0], [1], [0, 0, 1, 1], [], []>} : vector<256x128xf32>, vector<128x128xf32>, vector<256x128xf32> -> vector<256x128xf32>
    %c0_25 = arith.constant 0 : index
    %c0_26 = arith.constant 0 : index
    %31 = vector.load %arg14[%c0_25, %c0_26] : memref<1x128xf32, #tpu.memory_space<vmem>>, vector<1x128xf32>
    %32 = vector.broadcast %31 : vector<1x128xf32> to vector<256x128xf32>
    %33 = arith.addf %30, %32 : vector<256x128xf32>
    %34 = tpu.concatenate %21, %33 in 0 : vector<256x128xf32>, vector<256x128xf32> -> vector<512x128xf32>
    %c0_27 = arith.constant 0 : index
    %c0_28 = arith.constant 0 : index
    %35 = vector.load %arg7[%c0_27, %c0_28] : memref<128x128xf32, #tpu.memory_space<vmem>>, vector<128x128xf32>
    %cst_29 = arith.constant dense<0.000000e+00> : vector<512x128xf32>
    %36 = tpu.matmul %34, %35, %cst_29 {dimension_numbers = #tpu.dot_dimension_numbers<[1], [0], [0], [1], [0, 0, 1, 1], [], []>} : vector<512x128xf32>, vector<128x128xf32>, vector<512x128xf32> -> vector<512x128xf32>
    %c0_30 = arith.constant 0 : index
    %c0_31 = arith.constant 0 : index
    %37 = vector.load %arg8[%c0_30, %c0_31] : memref<1x128xf32, #tpu.memory_space<vmem>>, vector<1x128xf32>
    %38 = vector.broadcast %37 : vector<1x128xf32> to vector<512x128xf32>
    %39 = arith.addf %36, %38 : vector<512x128xf32>
    %cst_32 = arith.constant 0.000000e+00 : f32
    %40 = vector.broadcast %cst_32 : f32 to vector<512x128xf32>
    %41 = arith.maximumf %39, %40 : vector<512x128xf32>
    %c0_33 = arith.constant 0 : index
    %c0_34 = arith.constant 0 : index
    %42 = vector.load %arg9[%c0_33, %c0_34] : memref<128x128xf32, #tpu.memory_space<vmem>>, vector<128x128xf32>
    %cst_35 = arith.constant dense<0.000000e+00> : vector<512x128xf32>
    %43 = tpu.matmul %41, %42, %cst_35 {dimension_numbers = #tpu.dot_dimension_numbers<[1], [0], [0], [1], [0, 0, 1, 1], [], []>} : vector<512x128xf32>, vector<128x128xf32>, vector<512x128xf32> -> vector<512x128xf32>
    %c0_36 = arith.constant 0 : index
    %c0_37 = arith.constant 0 : index
    %44 = vector.load %arg10[%c0_36, %c0_37] : memref<1x128xf32, #tpu.memory_space<vmem>>, vector<1x128xf32>
    %45 = vector.broadcast %44 : vector<1x128xf32> to vector<512x128xf32>
    %46 = arith.addf %43, %45 : vector<512x128xf32>
    %47 = vector.extract_strided_slice %46 {offsets = [0, 0], sizes = [256, 128], strides = [1, 1]} : vector<512x128xf32> to vector<256x128xf32>
    %c0_38 = arith.constant 0 : index
    %c0_39 = arith.constant 0 : index
    %48 = vector.load %arg15[%c0_38, %c0_39] : memref<256x128xf32, #tpu.memory_space<vmem>>, vector<256x128xf32>
    tpu.vector_store %arg15[%c0_38, %c0_39], %47 {strides = array<i32>} : memref<256x128xf32, #tpu.memory_space<vmem>>, vector<256x128xf32>,
    %49 = vector.extract_strided_slice %46 {offsets = [256, 0], sizes = [256, 128], strides = [1, 1]} : vector<512x128xf32> to vector<256x128xf32>
    %c0_40 = arith.constant 0 : index
    %c0_41 = arith.constant 0 : index
    %50 = vector.load %arg17[%c0_40, %c0_41] : memref<256x128xf32, #tpu.memory_space<vmem>>, vector<256x128xf32>
    tpu.vector_store %arg17[%c0_40, %c0_41], %49 {strides = array<i32>} : memref<256x128xf32, #tpu.memory_space<vmem>>, vector<256x128xf32>,
    return
  }
  func.func @transform_0(%arg0: i32) -> (i32, i32) {
    %c0_i32 = arith.constant 0 : i32
    %c0_i32_0 = arith.constant 0 : i32
    return %arg0, %c0_i32 : i32, i32
  }
  func.func @transform_1(%arg0: i32) -> (i32, i32) {
    %c0_i32 = arith.constant 0 : i32
    %c0_i32_0 = arith.constant 0 : i32
    return %arg0, %c0_i32 : i32, i32
  }
  func.func @transform_2(%arg0: i32) -> (i32, i32) {
    %c0_i32 = arith.constant 0 : i32
    %c0_i32_0 = arith.constant 0 : i32
    %c0_i32_1 = arith.constant 0 : i32
    return %c0_i32, %c0_i32_0 : i32, i32
  }
  func.func @transform_3(%arg0: i32) -> (i32, i32) {
    %c0_i32 = arith.constant 0 : i32
    %c0_i32_0 = arith.constant 0 : i32
    %c0_i32_1 = arith.constant 0 : i32
    return %c0_i32, %c0_i32_0 : i32, i32
  }
  func.func @transform_4(%arg0: i32) -> (i32, i32) {
    %c0_i32 = arith.constant 0 : i32
    %c0_i32_0 = arith.constant 0 : i32
    %c0_i32_1 = arith.constant 0 : i32
    return %c0_i32, %c0_i32_0 : i32, i32
  }
  func.func @transform_5(%arg0: i32) -> (i32, i32) {
    %c0_i32 = arith.constant 0 : i32
    %c0_i32_0 = arith.constant 0 : i32
    %c0_i32_1 = arith.constant 0 : i32
    return %c0_i32, %c0_i32_0 : i32, i32
  }
  func.func @transform_6(%arg0: i32) -> (i32, i32) {
    %c0_i32 = arith.constant 0 : i32
    %c0_i32_0 = arith.constant 0 : i32
    %c0_i32_1 = arith.constant 0 : i32
    return %c0_i32, %c0_i32_0 : i32, i32
  }
  func.func @transform_7(%arg0: i32) -> (i32, i32) {
    %c0_i32 = arith.constant 0 : i32
    %c0_i32_0 = arith.constant 0 : i32
    %c0_i32_1 = arith.constant 0 : i32
    return %c0_i32, %c0_i32_0 : i32, i32
  }
  func.func @transform_8(%arg0: i32) -> (i32, i32) {
    %c0_i32 = arith.constant 0 : i32
    %c0_i32_0 = arith.constant 0 : i32
    %c0_i32_1 = arith.constant 0 : i32
    return %c0_i32, %c0_i32_0 : i32, i32
  }
  func.func @transform_9(%arg0: i32) -> (i32, i32) {
    %c0_i32 = arith.constant 0 : i32
    %c0_i32_0 = arith.constant 0 : i32
    %c0_i32_1 = arith.constant 0 : i32
    return %c0_i32, %c0_i32_0 : i32, i32
  }
  func.func @transform_10(%arg0: i32) -> (i32, i32) {
    %c0_i32 = arith.constant 0 : i32
    %c0_i32_0 = arith.constant 0 : i32
    %c0_i32_1 = arith.constant 0 : i32
    return %c0_i32, %c0_i32_0 : i32, i32
  }
  func.func @transform_11(%arg0: i32) -> (i32, i32) {
    %c0_i32 = arith.constant 0 : i32
    %c0_i32_0 = arith.constant 0 : i32
    %c0_i32_1 = arith.constant 0 : i32
    return %c0_i32, %c0_i32_0 : i32, i32
  }
  func.func @transform_12(%arg0: i32) -> (i32, i32) {
    %c0_i32 = arith.constant 0 : i32
    %c0_i32_0 = arith.constant 0 : i32
    %c0_i32_1 = arith.constant 0 : i32
    return %c0_i32, %c0_i32_0 : i32, i32
  }
  func.func @transform_13(%arg0: i32) -> (i32, i32) {
    %c0_i32 = arith.constant 0 : i32
    %c0_i32_0 = arith.constant 0 : i32
    %c0_i32_1 = arith.constant 0 : i32
    return %c0_i32, %c0_i32_0 : i32, i32
  }
  func.func @transform_14(%arg0: i32) -> (i32, i32) {
    %c0_i32 = arith.constant 0 : i32
    %c0_i32_0 = arith.constant 0 : i32
    return %arg0, %c0_i32 : i32, i32
  }
  func.func @transform_15(%arg0: i32) -> (i32, i32) {
    %c0_i32 = arith.constant 0 : i32
    %c0_i32_0 = arith.constant 0 : i32
    return %arg0, %c0_i32 : i32, i32
  }
  func.func @transform_16(%arg0: i32) -> (i32, i32) {
    %c0_i32 = arith.constant 0 : i32
    %c0_i32_0 = arith.constant 0 : i32
    return %arg0, %c0_i32 : i32, i32
  }
}

</mosaic_0001>

<llo_original>
// kernel: tpu_custom_call.1
$region0: #{tpu_custom_call.1}
  #allocation0 [shape = 'u32[]', space=smem, size = 0x4, offset = 0x4, fixed_abs, tag = 'smem constant byte address 0x4 - core index']
  #allocation1 [shape = 'u32[144,128]{1,0:T(1,128)}', space=vmem, size = 0x12000, scoped, tag = 'internal scratch']
  %s0 = inlined_call_operand.hbm [shape: f32[512,128], index: 0, kind: input, shape index: {}]
  %s1 = inlined_call_operand.hbm [shape: f32[512,128], index: 1, kind: input, shape index: {}]
  %s2 = inlined_call_operand.hbm [shape: f32[128,128], index: 2, kind: input, shape index: {}]
  %s3 = inlined_call_operand.vmem [shape: f32[1,128], index: 3, kind: input, shape index: {}]
  %s4 = inlined_call_operand.hbm [shape: f32[128,256], index: 4, kind: input, shape index: {}]
  %s5 = inlined_call_operand.vmem [shape: f32[1,256], index: 5, kind: input, shape index: {}]
  %s6 = inlined_call_operand.hbm [shape: f32[128,128], index: 6, kind: input, shape index: {}]
  %s7 = inlined_call_operand.vmem [shape: f32[1,128], index: 7, kind: input, shape index: {}]
  %s8 = inlined_call_operand.hbm [shape: f32[128,128], index: 8, kind: input, shape index: {}]
  %s9 = inlined_call_operand.vmem [shape: f32[1,128], index: 9, kind: input, shape index: {}]
  %s10 = inlined_call_operand.hbm [shape: f32[128,128], index: 10, kind: input, shape index: {}]
  %s11 = inlined_call_operand.vmem [shape: f32[1,128], index: 11, kind: input, shape index: {}]
  %s12 = inlined_call_operand.hbm [shape: f32[128,128], index: 12, kind: input, shape index: {}]
  %s13 = inlined_call_operand.vmem [shape: f32[1,128], index: 13, kind: input, shape index: {}]
  %s14 = inlined_call_operand.hbm [shape: f32[512,128], index: 14, kind: output, shape index: {0}]
  %s15 = inlined_call_operand.hbm [shape: f32[512,256], index: 15, kind: output, shape index: {1}]
  %s16 = inlined_call_operand.hbm [shape: f32[512,128], index: 16, kind: output, shape index: {2}]
  %17 = xla_tuple %s14, %s15, %s16
  %s18 = sld [smem:[#allocation0]]
  $region137: #{tpu_custom_call.1} parent=0
    _
  %s20 = ssub.s32 1, %s18
  %s21 = scalar_select 0, %s20, %s18
  $region1: #{tpu_custom_call.1} parent=0
    #allocation2 [shape = 'u8[262144]{0}', space=vmem, size = 0x40000, scoped, tag = 'input window, operand 0']
    #allocation3 [shape = 's32[2]{0}', space=sflag, size = 0x8, scoped, tag = 'scoped memory for tpu_custom_call.1']
    #allocation4 [shape = 's32[2]{0}', space=sflag, size = 0x8, scoped, tag = 'scoped memory for tpu_custom_call.1']
    #allocation5 [shape = 'u8[262144]{0}', space=vmem, size = 0x40000, scoped, tag = 'input window, operand 1']
    #allocation6 [shape = 's32[2]{0}', space=sflag, size = 0x8, scoped, tag = 'scoped memory for tpu_custom_call.1']
    #allocation7 [shape = 'u8[65536]{0}', space=vmem, size = 0x10000, scoped, tag = 'input window, operand 2, single buffered']
    #allocation8 [shape = 'u8[131072]{0}', space=vmem, size = 0x20000, scoped, tag = 'input window, operand 4, single buffered']
    #allocation9 [shape = 's32[1]{0}', space=sflag, size = 0x4, scoped, tag = 'scoped memory for tpu_custom_call.1']
    #allocation10 [shape = 'u8[65536]{0}', space=vmem, size = 0x10000, scoped, tag = 'input window, operand 6, single buffered']
    #allocation11 [shape = 'u8[65536]{0}', space=vmem, size = 0x10000, scoped, tag = 'input window, operand 8, single buffered']
    #allocation12 [shape = 's32[1]{0}', space=sflag, size = 0x4, scoped, tag = 'scoped memory for tpu_custom_call.1']
    #allocation13 [shape = 'u8[65536]{0}', space=vmem, size = 0x10000, scoped, tag = 'input window, operand 10, single buffered']
    #allocation14 [shape = 'u8[65536]{0}', space=vmem, size = 0x10000, scoped, tag = 'input window, operand 12, single buffered']
    #allocation15 [shape = 's32[1]{0}', space=sflag, size = 0x4, scoped, tag = 'scoped memory for tpu_custom_call.1']
    #allocation16 [shape = 'u8[262144]{0}', space=vmem, size = 0x40000, scoped, tag = 'output window, operand 0']
    #allocation17 [shape = 'u8[524288]{0}', space=vmem, size = 0x80000, scoped, tag = 'output window, operand 1']
    #allocation18 [shape = 's32[2]{0}', space=sflag, size = 0x8, scoped, tag = 'scoped memory for tpu_custom_call.1']
    #allocation19 [shape = 'u8[262144]{0}', space=vmem, size = 0x40000, scoped, tag = 'output window, operand 2']
    %22 = vsyncpa [#allocation3], 0
    %s23 = scalar_lea.sflag [#allocation3], 1
    %24 = vsyncpa %s23, 0
    %25 = vsyncpa [#allocation6], 0
    %s26 = scalar_lea.sflag [#allocation6], 1
    %27 = vsyncpa %s26, 0
    %28 = vsyncpa [#allocation9], 0
    %29 = vsyncpa [#allocation12], 0
    %30 = vsyncpa [#allocation15], 0
    %31 = vsyncpa [#allocation4], 0
    %s32 = scalar_lea.sflag [#allocation4], 1
    %33 = vsyncpa %s32, 0
    %34 = vsyncpa [#allocation18], 0
    %s35 = scalar_lea.sflag [#allocation18], 1
    %36 = vsyncpa %s35, 0
    loop: start=0, step=1, limit=4
    $region2: #{tpu_custom_call.1} parent=1 // loop_pre_header
      _
    $region3: #{tpu_custom_call.1} parent=1 // loop_header
      %s38 = sphi 0, %s42
      %p39 = scmp.ge.s32.totalorder %s38, 4
      %s48 = sphi 0, %s50
      %s51 = sphi 0, %s48
      %s52 = sphi 0, %s51
      %s68 = sphi 0, %s52
      %s74 = sphi 0, %s76
      %s77 = sphi 0, %s74
      %s78 = sphi 0, %s77
      %s94 = sphi 0, %s78
      %s98 = sphi 0, %s98
      %s100 = sphi 0, %s98
      %s101 = sphi 0, %s100
      %s115 = sphi 0, %s101
      %s119 = sphi 0, %s119
      %s121 = sphi 0, %s119
      %s122 = sphi 0, %s121
      %s136 = sphi 0, %s122
      %s140 = sphi 0, %s140
      %s142 = sphi 0, %s140
      %s143 = sphi 0, %s142
      %s157 = sphi 0, %s143
      %s161 = sphi 0, %s161
      %s163 = sphi 0, %s161
      %s164 = sphi 0, %s163
      %s178 = sphi 0, %s164
      %s182 = sphi 0, %s182
      %s184 = sphi 0, %s182
      %s185 = sphi 0, %s184
      %s199 = sphi 0, %s185
      %s203 = sphi 0, %s203
      %s205 = sphi 0, %s203
      %s206 = sphi 0, %s205
      %s220 = sphi 0, %s206
      %s224 = sphi 0, %s224
      %s226 = sphi 0, %s224
      %s227 = sphi 0, %s226
      %s241 = sphi 0, %s227
      %s245 = sphi 0, %s245
      %s247 = sphi 0, %s245
      %s248 = sphi 0, %s247
      %s262 = sphi 0, %s248
      %s266 = sphi 0, %s266
      %s268 = sphi 0, %s266
      %s269 = sphi 0, %s268
      %s283 = sphi 0, %s269
      %s287 = sphi 0, %s287
      %s289 = sphi 0, %s287
      %s290 = sphi 0, %s289
      %s304 = sphi 0, %s290
      %s308 = sphi 0, %s308
      %s310 = sphi 0, %s308
      %s311 = sphi 0, %s310
      %s325 = sphi 0, %s311
      %s329 = sphi 0, %s329
      %s331 = sphi 0, %s329
      %s332 = sphi 0, %s331
      %s346 = sphi 0, %s332
      %s352 = sphi 0, %s354
      %s355 = sphi 0, %s352
      %s356 = sphi 0, %s355
      %s372 = sphi 0, %s356
      %s378 = sphi 0, %s380
      %s381 = sphi 0, %s378
      %s382 = sphi 0, %s381
      %s398 = sphi 0, %s382
      %s404 = sphi 0, %s406
      %s407 = sphi 0, %s404
      %s408 = sphi 0, %s407
      %s424 = sphi 0, %s408
    $region4: #{tpu_custom_call.1} parent=1 // loop_header_branch
      %41 = sbr.rel (%p39) target = $region8
    $region5: #{tpu_custom_call.1} parent=1 // loop_body
      %s43 = ssub.s32 %s38, 1
      %s44 = ssub.s32 %s38, 2
      %s45 = sadd.s32 %s38, 1
      %s46 = ssub.s32 %s38, %s45
      %p47 = scmp.eq.s32.totalorder %s46, 0
      %s49 = sadd.s32 %s48, 1
      %s50 = scalar_select %p47, %s48, %s49
      %p53 = pneg %p47
      %p54 = scmp.eq.s32.totalorder %s38, 1
      %p55 = por %p53, %p54
      %p56 = scmp.ne.s32.totalorder %s48, %s51
      %p57 = scmp.eq.s32.totalorder %s38, 0
      %p58 = por %p56, %p57
      %p59 = scmp.ne.s32.totalorder %s48, %s51
      %p60 = scmp.eq.s32.totalorder %s43, 1
      %p61 = por %p59, %p60
      %p62 = scmp.ne.s32.totalorder %s51, %s52
      %p63 = scmp.eq.s32.totalorder %s43, 0
      %p64 = por %p62, %p63
      %p65 = scmp.ne.s32.totalorder %s51, %s52
      %p66 = scmp.eq.s32.totalorder %s44, 1
      %p67 = por %p65, %p66
      %p69 = scmp.ne.s32.totalorder %s52, %s68
      %p70 = scmp.eq.s32.totalorder %s44, 0
      %p71 = por %p69, %p70
      %s72 = ssub.s32 %s38, %s45
      %p73 = scmp.eq.s32.totalorder %s72, 0
      %s75 = sadd.s32 %s74, 1
      %s76 = scalar_select %p73, %s74, %s75
      %p79 = pneg %p73
      %p80 = scmp.eq.s32.totalorder %s38, 1
      %p81 = por %p79, %p80
      %p82 = scmp.ne.s32.totalorder %s74, %s77
      %p83 = scmp.eq.s32.totalorder %s38, 0
      %p84 = por %p82, %p83
      %p85 = scmp.ne.s32.totalorder %s74, %s77
      %p86 = scmp.eq.s32.totalorder %s43, 1
      %p87 = por %p85, %p86
      %p88 = scmp.ne.s32.totalorder %s77, %s78
      %p89 = scmp.eq.s32.totalorder %s43, 0
      %p90 = por %p88, %p89
      %p91 = scmp.ne.s32.totalorder %s77, %s78
      %p92 = scmp.eq.s32.totalorder %s44, 1
      %p93 = por %p91, %p92
      %p95 = scmp.ne.s32.totalorder %s78, %s94
      %p96 = scmp.eq.s32.totalorder %s44, 0
      %p97 = por %p95, %p96
      %s99 = sadd.s32 %s98, 1
      %p102 = scmp.eq.s32.totalorder %s38, 1
      %p103 = scmp.ne.s32.totalorder %s98, %s100
      %p104 = scmp.eq.s32.totalorder %s38, 0
      %p105 = por %p103, %p104
      %p106 = scmp.ne.s32.totalorder %s98, %s100
      %p107 = scmp.eq.s32.totalorder %s43, 1
      %p108 = por %p106, %p107
      %p109 = scmp.ne.s32.totalorder %s100, %s101
      %p110 = scmp.eq.s32.totalorder %s43, 0
      %p111 = por %p109, %p110
      %p112 = scmp.ne.s32.totalorder %s100, %s101
      %p113 = scmp.eq.s32.totalorder %s44, 1
      %p114 = por %p112, %p113
      %p116 = scmp.ne.s32.totalorder %s101, %s115
      %p117 = scmp.eq.s32.totalorder %s44, 0
      %p118 = por %p116, %p117
      %s120 = sadd.s32 %s119, 1
      %p123 = scmp.eq.s32.totalorder %s38, 1
      %p124 = scmp.ne.s32.totalorder %s119, %s121
      %p125 = scmp.eq.s32.totalorder %s38, 0
      %p126 = por %p124, %p125
      %p127 = scmp.ne.s32.totalorder %s119, %s121
      %p128 = scmp.eq.s32.totalorder %s43, 1
      %p129 = por %p127, %p128
      %p130 = scmp.ne.s32.totalorder %s121, %s122
      %p131 = scmp.eq.s32.totalorder %s43, 0
      %p132 = por %p130, %p131
      %p133 = scmp.ne.s32.totalorder %s121, %s122
      %p134 = scmp.eq.s32.totalorder %s44, 1
      %p135 = por %p133, %p134
      %p137 = scmp.ne.s32.totalorder %s122, %s136
      %p138 = scmp.eq.s32.totalorder %s44, 0
      %p139 = por %p137, %p138
      %s141 = sadd.s32 %s140, 1
      %p144 = scmp.eq.s32.totalorder %s38, 1
      %p145 = scmp.ne.s32.totalorder %s140, %s142
      %p146 = scmp.eq.s32.totalorder %s38, 0
      %p147 = por %p145, %p146
      %p148 = scmp.ne.s32.totalorder %s140, %s142
      %p149 = scmp.eq.s32.totalorder %s43, 1
      %p150 = por %p148, %p149
      %p151 = scmp.ne.s32.totalorder %s142, %s143
      %p152 = scmp.eq.s32.totalorder %s43, 0
      %p153 = por %p151, %p152
      %p154 = scmp.ne.s32.totalorder %s142, %s143
      %p155 = scmp.eq.s32.totalorder %s44, 1
      %p156 = por %p154, %p155
      %p158 = scmp.ne.s32.totalorder %s143, %s157
      %p159 = scmp.eq.s32.totalorder %s44, 0
      %p160 = por %p158, %p159
      %s162 = sadd.s32 %s161, 1
      %p165 = scmp.eq.s32.totalorder %s38, 1
      %p166 = scmp.ne.s32.totalorder %s161, %s163
      %p167 = scmp.eq.s32.totalorder %s38, 0
      %p168 = por %p166, %p167
      %p169 = scmp.ne.s32.totalorder %s161, %s163
      %p170 = scmp.eq.s32.totalorder %s43, 1
      %p171 = por %p169, %p170
      %p172 = scmp.ne.s32.totalorder %s163, %s164
      %p173 = scmp.eq.s32.totalorder %s43, 0
      %p174 = por %p172, %p173
      %p175 = scmp.ne.s32.totalorder %s163, %s164
      %p176 = scmp.eq.s32.totalorder %s44, 1
      %p177 = por %p175, %p176
      %p179 = scmp.ne.s32.totalorder %s164, %s178
      %p180 = scmp.eq.s32.totalorder %s44, 0
      %p181 = por %p179, %p180
      %s183 = sadd.s32 %s182, 1
      %p186 = scmp.eq.s32.totalorder %s38, 1
      %p187 = scmp.ne.s32.totalorder %s182, %s184
      %p188 = scmp.eq.s32.totalorder %s38, 0
      %p189 = por %p187, %p188
      %p190 = scmp.ne.s32.totalorder %s182, %s184
      %p191 = scmp.eq.s32.totalorder %s43, 1
      %p192 = por %p190, %p191
      %p193 = scmp.ne.s32.totalorder %s184, %s185
      %p194 = scmp.eq.s32.totalorder %s43, 0
      %p195 = por %p193, %p194
      %p196 = scmp.ne.s32.totalorder %s184, %s185
      %p197 = scmp.eq.s32.totalorder %s44, 1
      %p198 = por %p196, %p197
      %p200 = scmp.ne.s32.totalorder %s185, %s199
      %p201 = scmp.eq.s32.totalorder %s44, 0
      %p202 = por %p200, %p201
      %s204 = sadd.s32 %s203, 1
      %p207 = scmp.eq.s32.totalorder %s38, 1
      %p208 = scmp.ne.s32.totalorder %s203, %s205
      %p209 = scmp.eq.s32.totalorder %s38, 0
      %p210 = por %p208, %p209
      %p211 = scmp.ne.s32.totalorder %s203, %s205
      %p212 = scmp.eq.s32.totalorder %s43, 1
      %p213 = por %p211, %p212
      %p214 = scmp.ne.s32.totalorder %s205, %s206
      %p215 = scmp.eq.s32.totalorder %s43, 0
      %p216 = por %p214, %p215
      %p217 = scmp.ne.s32.totalorder %s205, %s206
      %p218 = scmp.eq.s32.totalorder %s44, 1
      %p219 = por %p217, %p218
      %p221 = scmp.ne.s32.totalorder %s206, %s220
      %p222 = scmp.eq.s32.totalorder %s44, 0
      %p223 = por %p221, %p222
      %s225 = sadd.s32 %s224, 1
      %p228 = scmp.eq.s32.totalorder %s38, 1
      %p229 = scmp.ne.s32.totalorder %s224, %s226
      %p230 = scmp.eq.s32.totalorder %s38, 0
      %p231 = por %p229, %p230
      %p232 = scmp.ne.s32.totalorder %s224, %s226
      %p233 = scmp.eq.s32.totalorder %s43, 1
      %p234 = por %p232, %p233
      %p235 = scmp.ne.s32.totalorder %s226, %s227
      %p236 = scmp.eq.s32.totalorder %s43, 0
      %p237 = por %p235, %p236
      %p238 = scmp.ne.s32.totalorder %s226, %s227
      %p239 = scmp.eq.s32.totalorder %s44, 1
      %p240 = por %p238, %p239
      %p242 = scmp.ne.s32.totalorder %s227, %s241
      %p243 = scmp.eq.s32.totalorder %s44, 0
      %p244 = por %p242, %p243
      %s246 = sadd.s32 %s245, 1
      %p249 = scmp.eq.s32.totalorder %s38, 1
      %p250 = scmp.ne.s32.totalorder %s245, %s247
      %p251 = scmp.eq.s32.totalorder %s38, 0
      %p252 = por %p250, %p251
      %p253 = scmp.ne.s32.totalorder %s245, %s247
      %p254 = scmp.eq.s32.totalorder %s43, 1
      %p255 = por %p253, %p254
      %p256 = scmp.ne.s32.totalorder %s247, %s248
      %p257 = scmp.eq.s32.totalorder %s43, 0
      %p258 = por %p256, %p257
      %p259 = scmp.ne.s32.totalorder %s247, %s248
      %p260 = scmp.eq.s32.totalorder %s44, 1
      %p261 = por %p259, %p260
      %p263 = scmp.ne.s32.totalorder %s248, %s262
      %p264 = scmp.eq.s32.totalorder %s44, 0
      %p265 = por %p263, %p264
      %s267 = sadd.s32 %s266, 1
      %p270 = scmp.eq.s32.totalorder %s38, 1
      %p271 = scmp.ne.s32.totalorder %s266, %s268
      %p272 = scmp.eq.s32.totalorder %s38, 0
      %p273 = por %p271, %p272
      %p274 = scmp.ne.s32.totalorder %s266, %s268
      %p275 = scmp.eq.s32.totalorder %s43, 1
      %p276 = por %p274, %p275
      %p277 = scmp.ne.s32.totalorder %s268, %s269
      %p278 = scmp.eq.s32.totalorder %s43, 0
      %p279 = por %p277, %p278
      %p280 = scmp.ne.s32.totalorder %s268, %s269
      %p281 = scmp.eq.s32.totalorder %s44, 1
      %p282 = por %p280, %p281
      %p284 = scmp.ne.s32.totalorder %s269, %s283
      %p285 = scmp.eq.s32.totalorder %s44, 0
      %p286 = por %p284, %p285
      %s288 = sadd.s32 %s287, 1
      %p291 = scmp.eq.s32.totalorder %s38, 1
      %p292 = scmp.ne.s32.totalorder %s287, %s289
      %p293 = scmp.eq.s32.totalorder %s38, 0
      %p294 = por %p292, %p293
      %p295 = scmp.ne.s32.totalorder %s287, %s289
      %p296 = scmp.eq.s32.totalorder %s43, 1
      %p297 = por %p295, %p296
      %p298 = scmp.ne.s32.totalorder %s289, %s290
      %p299 = scmp.eq.s32.totalorder %s43, 0
      %p300 = por %p298, %p299
      %p301 = scmp.ne.s32.totalorder %s289, %s290
      %p302 = scmp.eq.s32.totalorder %s44, 1
      %p303 = por %p301, %p302
      %p305 = scmp.ne.s32.totalorder %s290, %s304
      %p306 = scmp.eq.s32.totalorder %s44, 0
      %p307 = por %p305, %p306
      %s309 = sadd.s32 %s308, 1
      %p312 = scmp.eq.s32.totalorder %s38, 1
      %p313 = scmp.ne.s32.totalorder %s308, %s310
      %p314 = scmp.eq.s32.totalorder %s38, 0
      %p315 = por %p313, %p314
      %p316 = scmp.ne.s32.totalorder %s308, %s310
      %p317 = scmp.eq.s32.totalorder %s43, 1
      %p318 = por %p316, %p317
      %p319 = scmp.ne.s32.totalorder %s310, %s311
      %p320 = scmp.eq.s32.totalorder %s43, 0
      %p321 = por %p319, %p320
      %p322 = scmp.ne.s32.totalorder %s310, %s311
      %p323 = scmp.eq.s32.totalorder %s44, 1
      %p324 = por %p322, %p323
      %p326 = scmp.ne.s32.totalorder %s311, %s325
      %p327 = scmp.eq.s32.totalorder %s44, 0
      %p328 = por %p326, %p327
      %s330 = sadd.s32 %s329, 1
      %p333 = scmp.eq.s32.totalorder %s38, 1
      %p334 = scmp.ne.s32.totalorder %s329, %s331
      %p335 = scmp.eq.s32.totalorder %s38, 0
      %p336 = por %p334, %p335
      %p337 = scmp.ne.s32.totalorder %s329, %s331
      %p338 = scmp.eq.s32.totalorder %s43, 1
      %p339 = por %p337, %p338
      %p340 = scmp.ne.s32.totalorder %s331, %s332
      %p341 = scmp.eq.s32.totalorder %s43, 0
      %p342 = por %p340, %p341
      %p343 = scmp.ne.s32.totalorder %s331, %s332
      %p344 = scmp.eq.s32.totalorder %s44, 1
      %p345 = por %p343, %p344
      %p347 = scmp.ne.s32.totalorder %s332, %s346
      %p348 = scmp.eq.s32.totalorder %s44, 0
      %p349 = por %p347, %p348
      %s350 = ssub.s32 %s38, %s45
      %p351 = scmp.eq.s32.totalorder %s350, 0
      %s353 = sadd.s32 %s352, 1
      %s354 = scalar_select %p351, %s352, %s353
      %p357 = pneg %p351
      %p358 = scmp.eq.s32.totalorder %s38, 1
      %p359 = por %p357, %p358
      %p360 = scmp.ne.s32.totalorder %s352, %s355
      %p361 = scmp.eq.s32.totalorder %s38, 0
      %p362 = por %p360, %p361
      %p363 = scmp.ne.s32.totalorder %s352, %s355
      %p364 = scmp.eq.s32.totalorder %s43, 1
      %p365 = por %p363, %p364
      %p366 = scmp.ne.s32.totalorder %s355, %s356
      %p367 = scmp.eq.s32.totalorder %s43, 0
      %p368 = por %p366, %p367
      %p369 = scmp.ne.s32.totalorder %s355, %s356
      %p370 = scmp.eq.s32.totalorder %s44, 1
      %p371 = por %p369, %p370
      %p373 = scmp.ne.s32.totalorder %s356, %s372
      %p374 = scmp.eq.s32.totalorder %s44, 0
      %p375 = por %p373, %p374
      %s376 = ssub.s32 %s38, %s45
      %p377 = scmp.eq.s32.totalorder %s376, 0
      %s379 = sadd.s32 %s378, 1
      %s380 = scalar_select %p377, %s378, %s379
      %p383 = pneg %p377
      %p384 = scmp.eq.s32.totalorder %s38, 1
      %p385 = por %p383, %p384
      %p386 = scmp.ne.s32.totalorder %s378, %s381
      %p387 = scmp.eq.s32.totalorder %s38, 0
      %p388 = por %p386, %p387
      %p389 = scmp.ne.s32.totalorder %s378, %s381
      %p390 = scmp.eq.s32.totalorder %s43, 1
      %p391 = por %p389, %p390
      %p392 = scmp.ne.s32.totalorder %s381, %s382
      %p393 = scmp.eq.s32.totalorder %s43, 0
      %p394 = por %p392, %p393
      %p395 = scmp.ne.s32.totalorder %s381, %s382
      %p396 = scmp.eq.s32.totalorder %s44, 1
      %p397 = por %p395, %p396
      %p399 = scmp.ne.s32.totalorder %s382, %s398
      %p400 = scmp.eq.s32.totalorder %s44, 0
      %p401 = por %p399, %p400
      %s402 = ssub.s32 %s38, %s45
      %p403 = scmp.eq.s32.totalorder %s402, 0
      %s405 = sadd.s32 %s404, 1
      %s406 = scalar_select %p403, %s404, %s405
      %p409 = pneg %p403
      %p410 = scmp.eq.s32.totalorder %s38, 1
      %p411 = por %p409, %p410
      %p412 = scmp.ne.s32.totalorder %s404, %s407
      %p413 = scmp.eq.s32.totalorder %s38, 0
      %p414 = por %p412, %p413
      %p415 = scmp.ne.s32.totalorder %s404, %s407
      %p416 = scmp.eq.s32.totalorder %s43, 1
      %p417 = por %p415, %p416
      %p418 = scmp.ne.s32.totalorder %s407, %s408
      %p419 = scmp.eq.s32.totalorder %s43, 0
      %p420 = por %p418, %p419
      %p421 = scmp.ne.s32.totalorder %s407, %s408
      %p422 = scmp.eq.s32.totalorder %s44, 1
      %p423 = por %p421, %p422
      %p425 = scmp.ne.s32.totalorder %s408, %s424
      %p426 = scmp.eq.s32.totalorder %s44, 0
      %p427 = por %p425, %p426
      %p428 = scmp.le.s32.totalorder 1, %s38
      %p429 = scmp.lt.s32.totalorder %s38, 3
      %p430 = pnand %p428, %p429
      %p431 = pneg %p430
      // Predicated region
      $region9: #{tpu_custom_call.1} parent=5 // pred_check
        _
      $region10: #{tpu_custom_call.1} parent=5 // pred_check_branch
        %433 = sbr.rel (%p430) target = $region12
      $region11: #{tpu_custom_call.1} parent=5 // pred_region
        %s434 = ssub.s32 %s38, 1
        // Predicated region
        $region13: #{tpu_custom_call.1} parent=11 // pred_check
          %p435 = pneg %p111
        $region14: #{tpu_custom_call.1} parent=11 // pred_check_branch
          %437 = sbr.rel (%p435) target = $region16
        $region15: #{tpu_custom_call.1} parent=11 // pred_region
          %s439 = ssub.s32 2048, 2048
          %440 = vsyncadd [#allocation6], %s439
          %s441 = sshll.u32 [#allocation7], 4
          %s442 = int_to_ptr.vmem [resolvable:$true] %s441
          %447 = dma.hbm_to_vmem [thread:$0]  %s2, 2048, %s442, [#allocation6], 128, 128, 8
        $region16: #{tpu_custom_call.1} parent=11 // pred_fallthru
          _
        // Predicated region
        $region17: #{tpu_custom_call.1} parent=11 // pred_check
          %p448 = pneg %p132
        $region18: #{tpu_custom_call.1} parent=11 // pred_check_branch
          %450 = sbr.rel (%p448) target = $region20
        $region19: #{tpu_custom_call.1} parent=11 // pred_region
          _
        $region20: #{tpu_custom_call.1} parent=11 // pred_fallthru
          _
        // Predicated region
        $region21: #{tpu_custom_call.1} parent=11 // pred_check
          %p451 = pneg %p153
        $region22: #{tpu_custom_call.1} parent=11 // pred_check_branch
          %453 = sbr.rel (%p451) target = $region24
        $region23: #{tpu_custom_call.1} parent=11 // pred_region
          %s455 = ssub.s32 4096, 4096
          %456 = vsyncadd [#allocation9], %s455
          %s457 = sshll.u32 [#allocation8], 4
          %s458 = int_to_ptr.vmem [resolvable:$true] %s457
          %463 = dma.hbm_to_vmem [thread:$0]  %s4, 4096, %s458, [#allocation9], 256, 256, 16
        $region24: #{tpu_custom_call.1} parent=11 // pred_fallthru
          _
        // Predicated region
        $region25: #{tpu_custom_call.1} parent=11 // pred_check
          %p464 = pneg %p174
        $region26: #{tpu_custom_call.1} parent=11 // pred_check_branch
          %466 = sbr.rel (%p464) target = $region28
        $region27: #{tpu_custom_call.1} parent=11 // pred_region
          _
        $region28: #{tpu_custom_call.1} parent=11 // pred_fallthru
          _
        // Predicated region
        $region29: #{tpu_custom_call.1} parent=11 // pred_check
          %p467 = pneg %p195
        $region30: #{tpu_custom_call.1} parent=11 // pred_check_branch
          %469 = sbr.rel (%p467) target = $region32
        $region31: #{tpu_custom_call.1} parent=11 // pred_region
          %s471 = ssub.s32 2048, 2048
          %472 = vsyncadd [#allocation9], %s471
          %s473 = sshll.u32 [#allocation10], 4
          %s474 = int_to_ptr.vmem [resolvable:$true] %s473
          %479 = dma.hbm_to_vmem [thread:$0]  %s6, 2048, %s474, [#allocation9], 128, 128, 8
        $region32: #{tpu_custom_call.1} parent=11 // pred_fallthru
          _
        // Predicated region
        $region33: #{tpu_custom_call.1} parent=11 // pred_check
          %p480 = pneg %p216
        $region34: #{tpu_custom_call.1} parent=11 // pred_check_branch
          %482 = sbr.rel (%p480) target = $region36
        $region35: #{tpu_custom_call.1} parent=11 // pred_region
          _
        $region36: #{tpu_custom_call.1} parent=11 // pred_fallthru
          _
        // Predicated region
        $region37: #{tpu_custom_call.1} parent=11 // pred_check
          %p483 = pneg %p237
        $region38: #{tpu_custom_call.1} parent=11 // pred_check_branch
          %485 = sbr.rel (%p483) target = $region40
        $region39: #{tpu_custom_call.1} parent=11 // pred_region
          %s487 = ssub.s32 2048, 2048
          %488 = vsyncadd [#allocation12], %s487
          %s489 = sshll.u32 [#allocation11], 4
          %s490 = int_to_ptr.vmem [resolvable:$true] %s489
          %495 = dma.hbm_to_vmem [thread:$0]  %s8, 2048, %s490, [#allocation12], 128, 128, 8
        $region40: #{tpu_custom_call.1} parent=11 // pred_fallthru
          _
        // Predicated region
        $region41: #{tpu_custom_call.1} parent=11 // pred_check
          %p496 = pneg %p258
        $region42: #{tpu_custom_call.1} parent=11 // pred_check_branch
          %498 = sbr.rel (%p496) target = $region44
        $region43: #{tpu_custom_call.1} parent=11 // pred_region
          _
        $region44: #{tpu_custom_call.1} parent=11 // pred_fallthru
          _
        // Predicated region
        $region45: #{tpu_custom_call.1} parent=11 // pred_check
          %p499 = pneg %p279
        $region46: #{tpu_custom_call.1} parent=11 // pred_check_branch
          %501 = sbr.rel (%p499) target = $region48
        $region47: #{tpu_custom_call.1} parent=11 // pred_region
          %s503 = ssub.s32 2048, 2048
          %504 = vsyncadd [#allocation12], %s503
          %s505 = sshll.u32 [#allocation13], 4
          %s506 = int_to_ptr.vmem [resolvable:$true] %s505
          %511 = dma.hbm_to_vmem [thread:$0]  %s10, 2048, %s506, [#allocation12], 128, 128, 8
        $region48: #{tpu_custom_call.1} parent=11 // pred_fallthru
          _
        // Predicated region
        $region49: #{tpu_custom_call.1} parent=11 // pred_check
          %p512 = pneg %p300
        $region50: #{tpu_custom_call.1} parent=11 // pred_check_branch
          %514 = sbr.rel (%p512) target = $region52
        $region51: #{tpu_custom_call.1} parent=11 // pred_region
          _
        $region52: #{tpu_custom_call.1} parent=11 // pred_fallthru
          _
        // Predicated region
        $region53: #{tpu_custom_call.1} parent=11 // pred_check
          %p515 = pneg %p321
        $region54: #{tpu_custom_call.1} parent=11 // pred_check_branch
          %517 = sbr.rel (%p515) target = $region56
        $region55: #{tpu_custom_call.1} parent=11 // pred_region
          %s519 = ssub.s32 2048, 2048
          %520 = vsyncadd [#allocation15], %s519
          %s521 = sshll.u32 [#allocation14], 4
          %s522 = int_to_ptr.vmem [resolvable:$true] %s521
          %527 = dma.hbm_to_vmem [thread:$0]  %s12, 2048, %s522, [#allocation15], 128, 128, 8
        $region56: #{tpu_custom_call.1} parent=11 // pred_fallthru
          _
        // Predicated region
        $region57: #{tpu_custom_call.1} parent=11 // pred_check
          %p528 = pneg %p342
        $region58: #{tpu_custom_call.1} parent=11 // pred_check_branch
          %530 = sbr.rel (%p528) target = $region60
        $region59: #{tpu_custom_call.1} parent=11 // pred_region
          _
        $region60: #{tpu_custom_call.1} parent=11 // pred_fallthru
          _
      $region12: #{tpu_custom_call.1} parent=5 // pred_fallthru
        _
      %p531 = scmp.lt.s32.totalorder %s38, 2
      // Predicated region
      $region61: #{tpu_custom_call.1} parent=5 // pred_check
        %p532 = pneg %p531
      $region62: #{tpu_custom_call.1} parent=5 // pred_check_branch
        %534 = sbr.rel (%p532) target = $region64
      $region63: #{tpu_custom_call.1} parent=5 // pred_region
        // Predicated region
        $region65: #{tpu_custom_call.1} parent=63 // pred_check
          %p535 = pneg %p58
        $region66: #{tpu_custom_call.1} parent=63 // pred_check_branch
          %537 = sbr.rel (%p535) target = $region68
        $region67: #{tpu_custom_call.1} parent=63 // pred_region
          %s538 = sand.u32 %s48, 1
          %s539 = scalar_lea.sflag [#allocation3], %s538
          %s540 = sand.u32 %s48, 1
          %s541 = smul.addr %s540, 256
          %s542 = scalar_lea.vmem [#allocation2], %s541
          %s543 = smul.u32 32, %s38
          %s545 = ssub.s32 4096, 4096
          %546 = vsyncadd %s539, %s545
          %s547 = smul.addr %s543, 128
          %s548 = scalar_lea.hbm %s0, %s547
          %s549 = sshll.u32 %s542, 4
          %s550 = int_to_ptr.vmem [resolvable:$true] %s549
          %555 = dma.hbm_to_vmem [thread:$0]  %s548, 4096, %s550, %s539, 128, 128, 8
        $region68: #{tpu_custom_call.1} parent=63 // pred_fallthru
          _
        // Predicated region
        $region69: #{tpu_custom_call.1} parent=63 // pred_check
          %p556 = pneg %p84
        $region70: #{tpu_custom_call.1} parent=63 // pred_check_branch
          %558 = sbr.rel (%p556) target = $region72
        $region71: #{tpu_custom_call.1} parent=63 // pred_region
          %s559 = sand.u32 %s38, 1
          %s560 = scalar_lea.sflag [#allocation6], %s559
          %s561 = sand.u32 %s74, 1
          %s562 = smul.addr %s561, 256
          %s563 = scalar_lea.vmem [#allocation5], %s562
          %s564 = smul.u32 32, %s38
          %s566 = ssub.s32 4096, 4096
          %567 = vsyncadd %s560, %s566
          %s568 = smul.addr %s564, 128
          %s569 = scalar_lea.hbm %s1, %s568
          %s570 = sshll.u32 %s563, 4
          %s571 = int_to_ptr.vmem [resolvable:$true] %s570
          %576 = dma.hbm_to_vmem [thread:$0]  %s569, 4096, %s571, %s560, 128, 128, 8
        $region72: #{tpu_custom_call.1} parent=63 // pred_fallthru
          _
      $region64: #{tpu_custom_call.1} parent=5 // pred_fallthru
        _
      %p577 = scmp.le.s32.totalorder 1, %s38
      %p578 = scmp.lt.s32.totalorder %s38, 3
      %p579 = pnand %p577, %p578
      %p580 = pneg %p579
      // Predicated region
      $region73: #{tpu_custom_call.1} parent=5 // pred_check
        _
      $region74: #{tpu_custom_call.1} parent=5 // pred_check_branch
        %582 = sbr.rel (%p579) target = $region76
      $region75: #{tpu_custom_call.1} parent=5 // pred_region
        %s583 = ssub.s32 %s38, 1
        %s584 = sand.u32 %s51, 1
        %s585 = scalar_lea.sflag [#allocation3], %s584
        %s586 = sand.u32 %s51, 1
        %s587 = smul.addr %s586, 256
        %s588 = scalar_lea.vmem [#allocation2], %s587
        // Predicated region
        $region77: #{tpu_custom_call.1} parent=75 // pred_check
          %p589 = pneg %p64
        $region78: #{tpu_custom_call.1} parent=75 // pred_check_branch
          %591 = sbr.rel (%p589) target = $region80
        $region79: #{tpu_custom_call.1} parent=75 // pred_region
          %592 = dma.done %s585, 4096
        $region80: #{tpu_custom_call.1} parent=75 // pred_fallthru
          _
        %s593 = sand.u32 %s43, 1
        %s594 = scalar_lea.sflag [#allocation6], %s593
        %s595 = sand.u32 %s77, 1
        %s596 = smul.addr %s595, 256
        %s597 = scalar_lea.vmem [#allocation5], %s596
        // Predicated region
        $region81: #{tpu_custom_call.1} parent=75 // pred_check
          %p598 = pneg %p90
        $region82: #{tpu_custom_call.1} parent=75 // pred_check_branch
          %600 = sbr.rel (%p598) target = $region84
        $region83: #{tpu_custom_call.1} parent=75 // pred_region
          %601 = dma.done %s594, 4096
        $region84: #{tpu_custom_call.1} parent=75 // pred_fallthru
          _
        // Predicated region
        $region85: #{tpu_custom_call.1} parent=75 // pred_check
          %p602 = pneg %p111
        $region86: #{tpu_custom_call.1} parent=75 // pred_check_branch
          %604 = sbr.rel (%p602) target = $region88
        $region87: #{tpu_custom_call.1} parent=75 // pred_region
          %605 = dma.done [#allocation6], 2048
        $region88: #{tpu_custom_call.1} parent=75 // pred_fallthru
          _
        // Predicated region
        $region89: #{tpu_custom_call.1} parent=75 // pred_check
          %p606 = pneg %p153
        $region90: #{tpu_custom_call.1} parent=75 // pred_check_branch
          %608 = sbr.rel (%p606) target = $region92
        $region91: #{tpu_custom_call.1} parent=75 // pred_region
          %609 = dma.done [#allocation9], 4096
        $region92: #{tpu_custom_call.1} parent=75 // pred_fallthru
          _
        // Predicated region
        $region93: #{tpu_custom_call.1} parent=75 // pred_check
          %p610 = pneg %p195
        $region94: #{tpu_custom_call.1} parent=75 // pred_check_branch
          %612 = sbr.rel (%p610) target = $region96
        $region95: #{tpu_custom_call.1} parent=75 // pred_region
          %613 = dma.done [#allocation9], 2048
        $region96: #{tpu_custom_call.1} parent=75 // pred_fallthru
          _
        // Predicated region
        $region97: #{tpu_custom_call.1} parent=75 // pred_check
          %p614 = pneg %p237
        $region98: #{tpu_custom_call.1} parent=75 // pred_check_branch
          %616 = sbr.rel (%p614) target = $region100
        $region99: #{tpu_custom_call.1} parent=75 // pred_region
          %617 = dma.done [#allocation12], 2048
        $region100: #{tpu_custom_call.1} parent=75 // pred_fallthru
          _
        // Predicated region
        $region101: #{tpu_custom_call.1} parent=75 // pred_check
          %p618 = pneg %p279
        $region102: #{tpu_custom_call.1} parent=75 // pred_check_branch
          %620 = sbr.rel (%p618) target = $region104
        $region103: #{tpu_custom_call.1} parent=75 // pred_region
          %621 = dma.done [#allocation12], 2048
        $region104: #{tpu_custom_call.1} parent=75 // pred_fallthru
          _
        // Predicated region
        $region105: #{tpu_custom_call.1} parent=75 // pred_check
          %p622 = pneg %p321
        $region106: #{tpu_custom_call.1} parent=75 // pred_check_branch
          %624 = sbr.rel (%p622) target = $region108
        $region107: #{tpu_custom_call.1} parent=75 // pred_region
          %625 = dma.done [#allocation15], 2048
        $region108: #{tpu_custom_call.1} parent=75 // pred_fallthru
          _
        %s626 = sand.u32 %s51, 1
        %s627 = scalar_lea.sflag [#allocation3], %s626
        %s628 = sand.u32 %s51, 1
        %s629 = smul.addr %s628, 256
        %s630 = scalar_lea.vmem [#allocation2], %s629
        %p631 = pneg %p64
        %p632 = pneg %p61
        %s633 = sand.u32 %s43, 1
        %s634 = scalar_lea.sflag [#allocation6], %s633
        %s635 = sand.u32 %s77, 1
        %s636 = smul.addr %s635, 256
        %s637 = scalar_lea.vmem [#allocation5], %s636
        %p638 = pneg %p90
        %p639 = pneg %p87
        %p640 = pneg %p111
        %p641 = pneg %p108
        %p642 = pneg %p132
        %p643 = pneg %p129
        %p644 = pneg %p153
        %p645 = pneg %p150
        %p646 = pneg %p174
        %p647 = pneg %p171
        %p648 = pneg %p195
        %p649 = pneg %p192
        %p650 = pneg %p216
        %p651 = pneg %p213
        %p652 = pneg %p237
        %p653 = pneg %p234
        %p654 = pneg %p258
        %p655 = pneg %p255
        %p656 = pneg %p279
        %p657 = pneg %p276
        %p658 = pneg %p300
        %p659 = pneg %p297
        %p660 = pneg %p321
        %p661 = pneg %p318
        %p662 = pneg %p342
        %p663 = pneg %p339
        %p664 = pneg %p368
        %p665 = pneg %p365
        %s666 = sand.u32 %s355, 1
        %s667 = scalar_lea.sflag [#allocation4], %s666
        %s668 = sand.u32 %s355, 1
        %s669 = smul.addr %s668, 256
        %s670 = scalar_lea.vmem [#allocation16], %s669
        %p671 = pneg %p394
        %p672 = pneg %p391
        %s673 = sand.u32 %s43, 1
        %s674 = scalar_lea.sflag [#allocation18], %s673
        %s675 = sand.u32 %s381, 1
        %s676 = smul.addr %s675, 512
        %s677 = scalar_lea.vmem [#allocation17], %s676
        %p678 = pneg %p420
        %p679 = pneg %p417
        %s680 = sand.u32 %s43, 1
        %s681 = scalar_lea.sflag [#allocation18], %s680
        %s682 = sand.u32 %s407, 1
        %s683 = smul.addr %s682, 256
        %s684 = scalar_lea.vmem [#allocation19], %s683
        %s685 = smul.u32 32, %s43
        %s686 = smul.u32 32, %s43
        %s687 = smul.u32 32, %s43
        %s688 = smul.u32 32, %s43
        %s689 = smul.u32 32, %s43
        %v690 = vld [vmem:[%s588] sm:$0xff]
        %v691 = vld [vmem:[%s588 + $0x8] sm:$0xff]
        %v692 = vld [vmem:[%s588 + $0x10] sm:$0xff]
        %v693 = vld [vmem:[%s588 + $0x18] sm:$0xff]
        %v694 = vld [vmem:[%s588 + $0x20] sm:$0xff]
        %v695 = vld [vmem:[%s588 + $0x28] sm:$0xff]
        %v696 = vld [vmem:[%s588 + $0x30] sm:$0xff]
        %v697 = vld [vmem:[%s588 + $0x38] sm:$0xff]
        %v698 = vld [vmem:[%s588 + $0x40] sm:$0xff]
        %v699 = vld [vmem:[%s588 + $0x48] sm:$0xff]
        %v700 = vld [vmem:[%s588 + $0x50] sm:$0xff]
        %v701 = vld [vmem:[%s588 + $0x58] sm:$0xff]
        %v702 = vld [vmem:[%s588 + $0x60] sm:$0xff]
        %v703 = vld [vmem:[%s588 + $0x68] sm:$0xff]
        %v704 = vld [vmem:[%s588 + $0x70] sm:$0xff]
        %v705 = vld [vmem:[%s588 + $0x78] sm:$0xff]
        %v706 = vld [vmem:[%s588 + $0x80] sm:$0xff]
        %v707 = vld [vmem:[%s588 + $0x88] sm:$0xff]
        %v708 = vld [vmem:[%s588 + $0x90] sm:$0xff]
        %v709 = vld [vmem:[%s588 + $0x98] sm:$0xff]
        %v710 = vld [vmem:[%s588 + $0xa0] sm:$0xff]
        %v711 = vld [vmem:[%s588 + $0xa8] sm:$0xff]
        %v712 = vld [vmem:[%s588 + $0xb0] sm:$0xff]
        %v713 = vld [vmem:[%s588 + $0xb8] sm:$0xff]
        %v714 = vld [vmem:[%s588 + $0xc0] sm:$0xff]
        %v715 = vld [vmem:[%s588 + $0xc8] sm:$0xff]
        %v716 = vld [vmem:[%s588 + $0xd0] sm:$0xff]
        %v717 = vld [vmem:[%s588 + $0xd8] sm:$0xff]
        %v718 = vld [vmem:[%s588 + $0xe0] sm:$0xff]
        %v719 = vld [vmem:[%s588 + $0xe8] sm:$0xff]
        %v720 = vld [vmem:[%s588 + $0xf0] sm:$0xff]
        %v721 = vld [vmem:[%s588 + $0xf8] sm:$0xff]
        %v722 = vld [vmem:[#allocation7] sm:$0xff]
        %v723 = vld [vmem:[#allocation7 + $0x8] sm:$0xff]
        %v724 = vld [vmem:[#allocation7 + $0x10] sm:$0xff]
        %v725 = vld [vmem:[#allocation7 + $0x18] sm:$0xff]
        %v726 = vld [vmem:[#allocation7 + $0x20] sm:$0xff]
        %v727 = vld [vmem:[#allocation7 + $0x28] sm:$0xff]
        %v728 = vld [vmem:[#allocation7 + $0x30] sm:$0xff]
        %v729 = vld [vmem:[#allocation7 + $0x38] sm:$0xff]
        %v730 = vld [vmem:[#allocation7 + $0x40] sm:$0xff]
        %v731 = vld [vmem:[#allocation7 + $0x48] sm:$0xff]
        %v732 = vld [vmem:[#allocation7 + $0x50] sm:$0xff]
        %v733 = vld [vmem:[#allocation7 + $0x58] sm:$0xff]
        %v734 = vld [vmem:[#allocation7 + $0x60] sm:$0xff]
        %v735 = vld [vmem:[#allocation7 + $0x68] sm:$0xff]
        %v736 = vld [vmem:[#allocation7 + $0x70] sm:$0xff]
        %v737 = vld [vmem:[#allocation7 + $0x78] sm:$0xff]
        %v738 = vld [vmem:[%s3] sm:$0x1]
        %v740 = vlaneseq
        %v741 = vshrl.u32 %v740, 7
        %v742 = vsub.s32 0, %v741
        %v743 = vrot.slane %v738, %v742
        %745 = vmatprep.subr.mxu0 0.0
        %746 = vmatpush1.msra.mxu0 %v737
        %747 = vmatprep.subr.mxu0 0.0
        %748 = vmatpush1.msra.mxu0 %v736
        %749 = vmatprep.subr.mxu0 0.0
        %750 = vmatpush1.msra.mxu0 %v735
        %751 = vmatprep.subr.mxu0 0.0
        %752 = vmatpush1.msra.mxu0 %v734
        %753 = vmatprep.subr.mxu0 0.0
        %754 = vmatpush1.msra.mxu0 %v733
        %755 = vmatprep.subr.mxu0 0.0
        %756 = vmatpush1.msra.mxu0 %v732
        %757 = vmatprep.subr.mxu0 0.0
        %758 = vmatpush1.msra.mxu0 %v731
        %759 = vmatprep.subr.mxu0 0.0
        %760 = vmatpush1.msra.mxu0 %v730
        %761 = vmatprep.subr.mxu0 0.0
        %762 = vmatpush1.msra.mxu0 %v729
        %763 = vmatprep.subr.mxu0 0.0
        %764 = vmatpush1.msra.mxu0 %v728
        %765 = vmatprep.subr.mxu0 0.0
        %766 = vmatpush1.msra.mxu0 %v727
        %767 = vmatprep.subr.mxu0 0.0
        %768 = vmatpush1.msra.mxu0 %v726
        %769 = vmatprep.subr.mxu0 0.0
        %770 = vmatpush1.msra.mxu0 %v725
        %771 = vmatprep.subr.mxu0 0.0
        %772 = vmatpush1.msra.mxu0 %v724
        %773 = vmatprep.subr.mxu0 0.0
        %774 = vmatpush1.msra.mxu0 %v723
        %775 = vmatprep.subr.mxu0 0.0
        %776 = vmatpush1.msra.mxu0 %v722
        %777 = vmatprep.subr.mxu0 0.0
        %778 = vmatpush2.msra.mxu0 0.0
        %779 = vmatprep.subr.mxu0 0.0
        %780 = vmatpush2.msra.mxu0 0.0
        %781 = vmatprep.subr.mxu0 0.0
        %782 = vmatpush2.msra.mxu0 0.0
        %783 = vmatprep.subr.mxu0 0.0
        %784 = vmatpush2.msra.mxu0 0.0
        %785 = vmatprep.subr.mxu0 0.0
        %786 = vmatpush2.msra.mxu0 0.0
        %787 = vmatprep.subr.mxu0 0.0
        %788 = vmatpush2.msra.mxu0 0.0
        %789 = vmatprep.subr.mxu0 0.0
        %790 = vmatpush2.msra.mxu0 0.0
        %791 = vmatprep.subr.mxu0 0.0
        %792 = vmatpush2.msra.mxu0 0.0
        %793 = vmatprep.subr.mxu0 0.0
        %794 = vmatpush2.msra.mxu0 0.0
        %795 = vmatprep.subr.mxu0 0.0
        %796 = vmatpush2.msra.mxu0 0.0
        %797 = vmatprep.subr.mxu0 0.0
        %798 = vmatpush2.msra.mxu0 0.0
        %799 = vmatprep.subr.mxu0 0.0
        %800 = vmatpush2.msra.mxu0 0.0
        %801 = vmatprep.subr.mxu0 0.0
        %802 = vmatpush2.msra.mxu0 0.0
        %803 = vmatprep.subr.mxu0 0.0
        %804 = vmatpush2.msra.mxu0 0.0
        %805 = vmatprep.subr.mxu0 0.0
        %806 = vmatpush2.msra.mxu0 0.0
        %807 = vmatprep.subr.mxu0 0.0
        %808 = vmatpush2.msra.mxu0 0.0
        %809 = vmatprep.mubr.f32.mxu0 0.0
        %810 = vmatmul.mubr.f32.gmra.mxu0 %v690
        %v811 = vpop.f32.mrf.mxu0
        %v812 = vadd.f32 %v743, %v811
        %v813 = vpop.f32.mrf.mxu0
        %814 = vmatprep.mubr.f32.mxu0 0.0
        %815 = vmatmul.mubr.f32.gmra.mxu0 %v691
        %v816 = vpop.f32.mrf.mxu0
        %v817 = vadd.f32 %v743, %v816
        %v818 = vpop.f32.mrf.mxu0
        %819 = vmatprep.mubr.f32.mxu0 0.0
        %820 = vmatmul.mubr.f32.gmra.mxu0 %v692
        %v821 = vpop.f32.mrf.mxu0
        %v822 = vadd.f32 %v743, %v821
        %v823 = vpop.f32.mrf.mxu0
        %824 = vmatprep.mubr.f32.mxu0 0.0
        %825 = vmatmul.mubr.f32.gmra.mxu0 %v693
        %v826 = vpop.f32.mrf.mxu0
        %v827 = vadd.f32 %v743, %v826
        %v828 = vpop.f32.mrf.mxu0
        %829 = vmatprep.mubr.f32.mxu0 0.0
        %830 = vmatmul.mubr.f32.gmra.mxu0 %v694
        %v831 = vpop.f32.mrf.mxu0
        %v832 = vadd.f32 %v743, %v831
        %v833 = vpop.f32.mrf.mxu0
        %834 = vmatprep.mubr.f32.mxu0 0.0
        %835 = vmatmul.mubr.f32.gmra.mxu0 %v695
        %v836 = vpop.f32.mrf.mxu0
        %v837 = vadd.f32 %v743, %v836
        %v838 = vpop.f32.mrf.mxu0
        %839 = vmatprep.mubr.f32.mxu0 0.0
        %840 = vmatmul.mubr.f32.gmra.mxu0 %v696
        %v841 = vpop.f32.mrf.mxu0
        %v842 = vadd.f32 %v743, %v841
        %v843 = vpop.f32.mrf.mxu0
        %844 = vmatprep.mubr.f32.mxu0 0.0
        %845 = vmatmul.mubr.f32.gmra.mxu0 %v697
        %v846 = vpop.f32.mrf.mxu0
        %v847 = vadd.f32 %v743, %v846
        %v848 = vpop.f32.mrf.mxu0
        %849 = vmatprep.mubr.f32.mxu0 0.0
        %850 = vmatmul.mubr.f32.gmra.mxu0 %v698
        %v851 = vpop.f32.mrf.mxu0
        %v852 = vadd.f32 %v743, %v851
        %v853 = vpop.f32.mrf.mxu0
        %854 = vmatprep.mubr.f32.mxu0 0.0
        %855 = vmatmul.mubr.f32.gmra.mxu0 %v699
        %v856 = vpop.f32.mrf.mxu0
        %v857 = vadd.f32 %v743, %v856
        %v858 = vpop.f32.mrf.mxu0
        %859 = vmatprep.mubr.f32.mxu0 0.0
        %860 = vmatmul.mubr.f32.gmra.mxu0 %v700
        %v861 = vpop.f32.mrf.mxu0
        %v862 = vadd.f32 %v743, %v861
        %v863 = vpop.f32.mrf.mxu0
        %864 = vmatprep.mubr.f32.mxu0 0.0
        %865 = vmatmul.mubr.f32.gmra.mxu0 %v701
        %v866 = vpop.f32.mrf.mxu0
        %v867 = vadd.f32 %v743, %v866
        %v868 = vpop.f32.mrf.mxu0
        %869 = vmatprep.mubr.f32.mxu0 0.0
        %870 = vmatmul.mubr.f32.gmra.mxu0 %v702
        %v871 = vpop.f32.mrf.mxu0
        %v872 = vadd.f32 %v743, %v871
        %v873 = vpop.f32.mrf.mxu0
        %874 = vmatprep.mubr.f32.mxu0 0.0
        %875 = vmatmul.mubr.f32.gmra.mxu0 %v703
        %v876 = vpop.f32.mrf.mxu0
        %v877 = vadd.f32 %v743, %v876
        %v878 = vpop.f32.mrf.mxu0
        %879 = vmatprep.mubr.f32.mxu0 0.0
        %880 = vmatmul.mubr.f32.gmra.mxu0 %v704
        %v881 = vpop.f32.mrf.mxu0
        %v882 = vadd.f32 %v743, %v881
        %v883 = vpop.f32.mrf.mxu0
        %884 = vmatprep.mubr.f32.mxu0 0.0
        %885 = vmatmul.mubr.f32.gmra.mxu0 %v705
        %v886 = vpop.f32.mrf.mxu0
        %v887 = vadd.f32 %v743, %v886
        %v888 = vpop.f32.mrf.mxu0
        %889 = vmatprep.mubr.f32.mxu0 0.0
        %890 = vmatmul.mubr.f32.gmra.mxu0 %v706
        %v891 = vpop.f32.mrf.mxu0
        %v892 = vadd.f32 %v743, %v891
        %v893 = vpop.f32.mrf.mxu0
        %894 = vmatprep.mubr.f32.mxu0 0.0
        %895 = vmatmul.mubr.f32.gmra.mxu0 %v707
        %v896 = vpop.f32.mrf.mxu0
        %v897 = vadd.f32 %v743, %v896
        %v898 = vpop.f32.mrf.mxu0
        %899 = vmatprep.mubr.f32.mxu0 0.0
        %900 = vmatmul.mubr.f32.gmra.mxu0 %v708
        %v901 = vpop.f32.mrf.mxu0
        %v902 = vadd.f32 %v743, %v901
        %v903 = vpop.f32.mrf.mxu0
        %904 = vmatprep.mubr.f32.mxu0 0.0
        %905 = vmatmul.mubr.f32.gmra.mxu0 %v709
        %v906 = vpop.f32.mrf.mxu0
        %v907 = vadd.f32 %v743, %v906
        %v908 = vpop.f32.mrf.mxu0
        %909 = vmatprep.mubr.f32.mxu0 0.0
        %910 = vmatmul.mubr.f32.gmra.mxu0 %v710
        %v911 = vpop.f32.mrf.mxu0
        %v912 = vadd.f32 %v743, %v911
        %v913 = vpop.f32.mrf.mxu0
        %914 = vmatprep.mubr.f32.mxu0 0.0
        %915 = vmatmul.mubr.f32.gmra.mxu0 %v711
        %v916 = vpop.f32.mrf.mxu0
        %v917 = vadd.f32 %v743, %v916
        %v918 = vpop.f32.mrf.mxu0
        %919 = vmatprep.mubr.f32.mxu0 0.0
        %920 = vmatmul.mubr.f32.gmra.mxu0 %v712
        %v921 = vpop.f32.mrf.mxu0
        %v922 = vadd.f32 %v743, %v921
        %v923 = vpop.f32.mrf.mxu0
        %924 = vmatprep.mubr.f32.mxu0 0.0
        %925 = vmatmul.mubr.f32.gmra.mxu0 %v713
        %v926 = vpop.f32.mrf.mxu0
        %v927 = vadd.f32 %v743, %v926
        %v928 = vpop.f32.mrf.mxu0
        %929 = vmatprep.mubr.f32.mxu0 0.0
        %930 = vmatmul.mubr.f32.gmra.mxu0 %v714
        %v931 = vpop.f32.mrf.mxu0
        %v932 = vadd.f32 %v743, %v931
        %v933 = vpop.f32.mrf.mxu0
        %934 = vmatprep.mubr.f32.mxu0 0.0
        %935 = vmatmul.mubr.f32.gmra.mxu0 %v715
        %v936 = vpop.f32.mrf.mxu0
        %v937 = vadd.f32 %v743, %v936
        %v938 = vpop.f32.mrf.mxu0
        %939 = vmatprep.mubr.f32.mxu0 0.0
        %940 = vmatmul.mubr.f32.gmra.mxu0 %v716
        %v941 = vpop.f32.mrf.mxu0
        %v942 = vadd.f32 %v743, %v941
        %v943 = vpop.f32.mrf.mxu0
        %944 = vmatprep.mubr.f32.mxu0 0.0
        %945 = vmatmul.mubr.f32.gmra.mxu0 %v717
        %v946 = vpop.f32.mrf.mxu0
        %v947 = vadd.f32 %v743, %v946
        %v948 = vpop.f32.mrf.mxu0
        %949 = vmatprep.mubr.f32.mxu0 0.0
        %950 = vmatmul.mubr.f32.gmra.mxu0 %v718
        %v951 = vpop.f32.mrf.mxu0
        %v952 = vadd.f32 %v743, %v951
        %v953 = vpop.f32.mrf.mxu0
        %954 = vmatprep.mubr.f32.mxu0 0.0
        %955 = vmatmul.mubr.f32.gmra.mxu0 %v719
        %v956 = vpop.f32.mrf.mxu0
        %v957 = vadd.f32 %v743, %v956
        %v958 = vpop.f32.mrf.mxu0
        %959 = vmatprep.mubr.f32.mxu0 0.0
        %960 = vmatmul.mubr.f32.gmra.mxu0 %v720
        %v961 = vpop.f32.mrf.mxu0
        %v962 = vadd.f32 %v743, %v961
        %v963 = vpop.f32.mrf.mxu0
        %964 = vmatprep.mubr.f32.mxu0 0.0
        %965 = vmatmul.mubr.f32.gmra.mxu0 %v721
        %v966 = vpop.f32.mrf.mxu0
        %v967 = vadd.f32 %v743, %v966
        %v968 = vpop.f32.mrf.mxu0
        %969 = vdwg.mxu0
        %v970 = vmax.f32 %v812, 0.0
        %v971 = vmax.f32 %v817, 0.0
        %v972 = vmax.f32 %v822, 0.0
        %v973 = vmax.f32 %v827, 0.0
        %v974 = vmax.f32 %v832, 0.0
        %v975 = vmax.f32 %v837, 0.0
        %v976 = vmax.f32 %v842, 0.0
        %v977 = vmax.f32 %v847, 0.0
        %v978 = vmax.f32 %v852, 0.0
        %v979 = vmax.f32 %v857, 0.0
        %v980 = vmax.f32 %v862, 0.0
        %v981 = vmax.f32 %v867, 0.0
        %v982 = vmax.f32 %v872, 0.0
        %v983 = vmax.f32 %v877, 0.0
        %v984 = vmax.f32 %v882, 0.0
        %v985 = vmax.f32 %v887, 0.0
        %v986 = vmax.f32 %v892, 0.0
        %v987 = vmax.f32 %v897, 0.0
        %v988 = vmax.f32 %v902, 0.0
        %v989 = vmax.f32 %v907, 0.0
        %v990 = vmax.f32 %v912, 0.0
        %v991 = vmax.f32 %v917, 0.0
        %v992 = vmax.f32 %v922, 0.0
        %v993 = vmax.f32 %v927, 0.0
        %v994 = vmax.f32 %v932, 0.0
        %v995 = vmax.f32 %v937, 0.0
        %v996 = vmax.f32 %v942, 0.0
        %v997 = vmax.f32 %v947, 0.0
        %v998 = vmax.f32 %v952, 0.0
        %v999 = vmax.f32 %v957, 0.0
        %v1000 = vmax.f32 %v962, 0.0
        %v1001 = vmax.f32 %v967, 0.0
        %v1002 = vld [vmem:[#allocation8] sm:$0xff]
        %v1003 = vld [vmem:[#allocation8 + $0x8] sm:$0xff]
        %v1004 = vld [vmem:[#allocation8 + $0x10] sm:$0xff]
        %v1005 = vld [vmem:[#allocation8 + $0x18] sm:$0xff]
        %v1006 = vld [vmem:[#allocation8 + $0x20] sm:$0xff]
        %v1007 = vld [vmem:[#allocation8 + $0x28] sm:$0xff]
        %v1008 = vld [vmem:[#allocation8 + $0x30] sm:$0xff]
        %v1009 = vld [vmem:[#allocation8 + $0x38] sm:$0xff]
        %v1010 = vld [vmem:[#allocation8 + $0x40] sm:$0xff]
        %v1011 = vld [vmem:[#allocation8 + $0x48] sm:$0xff]
        %v1012 = vld [vmem:[#allocation8 + $0x50] sm:$0xff]
        %v1013 = vld [vmem:[#allocation8 + $0x58] sm:$0xff]
        %v1014 = vld [vmem:[#allocation8 + $0x60] sm:$0xff]
        %v1015 = vld [vmem:[#allocation8 + $0x68] sm:$0xff]
        %v1016 = vld [vmem:[#allocation8 + $0x70] sm:$0xff]
        %v1017 = vld [vmem:[#allocation8 + $0x78] sm:$0xff]
        %v1018 = vld [vmem:[#allocation8 + $0x80] sm:$0xff]
        %v1019 = vld [vmem:[#allocation8 + $0x88] sm:$0xff]
        %v1020 = vld [vmem:[#allocation8 + $0x90] sm:$0xff]
        %v1021 = vld [vmem:[#allocation8 + $0x98] sm:$0xff]
        %v1022 = vld [vmem:[#allocation8 + $0xa0] sm:$0xff]
        %v1023 = vld [vmem:[#allocation8 + $0xa8] sm:$0xff]
        %v1024 = vld [vmem:[#allocation8 + $0xb0] sm:$0xff]
        %v1025 = vld [vmem:[#allocation8 + $0xb8] sm:$0xff]
        %v1026 = vld [vmem:[#allocation8 + $0xc0] sm:$0xff]
        %v1027 = vld [vmem:[#allocation8 + $0xc8] sm:$0xff]
        %v1028 = vld [vmem:[#allocation8 + $0xd0] sm:$0xff]
        %v1029 = vld [vmem:[#allocation8 + $0xd8] sm:$0xff]
        %v1030 = vld [vmem:[#allocation8 + $0xe0] sm:$0xff]
        %v1031 = vld [vmem:[#allocation8 + $0xe8] sm:$0xff]
        %v1032 = vld [vmem:[#allocation8 + $0xf0] sm:$0xff]
        %v1033 = vld [vmem:[#allocation8 + $0xf8] sm:$0xff]
        %v1034 = vld [vmem:[%s5] sm:$0x3]
        %v1036 = vlaneseq
        %v1037 = vshrl.u32 %v1036, 7
        %v1038 = vsub.s32 0, %v1037
        %v1039 = vrot.slane %v1034, %v1038
        %v1040 = vlaneseq
        %v1041 = vshrl.u32 %v1040, 7
        %v1042 = vsub.s32 1, %v1041
        %v1043 = vrot.slane %v1034, %v1042
        %1046 = vmatprep.subr.mxu0 %v1033
        %1047 = vmatpush1.msra.mxu0 %v1032
        %1048 = vmatprep.subr.mxu0 %v1031
        %1049 = vmatpush1.msra.mxu0 %v1030
        %1050 = vmatprep.subr.mxu0 %v1029
        %1051 = vmatpush1.msra.mxu0 %v1028
        %1052 = vmatprep.subr.mxu0 %v1027
        %1053 = vmatpush1.msra.mxu0 %v1026
        %1054 = vmatprep.subr.mxu0 %v1025
        %1055 = vmatpush1.msra.mxu0 %v1024
        %1056 = vmatprep.subr.mxu0 %v1023
        %1057 = vmatpush1.msra.mxu0 %v1022
        %1058 = vmatprep.subr.mxu0 %v1021
        %1059 = vmatpush1.msra.mxu0 %v1020
        %1060 = vmatprep.subr.mxu0 %v1019
        %1061 = vmatpush1.msra.mxu0 %v1018
        %1062 = vmatprep.subr.mxu0 %v1017
        %1063 = vmatpush1.msra.mxu0 %v1016
        %1064 = vmatprep.subr.mxu0 %v1015
        %1065 = vmatpush1.msra.mxu0 %v1014
        %1066 = vmatprep.subr.mxu0 %v1013
        %1067 = vmatpush1.msra.mxu0 %v1012
        %1068 = vmatprep.subr.mxu0 %v1011
        %1069 = vmatpush1.msra.mxu0 %v1010
        %1070 = vmatprep.subr.mxu0 %v1009
        %1071 = vmatpush1.msra.mxu0 %v1008
        %1072 = vmatprep.subr.mxu0 %v1007
        %1073 = vmatpush1.msra.mxu0 %v1006
        %1074 = vmatprep.subr.mxu0 %v1005
        %1075 = vmatpush1.msra.mxu0 %v1004
        %1076 = vmatprep.subr.mxu0 %v1003
        %1077 = vmatpush1.msra.mxu0 %v1002
        %1078 = vmatprep.subr.mxu0 0.0
        %1079 = vmatpush2.msra.mxu0 0.0
        %1080 = vmatprep.subr.mxu0 0.0
        %1081 = vmatpush2.msra.mxu0 0.0
        %1082 = vmatprep.subr.mxu0 0.0
        %1083 = vmatpush2.msra.mxu0 0.0
        %1084 = vmatprep.subr.mxu0 0.0
        %1085 = vmatpush2.msra.mxu0 0.0
        %1086 = vmatprep.subr.mxu0 0.0
        %1087 = vmatpush2.msra.mxu0 0.0
        %1088 = vmatprep.subr.mxu0 0.0
        %1089 = vmatpush2.msra.mxu0 0.0
        %1090 = vmatprep.subr.mxu0 0.0
        %1091 = vmatpush2.msra.mxu0 0.0
        %1092 = vmatprep.subr.mxu0 0.0
        %1093 = vmatpush2.msra.mxu0 0.0
        %1094 = vmatprep.subr.mxu0 0.0
        %1095 = vmatpush2.msra.mxu0 0.0
        %1096 = vmatprep.subr.mxu0 0.0
        %1097 = vmatpush2.msra.mxu0 0.0
        %1098 = vmatprep.subr.mxu0 0.0
        %1099 = vmatpush2.msra.mxu0 0.0
        %1100 = vmatprep.subr.mxu0 0.0
        %1101 = vmatpush2.msra.mxu0 0.0
        %1102 = vmatprep.subr.mxu0 0.0
        %1103 = vmatpush2.msra.mxu0 0.0
        %1104 = vmatprep.subr.mxu0 0.0
        %1105 = vmatpush2.msra.mxu0 0.0
        %1106 = vmatprep.subr.mxu0 0.0
        %1107 = vmatpush2.msra.mxu0 0.0
        %1108 = vmatprep.subr.mxu0 0.0
        %1109 = vmatpush2.msra.mxu0 0.0
        %1110 = vmatprep.mubr.f32.mxu0 0.0
        %1111 = vmatmul.mubr.f32.gmra.mxu0 %v970
        %v1112 = vpop.f32.mrf.mxu0
        %v1113 = vadd.f32 %v1039, %v1112
        %v1114 = vpop.f32.mrf.mxu0
        %v1115 = vadd.f32 %v1043, %v1114
        %1116 = vmatprep.mubr.f32.mxu0 0.0
        %1117 = vmatmul.mubr.f32.gmra.mxu0 %v971
        %v1118 = vpop.f32.mrf.mxu0
        %v1119 = vadd.f32 %v1039, %v1118
        %v1120 = vpop.f32.mrf.mxu0
        %v1121 = vadd.f32 %v1043, %v1120
        %1122 = vmatprep.mubr.f32.mxu0 0.0
        %1123 = vmatmul.mubr.f32.gmra.mxu0 %v972
        %v1124 = vpop.f32.mrf.mxu0
        %v1125 = vadd.f32 %v1039, %v1124
        %v1126 = vpop.f32.mrf.mxu0
        %v1127 = vadd.f32 %v1043, %v1126
        %1128 = vmatprep.mubr.f32.mxu0 0.0
        %1129 = vmatmul.mubr.f32.gmra.mxu0 %v973
        %v1130 = vpop.f32.mrf.mxu0
        %v1131 = vadd.f32 %v1039, %v1130
        %v1132 = vpop.f32.mrf.mxu0
        %v1133 = vadd.f32 %v1043, %v1132
        %1134 = vmatprep.mubr.f32.mxu0 0.0
        %1135 = vmatmul.mubr.f32.gmra.mxu0 %v974
        %v1136 = vpop.f32.mrf.mxu0
        %v1137 = vadd.f32 %v1039, %v1136
        %v1138 = vpop.f32.mrf.mxu0
        %v1139 = vadd.f32 %v1043, %v1138
        %1140 = vmatprep.mubr.f32.mxu0 0.0
        %1141 = vmatmul.mubr.f32.gmra.mxu0 %v975
        %v1142 = vpop.f32.mrf.mxu0
        %v1143 = vadd.f32 %v1039, %v1142
        %v1144 = vpop.f32.mrf.mxu0
        %v1145 = vadd.f32 %v1043, %v1144
        %1146 = vmatprep.mubr.f32.mxu0 0.0
        %1147 = vmatmul.mubr.f32.gmra.mxu0 %v976
        %v1148 = vpop.f32.mrf.mxu0
        %v1149 = vadd.f32 %v1039, %v1148
        %v1150 = vpop.f32.mrf.mxu0
        %v1151 = vadd.f32 %v1043, %v1150
        %1152 = vmatprep.mubr.f32.mxu0 0.0
        %1153 = vmatmul.mubr.f32.gmra.mxu0 %v977
        %v1154 = vpop.f32.mrf.mxu0
        %v1155 = vadd.f32 %v1039, %v1154
        %v1156 = vpop.f32.mrf.mxu0
        %v1157 = vadd.f32 %v1043, %v1156
        %1158 = vmatprep.mubr.f32.mxu0 0.0
        %1159 = vmatmul.mubr.f32.gmra.mxu0 %v978
        %v1160 = vpop.f32.mrf.mxu0
        %v1161 = vadd.f32 %v1039, %v1160
        %v1162 = vpop.f32.mrf.mxu0
        %v1163 = vadd.f32 %v1043, %v1162
        %1164 = vmatprep.mubr.f32.mxu0 0.0
        %1165 = vmatmul.mubr.f32.gmra.mxu0 %v979
        %v1166 = vpop.f32.mrf.mxu0
        %v1167 = vadd.f32 %v1039, %v1166
        %v1168 = vpop.f32.mrf.mxu0
        %v1169 = vadd.f32 %v1043, %v1168
        %1170 = vmatprep.mubr.f32.mxu0 0.0
        %1171 = vmatmul.mubr.f32.gmra.mxu0 %v980
        %v1172 = vpop.f32.mrf.mxu0
        %v1173 = vadd.f32 %v1039, %v1172
        %v1174 = vpop.f32.mrf.mxu0
        %v1175 = vadd.f32 %v1043, %v1174
        %1176 = vmatprep.mubr.f32.mxu0 0.0
        %1177 = vmatmul.mubr.f32.gmra.mxu0 %v981
        %v1178 = vpop.f32.mrf.mxu0
        %v1179 = vadd.f32 %v1039, %v1178
        %v1180 = vpop.f32.mrf.mxu0
        %v1181 = vadd.f32 %v1043, %v1180
        %1182 = vmatprep.mubr.f32.mxu0 0.0
        %1183 = vmatmul.mubr.f32.gmra.mxu0 %v982
        %v1184 = vpop.f32.mrf.mxu0
        %v1185 = vadd.f32 %v1039, %v1184
        %v1186 = vpop.f32.mrf.mxu0
        %v1187 = vadd.f32 %v1043, %v1186
        %1188 = vmatprep.mubr.f32.mxu0 0.0
        %1189 = vmatmul.mubr.f32.gmra.mxu0 %v983
        %v1190 = vpop.f32.mrf.mxu0
        %v1191 = vadd.f32 %v1039, %v1190
        %v1192 = vpop.f32.mrf.mxu0
        %v1193 = vadd.f32 %v1043, %v1192
        %1194 = vmatprep.mubr.f32.mxu0 0.0
        %1195 = vmatmul.mubr.f32.gmra.mxu0 %v984
        %v1196 = vpop.f32.mrf.mxu0
        %v1197 = vadd.f32 %v1039, %v1196
        %v1198 = vpop.f32.mrf.mxu0
        %v1199 = vadd.f32 %v1043, %v1198
        %1200 = vmatprep.mubr.f32.mxu0 0.0
        %1201 = vmatmul.mubr.f32.gmra.mxu0 %v985
        %v1202 = vpop.f32.mrf.mxu0
        %v1203 = vadd.f32 %v1039, %v1202
        %v1204 = vpop.f32.mrf.mxu0
        %v1205 = vadd.f32 %v1043, %v1204
        %1206 = vmatprep.mubr.f32.mxu0 0.0
        %1207 = vmatmul.mubr.f32.gmra.mxu0 %v986
        %v1208 = vpop.f32.mrf.mxu0
        %v1209 = vadd.f32 %v1039, %v1208
        %v1210 = vpop.f32.mrf.mxu0
        %v1211 = vadd.f32 %v1043, %v1210
        %1212 = vmatprep.mubr.f32.mxu0 0.0
        %1213 = vmatmul.mubr.f32.gmra.mxu0 %v987
        %v1214 = vpop.f32.mrf.mxu0
        %v1215 = vadd.f32 %v1039, %v1214
        %v1216 = vpop.f32.mrf.mxu0
        %v1217 = vadd.f32 %v1043, %v1216
        %1218 = vmatprep.mubr.f32.mxu0 0.0
        %1219 = vmatmul.mubr.f32.gmra.mxu0 %v988
        %v1220 = vpop.f32.mrf.mxu0
        %v1221 = vadd.f32 %v1039, %v1220
        %v1222 = vpop.f32.mrf.mxu0
        %v1223 = vadd.f32 %v1043, %v1222
        %1224 = vmatprep.mubr.f32.mxu0 0.0
        %1225 = vmatmul.mubr.f32.gmra.mxu0 %v989
        %v1226 = vpop.f32.mrf.mxu0
        %v1227 = vadd.f32 %v1039, %v1226
        %v1228 = vpop.f32.mrf.mxu0
        %v1229 = vadd.f32 %v1043, %v1228
        %1230 = vmatprep.mubr.f32.mxu0 0.0
        %1231 = vmatmul.mubr.f32.gmra.mxu0 %v990
        %v1232 = vpop.f32.mrf.mxu0
        %v1233 = vadd.f32 %v1039, %v1232
        %v1234 = vpop.f32.mrf.mxu0
        %v1235 = vadd.f32 %v1043, %v1234
        %1236 = vmatprep.mubr.f32.mxu0 0.0
        %1237 = vmatmul.mubr.f32.gmra.mxu0 %v991
        %v1238 = vpop.f32.mrf.mxu0
        %v1239 = vadd.f32 %v1039, %v1238
        %v1240 = vpop.f32.mrf.mxu0
        %v1241 = vadd.f32 %v1043, %v1240
        %1242 = vmatprep.mubr.f32.mxu0 0.0
        %1243 = vmatmul.mubr.f32.gmra.mxu0 %v992
        %v1244 = vpop.f32.mrf.mxu0
        %v1245 = vadd.f32 %v1039, %v1244
        %v1246 = vpop.f32.mrf.mxu0
        %v1247 = vadd.f32 %v1043, %v1246
        %1248 = vmatprep.mubr.f32.mxu0 0.0
        %1249 = vmatmul.mubr.f32.gmra.mxu0 %v993
        %v1250 = vpop.f32.mrf.mxu0
        %v1251 = vadd.f32 %v1039, %v1250
        %v1252 = vpop.f32.mrf.mxu0
        %v1253 = vadd.f32 %v1043, %v1252
        %1254 = vmatprep.mubr.f32.mxu0 0.0
        %1255 = vmatmul.mubr.f32.gmra.mxu0 %v994
        %v1256 = vpop.f32.mrf.mxu0
        %v1257 = vadd.f32 %v1039, %v1256
        %v1258 = vpop.f32.mrf.mxu0
        %v1259 = vadd.f32 %v1043, %v1258
        %1260 = vmatprep.mubr.f32.mxu0 0.0
        %1261 = vmatmul.mubr.f32.gmra.mxu0 %v995
        %v1262 = vpop.f32.mrf.mxu0
        %v1263 = vadd.f32 %v1039, %v1262
        %v1264 = vpop.f32.mrf.mxu0
        %v1265 = vadd.f32 %v1043, %v1264
        %1266 = vmatprep.mubr.f32.mxu0 0.0
        %1267 = vmatmul.mubr.f32.gmra.mxu0 %v996
        %v1268 = vpop.f32.mrf.mxu0
        %v1269 = vadd.f32 %v1039, %v1268
        %v1270 = vpop.f32.mrf.mxu0
        %v1271 = vadd.f32 %v1043, %v1270
        %1272 = vmatprep.mubr.f32.mxu0 0.0
        %1273 = vmatmul.mubr.f32.gmra.mxu0 %v997
        %v1274 = vpop.f32.mrf.mxu0
        %v1275 = vadd.f32 %v1039, %v1274
        %v1276 = vpop.f32.mrf.mxu0
        %v1277 = vadd.f32 %v1043, %v1276
        %1278 = vmatprep.mubr.f32.mxu0 0.0
        %1279 = vmatmul.mubr.f32.gmra.mxu0 %v998
        %v1280 = vpop.f32.mrf.mxu0
        %v1281 = vadd.f32 %v1039, %v1280
        %v1282 = vpop.f32.mrf.mxu0
        %v1283 = vadd.f32 %v1043, %v1282
        %1284 = vmatprep.mubr.f32.mxu0 0.0
        %1285 = vmatmul.mubr.f32.gmra.mxu0 %v999
        %v1286 = vpop.f32.mrf.mxu0
        %v1287 = vadd.f32 %v1039, %v1286
        %v1288 = vpop.f32.mrf.mxu0
        %v1289 = vadd.f32 %v1043, %v1288
        %1290 = vmatprep.mubr.f32.mxu0 0.0
        %1291 = vmatmul.mubr.f32.gmra.mxu0 %v1000
        %v1292 = vpop.f32.mrf.mxu0
        %v1293 = vadd.f32 %v1039, %v1292
        %v1294 = vpop.f32.mrf.mxu0
        %v1295 = vadd.f32 %v1043, %v1294
        %1296 = vmatprep.mubr.f32.mxu0 0.0
        %1297 = vmatmul.mubr.f32.gmra.mxu0 %v1001
        %v1298 = vpop.f32.mrf.mxu0
        %v1299 = vadd.f32 %v1039, %v1298
        %v1300 = vpop.f32.mrf.mxu0
        %v1301 = vadd.f32 %v1043, %v1300
        %1302 = vdwg.mxu0
        %1303 = vst [vmem:[%s677] sm:$0xff] %v1113
        %1304 = vst [vmem:[%s677 + $0x8] sm:$0xff] %v1115
        %1305 = vst [vmem:[%s677 + $0x10] sm:$0xff] %v1119
        %1306 = vst [vmem:[%s677 + $0x18] sm:$0xff] %v1121
        %1307 = vst [vmem:[%s677 + $0x20] sm:$0xff] %v1125
        %1308 = vst [vmem:[%s677 + $0x28] sm:$0xff] %v1127
        %1309 = vst [vmem:[%s677 + $0x30] sm:$0xff] %v1131
        %1310 = vst [vmem:[%s677 + $0x38] sm:$0xff] %v1133
        %1311 = vst [vmem:[%s677 + $0x40] sm:$0xff] %v1137
        %1312 = vst [vmem:[%s677 + $0x48] sm:$0xff] %v1139
        %1313 = vst [vmem:[%s677 + $0x50] sm:$0xff] %v1143
        %1314 = vst [vmem:[%s677 + $0x58] sm:$0xff] %v1145
        %1315 = vst [vmem:[%s677 + $0x60] sm:$0xff] %v1149
        %1316 = vst [vmem:[%s677 + $0x68] sm:$0xff] %v1151
        %1317 = vst [vmem:[%s677 + $0x70] sm:$0xff] %v1155
        %1318 = vst [vmem:[%s677 + $0x78] sm:$0xff] %v1157
        %1319 = vst [vmem:[%s677 + $0x80] sm:$0xff] %v1161
        %1320 = vst [vmem:[%s677 + $0x88] sm:$0xff] %v1163
        %1321 = vst [vmem:[%s677 + $0x90] sm:$0xff] %v1167
        %1322 = vst [vmem:[%s677 + $0x98] sm:$0xff] %v1169
        %1323 = vst [vmem:[%s677 + $0xa0] sm:$0xff] %v1173
        %1324 = vst [vmem:[%s677 + $0xa8] sm:$0xff] %v1175
        %1325 = vst [vmem:[%s677 + $0xb0] sm:$0xff] %v1179
        %1326 = vst [vmem:[%s677 + $0xb8] sm:$0xff] %v1181
        %1327 = vst [vmem:[%s677 + $0xc0] sm:$0xff] %v1185
        %1328 = vst [vmem:[%s677 + $0xc8] sm:$0xff] %v1187
        %1329 = vst [vmem:[%s677 + $0xd0] sm:$0xff] %v1191
        %1330 = vst [vmem:[%s677 + $0xd8] sm:$0xff] %v1193
        %1331 = vst [vmem:[%s677 + $0xe0] sm:$0xff] %v1197
        %1332 = vst [vmem:[%s677 + $0xe8] sm:$0xff] %v1199
        %1333 = vst [vmem:[%s677 + $0xf0] sm:$0xff] %v1203
        %1334 = vst [vmem:[%s677 + $0xf8] sm:$0xff] %v1205
        %1335 = vst [vmem:[%s677 + $0x100] sm:$0xff] %v1209
        %1336 = vst [vmem:[%s677 + $0x108] sm:$0xff] %v1211
        %1337 = vst [vmem:[%s677 + $0x110] sm:$0xff] %v1215
        %1338 = vst [vmem:[%s677 + $0x118] sm:$0xff] %v1217
        %1339 = vst [vmem:[%s677 + $0x120] sm:$0xff] %v1221
        %1340 = vst [vmem:[%s677 + $0x128] sm:$0xff] %v1223
        %1341 = vst [vmem:[%s677 + $0x130] sm:$0xff] %v1227
        %1342 = vst [vmem:[%s677 + $0x138] sm:$0xff] %v1229
        %1343 = vst [vmem:[%s677 + $0x140] sm:$0xff] %v1233
        %1344 = vst [vmem:[%s677 + $0x148] sm:$0xff] %v1235
        %1345 = vst [vmem:[%s677 + $0x150] sm:$0xff] %v1239
        %1346 = vst [vmem:[%s677 + $0x158] sm:$0xff] %v1241
        %1347 = vst [vmem:[%s677 + $0x160] sm:$0xff] %v1245
        %1348 = vst [vmem:[%s677 + $0x168] sm:$0xff] %v1247
        %1349 = vst [vmem:[%s677 + $0x170] sm:$0xff] %v1251
        %1350 = vst [vmem:[%s677 + $0x178] sm:$0xff] %v1253
        %1351 = vst [vmem:[%s677 + $0x180] sm:$0xff] %v1257
        %1352 = vst [vmem:[%s677 + $0x188] sm:$0xff] %v1259
        %1353 = vst [vmem:[%s677 + $0x190] sm:$0xff] %v1263
        %1354 = vst [vmem:[%s677 + $0x198] sm:$0xff] %v1265
        %1355 = vst [vmem:[%s677 + $0x1a0] sm:$0xff] %v1269
        %1356 = vst [vmem:[%s677 + $0x1a8] sm:$0xff] %v1271
        %1357 = vst [vmem:[%s677 + $0x1b0] sm:$0xff] %v1275
        %1358 = vst [vmem:[%s677 + $0x1b8] sm:$0xff] %v1277
        %1359 = vst [vmem:[%s677 + $0x1c0] sm:$0xff] %v1281
        %1360 = vst [vmem:[%s677 + $0x1c8] sm:$0xff] %v1283
        %1361 = vst [vmem:[%s677 + $0x1d0] sm:$0xff] %v1287
        %1362 = vst [vmem:[%s677 + $0x1d8] sm:$0xff] %v1289
        %1363 = vst [vmem:[%s677 + $0x1e0] sm:$0xff] %v1293
        %1364 = vst [vmem:[%s677 + $0x1e8] sm:$0xff] %v1295
        %1365 = vst [vmem:[%s677 + $0x1f0] sm:$0xff] %v1299
        %1366 = vst [vmem:[%s677 + $0x1f8] sm:$0xff] %v1301
        %v1367 = vld [vmem:[%s597] sm:$0xff]
        %v1368 = vld [vmem:[%s597 + $0x8] sm:$0xff]
        %v1369 = vld [vmem:[%s597 + $0x10] sm:$0xff]
        %v1370 = vld [vmem:[%s597 + $0x18] sm:$0xff]
        %v1371 = vld [vmem:[%s597 + $0x20] sm:$0xff]
        %v1372 = vld [vmem:[%s597 + $0x28] sm:$0xff]
        %v1373 = vld [vmem:[%s597 + $0x30] sm:$0xff]
        %v1374 = vld [vmem:[%s597 + $0x38] sm:$0xff]
        %v1375 = vld [vmem:[%s597 + $0x40] sm:$0xff]
        %v1376 = vld [vmem:[%s597 + $0x48] sm:$0xff]
        %v1377 = vld [vmem:[%s597 + $0x50] sm:$0xff]
        %v1378 = vld [vmem:[%s597 + $0x58] sm:$0xff]
        %v1379 = vld [vmem:[%s597 + $0x60] sm:$0xff]
        %v1380 = vld [vmem:[%s597 + $0x68] sm:$0xff]
        %v1381 = vld [vmem:[%s597 + $0x70] sm:$0xff]
        %v1382 = vld [vmem:[%s597 + $0x78] sm:$0xff]
        %v1383 = vld [vmem:[%s597 + $0x80] sm:$0xff]
        %v1384 = vld [vmem:[%s597 + $0x88] sm:$0xff]
        %v1385 = vld [vmem:[%s597 + $0x90] sm:$0xff]
        %v1386 = vld [vmem:[%s597 + $0x98] sm:$0xff]
        %v1387 = vld [vmem:[%s597 + $0xa0] sm:$0xff]
        %v1388 = vld [vmem:[%s597 + $0xa8] sm:$0xff]
        %v1389 = vld [vmem:[%s597 + $0xb0] sm:$0xff]
        %v1390 = vld [vmem:[%s597 + $0xb8] sm:$0xff]
        %v1391 = vld [vmem:[%s597 + $0xc0] sm:$0xff]
        %v1392 = vld [vmem:[%s597 + $0xc8] sm:$0xff]
        %v1393 = vld [vmem:[%s597 + $0xd0] sm:$0xff]
        %v1394 = vld [vmem:[%s597 + $0xd8] sm:$0xff]
        %v1395 = vld [vmem:[%s597 + $0xe0] sm:$0xff]
        %v1396 = vld [vmem:[%s597 + $0xe8] sm:$0xff]
        %v1397 = vld [vmem:[%s597 + $0xf0] sm:$0xff]
        %v1398 = vld [vmem:[%s597 + $0xf8] sm:$0xff]
        %v1399 = vmul.f32 %v1115, 0.5
        %v1400 = vmul.f32 %v1121, 0.5
        %v1401 = vmul.f32 %v1127, 0.5
        %v1402 = vmul.f32 %v1133, 0.5
        %v1403 = vmul.f32 %v1139, 0.5
        %v1404 = vmul.f32 %v1145, 0.5
        %v1405 = vmul.f32 %v1151, 0.5
        %v1406 = vmul.f32 %v1157, 0.5
        %v1407 = vmul.f32 %v1163, 0.5
        %v1408 = vmul.f32 %v1169, 0.5
        %v1409 = vmul.f32 %v1175, 0.5
        %v1410 = vmul.f32 %v1181, 0.5
        %v1411 = vmul.f32 %v1187, 0.5
        %v1412 = vmul.f32 %v1193, 0.5
        %v1413 = vmul.f32 %v1199, 0.5
        %v1414 = vmul.f32 %v1205, 0.5
        %v1415 = vmul.f32 %v1211, 0.5
        %v1416 = vmul.f32 %v1217, 0.5
        %v1417 = vmul.f32 %v1223, 0.5
        %v1418 = vmul.f32 %v1229, 0.5
        %v1419 = vmul.f32 %v1235, 0.5
        %v1420 = vmul.f32 %v1241, 0.5
        %v1421 = vmul.f32 %v1247, 0.5
        %v1422 = vmul.f32 %v1253, 0.5
        %v1423 = vmul.f32 %v1259, 0.5
        %v1424 = vmul.f32 %v1265, 0.5
        %v1425 = vmul.f32 %v1271, 0.5
        %v1426 = vmul.f32 %v1277, 0.5
        %v1427 = vmul.f32 %v1283, 0.5
        %v1428 = vmul.f32 %v1289, 0.5
        %v1429 = vmul.f32 %v1295, 0.5
        %v1430 = vmul.f32 %v1301, 0.5
        %v1431 = vmul.f32 %v1399, 1.442695
        %v1432 = vpow.pop %v1431
        %v1433 = vmul.f32 %v1400, 1.442695
        %v1434 = vpow.pop %v1433
        %v1435 = vmul.f32 %v1401, 1.442695
        %v1436 = vpow.pop %v1435
        %v1437 = vmul.f32 %v1402, 1.442695
        %v1438 = vpow.pop %v1437
        %v1439 = vmul.f32 %v1403, 1.442695
        %v1440 = vpow.pop %v1439
        %v1441 = vmul.f32 %v1404, 1.442695
        %v1442 = vpow.pop %v1441
        %v1443 = vmul.f32 %v1405, 1.442695
        %v1444 = vpow.pop %v1443
        %v1445 = vmul.f32 %v1406, 1.442695
        %v1446 = vpow.pop %v1445
        %v1447 = vmul.f32 %v1407, 1.442695
        %v1448 = vpow.pop %v1447
        %v1449 = vmul.f32 %v1408, 1.442695
        %v1450 = vpow.pop %v1449
        %v1451 = vmul.f32 %v1409, 1.442695
        %v1452 = vpow.pop %v1451
        %v1453 = vmul.f32 %v1410, 1.442695
        %v1454 = vpow.pop %v1453
        %v1455 = vmul.f32 %v1411, 1.442695
        %v1456 = vpow.pop %v1455
        %v1457 = vmul.f32 %v1412, 1.442695
        %v1458 = vpow.pop %v1457
        %v1459 = vmul.f32 %v1413, 1.442695
        %v1460 = vpow.pop %v1459
        %v1461 = vmul.f32 %v1414, 1.442695
        %v1462 = vpow.pop %v1461
        %v1463 = vmul.f32 %v1415, 1.442695
        %v1464 = vpow.pop %v1463
        %v1465 = vmul.f32 %v1416, 1.442695
        %v1466 = vpow.pop %v1465
        %v1467 = vmul.f32 %v1417, 1.442695
        %v1468 = vpow.pop %v1467
        %v1469 = vmul.f32 %v1418, 1.442695
        %v1470 = vpow.pop %v1469
        %v1471 = vmul.f32 %v1419, 1.442695
        %v1472 = vpow.pop %v1471
        %v1473 = vmul.f32 %v1420, 1.442695
        %v1474 = vpow.pop %v1473
        %v1475 = vmul.f32 %v1421, 1.442695
        %v1476 = vpow.pop %v1475
        %v1477 = vmul.f32 %v1422, 1.442695
        %v1478 = vpow.pop %v1477
        %v1479 = vmul.f32 %v1423, 1.442695
        %v1480 = vpow.pop %v1479
        %v1481 = vmul.f32 %v1424, 1.442695
        %v1482 = vpow.pop %v1481
        %v1483 = vmul.f32 %v1425, 1.442695
        %v1484 = vpow.pop %v1483
        %v1485 = vmul.f32 %v1426, 1.442695
        %v1486 = vpow.pop %v1485
        %v1487 = vmul.f32 %v1427, 1.442695
        %v1488 = vpow.pop %v1487
        %v1489 = vmul.f32 %v1428, 1.442695
        %v1490 = vpow.pop %v1489
        %v1491 = vmul.f32 %v1429, 1.442695
        %v1492 = vpow.pop %v1491
        %v1493 = vmul.f32 %v1430, 1.442695
        %v1494 = vpow.pop %v1493
        %v1495 = vmul.f32 %v1367, %v1432
        %v1496 = vmul.f32 %v1368, %v1434
        %v1497 = vmul.f32 %v1369, %v1436
        %v1498 = vmul.f32 %v1370, %v1438
        %v1499 = vmul.f32 %v1371, %v1440
        %v1500 = vmul.f32 %v1372, %v1442
        %v1501 = vmul.f32 %v1373, %v1444
        %v1502 = vmul.f32 %v1374, %v1446
        %v1503 = vmul.f32 %v1375, %v1448
        %v1504 = vmul.f32 %v1376, %v1450
        %v1505 = vmul.f32 %v1377, %v1452
        %v1506 = vmul.f32 %v1378, %v1454
        %v1507 = vmul.f32 %v1379, %v1456
        %v1508 = vmul.f32 %v1380, %v1458
        %v1509 = vmul.f32 %v1381, %v1460
        %v1510 = vmul.f32 %v1382, %v1462
        %v1511 = vmul.f32 %v1383, %v1464
        %v1512 = vmul.f32 %v1384, %v1466
        %v1513 = vmul.f32 %v1385, %v1468
        %v1514 = vmul.f32 %v1386, %v1470
        %v1515 = vmul.f32 %v1387, %v1472
        %v1516 = vmul.f32 %v1388, %v1474
        %v1517 = vmul.f32 %v1389, %v1476
        %v1518 = vmul.f32 %v1390, %v1478
        %v1519 = vmul.f32 %v1391, %v1480
        %v1520 = vmul.f32 %v1392, %v1482
        %v1521 = vmul.f32 %v1393, %v1484
        %v1522 = vmul.f32 %v1394, %v1486
        %v1523 = vmul.f32 %v1395, %v1488
        %v1524 = vmul.f32 %v1396, %v1490
        %v1525 = vmul.f32 %v1397, %v1492
        %v1526 = vmul.f32 %v1398, %v1494
        %v1527 = vadd.f32 %v1113, %v1495
        %v1528 = vadd.f32 %v1119, %v1496
        %v1529 = vadd.f32 %v1125, %v1497
        %v1530 = vadd.f32 %v1131, %v1498
        %v1531 = vadd.f32 %v1137, %v1499
        %v1532 = vadd.f32 %v1143, %v1500
        %v1533 = vadd.f32 %v1149, %v1501
        %v1534 = vadd.f32 %v1155, %v1502
        %v1535 = vadd.f32 %v1161, %v1503
        %v1536 = vadd.f32 %v1167, %v1504
        %v1537 = vadd.f32 %v1173, %v1505
        %v1538 = vadd.f32 %v1179, %v1506
        %v1539 = vadd.f32 %v1185, %v1507
        %v1540 = vadd.f32 %v1191, %v1508
        %v1541 = vadd.f32 %v1197, %v1509
        %v1542 = vadd.f32 %v1203, %v1510
        %v1543 = vadd.f32 %v1209, %v1511
        %v1544 = vadd.f32 %v1215, %v1512
        %v1545 = vadd.f32 %v1221, %v1513
        %v1546 = vadd.f32 %v1227, %v1514
        %v1547 = vadd.f32 %v1233, %v1515
        %v1548 = vadd.f32 %v1239, %v1516
        %v1549 = vadd.f32 %v1245, %v1517
        %v1550 = vadd.f32 %v1251, %v1518
        %v1551 = vadd.f32 %v1257, %v1519
        %v1552 = vadd.f32 %v1263, %v1520
        %v1553 = vadd.f32 %v1269, %v1521
        %v1554 = vadd.f32 %v1275, %v1522
        %v1555 = vadd.f32 %v1281, %v1523
        %v1556 = vadd.f32 %v1287, %v1524
        %v1557 = vadd.f32 %v1293, %v1525
        %v1558 = vadd.f32 %v1299, %v1526
        %v1559 = vld [vmem:[#allocation13] sm:$0xff]
        %v1560 = vld [vmem:[#allocation13 + $0x8] sm:$0xff]
        %v1561 = vld [vmem:[#allocation13 + $0x10] sm:$0xff]
        %v1562 = vld [vmem:[#allocation13 + $0x18] sm:$0xff]
        %v1563 = vld [vmem:[#allocation13 + $0x20] sm:$0xff]
        %v1564 = vld [vmem:[#allocation13 + $0x28] sm:$0xff]
        %v1565 = vld [vmem:[#allocation13 + $0x30] sm:$0xff]
        %v1566 = vld [vmem:[#allocation13 + $0x38] sm:$0xff]
        %v1567 = vld [vmem:[#allocation13 + $0x40] sm:$0xff]
        %v1568 = vld [vmem:[#allocation13 + $0x48] sm:$0xff]
        %v1569 = vld [vmem:[#allocation13 + $0x50] sm:$0xff]
        %v1570 = vld [vmem:[#allocation13 + $0x58] sm:$0xff]
        %v1571 = vld [vmem:[#allocation13 + $0x60] sm:$0xff]
        %v1572 = vld [vmem:[#allocation13 + $0x68] sm:$0xff]
        %v1573 = vld [vmem:[#allocation13 + $0x70] sm:$0xff]
        %v1574 = vld [vmem:[#allocation13 + $0x78] sm:$0xff]
        %v1575 = vld [vmem:[%s11] sm:$0x1]
        %v1577 = vlaneseq
        %v1578 = vshrl.u32 %v1577, 7
        %v1579 = vsub.s32 0, %v1578
        %v1580 = vrot.slane %v1575, %v1579
        %1582 = vmatprep.subr.mxu0 0.0
        %1583 = vmatpush1.msra.mxu0 %v1574
        %1584 = vmatprep.subr.mxu0 0.0
        %1585 = vmatpush1.msra.mxu0 %v1573
        %1586 = vmatprep.subr.mxu0 0.0
        %1587 = vmatpush1.msra.mxu0 %v1572
        %1588 = vmatprep.subr.mxu0 0.0
        %1589 = vmatpush1.msra.mxu0 %v1571
        %1590 = vmatprep.subr.mxu0 0.0
        %1591 = vmatpush1.msra.mxu0 %v1570
        %1592 = vmatprep.subr.mxu0 0.0
        %1593 = vmatpush1.msra.mxu0 %v1569
        %1594 = vmatprep.subr.mxu0 0.0
        %1595 = vmatpush1.msra.mxu0 %v1568
        %1596 = vmatprep.subr.mxu0 0.0
        %1597 = vmatpush1.msra.mxu0 %v1567
        %1598 = vmatprep.subr.mxu0 0.0
        %1599 = vmatpush1.msra.mxu0 %v1566
        %1600 = vmatprep.subr.mxu0 0.0
        %1601 = vmatpush1.msra.mxu0 %v1565
        %1602 = vmatprep.subr.mxu0 0.0
        %1603 = vmatpush1.msra.mxu0 %v1564
        %1604 = vmatprep.subr.mxu0 0.0
        %1605 = vmatpush1.msra.mxu0 %v1563
        %1606 = vmatprep.subr.mxu0 0.0
        %1607 = vmatpush1.msra.mxu0 %v1562
        %1608 = vmatprep.subr.mxu0 0.0
        %1609 = vmatpush1.msra.mxu0 %v1561
        %1610 = vmatprep.subr.mxu0 0.0
        %1611 = vmatpush1.msra.mxu0 %v1560
        %1612 = vmatprep.subr.mxu0 0.0
        %1613 = vmatpush1.msra.mxu0 %v1559
        %1614 = vmatprep.subr.mxu0 0.0
        %1615 = vmatpush2.msra.mxu0 0.0
        %1616 = vmatprep.subr.mxu0 0.0
        %1617 = vmatpush2.msra.mxu0 0.0
        %1618 = vmatprep.subr.mxu0 0.0
        %1619 = vmatpush2.msra.mxu0 0.0
        %1620 = vmatprep.subr.mxu0 0.0
        %1621 = vmatpush2.msra.mxu0 0.0
        %1622 = vmatprep.subr.mxu0 0.0
        %1623 = vmatpush2.msra.mxu0 0.0
        %1624 = vmatprep.subr.mxu0 0.0
        %1625 = vmatpush2.msra.mxu0 0.0
        %1626 = vmatprep.subr.mxu0 0.0
        %1627 = vmatpush2.msra.mxu0 0.0
        %1628 = vmatprep.subr.mxu0 0.0
        %1629 = vmatpush2.msra.mxu0 0.0
        %1630 = vmatprep.subr.mxu0 0.0
        %1631 = vmatpush2.msra.mxu0 0.0
        %1632 = vmatprep.subr.mxu0 0.0
        %1633 = vmatpush2.msra.mxu0 0.0
        %1634 = vmatprep.subr.mxu0 0.0
        %1635 = vmatpush2.msra.mxu0 0.0
        %1636 = vmatprep.subr.mxu0 0.0
        %1637 = vmatpush2.msra.mxu0 0.0
        %1638 = vmatprep.subr.mxu0 0.0
        %1639 = vmatpush2.msra.mxu0 0.0
        %1640 = vmatprep.subr.mxu0 0.0
        %1641 = vmatpush2.msra.mxu0 0.0
        %1642 = vmatprep.subr.mxu0 0.0
        %1643 = vmatpush2.msra.mxu0 0.0
        %1644 = vmatprep.subr.mxu0 0.0
        %1645 = vmatpush2.msra.mxu0 0.0
        %1646 = vmatprep.mubr.f32.mxu0 0.0
        %1647 = vmatmul.mubr.f32.gmra.mxu0 %v1527
        %v1648 = vpop.f32.mrf.mxu0
        %v1649 = vadd.f32 %v1580, %v1648
        %v1650 = vpop.f32.mrf.mxu0
        %1651 = vmatprep.mubr.f32.mxu0 0.0
        %1652 = vmatmul.mubr.f32.gmra.mxu0 %v1528
        %v1653 = vpop.f32.mrf.mxu0
        %v1654 = vadd.f32 %v1580, %v1653
        %v1655 = vpop.f32.mrf.mxu0
        %1656 = vmatprep.mubr.f32.mxu0 0.0
        %1657 = vmatmul.mubr.f32.gmra.mxu0 %v1529
        %v1658 = vpop.f32.mrf.mxu0
        %v1659 = vadd.f32 %v1580, %v1658
        %v1660 = vpop.f32.mrf.mxu0
        %1661 = vmatprep.mubr.f32.mxu0 0.0
        %1662 = vmatmul.mubr.f32.gmra.mxu0 %v1530
        %v1663 = vpop.f32.mrf.mxu0
        %v1664 = vadd.f32 %v1580, %v1663
        %v1665 = vpop.f32.mrf.mxu0
        %1666 = vmatprep.mubr.f32.mxu0 0.0
        %1667 = vmatmul.mubr.f32.gmra.mxu0 %v1531
        %v1668 = vpop.f32.mrf.mxu0
        %v1669 = vadd.f32 %v1580, %v1668
        %v1670 = vpop.f32.mrf.mxu0
        %1671 = vmatprep.mubr.f32.mxu0 0.0
        %1672 = vmatmul.mubr.f32.gmra.mxu0 %v1532
        %v1673 = vpop.f32.mrf.mxu0
        %v1674 = vadd.f32 %v1580, %v1673
        %v1675 = vpop.f32.mrf.mxu0
        %1676 = vmatprep.mubr.f32.mxu0 0.0
        %1677 = vmatmul.mubr.f32.gmra.mxu0 %v1533
        %v1678 = vpop.f32.mrf.mxu0
        %v1679 = vadd.f32 %v1580, %v1678
        %v1680 = vpop.f32.mrf.mxu0
        %1681 = vmatprep.mubr.f32.mxu0 0.0
        %1682 = vmatmul.mubr.f32.gmra.mxu0 %v1534
        %v1683 = vpop.f32.mrf.mxu0
        %v1684 = vadd.f32 %v1580, %v1683
        %v1685 = vpop.f32.mrf.mxu0
        %1686 = vmatprep.mubr.f32.mxu0 0.0
        %1687 = vmatmul.mubr.f32.gmra.mxu0 %v1535
        %v1688 = vpop.f32.mrf.mxu0
        %v1689 = vadd.f32 %v1580, %v1688
        %v1690 = vpop.f32.mrf.mxu0
        %1691 = vmatprep.mubr.f32.mxu0 0.0
        %1692 = vmatmul.mubr.f32.gmra.mxu0 %v1536
        %v1693 = vpop.f32.mrf.mxu0
        %v1694 = vadd.f32 %v1580, %v1693
        %v1695 = vpop.f32.mrf.mxu0
        %1696 = vmatprep.mubr.f32.mxu0 0.0
        %1697 = vmatmul.mubr.f32.gmra.mxu0 %v1537
        %v1698 = vpop.f32.mrf.mxu0
        %v1699 = vadd.f32 %v1580, %v1698
        %v1700 = vpop.f32.mrf.mxu0
        %1701 = vmatprep.mubr.f32.mxu0 0.0
        %1702 = vmatmul.mubr.f32.gmra.mxu0 %v1538
        %v1703 = vpop.f32.mrf.mxu0
        %v1704 = vadd.f32 %v1580, %v1703
        %v1705 = vpop.f32.mrf.mxu0
        %1706 = vmatprep.mubr.f32.mxu0 0.0
        %1707 = vmatmul.mubr.f32.gmra.mxu0 %v1539
        %v1708 = vpop.f32.mrf.mxu0
        %v1709 = vadd.f32 %v1580, %v1708
        %v1710 = vpop.f32.mrf.mxu0
        %1711 = vmatprep.mubr.f32.mxu0 0.0
        %1712 = vmatmul.mubr.f32.gmra.mxu0 %v1540
        %v1713 = vpop.f32.mrf.mxu0
        %v1714 = vadd.f32 %v1580, %v1713
        %v1715 = vpop.f32.mrf.mxu0
        %1716 = vmatprep.mubr.f32.mxu0 0.0
        %1717 = vmatmul.mubr.f32.gmra.mxu0 %v1541
        %v1718 = vpop.f32.mrf.mxu0
        %v1719 = vadd.f32 %v1580, %v1718
        %v1720 = vpop.f32.mrf.mxu0
        %1721 = vmatprep.mubr.f32.mxu0 0.0
        %1722 = vmatmul.mubr.f32.gmra.mxu0 %v1542
        %v1723 = vpop.f32.mrf.mxu0
        %v1724 = vadd.f32 %v1580, %v1723
        %v1725 = vpop.f32.mrf.mxu0
        %1726 = vmatprep.mubr.f32.mxu0 0.0
        %1727 = vmatmul.mubr.f32.gmra.mxu0 %v1543
        %v1728 = vpop.f32.mrf.mxu0
        %v1729 = vadd.f32 %v1580, %v1728
        %v1730 = vpop.f32.mrf.mxu0
        %1731 = vmatprep.mubr.f32.mxu0 0.0
        %1732 = vmatmul.mubr.f32.gmra.mxu0 %v1544
        %v1733 = vpop.f32.mrf.mxu0
        %v1734 = vadd.f32 %v1580, %v1733
        %v1735 = vpop.f32.mrf.mxu0
        %1736 = vmatprep.mubr.f32.mxu0 0.0
        %1737 = vmatmul.mubr.f32.gmra.mxu0 %v1545
        %v1738 = vpop.f32.mrf.mxu0
        %v1739 = vadd.f32 %v1580, %v1738
        %v1740 = vpop.f32.mrf.mxu0
        %1741 = vmatprep.mubr.f32.mxu0 0.0
        %1742 = vmatmul.mubr.f32.gmra.mxu0 %v1546
        %v1743 = vpop.f32.mrf.mxu0
        %v1744 = vadd.f32 %v1580, %v1743
        %v1745 = vpop.f32.mrf.mxu0
        %1746 = vmatprep.mubr.f32.mxu0 0.0
        %1747 = vmatmul.mubr.f32.gmra.mxu0 %v1547
        %v1748 = vpop.f32.mrf.mxu0
        %v1749 = vadd.f32 %v1580, %v1748
        %v1750 = vpop.f32.mrf.mxu0
        %1751 = vmatprep.mubr.f32.mxu0 0.0
        %1752 = vmatmul.mubr.f32.gmra.mxu0 %v1548
        %v1753 = vpop.f32.mrf.mxu0
        %v1754 = vadd.f32 %v1580, %v1753
        %v1755 = vpop.f32.mrf.mxu0
        %1756 = vmatprep.mubr.f32.mxu0 0.0
        %1757 = vmatmul.mubr.f32.gmra.mxu0 %v1549
        %v1758 = vpop.f32.mrf.mxu0
        %v1759 = vadd.f32 %v1580, %v1758
        %v1760 = vpop.f32.mrf.mxu0
        %1761 = vmatprep.mubr.f32.mxu0 0.0
        %1762 = vmatmul.mubr.f32.gmra.mxu0 %v1550
        %v1763 = vpop.f32.mrf.mxu0
        %v1764 = vadd.f32 %v1580, %v1763
        %v1765 = vpop.f32.mrf.mxu0
        %1766 = vmatprep.mubr.f32.mxu0 0.0
        %1767 = vmatmul.mubr.f32.gmra.mxu0 %v1551
        %v1768 = vpop.f32.mrf.mxu0
        %v1769 = vadd.f32 %v1580, %v1768
        %v1770 = vpop.f32.mrf.mxu0
        %1771 = vmatprep.mubr.f32.mxu0 0.0
        %1772 = vmatmul.mubr.f32.gmra.mxu0 %v1552
        %v1773 = vpop.f32.mrf.mxu0
        %v1774 = vadd.f32 %v1580, %v1773
        %v1775 = vpop.f32.mrf.mxu0
        %1776 = vmatprep.mubr.f32.mxu0 0.0
        %1777 = vmatmul.mubr.f32.gmra.mxu0 %v1553
        %v1778 = vpop.f32.mrf.mxu0
        %v1779 = vadd.f32 %v1580, %v1778
        %v1780 = vpop.f32.mrf.mxu0
        %1781 = vmatprep.mubr.f32.mxu0 0.0
        %1782 = vmatmul.mubr.f32.gmra.mxu0 %v1554
        %v1783 = vpop.f32.mrf.mxu0
        %v1784 = vadd.f32 %v1580, %v1783
        %v1785 = vpop.f32.mrf.mxu0
        %1786 = vmatprep.mubr.f32.mxu0 0.0
        %1787 = vmatmul.mubr.f32.gmra.mxu0 %v1555
        %v1788 = vpop.f32.mrf.mxu0
        %v1789 = vadd.f32 %v1580, %v1788
        %v1790 = vpop.f32.mrf.mxu0
        %1791 = vmatprep.mubr.f32.mxu0 0.0
        %1792 = vmatmul.mubr.f32.gmra.mxu0 %v1556
        %v1793 = vpop.f32.mrf.mxu0
        %v1794 = vadd.f32 %v1580, %v1793
        %v1795 = vpop.f32.mrf.mxu0
        %1796 = vmatprep.mubr.f32.mxu0 0.0
        %1797 = vmatmul.mubr.f32.gmra.mxu0 %v1557
        %v1798 = vpop.f32.mrf.mxu0
        %v1799 = vadd.f32 %v1580, %v1798
        %v1800 = vpop.f32.mrf.mxu0
        %1801 = vmatprep.mubr.f32.mxu0 0.0
        %1802 = vmatmul.mubr.f32.gmra.mxu0 %v1558
        %v1803 = vpop.f32.mrf.mxu0
        %v1804 = vadd.f32 %v1580, %v1803
        %v1805 = vpop.f32.mrf.mxu0
        %1806 = vdwg.mxu0
        %v1807 = vmax.f32 %v1649, 0.0
        %v1808 = vmax.f32 %v1654, 0.0
        %v1809 = vmax.f32 %v1659, 0.0
        %v1810 = vmax.f32 %v1664, 0.0
        %v1811 = vmax.f32 %v1669, 0.0
        %v1812 = vmax.f32 %v1674, 0.0
        %v1813 = vmax.f32 %v1679, 0.0
        %v1814 = vmax.f32 %v1684, 0.0
        %v1815 = vmax.f32 %v1689, 0.0
        %v1816 = vmax.f32 %v1694, 0.0
        %v1817 = vmax.f32 %v1699, 0.0
        %v1818 = vmax.f32 %v1704, 0.0
        %v1819 = vmax.f32 %v1709, 0.0
        %v1820 = vmax.f32 %v1714, 0.0
        %v1821 = vmax.f32 %v1719, 0.0
        %v1822 = vmax.f32 %v1724, 0.0
        %v1823 = vmax.f32 %v1729, 0.0
        %v1824 = vmax.f32 %v1734, 0.0
        %v1825 = vmax.f32 %v1739, 0.0
        %v1826 = vmax.f32 %v1744, 0.0
        %v1827 = vmax.f32 %v1749, 0.0
        %v1828 = vmax.f32 %v1754, 0.0
        %v1829 = vmax.f32 %v1759, 0.0
        %v1830 = vmax.f32 %v1764, 0.0
        %v1831 = vmax.f32 %v1769, 0.0
        %v1832 = vmax.f32 %v1774, 0.0
        %v1833 = vmax.f32 %v1779, 0.0
        %v1834 = vmax.f32 %v1784, 0.0
        %v1835 = vmax.f32 %v1789, 0.0
        %v1836 = vmax.f32 %v1794, 0.0
        %v1837 = vmax.f32 %v1799, 0.0
        %v1838 = vmax.f32 %v1804, 0.0
        %v1839 = vld [vmem:[#allocation14] sm:$0xff]
        %v1840 = vld [vmem:[#allocation14 + $0x8] sm:$0xff]
        %v1841 = vld [vmem:[#allocation14 + $0x10] sm:$0xff]
        %v1842 = vld [vmem:[#allocation14 + $0x18] sm:$0xff]
        %v1843 = vld [vmem:[#allocation14 + $0x20] sm:$0xff]
        %v1844 = vld [vmem:[#allocation14 + $0x28] sm:$0xff]
        %v1845 = vld [vmem:[#allocation14 + $0x30] sm:$0xff]
        %v1846 = vld [vmem:[#allocation14 + $0x38] sm:$0xff]
        %v1847 = vld [vmem:[#allocation14 + $0x40] sm:$0xff]
        %v1848 = vld [vmem:[#allocation14 + $0x48] sm:$0xff]
        %v1849 = vld [vmem:[#allocation14 + $0x50] sm:$0xff]
        %v1850 = vld [vmem:[#allocation14 + $0x58] sm:$0xff]
        %v1851 = vld [vmem:[#allocation14 + $0x60] sm:$0xff]
        %v1852 = vld [vmem:[#allocation14 + $0x68] sm:$0xff]
        %v1853 = vld [vmem:[#allocation14 + $0x70] sm:$0xff]
        %v1854 = vld [vmem:[#allocation14 + $0x78] sm:$0xff]
        %v1855 = vld [vmem:[%s13] sm:$0x1]
        %v1857 = vlaneseq
        %v1858 = vshrl.u32 %v1857, 7
        %v1859 = vsub.s32 0, %v1858
        %v1860 = vrot.slane %v1855, %v1859
        %1862 = vmatprep.subr.mxu0 0.0
        %1863 = vmatpush1.msra.mxu0 %v1854
        %1864 = vmatprep.subr.mxu0 0.0
        %1865 = vmatpush1.msra.mxu0 %v1853
        %1866 = vmatprep.subr.mxu0 0.0
        %1867 = vmatpush1.msra.mxu0 %v1852
        %1868 = vmatprep.subr.mxu0 0.0
        %1869 = vmatpush1.msra.mxu0 %v1851
        %1870 = vmatprep.subr.mxu0 0.0
        %1871 = vmatpush1.msra.mxu0 %v1850
        %1872 = vmatprep.subr.mxu0 0.0
        %1873 = vmatpush1.msra.mxu0 %v1849
        %1874 = vmatprep.subr.mxu0 0.0
        %1875 = vmatpush1.msra.mxu0 %v1848
        %1876 = vmatprep.subr.mxu0 0.0
        %1877 = vmatpush1.msra.mxu0 %v1847
        %1878 = vmatprep.subr.mxu0 0.0
        %1879 = vmatpush1.msra.mxu0 %v1846
        %1880 = vmatprep.subr.mxu0 0.0
        %1881 = vmatpush1.msra.mxu0 %v1845
        %1882 = vmatprep.subr.mxu0 0.0
        %1883 = vmatpush1.msra.mxu0 %v1844
        %1884 = vmatprep.subr.mxu0 0.0
        %1885 = vmatpush1.msra.mxu0 %v1843
        %1886 = vmatprep.subr.mxu0 0.0
        %1887 = vmatpush1.msra.mxu0 %v1842
        %1888 = vmatprep.subr.mxu0 0.0
        %1889 = vmatpush1.msra.mxu0 %v1841
        %1890 = vmatprep.subr.mxu0 0.0
        %1891 = vmatpush1.msra.mxu0 %v1840
        %1892 = vmatprep.subr.mxu0 0.0
        %1893 = vmatpush1.msra.mxu0 %v1839
        %1894 = vmatprep.subr.mxu0 0.0
        %1895 = vmatpush2.msra.mxu0 0.0
        %1896 = vmatprep.subr.mxu0 0.0
        %1897 = vmatpush2.msra.mxu0 0.0
        %1898 = vmatprep.subr.mxu0 0.0
        %1899 = vmatpush2.msra.mxu0 0.0
        %1900 = vmatprep.subr.mxu0 0.0
        %1901 = vmatpush2.msra.mxu0 0.0
        %1902 = vmatprep.subr.mxu0 0.0
        %1903 = vmatpush2.msra.mxu0 0.0
        %1904 = vmatprep.subr.mxu0 0.0
        %1905 = vmatpush2.msra.mxu0 0.0
        %1906 = vmatprep.subr.mxu0 0.0
        %1907 = vmatpush2.msra.mxu0 0.0
        %1908 = vmatprep.subr.mxu0 0.0
        %1909 = vmatpush2.msra.mxu0 0.0
        %1910 = vmatprep.subr.mxu0 0.0
        %1911 = vmatpush2.msra.mxu0 0.0
        %1912 = vmatprep.subr.mxu0 0.0
        %1913 = vmatpush2.msra.mxu0 0.0
        %1914 = vmatprep.subr.mxu0 0.0
        %1915 = vmatpush2.msra.mxu0 0.0
        %1916 = vmatprep.subr.mxu0 0.0
        %1917 = vmatpush2.msra.mxu0 0.0
        %1918 = vmatprep.subr.mxu0 0.0
        %1919 = vmatpush2.msra.mxu0 0.0
        %1920 = vmatprep.subr.mxu0 0.0
        %1921 = vmatpush2.msra.mxu0 0.0
        %1922 = vmatprep.subr.mxu0 0.0
        %1923 = vmatpush2.msra.mxu0 0.0
        %1924 = vmatprep.subr.mxu0 0.0
        %1925 = vmatpush2.msra.mxu0 0.0
        %1926 = vmatprep.mubr.f32.mxu0 0.0
        %1927 = vmatmul.mubr.f32.gmra.mxu0 %v1807
        %v1928 = vpop.f32.mrf.mxu0
        %v1929 = vadd.f32 %v1860, %v1928
        %v1930 = vpop.f32.mrf.mxu0
        %1931 = vmatprep.mubr.f32.mxu0 0.0
        %1932 = vmatmul.mubr.f32.gmra.mxu0 %v1808
        %v1933 = vpop.f32.mrf.mxu0
        %v1934 = vadd.f32 %v1860, %v1933
        %v1935 = vpop.f32.mrf.mxu0
        %1936 = vmatprep.mubr.f32.mxu0 0.0
        %1937 = vmatmul.mubr.f32.gmra.mxu0 %v1809
        %v1938 = vpop.f32.mrf.mxu0
        %v1939 = vadd.f32 %v1860, %v1938
        %v1940 = vpop.f32.mrf.mxu0
        %1941 = vmatprep.mubr.f32.mxu0 0.0
        %1942 = vmatmul.mubr.f32.gmra.mxu0 %v1810
        %v1943 = vpop.f32.mrf.mxu0
        %v1944 = vadd.f32 %v1860, %v1943
        %v1945 = vpop.f32.mrf.mxu0
        %1946 = vmatprep.mubr.f32.mxu0 0.0
        %1947 = vmatmul.mubr.f32.gmra.mxu0 %v1811
        %v1948 = vpop.f32.mrf.mxu0
        %v1949 = vadd.f32 %v1860, %v1948
        %v1950 = vpop.f32.mrf.mxu0
        %1951 = vmatprep.mubr.f32.mxu0 0.0
        %1952 = vmatmul.mubr.f32.gmra.mxu0 %v1812
        %v1953 = vpop.f32.mrf.mxu0
        %v1954 = vadd.f32 %v1860, %v1953
        %v1955 = vpop.f32.mrf.mxu0
        %1956 = vmatprep.mubr.f32.mxu0 0.0
        %1957 = vmatmul.mubr.f32.gmra.mxu0 %v1813
        %v1958 = vpop.f32.mrf.mxu0
        %v1959 = vadd.f32 %v1860, %v1958
        %v1960 = vpop.f32.mrf.mxu0
        %1961 = vmatprep.mubr.f32.mxu0 0.0
        %1962 = vmatmul.mubr.f32.gmra.mxu0 %v1814
        %v1963 = vpop.f32.mrf.mxu0
        %v1964 = vadd.f32 %v1860, %v1963
        %v1965 = vpop.f32.mrf.mxu0
        %1966 = vmatprep.mubr.f32.mxu0 0.0
        %1967 = vmatmul.mubr.f32.gmra.mxu0 %v1815
        %v1968 = vpop.f32.mrf.mxu0
        %v1969 = vadd.f32 %v1860, %v1968
        %v1970 = vpop.f32.mrf.mxu0
        %1971 = vmatprep.mubr.f32.mxu0 0.0
        %1972 = vmatmul.mubr.f32.gmra.mxu0 %v1816
        %v1973 = vpop.f32.mrf.mxu0
        %v1974 = vadd.f32 %v1860, %v1973
        %v1975 = vpop.f32.mrf.mxu0
        %1976 = vmatprep.mubr.f32.mxu0 0.0
        %1977 = vmatmul.mubr.f32.gmra.mxu0 %v1817
        %v1978 = vpop.f32.mrf.mxu0
        %v1979 = vadd.f32 %v1860, %v1978
        %v1980 = vpop.f32.mrf.mxu0
        %1981 = vmatprep.mubr.f32.mxu0 0.0
        %1982 = vmatmul.mubr.f32.gmra.mxu0 %v1818
        %v1983 = vpop.f32.mrf.mxu0
        %v1984 = vadd.f32 %v1860, %v1983
        %v1985 = vpop.f32.mrf.mxu0
        %1986 = vmatprep.mubr.f32.mxu0 0.0
        %1987 = vmatmul.mubr.f32.gmra.mxu0 %v1819
        %v1988 = vpop.f32.mrf.mxu0
        %v1989 = vadd.f32 %v1860, %v1988
        %v1990 = vpop.f32.mrf.mxu0
        %1991 = vmatprep.mubr.f32.mxu0 0.0
        %1992 = vmatmul.mubr.f32.gmra.mxu0 %v1820
        %v1993 = vpop.f32.mrf.mxu0
        %v1994 = vadd.f32 %v1860, %v1993
        %v1995 = vpop.f32.mrf.mxu0
        %1996 = vmatprep.mubr.f32.mxu0 0.0
        %1997 = vmatmul.mubr.f32.gmra.mxu0 %v1821
        %v1998 = vpop.f32.mrf.mxu0
        %v1999 = vadd.f32 %v1860, %v1998
        %v2000 = vpop.f32.mrf.mxu0
        %2001 = vmatprep.mubr.f32.mxu0 0.0
        %2002 = vmatmul.mubr.f32.gmra.mxu0 %v1822
        %v2003 = vpop.f32.mrf.mxu0
        %v2004 = vadd.f32 %v1860, %v2003
        %v2005 = vpop.f32.mrf.mxu0
        %2006 = vmatprep.mubr.f32.mxu0 0.0
        %2007 = vmatmul.mubr.f32.gmra.mxu0 %v1823
        %v2008 = vpop.f32.mrf.mxu0
        %v2009 = vadd.f32 %v1860, %v2008
        %v2010 = vpop.f32.mrf.mxu0
        %2011 = vmatprep.mubr.f32.mxu0 0.0
        %2012 = vmatmul.mubr.f32.gmra.mxu0 %v1824
        %v2013 = vpop.f32.mrf.mxu0
        %v2014 = vadd.f32 %v1860, %v2013
        %v2015 = vpop.f32.mrf.mxu0
        %2016 = vmatprep.mubr.f32.mxu0 0.0
        %2017 = vmatmul.mubr.f32.gmra.mxu0 %v1825
        %v2018 = vpop.f32.mrf.mxu0
        %v2019 = vadd.f32 %v1860, %v2018
        %v2020 = vpop.f32.mrf.mxu0
        %2021 = vmatprep.mubr.f32.mxu0 0.0
        %2022 = vmatmul.mubr.f32.gmra.mxu0 %v1826
        %v2023 = vpop.f32.mrf.mxu0
        %v2024 = vadd.f32 %v1860, %v2023
        %v2025 = vpop.f32.mrf.mxu0
        %2026 = vmatprep.mubr.f32.mxu0 0.0
        %2027 = vmatmul.mubr.f32.gmra.mxu0 %v1827
        %v2028 = vpop.f32.mrf.mxu0
        %v2029 = vadd.f32 %v1860, %v2028
        %v2030 = vpop.f32.mrf.mxu0
        %2031 = vmatprep.mubr.f32.mxu0 0.0
        %2032 = vmatmul.mubr.f32.gmra.mxu0 %v1828
        %v2033 = vpop.f32.mrf.mxu0
        %v2034 = vadd.f32 %v1860, %v2033
        %v2035 = vpop.f32.mrf.mxu0
        %2036 = vmatprep.mubr.f32.mxu0 0.0
        %2037 = vmatmul.mubr.f32.gmra.mxu0 %v1829
        %v2038 = vpop.f32.mrf.mxu0
        %v2039 = vadd.f32 %v1860, %v2038
        %v2040 = vpop.f32.mrf.mxu0
        %2041 = vmatprep.mubr.f32.mxu0 0.0
        %2042 = vmatmul.mubr.f32.gmra.mxu0 %v1830
        %v2043 = vpop.f32.mrf.mxu0
        %v2044 = vadd.f32 %v1860, %v2043
        %v2045 = vpop.f32.mrf.mxu0
        %2046 = vmatprep.mubr.f32.mxu0 0.0
        %2047 = vmatmul.mubr.f32.gmra.mxu0 %v1831
        %v2048 = vpop.f32.mrf.mxu0
        %v2049 = vadd.f32 %v1860, %v2048
        %v2050 = vpop.f32.mrf.mxu0
        %2051 = vmatprep.mubr.f32.mxu0 0.0
        %2052 = vmatmul.mubr.f32.gmra.mxu0 %v1832
        %v2053 = vpop.f32.mrf.mxu0
        %v2054 = vadd.f32 %v1860, %v2053
        %v2055 = vpop.f32.mrf.mxu0
        %2056 = vmatprep.mubr.f32.mxu0 0.0
        %2057 = vmatmul.mubr.f32.gmra.mxu0 %v1833
        %v2058 = vpop.f32.mrf.mxu0
        %v2059 = vadd.f32 %v1860, %v2058
        %v2060 = vpop.f32.mrf.mxu0
        %2061 = vmatprep.mubr.f32.mxu0 0.0
        %2062 = vmatmul.mubr.f32.gmra.mxu0 %v1834
        %v2063 = vpop.f32.mrf.mxu0
        %v2064 = vadd.f32 %v1860, %v2063
        %v2065 = vpop.f32.mrf.mxu0
        %2066 = vmatprep.mubr.f32.mxu0 0.0
        %2067 = vmatmul.mubr.f32.gmra.mxu0 %v1835
        %v2068 = vpop.f32.mrf.mxu0
        %v2069 = vadd.f32 %v1860, %v2068
        %v2070 = vpop.f32.mrf.mxu0
        %2071 = vmatprep.mubr.f32.mxu0 0.0
        %2072 = vmatmul.mubr.f32.gmra.mxu0 %v1836
        %v2073 = vpop.f32.mrf.mxu0
        %v2074 = vadd.f32 %v1860, %v2073
        %v2075 = vpop.f32.mrf.mxu0
        %2076 = vmatprep.mubr.f32.mxu0 0.0
        %2077 = vmatmul.mubr.f32.gmra.mxu0 %v1837
        %v2078 = vpop.f32.mrf.mxu0
        %v2079 = vadd.f32 %v1860, %v2078
        %v2080 = vpop.f32.mrf.mxu0
        %2081 = vmatprep.mubr.f32.mxu0 0.0
        %2082 = vmatmul.mubr.f32.gmra.mxu0 %v1838
        %v2083 = vpop.f32.mrf.mxu0
        %v2084 = vadd.f32 %v1860, %v2083
        %v2085 = vpop.f32.mrf.mxu0
        %2086 = vdwg.mxu0
        %v2087 = vld [vmem:[#allocation10] sm:$0xff]
        %v2088 = vld [vmem:[#allocation10 + $0x8] sm:$0xff]
        %v2089 = vld [vmem:[#allocation10 + $0x10] sm:$0xff]
        %v2090 = vld [vmem:[#allocation10 + $0x18] sm:$0xff]
        %v2091 = vld [vmem:[#allocation10 + $0x20] sm:$0xff]
        %v2092 = vld [vmem:[#allocation10 + $0x28] sm:$0xff]
        %v2093 = vld [vmem:[#allocation10 + $0x30] sm:$0xff]
        %v2094 = vld [vmem:[#allocation10 + $0x38] sm:$0xff]
        %v2095 = vld [vmem:[#allocation10 + $0x40] sm:$0xff]
        %v2096 = vld [vmem:[#allocation10 + $0x48] sm:$0xff]
        %v2097 = vld [vmem:[#allocation10 + $0x50] sm:$0xff]
        %v2098 = vld [vmem:[#allocation10 + $0x58] sm:$0xff]
        %v2099 = vld [vmem:[#allocation10 + $0x60] sm:$0xff]
        %v2100 = vld [vmem:[#allocation10 + $0x68] sm:$0xff]
        %v2101 = vld [vmem:[#allocation10 + $0x70] sm:$0xff]
        %v2102 = vld [vmem:[#allocation10 + $0x78] sm:$0xff]
        %v2103 = vld [vmem:[%s7] sm:$0x1]
        %v2105 = vlaneseq
        %v2106 = vshrl.u32 %v2105, 7
        %v2107 = vsub.s32 0, %v2106
        %v2108 = vrot.slane %v2103, %v2107
        %2110 = vmatprep.subr.mxu0 0.0
        %2111 = vmatpush1.msra.mxu0 %v2102
        %2112 = vmatprep.subr.mxu0 0.0
        %2113 = vmatpush1.msra.mxu0 %v2101
        %2114 = vmatprep.subr.mxu0 0.0
        %2115 = vmatpush1.msra.mxu0 %v2100
        %2116 = vmatprep.subr.mxu0 0.0
        %2117 = vmatpush1.msra.mxu0 %v2099
        %2118 = vmatprep.subr.mxu0 0.0
        %2119 = vmatpush1.msra.mxu0 %v2098
        %2120 = vmatprep.subr.mxu0 0.0
        %2121 = vmatpush1.msra.mxu0 %v2097
        %2122 = vmatprep.subr.mxu0 0.0
        %2123 = vmatpush1.msra.mxu0 %v2096
        %2124 = vmatprep.subr.mxu0 0.0
        %2125 = vmatpush1.msra.mxu0 %v2095
        %2126 = vmatprep.subr.mxu0 0.0
        %2127 = vmatpush1.msra.mxu0 %v2094
        %2128 = vmatprep.subr.mxu0 0.0
        %2129 = vmatpush1.msra.mxu0 %v2093
        %2130 = vmatprep.subr.mxu0 0.0
        %2131 = vmatpush1.msra.mxu0 %v2092
        %2132 = vmatprep.subr.mxu0 0.0
        %2133 = vmatpush1.msra.mxu0 %v2091
        %2134 = vmatprep.subr.mxu0 0.0
        %2135 = vmatpush1.msra.mxu0 %v2090
        %2136 = vmatprep.subr.mxu0 0.0
        %2137 = vmatpush1.msra.mxu0 %v2089
        %2138 = vmatprep.subr.mxu0 0.0
        %2139 = vmatpush1.msra.mxu0 %v2088
        %2140 = vmatprep.subr.mxu0 0.0
        %2141 = vmatpush1.msra.mxu0 %v2087
        %2142 = vmatprep.subr.mxu0 0.0
        %2143 = vmatpush2.msra.mxu0 0.0
        %2144 = vmatprep.subr.mxu0 0.0
        %2145 = vmatpush2.msra.mxu0 0.0
        %2146 = vmatprep.subr.mxu0 0.0
        %2147 = vmatpush2.msra.mxu0 0.0
        %2148 = vmatprep.subr.mxu0 0.0
        %2149 = vmatpush2.msra.mxu0 0.0
        %2150 = vmatprep.subr.mxu0 0.0
        %2151 = vmatpush2.msra.mxu0 0.0
        %2152 = vmatprep.subr.mxu0 0.0
        %2153 = vmatpush2.msra.mxu0 0.0
        %2154 = vmatprep.subr.mxu0 0.0
        %2155 = vmatpush2.msra.mxu0 0.0
        %2156 = vmatprep.subr.mxu0 0.0
        %2157 = vmatpush2.msra.mxu0 0.0
        %2158 = vmatprep.subr.mxu0 0.0
        %2159 = vmatpush2.msra.mxu0 0.0
        %2160 = vmatprep.subr.mxu0 0.0
        %2161 = vmatpush2.msra.mxu0 0.0
        %2162 = vmatprep.subr.mxu0 0.0
        %2163 = vmatpush2.msra.mxu0 0.0
        %2164 = vmatprep.subr.mxu0 0.0
        %2165 = vmatpush2.msra.mxu0 0.0
        %2166 = vmatprep.subr.mxu0 0.0
        %2167 = vmatpush2.msra.mxu0 0.0
        %2168 = vmatprep.subr.mxu0 0.0
        %2169 = vmatpush2.msra.mxu0 0.0
        %2170 = vmatprep.subr.mxu0 0.0
        %2171 = vmatpush2.msra.mxu0 0.0
        %2172 = vmatprep.subr.mxu0 0.0
        %2173 = vmatpush2.msra.mxu0 0.0
        %2174 = vmatprep.mubr.f32.mxu0 0.0
        %2175 = vmatmul.mubr.f32.gmra.mxu0 %v1527
        %v2176 = vpop.f32.mrf.mxu0
        %v2177 = vadd.f32 %v2108, %v2176
        %v2178 = vpop.f32.mrf.mxu0
        %2179 = vmatprep.mubr.f32.mxu0 0.0
        %2180 = vmatmul.mubr.f32.gmra.mxu0 %v1528
        %v2181 = vpop.f32.mrf.mxu0
        %v2182 = vadd.f32 %v2108, %v2181
        %v2183 = vpop.f32.mrf.mxu0
        %2184 = vmatprep.mubr.f32.mxu0 0.0
        %2185 = vmatmul.mubr.f32.gmra.mxu0 %v1529
        %v2186 = vpop.f32.mrf.mxu0
        %v2187 = vadd.f32 %v2108, %v2186
        %v2188 = vpop.f32.mrf.mxu0
        %2189 = vmatprep.mubr.f32.mxu0 0.0
        %2190 = vmatmul.mubr.f32.gmra.mxu0 %v1530
        %v2191 = vpop.f32.mrf.mxu0
        %v2192 = vadd.f32 %v2108, %v2191
        %v2193 = vpop.f32.mrf.mxu0
        %2194 = vmatprep.mubr.f32.mxu0 0.0
        %2195 = vmatmul.mubr.f32.gmra.mxu0 %v1531
        %v2196 = vpop.f32.mrf.mxu0
        %v2197 = vadd.f32 %v2108, %v2196
        %v2198 = vpop.f32.mrf.mxu0
        %2199 = vmatprep.mubr.f32.mxu0 0.0
        %2200 = vmatmul.mubr.f32.gmra.mxu0 %v1532
        %v2201 = vpop.f32.mrf.mxu0
        %v2202 = vadd.f32 %v2108, %v2201
        %v2203 = vpop.f32.mrf.mxu0
        %2204 = vmatprep.mubr.f32.mxu0 0.0
        %2205 = vmatmul.mubr.f32.gmra.mxu0 %v1533
        %v2206 = vpop.f32.mrf.mxu0
        %v2207 = vadd.f32 %v2108, %v2206
        %v2208 = vpop.f32.mrf.mxu0
        %2209 = vmatprep.mubr.f32.mxu0 0.0
        %2210 = vmatmul.mubr.f32.gmra.mxu0 %v1534
        %v2211 = vpop.f32.mrf.mxu0
        %v2212 = vadd.f32 %v2108, %v2211
        %v2213 = vpop.f32.mrf.mxu0
        %2214 = vmatprep.mubr.f32.mxu0 0.0
        %2215 = vmatmul.mubr.f32.gmra.mxu0 %v1535
        %v2216 = vpop.f32.mrf.mxu0
        %v2217 = vadd.f32 %v2108, %v2216
        %v2218 = vpop.f32.mrf.mxu0
        %2219 = vmatprep.mubr.f32.mxu0 0.0
        %2220 = vmatmul.mubr.f32.gmra.mxu0 %v1536
        %v2221 = vpop.f32.mrf.mxu0
        %v2222 = vadd.f32 %v2108, %v2221
        %v2223 = vpop.f32.mrf.mxu0
        %2224 = vmatprep.mubr.f32.mxu0 0.0
        %2225 = vmatmul.mubr.f32.gmra.mxu0 %v1537
        %v2226 = vpop.f32.mrf.mxu0
        %v2227 = vadd.f32 %v2108, %v2226
        %v2228 = vpop.f32.mrf.mxu0
        %2229 = vmatprep.mubr.f32.mxu0 0.0
        %2230 = vmatmul.mubr.f32.gmra.mxu0 %v1538
        %v2231 = vpop.f32.mrf.mxu0
        %v2232 = vadd.f32 %v2108, %v2231
        %v2233 = vpop.f32.mrf.mxu0
        %2234 = vmatprep.mubr.f32.mxu0 0.0
        %2235 = vmatmul.mubr.f32.gmra.mxu0 %v1539
        %v2236 = vpop.f32.mrf.mxu0
        %v2237 = vadd.f32 %v2108, %v2236
        %v2238 = vpop.f32.mrf.mxu0
        %2239 = vmatprep.mubr.f32.mxu0 0.0
        %2240 = vmatmul.mubr.f32.gmra.mxu0 %v1540
        %v2241 = vpop.f32.mrf.mxu0
        %v2242 = vadd.f32 %v2108, %v2241
        %v2243 = vpop.f32.mrf.mxu0
        %2244 = vmatprep.mubr.f32.mxu0 0.0
        %2245 = vmatmul.mubr.f32.gmra.mxu0 %v1541
        %v2246 = vpop.f32.mrf.mxu0
        %v2247 = vadd.f32 %v2108, %v2246
        %v2248 = vpop.f32.mrf.mxu0
        %2249 = vmatprep.mubr.f32.mxu0 0.0
        %2250 = vmatmul.mubr.f32.gmra.mxu0 %v1542
        %v2251 = vpop.f32.mrf.mxu0
        %v2252 = vadd.f32 %v2108, %v2251
        %v2253 = vpop.f32.mrf.mxu0
        %2254 = vmatprep.mubr.f32.mxu0 0.0
        %2255 = vmatmul.mubr.f32.gmra.mxu0 %v1543
        %v2256 = vpop.f32.mrf.mxu0
        %v2257 = vadd.f32 %v2108, %v2256
        %v2258 = vpop.f32.mrf.mxu0
        %2259 = vmatprep.mubr.f32.mxu0 0.0
        %2260 = vmatmul.mubr.f32.gmra.mxu0 %v1544
        %v2261 = vpop.f32.mrf.mxu0
        %v2262 = vadd.f32 %v2108, %v2261
        %v2263 = vpop.f32.mrf.mxu0
        %2264 = vmatprep.mubr.f32.mxu0 0.0
        %2265 = vmatmul.mubr.f32.gmra.mxu0 %v1545
        %v2266 = vpop.f32.mrf.mxu0
        %v2267 = vadd.f32 %v2108, %v2266
        %v2268 = vpop.f32.mrf.mxu0
        %2269 = vmatprep.mubr.f32.mxu0 0.0
        %2270 = vmatmul.mubr.f32.gmra.mxu0 %v1546
        %v2271 = vpop.f32.mrf.mxu0
        %v2272 = vadd.f32 %v2108, %v2271
        %v2273 = vpop.f32.mrf.mxu0
        %2274 = vmatprep.mubr.f32.mxu0 0.0
        %2275 = vmatmul.mubr.f32.gmra.mxu0 %v1547
        %v2276 = vpop.f32.mrf.mxu0
        %v2277 = vadd.f32 %v2108, %v2276
        %v2278 = vpop.f32.mrf.mxu0
        %2279 = vmatprep.mubr.f32.mxu0 0.0
        %2280 = vmatmul.mubr.f32.gmra.mxu0 %v1548
        %v2281 = vpop.f32.mrf.mxu0
        %v2282 = vadd.f32 %v2108, %v2281
        %v2283 = vpop.f32.mrf.mxu0
        %2284 = vmatprep.mubr.f32.mxu0 0.0
        %2285 = vmatmul.mubr.f32.gmra.mxu0 %v1549
        %v2286 = vpop.f32.mrf.mxu0
        %v2287 = vadd.f32 %v2108, %v2286
        %v2288 = vpop.f32.mrf.mxu0
        %2289 = vmatprep.mubr.f32.mxu0 0.0
        %2290 = vmatmul.mubr.f32.gmra.mxu0 %v1550
        %v2291 = vpop.f32.mrf.mxu0
        %v2292 = vadd.f32 %v2108, %v2291
        %v2293 = vpop.f32.mrf.mxu0
        %2294 = vmatprep.mubr.f32.mxu0 0.0
        %2295 = vmatmul.mubr.f32.gmra.mxu0 %v1551
        %v2296 = vpop.f32.mrf.mxu0
        %v2297 = vadd.f32 %v2108, %v2296
        %v2298 = vpop.f32.mrf.mxu0
        %2299 = vmatprep.mubr.f32.mxu0 0.0
        %2300 = vmatmul.mubr.f32.gmra.mxu0 %v1552
        %v2301 = vpop.f32.mrf.mxu0
        %v2302 = vadd.f32 %v2108, %v2301
        %v2303 = vpop.f32.mrf.mxu0
        %2304 = vmatprep.mubr.f32.mxu0 0.0
        %2305 = vmatmul.mubr.f32.gmra.mxu0 %v1553
        %v2306 = vpop.f32.mrf.mxu0
        %v2307 = vadd.f32 %v2108, %v2306
        %v2308 = vpop.f32.mrf.mxu0
        %2309 = vmatprep.mubr.f32.mxu0 0.0
        %2310 = vmatmul.mubr.f32.gmra.mxu0 %v1554
        %v2311 = vpop.f32.mrf.mxu0
        %v2312 = vadd.f32 %v2108, %v2311
        %v2313 = vpop.f32.mrf.mxu0
        %2314 = vmatprep.mubr.f32.mxu0 0.0
        %2315 = vmatmul.mubr.f32.gmra.mxu0 %v1555
        %v2316 = vpop.f32.mrf.mxu0
        %v2317 = vadd.f32 %v2108, %v2316
        %v2318 = vpop.f32.mrf.mxu0
        %2319 = vmatprep.mubr.f32.mxu0 0.0
        %2320 = vmatmul.mubr.f32.gmra.mxu0 %v1556
        %v2321 = vpop.f32.mrf.mxu0
        %v2322 = vadd.f32 %v2108, %v2321
        %v2323 = vpop.f32.mrf.mxu0
        %2324 = vmatprep.mubr.f32.mxu0 0.0
        %2325 = vmatmul.mubr.f32.gmra.mxu0 %v1557
        %v2326 = vpop.f32.mrf.mxu0
        %v2327 = vadd.f32 %v2108, %v2326
        %v2328 = vpop.f32.mrf.mxu0
        %2329 = vmatprep.mubr.f32.mxu0 0.0
        %2330 = vmatmul.mubr.f32.gmra.mxu0 %v1558
        %v2331 = vpop.f32.mrf.mxu0
        %v2332 = vadd.f32 %v2108, %v2331
        %v2333 = vpop.f32.mrf.mxu0
        %2334 = vmatprep.mubr.f32.mxu0 0.0
        %2335 = vmatmul.mubr.f32.gmra.mxu0 %v1929
        %v2336 = vpop.f32.mrf.mxu0
        %v2337 = vadd.f32 %v2108, %v2336
        %v2338 = vpop.f32.mrf.mxu0
        %2339 = vmatprep.mubr.f32.mxu0 0.0
        %2340 = vmatmul.mubr.f32.gmra.mxu0 %v1934
        %v2341 = vpop.f32.mrf.mxu0
        %v2342 = vadd.f32 %v2108, %v2341
        %v2343 = vpop.f32.mrf.mxu0
        %2344 = vmatprep.mubr.f32.mxu0 0.0
        %2345 = vmatmul.mubr.f32.gmra.mxu0 %v1939
        %v2346 = vpop.f32.mrf.mxu0
        %v2347 = vadd.f32 %v2108, %v2346
        %v2348 = vpop.f32.mrf.mxu0
        %2349 = vmatprep.mubr.f32.mxu0 0.0
        %2350 = vmatmul.mubr.f32.gmra.mxu0 %v1944
        %v2351 = vpop.f32.mrf.mxu0
        %v2352 = vadd.f32 %v2108, %v2351
        %v2353 = vpop.f32.mrf.mxu0
        %2354 = vmatprep.mubr.f32.mxu0 0.0
        %2355 = vmatmul.mubr.f32.gmra.mxu0 %v1949
        %v2356 = vpop.f32.mrf.mxu0
        %v2357 = vadd.f32 %v2108, %v2356
        %v2358 = vpop.f32.mrf.mxu0
        %2359 = vmatprep.mubr.f32.mxu0 0.0
        %2360 = vmatmul.mubr.f32.gmra.mxu0 %v1954
        %v2361 = vpop.f32.mrf.mxu0
        %v2362 = vadd.f32 %v2108, %v2361
        %v2363 = vpop.f32.mrf.mxu0
        %2364 = vmatprep.mubr.f32.mxu0 0.0
        %2365 = vmatmul.mubr.f32.gmra.mxu0 %v1959
        %v2366 = vpop.f32.mrf.mxu0
        %v2367 = vadd.f32 %v2108, %v2366
        %v2368 = vpop.f32.mrf.mxu0
        %2369 = vmatprep.mubr.f32.mxu0 0.0
        %2370 = vmatmul.mubr.f32.gmra.mxu0 %v1964
        %v2371 = vpop.f32.mrf.mxu0
        %v2372 = vadd.f32 %v2108, %v2371
        %v2373 = vpop.f32.mrf.mxu0
        %2374 = vmatprep.mubr.f32.mxu0 0.0
        %2375 = vmatmul.mubr.f32.gmra.mxu0 %v1969
        %v2376 = vpop.f32.mrf.mxu0
        %v2377 = vadd.f32 %v2108, %v2376
        %v2378 = vpop.f32.mrf.mxu0
        %2379 = vmatprep.mubr.f32.mxu0 0.0
        %2380 = vmatmul.mubr.f32.gmra.mxu0 %v1974
        %v2381 = vpop.f32.mrf.mxu0
        %v2382 = vadd.f32 %v2108, %v2381
        %v2383 = vpop.f32.mrf.mxu0
        %2384 = vmatprep.mubr.f32.mxu0 0.0
        %2385 = vmatmul.mubr.f32.gmra.mxu0 %v1979
        %v2386 = vpop.f32.mrf.mxu0
        %v2387 = vadd.f32 %v2108, %v2386
        %v2388 = vpop.f32.mrf.mxu0
        %2389 = vmatprep.mubr.f32.mxu0 0.0
        %2390 = vmatmul.mubr.f32.gmra.mxu0 %v1984
        %v2391 = vpop.f32.mrf.mxu0
        %v2392 = vadd.f32 %v2108, %v2391
        %v2393 = vpop.f32.mrf.mxu0
        %2394 = vmatprep.mubr.f32.mxu0 0.0
        %2395 = vmatmul.mubr.f32.gmra.mxu0 %v1989
        %v2396 = vpop.f32.mrf.mxu0
        %v2397 = vadd.f32 %v2108, %v2396
        %v2398 = vpop.f32.mrf.mxu0
        %2399 = vmatprep.mubr.f32.mxu0 0.0
        %2400 = vmatmul.mubr.f32.gmra.mxu0 %v1994
        %v2401 = vpop.f32.mrf.mxu0
        %v2402 = vadd.f32 %v2108, %v2401
        %v2403 = vpop.f32.mrf.mxu0
        %2404 = vmatprep.mubr.f32.mxu0 0.0
        %2405 = vmatmul.mubr.f32.gmra.mxu0 %v1999
        %v2406 = vpop.f32.mrf.mxu0
        %v2407 = vadd.f32 %v2108, %v2406
        %v2408 = vpop.f32.mrf.mxu0
        %2409 = vmatprep.mubr.f32.mxu0 0.0
        %2410 = vmatmul.mubr.f32.gmra.mxu0 %v2004
        %v2411 = vpop.f32.mrf.mxu0
        %v2412 = vadd.f32 %v2108, %v2411
        %v2413 = vpop.f32.mrf.mxu0
        %2414 = vmatprep.mubr.f32.mxu0 0.0
        %2415 = vmatmul.mubr.f32.gmra.mxu0 %v2009
        %v2416 = vpop.f32.mrf.mxu0
        %v2417 = vadd.f32 %v2108, %v2416
        %v2418 = vpop.f32.mrf.mxu0
        %2419 = vmatprep.mubr.f32.mxu0 0.0
        %2420 = vmatmul.mubr.f32.gmra.mxu0 %v2014
        %v2421 = vpop.f32.mrf.mxu0
        %v2422 = vadd.f32 %v2108, %v2421
        %v2423 = vpop.f32.mrf.mxu0
        %2424 = vmatprep.mubr.f32.mxu0 0.0
        %2425 = vmatmul.mubr.f32.gmra.mxu0 %v2019
        %v2426 = vpop.f32.mrf.mxu0
        %v2427 = vadd.f32 %v2108, %v2426
        %v2428 = vpop.f32.mrf.mxu0
        %2429 = vmatprep.mubr.f32.mxu0 0.0
        %2430 = vmatmul.mubr.f32.gmra.mxu0 %v2024
        %v2431 = vpop.f32.mrf.mxu0
        %v2432 = vadd.f32 %v2108, %v2431
        %v2433 = vpop.f32.mrf.mxu0
        %2434 = vmatprep.mubr.f32.mxu0 0.0
        %2435 = vmatmul.mubr.f32.gmra.mxu0 %v2029
        %v2436 = vpop.f32.mrf.mxu0
        %v2437 = vadd.f32 %v2108, %v2436
        %v2438 = vpop.f32.mrf.mxu0
        %2439 = vmatprep.mubr.f32.mxu0 0.0
        %2440 = vmatmul.mubr.f32.gmra.mxu0 %v2034
        %v2441 = vpop.f32.mrf.mxu0
        %v2442 = vadd.f32 %v2108, %v2441
        %v2443 = vpop.f32.mrf.mxu0
        %2444 = vmatprep.mubr.f32.mxu0 0.0
        %2445 = vmatmul.mubr.f32.gmra.mxu0 %v2039
        %v2446 = vpop.f32.mrf.mxu0
        %v2447 = vadd.f32 %v2108, %v2446
        %v2448 = vpop.f32.mrf.mxu0
        %2449 = vmatprep.mubr.f32.mxu0 0.0
        %2450 = vmatmul.mubr.f32.gmra.mxu0 %v2044
        %v2451 = vpop.f32.mrf.mxu0
        %v2452 = vadd.f32 %v2108, %v2451
        %v2453 = vpop.f32.mrf.mxu0
        %2454 = vmatprep.mubr.f32.mxu0 0.0
        %2455 = vmatmul.mubr.f32.gmra.mxu0 %v2049
        %v2456 = vpop.f32.mrf.mxu0
        %v2457 = vadd.f32 %v2108, %v2456
        %v2458 = vpop.f32.mrf.mxu0
        %2459 = vmatprep.mubr.f32.mxu0 0.0
        %2460 = vmatmul.mubr.f32.gmra.mxu0 %v2054
        %v2461 = vpop.f32.mrf.mxu0
        %v2462 = vadd.f32 %v2108, %v2461
        %v2463 = vpop.f32.mrf.mxu0
        %2464 = vmatprep.mubr.f32.mxu0 0.0
        %2465 = vmatmul.mubr.f32.gmra.mxu0 %v2059
        %v2466 = vpop.f32.mrf.mxu0
        %v2467 = vadd.f32 %v2108, %v2466
        %v2468 = vpop.f32.mrf.mxu0
        %2469 = vmatprep.mubr.f32.mxu0 0.0
        %2470 = vmatmul.mubr.f32.gmra.mxu0 %v2064
        %v2471 = vpop.f32.mrf.mxu0
        %v2472 = vadd.f32 %v2108, %v2471
        %v2473 = vpop.f32.mrf.mxu0
        %2474 = vmatprep.mubr.f32.mxu0 0.0
        %2475 = vmatmul.mubr.f32.gmra.mxu0 %v2069
        %v2476 = vpop.f32.mrf.mxu0
        %v2477 = vadd.f32 %v2108, %v2476
        %v2478 = vpop.f32.mrf.mxu0
        %2479 = vmatprep.mubr.f32.mxu0 0.0
        %2480 = vmatmul.mubr.f32.gmra.mxu0 %v2074
        %v2481 = vpop.f32.mrf.mxu0
        %v2482 = vadd.f32 %v2108, %v2481
        %v2483 = vpop.f32.mrf.mxu0
        %2484 = vmatprep.mubr.f32.mxu0 0.0
        %2485 = vmatmul.mubr.f32.gmra.mxu0 %v2079
        %v2486 = vpop.f32.mrf.mxu0
        %v2487 = vadd.f32 %v2108, %v2486
        %v2488 = vpop.f32.mrf.mxu0
        %2489 = vmatprep.mubr.f32.mxu0 0.0
        %2490 = vmatmul.mubr.f32.gmra.mxu0 %v2084
        %v2491 = vpop.f32.mrf.mxu0
        %v2492 = vadd.f32 %v2108, %v2491
        %v2493 = vpop.f32.mrf.mxu0
        %2494 = vdwg.mxu0
        %v2495 = vmax.f32 %v2177, 0.0
        %v2496 = vmax.f32 %v2182, 0.0
        %v2497 = vmax.f32 %v2187, 0.0
        %v2498 = vmax.f32 %v2192, 0.0
        %v2499 = vmax.f32 %v2197, 0.0
        %v2500 = vmax.f32 %v2202, 0.0
        %v2501 = vmax.f32 %v2207, 0.0
        %v2502 = vmax.f32 %v2212, 0.0
        %v2503 = vmax.f32 %v2217, 0.0
        %v2504 = vmax.f32 %v2222, 0.0
        %v2505 = vmax.f32 %v2227, 0.0
        %v2506 = vmax.f32 %v2232, 0.0
        %v2507 = vmax.f32 %v2237, 0.0
        %v2508 = vmax.f32 %v2242, 0.0
        %v2509 = vmax.f32 %v2247, 0.0
        %v2510 = vmax.f32 %v2252, 0.0
        %v2511 = vmax.f32 %v2257, 0.0
        %v2512 = vmax.f32 %v2262, 0.0
        %v2513 = vmax.f32 %v2267, 0.0
        %v2514 = vmax.f32 %v2272, 0.0
        %v2515 = vmax.f32 %v2277, 0.0
        %v2516 = vmax.f32 %v2282, 0.0
        %v2517 = vmax.f32 %v2287, 0.0
        %v2518 = vmax.f32 %v2292, 0.0
        %v2519 = vmax.f32 %v2297, 0.0
        %v2520 = vmax.f32 %v2302, 0.0
        %v2521 = vmax.f32 %v2307, 0.0
        %v2522 = vmax.f32 %v2312, 0.0
        %v2523 = vmax.f32 %v2317, 0.0
        %v2524 = vmax.f32 %v2322, 0.0
        %v2525 = vmax.f32 %v2327, 0.0
        %v2526 = vmax.f32 %v2332, 0.0
        %v2527 = vmax.f32 %v2337, 0.0
        %v2528 = vmax.f32 %v2342, 0.0
        %v2529 = vmax.f32 %v2347, 0.0
        %v2530 = vmax.f32 %v2352, 0.0
        %v2531 = vmax.f32 %v2357, 0.0
        %v2532 = vmax.f32 %v2362, 0.0
        %v2533 = vmax.f32 %v2367, 0.0
        %v2534 = vmax.f32 %v2372, 0.0
        %v2535 = vmax.f32 %v2377, 0.0
        %v2536 = vmax.f32 %v2382, 0.0
        %v2537 = vmax.f32 %v2387, 0.0
        %v2538 = vmax.f32 %v2392, 0.0
        %v2539 = vmax.f32 %v2397, 0.0
        %v2540 = vmax.f32 %v2402, 0.0
        %v2541 = vmax.f32 %v2407, 0.0
        %v2542 = vmax.f32 %v2412, 0.0
        %v2543 = vmax.f32 %v2417, 0.0
        %v2544 = vmax.f32 %v2422, 0.0
        %v2545 = vmax.f32 %v2427, 0.0
        %v2546 = vmax.f32 %v2432, 0.0
        %v2547 = vmax.f32 %v2437, 0.0
        %v2548 = vmax.f32 %v2442, 0.0
        %v2549 = vmax.f32 %v2447, 0.0
        %v2550 = vmax.f32 %v2452, 0.0
        %v2551 = vmax.f32 %v2457, 0.0
        %v2552 = vmax.f32 %v2462, 0.0
        %v2553 = vmax.f32 %v2467, 0.0
        %v2554 = vmax.f32 %v2472, 0.0
        %v2555 = vmax.f32 %v2477, 0.0
        %v2556 = vmax.f32 %v2482, 0.0
        %v2557 = vmax.f32 %v2487, 0.0
        %v2558 = vmax.f32 %v2492, 0.0
        %v2559 = vld [vmem:[#allocation11] sm:$0xff]
        %v2560 = vld [vmem:[#allocation11 + $0x8] sm:$0xff]
        %v2561 = vld [vmem:[#allocation11 + $0x10] sm:$0xff]
        %v2562 = vld [vmem:[#allocation11 + $0x18] sm:$0xff]
        %v2563 = vld [vmem:[#allocation11 + $0x20] sm:$0xff]
        %v2564 = vld [vmem:[#allocation11 + $0x28] sm:$0xff]
        %v2565 = vld [vmem:[#allocation11 + $0x30] sm:$0xff]
        %v2566 = vld [vmem:[#allocation11 + $0x38] sm:$0xff]
        %v2567 = vld [vmem:[#allocation11 + $0x40] sm:$0xff]
        %v2568 = vld [vmem:[#allocation11 + $0x48] sm:$0xff]
        %v2569 = vld [vmem:[#allocation11 + $0x50] sm:$0xff]
        %v2570 = vld [vmem:[#allocation11 + $0x58] sm:$0xff]
        %v2571 = vld [vmem:[#allocation11 + $0x60] sm:$0xff]
        %v2572 = vld [vmem:[#allocation11 + $0x68] sm:$0xff]
        %v2573 = vld [vmem:[#allocation11 + $0x70] sm:$0xff]
        %v2574 = vld [vmem:[#allocation11 + $0x78] sm:$0xff]
        %v2575 = vld [vmem:[%s9] sm:$0x1]
        %v2577 = vlaneseq
        %v2578 = vshrl.u32 %v2577, 7
        %v2579 = vsub.s32 0, %v2578
        %v2580 = vrot.slane %v2575, %v2579
        %2582 = vmatprep.subr.mxu0 0.0
        %2583 = vmatpush1.msra.mxu0 %v2574
        %2584 = vmatprep.subr.mxu0 0.0
        %2585 = vmatpush1.msra.mxu0 %v2573
        %2586 = vmatprep.subr.mxu0 0.0
        %2587 = vmatpush1.msra.mxu0 %v2572
        %2588 = vmatprep.subr.mxu0 0.0
        %2589 = vmatpush1.msra.mxu0 %v2571
        %2590 = vmatprep.subr.mxu0 0.0
        %2591 = vmatpush1.msra.mxu0 %v2570
        %2592 = vmatprep.subr.mxu0 0.0
        %2593 = vmatpush1.msra.mxu0 %v2569
        %2594 = vmatprep.subr.mxu0 0.0
        %2595 = vmatpush1.msra.mxu0 %v2568
        %2596 = vmatprep.subr.mxu0 0.0
        %2597 = vmatpush1.msra.mxu0 %v2567
        %2598 = vmatprep.subr.mxu0 0.0
        %2599 = vmatpush1.msra.mxu0 %v2566
        %2600 = vmatprep.subr.mxu0 0.0
        %2601 = vmatpush1.msra.mxu0 %v2565
        %2602 = vmatprep.subr.mxu0 0.0
        %2603 = vmatpush1.msra.mxu0 %v2564
        %2604 = vmatprep.subr.mxu0 0.0
        %2605 = vmatpush1.msra.mxu0 %v2563
        %2606 = vmatprep.subr.mxu0 0.0
        %2607 = vmatpush1.msra.mxu0 %v2562
        %2608 = vmatprep.subr.mxu0 0.0
        %2609 = vmatpush1.msra.mxu0 %v2561
        %2610 = vmatprep.subr.mxu0 0.0
        %2611 = vmatpush1.msra.mxu0 %v2560
        %2612 = vmatprep.subr.mxu0 0.0
        %2613 = vmatpush1.msra.mxu0 %v2559
        %2614 = vmatprep.subr.mxu0 0.0
        %2615 = vmatpush2.msra.mxu0 0.0
        %2616 = vmatprep.subr.mxu0 0.0
        %2617 = vmatpush2.msra.mxu0 0.0
        %2618 = vmatprep.subr.mxu0 0.0
        %2619 = vmatpush2.msra.mxu0 0.0
        %2620 = vmatprep.subr.mxu0 0.0
        %2621 = vmatpush2.msra.mxu0 0.0
        %2622 = vmatprep.subr.mxu0 0.0
        %2623 = vmatpush2.msra.mxu0 0.0
        %2624 = vmatprep.subr.mxu0 0.0
        %2625 = vmatpush2.msra.mxu0 0.0
        %2626 = vmatprep.subr.mxu0 0.0
        %2627 = vmatpush2.msra.mxu0 0.0
        %2628 = vmatprep.subr.mxu0 0.0
        %2629 = vmatpush2.msra.mxu0 0.0
        %2630 = vmatprep.subr.mxu0 0.0
        %2631 = vmatpush2.msra.mxu0 0.0
        %2632 = vmatprep.subr.mxu0 0.0
        %2633 = vmatpush2.msra.mxu0 0.0
        %2634 = vmatprep.subr.mxu0 0.0
        %2635 = vmatpush2.msra.mxu0 0.0
        %2636 = vmatprep.subr.mxu0 0.0
        %2637 = vmatpush2.msra.mxu0 0.0
        %2638 = vmatprep.subr.mxu0 0.0
        %2639 = vmatpush2.msra.mxu0 0.0
        %2640 = vmatprep.subr.mxu0 0.0
        %2641 = vmatpush2.msra.mxu0 0.0
        %2642 = vmatprep.subr.mxu0 0.0
        %2643 = vmatpush2.msra.mxu0 0.0
        %2644 = vmatprep.subr.mxu0 0.0
        %2645 = vmatpush2.msra.mxu0 0.0
        %2646 = vmatprep.mubr.f32.mxu0 0.0
        %2647 = vmatmul.mubr.f32.gmra.mxu0 %v2495
        %v2648 = vpop.f32.mrf.mxu0
        %v2649 = vadd.f32 %v2580, %v2648
        %v2650 = vpop.f32.mrf.mxu0
        %2651 = vmatprep.mubr.f32.mxu0 0.0
        %2652 = vmatmul.mubr.f32.gmra.mxu0 %v2496
        %v2653 = vpop.f32.mrf.mxu0
        %v2654 = vadd.f32 %v2580, %v2653
        %v2655 = vpop.f32.mrf.mxu0
        %2656 = vmatprep.mubr.f32.mxu0 0.0
        %2657 = vmatmul.mubr.f32.gmra.mxu0 %v2497
        %v2658 = vpop.f32.mrf.mxu0
        %v2659 = vadd.f32 %v2580, %v2658
        %v2660 = vpop.f32.mrf.mxu0
        %2661 = vmatprep.mubr.f32.mxu0 0.0
        %2662 = vmatmul.mubr.f32.gmra.mxu0 %v2498
        %v2663 = vpop.f32.mrf.mxu0
        %v2664 = vadd.f32 %v2580, %v2663
        %v2665 = vpop.f32.mrf.mxu0
        %2666 = vmatprep.mubr.f32.mxu0 0.0
        %2667 = vmatmul.mubr.f32.gmra.mxu0 %v2499
        %v2668 = vpop.f32.mrf.mxu0
        %v2669 = vadd.f32 %v2580, %v2668
        %v2670 = vpop.f32.mrf.mxu0
        %2671 = vmatprep.mubr.f32.mxu0 0.0
        %2672 = vmatmul.mubr.f32.gmra.mxu0 %v2500
        %v2673 = vpop.f32.mrf.mxu0
        %v2674 = vadd.f32 %v2580, %v2673
        %v2675 = vpop.f32.mrf.mxu0
        %2676 = vmatprep.mubr.f32.mxu0 0.0
        %2677 = vmatmul.mubr.f32.gmra.mxu0 %v2501
        %v2678 = vpop.f32.mrf.mxu0
        %v2679 = vadd.f32 %v2580, %v2678
        %v2680 = vpop.f32.mrf.mxu0
        %2681 = vmatprep.mubr.f32.mxu0 0.0
        %2682 = vmatmul.mubr.f32.gmra.mxu0 %v2502
        %v2683 = vpop.f32.mrf.mxu0
        %v2684 = vadd.f32 %v2580, %v2683
        %v2685 = vpop.f32.mrf.mxu0
        %2686 = vmatprep.mubr.f32.mxu0 0.0
        %2687 = vmatmul.mubr.f32.gmra.mxu0 %v2503
        %v2688 = vpop.f32.mrf.mxu0
        %v2689 = vadd.f32 %v2580, %v2688
        %v2690 = vpop.f32.mrf.mxu0
        %2691 = vmatprep.mubr.f32.mxu0 0.0
        %2692 = vmatmul.mubr.f32.gmra.mxu0 %v2504
        %v2693 = vpop.f32.mrf.mxu0
        %v2694 = vadd.f32 %v2580, %v2693
        %v2695 = vpop.f32.mrf.mxu0
        %2696 = vmatprep.mubr.f32.mxu0 0.0
        %2697 = vmatmul.mubr.f32.gmra.mxu0 %v2505
        %v2698 = vpop.f32.mrf.mxu0
        %v2699 = vadd.f32 %v2580, %v2698
        %v2700 = vpop.f32.mrf.mxu0
        %2701 = vmatprep.mubr.f32.mxu0 0.0
        %2702 = vmatmul.mubr.f32.gmra.mxu0 %v2506
        %v2703 = vpop.f32.mrf.mxu0
        %v2704 = vadd.f32 %v2580, %v2703
        %v2705 = vpop.f32.mrf.mxu0
        %2706 = vmatprep.mubr.f32.mxu0 0.0
        %2707 = vmatmul.mubr.f32.gmra.mxu0 %v2507
        %v2708 = vpop.f32.mrf.mxu0
        %v2709 = vadd.f32 %v2580, %v2708
        %v2710 = vpop.f32.mrf.mxu0
        %2711 = vmatprep.mubr.f32.mxu0 0.0
        %2712 = vmatmul.mubr.f32.gmra.mxu0 %v2508
        %v2713 = vpop.f32.mrf.mxu0
        %v2714 = vadd.f32 %v2580, %v2713
        %v2715 = vpop.f32.mrf.mxu0
        %2716 = vmatprep.mubr.f32.mxu0 0.0
        %2717 = vmatmul.mubr.f32.gmra.mxu0 %v2509
        %v2718 = vpop.f32.mrf.mxu0
        %v2719 = vadd.f32 %v2580, %v2718
        %v2720 = vpop.f32.mrf.mxu0
        %2721 = vmatprep.mubr.f32.mxu0 0.0
        %2722 = vmatmul.mubr.f32.gmra.mxu0 %v2510
        %v2723 = vpop.f32.mrf.mxu0
        %v2724 = vadd.f32 %v2580, %v2723
        %v2725 = vpop.f32.mrf.mxu0
        %2726 = vmatprep.mubr.f32.mxu0 0.0
        %2727 = vmatmul.mubr.f32.gmra.mxu0 %v2511
        %v2728 = vpop.f32.mrf.mxu0
        %v2729 = vadd.f32 %v2580, %v2728
        %v2730 = vpop.f32.mrf.mxu0
        %2731 = vmatprep.mubr.f32.mxu0 0.0
        %2732 = vmatmul.mubr.f32.gmra.mxu0 %v2512
        %v2733 = vpop.f32.mrf.mxu0
        %v2734 = vadd.f32 %v2580, %v2733
        %v2735 = vpop.f32.mrf.mxu0
        %2736 = vmatprep.mubr.f32.mxu0 0.0
        %2737 = vmatmul.mubr.f32.gmra.mxu0 %v2513
        %v2738 = vpop.f32.mrf.mxu0
        %v2739 = vadd.f32 %v2580, %v2738
        %v2740 = vpop.f32.mrf.mxu0
        %2741 = vmatprep.mubr.f32.mxu0 0.0
        %2742 = vmatmul.mubr.f32.gmra.mxu0 %v2514
        %v2743 = vpop.f32.mrf.mxu0
        %v2744 = vadd.f32 %v2580, %v2743
        %v2745 = vpop.f32.mrf.mxu0
        %2746 = vmatprep.mubr.f32.mxu0 0.0
        %2747 = vmatmul.mubr.f32.gmra.mxu0 %v2515
        %v2748 = vpop.f32.mrf.mxu0
        %v2749 = vadd.f32 %v2580, %v2748
        %v2750 = vpop.f32.mrf.mxu0
        %2751 = vmatprep.mubr.f32.mxu0 0.0
        %2752 = vmatmul.mubr.f32.gmra.mxu0 %v2516
        %v2753 = vpop.f32.mrf.mxu0
        %v2754 = vadd.f32 %v2580, %v2753
        %v2755 = vpop.f32.mrf.mxu0
        %2756 = vmatprep.mubr.f32.mxu0 0.0
        %2757 = vmatmul.mubr.f32.gmra.mxu0 %v2517
        %v2758 = vpop.f32.mrf.mxu0
        %v2759 = vadd.f32 %v2580, %v2758
        %v2760 = vpop.f32.mrf.mxu0
        %2761 = vmatprep.mubr.f32.mxu0 0.0
        %2762 = vmatmul.mubr.f32.gmra.mxu0 %v2518
        %v2763 = vpop.f32.mrf.mxu0
        %v2764 = vadd.f32 %v2580, %v2763
        %v2765 = vpop.f32.mrf.mxu0
        %2766 = vmatprep.mubr.f32.mxu0 0.0
        %2767 = vmatmul.mubr.f32.gmra.mxu0 %v2519
        %v2768 = vpop.f32.mrf.mxu0
        %v2769 = vadd.f32 %v2580, %v2768
        %v2770 = vpop.f32.mrf.mxu0
        %2771 = vmatprep.mubr.f32.mxu0 0.0
        %2772 = vmatmul.mubr.f32.gmra.mxu0 %v2520
        %v2773 = vpop.f32.mrf.mxu0
        %v2774 = vadd.f32 %v2580, %v2773
        %v2775 = vpop.f32.mrf.mxu0
        %2776 = vmatprep.mubr.f32.mxu0 0.0
        %2777 = vmatmul.mubr.f32.gmra.mxu0 %v2521
        %v2778 = vpop.f32.mrf.mxu0
        %v2779 = vadd.f32 %v2580, %v2778
        %v2780 = vpop.f32.mrf.mxu0
        %2781 = vmatprep.mubr.f32.mxu0 0.0
        %2782 = vmatmul.mubr.f32.gmra.mxu0 %v2522
        %v2783 = vpop.f32.mrf.mxu0
        %v2784 = vadd.f32 %v2580, %v2783
        %v2785 = vpop.f32.mrf.mxu0
        %2786 = vmatprep.mubr.f32.mxu0 0.0
        %2787 = vmatmul.mubr.f32.gmra.mxu0 %v2523
        %v2788 = vpop.f32.mrf.mxu0
        %v2789 = vadd.f32 %v2580, %v2788
        %v2790 = vpop.f32.mrf.mxu0
        %2791 = vmatprep.mubr.f32.mxu0 0.0
        %2792 = vmatmul.mubr.f32.gmra.mxu0 %v2524
        %v2793 = vpop.f32.mrf.mxu0
        %v2794 = vadd.f32 %v2580, %v2793
        %v2795 = vpop.f32.mrf.mxu0
        %2796 = vmatprep.mubr.f32.mxu0 0.0
        %2797 = vmatmul.mubr.f32.gmra.mxu0 %v2525
        %v2798 = vpop.f32.mrf.mxu0
        %v2799 = vadd.f32 %v2580, %v2798
        %v2800 = vpop.f32.mrf.mxu0
        %2801 = vmatprep.mubr.f32.mxu0 0.0
        %2802 = vmatmul.mubr.f32.gmra.mxu0 %v2526
        %v2803 = vpop.f32.mrf.mxu0
        %v2804 = vadd.f32 %v2580, %v2803
        %v2805 = vpop.f32.mrf.mxu0
        %2806 = vmatprep.mubr.f32.mxu0 0.0
        %2807 = vmatmul.mubr.f32.gmra.mxu0 %v2527
        %v2808 = vpop.f32.mrf.mxu0
        %v2809 = vadd.f32 %v2580, %v2808
        %v2810 = vpop.f32.mrf.mxu0
        %2811 = vmatprep.mubr.f32.mxu0 0.0
        %2812 = vmatmul.mubr.f32.gmra.mxu0 %v2528
        %v2813 = vpop.f32.mrf.mxu0
        %v2814 = vadd.f32 %v2580, %v2813
        %v2815 = vpop.f32.mrf.mxu0
        %2816 = vmatprep.mubr.f32.mxu0 0.0
        %2817 = vmatmul.mubr.f32.gmra.mxu0 %v2529
        %v2818 = vpop.f32.mrf.mxu0
        %v2819 = vadd.f32 %v2580, %v2818
        %v2820 = vpop.f32.mrf.mxu0
        %2821 = vmatprep.mubr.f32.mxu0 0.0
        %2822 = vmatmul.mubr.f32.gmra.mxu0 %v2530
        %v2823 = vpop.f32.mrf.mxu0
        %v2824 = vadd.f32 %v2580, %v2823
        %v2825 = vpop.f32.mrf.mxu0
        %2826 = vmatprep.mubr.f32.mxu0 0.0
        %2827 = vmatmul.mubr.f32.gmra.mxu0 %v2531
        %v2828 = vpop.f32.mrf.mxu0
        %v2829 = vadd.f32 %v2580, %v2828
        %v2830 = vpop.f32.mrf.mxu0
        %2831 = vmatprep.mubr.f32.mxu0 0.0
        %2832 = vmatmul.mubr.f32.gmra.mxu0 %v2532
        %v2833 = vpop.f32.mrf.mxu0
        %v2834 = vadd.f32 %v2580, %v2833
        %v2835 = vpop.f32.mrf.mxu0
        %2836 = vmatprep.mubr.f32.mxu0 0.0
        %2837 = vmatmul.mubr.f32.gmra.mxu0 %v2533
        %v2838 = vpop.f32.mrf.mxu0
        %v2839 = vadd.f32 %v2580, %v2838
        %v2840 = vpop.f32.mrf.mxu0
        %2841 = vmatprep.mubr.f32.mxu0 0.0
        %2842 = vmatmul.mubr.f32.gmra.mxu0 %v2534
        %v2843 = vpop.f32.mrf.mxu0
        %v2844 = vadd.f32 %v2580, %v2843
        %v2845 = vpop.f32.mrf.mxu0
        %2846 = vmatprep.mubr.f32.mxu0 0.0
        %2847 = vmatmul.mubr.f32.gmra.mxu0 %v2535
        %v2848 = vpop.f32.mrf.mxu0
        %v2849 = vadd.f32 %v2580, %v2848
        %v2850 = vpop.f32.mrf.mxu0
        %2851 = vmatprep.mubr.f32.mxu0 0.0
        %2852 = vmatmul.mubr.f32.gmra.mxu0 %v2536
        %v2853 = vpop.f32.mrf.mxu0
        %v2854 = vadd.f32 %v2580, %v2853
        %v2855 = vpop.f32.mrf.mxu0
        %2856 = vmatprep.mubr.f32.mxu0 0.0
        %2857 = vmatmul.mubr.f32.gmra.mxu0 %v2537
        %v2858 = vpop.f32.mrf.mxu0
        %v2859 = vadd.f32 %v2580, %v2858
        %v2860 = vpop.f32.mrf.mxu0
        %2861 = vmatprep.mubr.f32.mxu0 0.0
        %2862 = vmatmul.mubr.f32.gmra.mxu0 %v2538
        %v2863 = vpop.f32.mrf.mxu0
        %v2864 = vadd.f32 %v2580, %v2863
        %v2865 = vpop.f32.mrf.mxu0
        %2866 = vmatprep.mubr.f32.mxu0 0.0
        %2867 = vmatmul.mubr.f32.gmra.mxu0 %v2539
        %v2868 = vpop.f32.mrf.mxu0
        %v2869 = vadd.f32 %v2580, %v2868
        %v2870 = vpop.f32.mrf.mxu0
        %2871 = vmatprep.mubr.f32.mxu0 0.0
        %2872 = vmatmul.mubr.f32.gmra.mxu0 %v2540
        %v2873 = vpop.f32.mrf.mxu0
        %v2874 = vadd.f32 %v2580, %v2873
        %v2875 = vpop.f32.mrf.mxu0
        %2876 = vmatprep.mubr.f32.mxu0 0.0
        %2877 = vmatmul.mubr.f32.gmra.mxu0 %v2541
        %v2878 = vpop.f32.mrf.mxu0
        %v2879 = vadd.f32 %v2580, %v2878
        %v2880 = vpop.f32.mrf.mxu0
        %2881 = vmatprep.mubr.f32.mxu0 0.0
        %2882 = vmatmul.mubr.f32.gmra.mxu0 %v2542
        %v2883 = vpop.f32.mrf.mxu0
        %v2884 = vadd.f32 %v2580, %v2883
        %v2885 = vpop.f32.mrf.mxu0
        %2886 = vmatprep.mubr.f32.mxu0 0.0
        %2887 = vmatmul.mubr.f32.gmra.mxu0 %v2543
        %v2888 = vpop.f32.mrf.mxu0
        %v2889 = vadd.f32 %v2580, %v2888
        %v2890 = vpop.f32.mrf.mxu0
        %2891 = vmatprep.mubr.f32.mxu0 0.0
        %2892 = vmatmul.mubr.f32.gmra.mxu0 %v2544
        %v2893 = vpop.f32.mrf.mxu0
        %v2894 = vadd.f32 %v2580, %v2893
        %v2895 = vpop.f32.mrf.mxu0
        %2896 = vmatprep.mubr.f32.mxu0 0.0
        %2897 = vmatmul.mubr.f32.gmra.mxu0 %v2545
        %v2898 = vpop.f32.mrf.mxu0
        %v2899 = vadd.f32 %v2580, %v2898
        %v2900 = vpop.f32.mrf.mxu0
        %2901 = vmatprep.mubr.f32.mxu0 0.0
        %2902 = vmatmul.mubr.f32.gmra.mxu0 %v2546
        %v2903 = vpop.f32.mrf.mxu0
        %v2904 = vadd.f32 %v2580, %v2903
        %v2905 = vpop.f32.mrf.mxu0
        %2906 = vmatprep.mubr.f32.mxu0 0.0
        %2907 = vmatmul.mubr.f32.gmra.mxu0 %v2547
        %v2908 = vpop.f32.mrf.mxu0
        %v2909 = vadd.f32 %v2580, %v2908
        %v2910 = vpop.f32.mrf.mxu0
        %2911 = vmatprep.mubr.f32.mxu0 0.0
        %2912 = vmatmul.mubr.f32.gmra.mxu0 %v2548
        %v2913 = vpop.f32.mrf.mxu0
        %v2914 = vadd.f32 %v2580, %v2913
        %v2915 = vpop.f32.mrf.mxu0
        %2916 = vmatprep.mubr.f32.mxu0 0.0
        %2917 = vmatmul.mubr.f32.gmra.mxu0 %v2549
        %v2918 = vpop.f32.mrf.mxu0
        %v2919 = vadd.f32 %v2580, %v2918
        %v2920 = vpop.f32.mrf.mxu0
        %2921 = vmatprep.mubr.f32.mxu0 0.0
        %2922 = vmatmul.mubr.f32.gmra.mxu0 %v2550
        %v2923 = vpop.f32.mrf.mxu0
        %v2924 = vadd.f32 %v2580, %v2923
        %v2925 = vpop.f32.mrf.mxu0
        %2926 = vmatprep.mubr.f32.mxu0 0.0
        %2927 = vmatmul.mubr.f32.gmra.mxu0 %v2551
        %v2928 = vpop.f32.mrf.mxu0
        %v2929 = vadd.f32 %v2580, %v2928
        %v2930 = vpop.f32.mrf.mxu0
        %2931 = vmatprep.mubr.f32.mxu0 0.0
        %2932 = vmatmul.mubr.f32.gmra.mxu0 %v2552
        %v2933 = vpop.f32.mrf.mxu0
        %v2934 = vadd.f32 %v2580, %v2933
        %v2935 = vpop.f32.mrf.mxu0
        %2936 = vmatprep.mubr.f32.mxu0 0.0
        %2937 = vmatmul.mubr.f32.gmra.mxu0 %v2553
        %v2938 = vpop.f32.mrf.mxu0
        %v2939 = vadd.f32 %v2580, %v2938
        %v2940 = vpop.f32.mrf.mxu0
        %2941 = vmatprep.mubr.f32.mxu0 0.0
        %2942 = vmatmul.mubr.f32.gmra.mxu0 %v2554
        %v2943 = vpop.f32.mrf.mxu0
        %v2944 = vadd.f32 %v2580, %v2943
        %v2945 = vpop.f32.mrf.mxu0
        %2946 = vmatprep.mubr.f32.mxu0 0.0
        %2947 = vmatmul.mubr.f32.gmra.mxu0 %v2555
        %v2948 = vpop.f32.mrf.mxu0
        %v2949 = vadd.f32 %v2580, %v2948
        %v2950 = vpop.f32.mrf.mxu0
        %2951 = vmatprep.mubr.f32.mxu0 0.0
        %2952 = vmatmul.mubr.f32.gmra.mxu0 %v2556
        %v2953 = vpop.f32.mrf.mxu0
        %v2954 = vadd.f32 %v2580, %v2953
        %v2955 = vpop.f32.mrf.mxu0
        %2956 = vmatprep.mubr.f32.mxu0 0.0
        %2957 = vmatmul.mubr.f32.gmra.mxu0 %v2557
        %v2958 = vpop.f32.mrf.mxu0
        %v2959 = vadd.f32 %v2580, %v2958
        %v2960 = vpop.f32.mrf.mxu0
        %2961 = vmatprep.mubr.f32.mxu0 0.0
        %2962 = vmatmul.mubr.f32.gmra.mxu0 %v2558
        %v2963 = vpop.f32.mrf.mxu0
        %v2964 = vadd.f32 %v2580, %v2963
        %v2965 = vpop.f32.mrf.mxu0
        %2966 = vdwg.mxu0
        %2967 = vst [vmem:[%s670] sm:$0xff] %v2649
        %2968 = vst [vmem:[%s670 + $0x8] sm:$0xff] %v2654
        %2969 = vst [vmem:[%s670 + $0x10] sm:$0xff] %v2659
        %2970 = vst [vmem:[%s670 + $0x18] sm:$0xff] %v2664
        %2971 = vst [vmem:[%s670 + $0x20] sm:$0xff] %v2669
        %2972 = vst [vmem:[%s670 + $0x28] sm:$0xff] %v2674
        %2973 = vst [vmem:[%s670 + $0x30] sm:$0xff] %v2679
        %2974 = vst [vmem:[%s670 + $0x38] sm:$0xff] %v2684
        %2975 = vst [vmem:[%s670 + $0x40] sm:$0xff] %v2689
        %2976 = vst [vmem:[%s670 + $0x48] sm:$0xff] %v2694
        %2977 = vst [vmem:[%s670 + $0x50] sm:$0xff] %v2699
        %2978 = vst [vmem:[%s670 + $0x58] sm:$0xff] %v2704
        %2979 = vst [vmem:[%s670 + $0x60] sm:$0xff] %v2709
        %2980 = vst [vmem:[%s670 + $0x68] sm:$0xff] %v2714
        %2981 = vst [vmem:[%s670 + $0x70] sm:$0xff] %v2719
        %2982 = vst [vmem:[%s670 + $0x78] sm:$0xff] %v2724
        %2983 = vst [vmem:[%s670 + $0x80] sm:$0xff] %v2729
        %2984 = vst [vmem:[%s670 + $0x88] sm:$0xff] %v2734
        %2985 = vst [vmem:[%s670 + $0x90] sm:$0xff] %v2739
        %2986 = vst [vmem:[%s670 + $0x98] sm:$0xff] %v2744
        %2987 = vst [vmem:[%s670 + $0xa0] sm:$0xff] %v2749
        %2988 = vst [vmem:[%s670 + $0xa8] sm:$0xff] %v2754
        %2989 = vst [vmem:[%s670 + $0xb0] sm:$0xff] %v2759
        %2990 = vst [vmem:[%s670 + $0xb8] sm:$0xff] %v2764
        %2991 = vst [vmem:[%s670 + $0xc0] sm:$0xff] %v2769
        %2992 = vst [vmem:[%s670 + $0xc8] sm:$0xff] %v2774
        %2993 = vst [vmem:[%s670 + $0xd0] sm:$0xff] %v2779
        %2994 = vst [vmem:[%s670 + $0xd8] sm:$0xff] %v2784
        %2995 = vst [vmem:[%s670 + $0xe0] sm:$0xff] %v2789
        %2996 = vst [vmem:[%s670 + $0xe8] sm:$0xff] %v2794
        %2997 = vst [vmem:[%s670 + $0xf0] sm:$0xff] %v2799
        %2998 = vst [vmem:[%s670 + $0xf8] sm:$0xff] %v2804
        %2999 = vst [vmem:[%s684] sm:$0xff] %v2809
        %3000 = vst [vmem:[%s684 + $0x8] sm:$0xff] %v2814
        %3001 = vst [vmem:[%s684 + $0x10] sm:$0xff] %v2819
        %3002 = vst [vmem:[%s684 + $0x18] sm:$0xff] %v2824
        %3003 = vst [vmem:[%s684 + $0x20] sm:$0xff] %v2829
        %3004 = vst [vmem:[%s684 + $0x28] sm:$0xff] %v2834
        %3005 = vst [vmem:[%s684 + $0x30] sm:$0xff] %v2839
        %3006 = vst [vmem:[%s684 + $0x38] sm:$0xff] %v2844
        %3007 = vst [vmem:[%s684 + $0x40] sm:$0xff] %v2849
        %3008 = vst [vmem:[%s684 + $0x48] sm:$0xff] %v2854
        %3009 = vst [vmem:[%s684 + $0x50] sm:$0xff] %v2859
        %3010 = vst [vmem:[%s684 + $0x58] sm:$0xff] %v2864
        %3011 = vst [vmem:[%s684 + $0x60] sm:$0xff] %v2869
        %3012 = vst [vmem:[%s684 + $0x68] sm:$0xff] %v2874
        %3013 = vst [vmem:[%s684 + $0x70] sm:$0xff] %v2879
        %3014 = vst [vmem:[%s684 + $0x78] sm:$0xff] %v2884
        %3015 = vst [vmem:[%s684 + $0x80] sm:$0xff] %v2889
        %3016 = vst [vmem:[%s684 + $0x88] sm:$0xff] %v2894
        %3017 = vst [vmem:[%s684 + $0x90] sm:$0xff] %v2899
        %3018 = vst [vmem:[%s684 + $0x98] sm:$0xff] %v2904
        %3019 = vst [vmem:[%s684 + $0xa0] sm:$0xff] %v2909
        %3020 = vst [vmem:[%s684 + $0xa8] sm:$0xff] %v2914
        %3021 = vst [vmem:[%s684 + $0xb0] sm:$0xff] %v2919
        %3022 = vst [vmem:[%s684 + $0xb8] sm:$0xff] %v2924
        %3023 = vst [vmem:[%s684 + $0xc0] sm:$0xff] %v2929
        %3024 = vst [vmem:[%s684 + $0xc8] sm:$0xff] %v2934
        %3025 = vst [vmem:[%s684 + $0xd0] sm:$0xff] %v2939
        %3026 = vst [vmem:[%s684 + $0xd8] sm:$0xff] %v2944
        %3027 = vst [vmem:[%s684 + $0xe0] sm:$0xff] %v2949
        %3028 = vst [vmem:[%s684 + $0xe8] sm:$0xff] %v2954
        %3029 = vst [vmem:[%s684 + $0xf0] sm:$0xff] %v2959
        %3030 = vst [vmem:[%s684 + $0xf8] sm:$0xff] %v2964
        %s3031 = sand.u32 %s355, 1
        %s3032 = scalar_lea.sflag [#allocation4], %s3031
        %s3033 = sand.u32 %s355, 1
        %s3034 = smul.addr %s3033, 256
        %s3035 = scalar_lea.vmem [#allocation16], %s3034
        %s3036 = sand.u32 %s43, 1
        %s3037 = scalar_lea.sflag [#allocation18], %s3036
        %s3038 = sand.u32 %s381, 1
        %s3039 = smul.addr %s3038, 512
        %s3040 = scalar_lea.vmem [#allocation17], %s3039
        %s3041 = sand.u32 %s43, 1
        %s3042 = scalar_lea.sflag [#allocation18], %s3041
        %s3043 = sand.u32 %s407, 1
        %s3044 = smul.addr %s3043, 256
        %s3045 = scalar_lea.vmem [#allocation19], %s3044
        // Predicated region
        $region109: #{tpu_custom_call.1} parent=75 // pred_check
          %p3046 = pneg %p365
        $region110: #{tpu_custom_call.1} parent=75 // pred_check_branch
          %3048 = sbr.rel (%p3046) target = $region112
        $region111: #{tpu_custom_call.1} parent=75 // pred_region
          %s3049 = smul.u32 32, %s43
          %s3051 = ssub.s32 4096, 4096
          %3052 = vsyncadd %s3032, %s3051
          %s3053 = smul.addr %s3049, 128
          %s3054 = scalar_lea.hbm %s14, %s3053
          %s3055 = sshll.u32 %s3035, 4
          %s3056 = int_to_ptr.vmem [resolvable:$true] %s3055
          %3061 = dma.vmem_to_hbm [thread:$0]  %s3056, 4096, %s3054, %s3032, 128, 128, 8
        $region112: #{tpu_custom_call.1} parent=75 // pred_fallthru
          _
        // Predicated region
        $region113: #{tpu_custom_call.1} parent=75 // pred_check
          %p3062 = pneg %p391
        $region114: #{tpu_custom_call.1} parent=75 // pred_check_branch
          %3064 = sbr.rel (%p3062) target = $region116
        $region115: #{tpu_custom_call.1} parent=75 // pred_region
          %s3065 = smul.u32 32, %s43
          %s3067 = ssub.s32 8192, 8192
          %3068 = vsyncadd %s3037, %s3067
          %s3069 = smul.addr %s3065, 2
          %s3070 = smul.addr %s3069, 128
          %s3071 = scalar_lea.hbm %s15, %s3070
          %s3072 = sshll.u32 %s3040, 4
          %s3073 = int_to_ptr.vmem [resolvable:$true] %s3072
          %3078 = dma.vmem_to_hbm [thread:$0]  %s3073, 8192, %s3071, %s3037, 256, 256, 16
        $region116: #{tpu_custom_call.1} parent=75 // pred_fallthru
          _
        // Predicated region
        $region117: #{tpu_custom_call.1} parent=75 // pred_check
          %p3079 = pneg %p417
        $region118: #{tpu_custom_call.1} parent=75 // pred_check_branch
          %3081 = sbr.rel (%p3079) target = $region120
        $region119: #{tpu_custom_call.1} parent=75 // pred_region
          %s3082 = smul.u32 32, %s43
          %s3084 = ssub.s32 4096, 4096
          %3085 = vsyncadd %s3042, %s3084
          %s3086 = smul.addr %s3082, 128
          %s3087 = scalar_lea.hbm %s16, %s3086
          %s3088 = sshll.u32 %s3045, 4
          %s3089 = int_to_ptr.vmem [resolvable:$true] %s3088
          %3094 = dma.vmem_to_hbm [thread:$0]  %s3089, 4096, %s3087, %s3042, 128, 128, 8
        $region120: #{tpu_custom_call.1} parent=75 // pred_fallthru
          _
      $region76: #{tpu_custom_call.1} parent=5 // pred_fallthru
        _
      %p3095 = scmp.le.s32.totalorder 2, %s38
      // Predicated region
      $region121: #{tpu_custom_call.1} parent=5 // pred_check
        %p3096 = pneg %p3095
      $region122: #{tpu_custom_call.1} parent=5 // pred_check_branch
        %3098 = sbr.rel (%p3096) target = $region124
      $region123: #{tpu_custom_call.1} parent=5 // pred_region
        %s3099 = ssub.s32 %s38, 2
        // Predicated region
        $region125: #{tpu_custom_call.1} parent=123 // pred_check
          %p3100 = pneg %p371
        $region126: #{tpu_custom_call.1} parent=123 // pred_check_branch
          %3102 = sbr.rel (%p3100) target = $region128
        $region127: #{tpu_custom_call.1} parent=123 // pred_region
          %s3103 = sand.u32 %s356, 1
          %s3104 = scalar_lea.sflag [#allocation4], %s3103
          %s3105 = sand.u32 %s356, 1
          %s3106 = smul.addr %s3105, 256
          %s3107 = scalar_lea.vmem [#allocation16], %s3106
          %3108 = dma.done %s3104, 4096
        $region128: #{tpu_custom_call.1} parent=123 // pred_fallthru
          _
        // Predicated region
        $region129: #{tpu_custom_call.1} parent=123 // pred_check
          %p3109 = pneg %p397
        $region130: #{tpu_custom_call.1} parent=123 // pred_check_branch
          %3111 = sbr.rel (%p3109) target = $region132
        $region131: #{tpu_custom_call.1} parent=123 // pred_region
          %s3112 = sand.u32 %s44, 1
          %s3113 = scalar_lea.sflag [#allocation18], %s3112
          %s3114 = sand.u32 %s382, 1
          %s3115 = smul.addr %s3114, 512
          %s3116 = scalar_lea.vmem [#allocation17], %s3115
          %3117 = dma.done %s3113, 8192
        $region132: #{tpu_custom_call.1} parent=123 // pred_fallthru
          _
        // Predicated region
        $region133: #{tpu_custom_call.1} parent=123 // pred_check
          %p3118 = pneg %p423
        $region134: #{tpu_custom_call.1} parent=123 // pred_check_branch
          %3120 = sbr.rel (%p3118) target = $region136
        $region135: #{tpu_custom_call.1} parent=123 // pred_region
          %s3121 = sand.u32 %s44, 1
          %s3122 = scalar_lea.sflag [#allocation18], %s3121
          %s3123 = sand.u32 %s408, 1
          %s3124 = smul.addr %s3123, 256
          %s3125 = scalar_lea.vmem [#allocation19], %s3124
          %3126 = dma.done %s3122, 4096
        $region136: #{tpu_custom_call.1} parent=123 // pred_fallthru
          _
      $region124: #{tpu_custom_call.1} parent=5 // pred_fallthru
        _
    $region6: #{tpu_custom_call.1} parent=1 // loop_footer
      %s42 = sadd.s32 1, %s38
    $region7: #{tpu_custom_call.1} parent=1 // loop_footer_branch
      %37 = sbr.rel target = $region3
    $region8: #{tpu_custom_call.1} parent=1 // loop_exit
      _
    %3127 = vsyncpa [#allocation3], 1
    %s3128 = scalar_lea.sflag [#allocation3], 1
    %3129 = vsyncpa %s3128, 1
    %3130 = vsyncpa [#allocation6], 1
    %s3131 = scalar_lea.sflag [#allocation6], 1
    %3132 = vsyncpa %s3131, 1
    %3133 = vsyncpa [#allocation9], 1
    %3134 = vsyncpa [#allocation12], 1
    %3135 = vsyncpa [#allocation15], 1
    %3136 = vsyncpa [#allocation4], 1
    %s3137 = scalar_lea.sflag [#allocation4], 1
    %3138 = vsyncpa %s3137, 1
    %3139 = vsyncpa [#allocation18], 1
    %s3140 = scalar_lea.sflag [#allocation18], 1
    %3141 = vsyncpa %s3140, 1

// kernel: tpu_custom_call.1
$region0: #{tpu_custom_call.1}
  #allocation0 [shape = 'u32[]', space=smem, size = 0x4, offset = 0x4, fixed_abs, tag = 'smem constant byte address 0x4 - core index']
  #allocation1 [shape = 'u32[144,128]{1,0:T(1,128)}', space=vmem, size = 0x12000, scoped, tag = 'internal scratch']
  %s0 = inlined_call_operand.hbm [shape: f32[512,128], index: 0, kind: input, shape index: {}]
  %s1 = inlined_call_operand.hbm [shape: f32[512,128], index: 1, kind: input, shape index: {}]
  %s2 = inlined_call_operand.hbm [shape: f32[128,128], index: 2, kind: input, shape index: {}]
  %s3 = inlined_call_operand.vmem [shape: f32[1,128], index: 3, kind: input, shape index: {}]
  %s4 = inlined_call_operand.hbm [shape: f32[128,256], index: 4, kind: input, shape index: {}]
  %s5 = inlined_call_operand.vmem [shape: f32[1,256], index: 5, kind: input, shape index: {}]
  %s6 = inlined_call_operand.hbm [shape: f32[128,128], index: 6, kind: input, shape index: {}]
  %s7 = inlined_call_operand.vmem [shape: f32[1,128], index: 7, kind: input, shape index: {}]
  %s8 = inlined_call_operand.hbm [shape: f32[128,128], index: 8, kind: input, shape index: {}]
  %s9 = inlined_call_operand.vmem [shape: f32[1,128], index: 9, kind: input, shape index: {}]
  %s10 = inlined_call_operand.hbm [shape: f32[128,128], index: 10, kind: input, shape index: {}]
  %s11 = inlined_call_operand.vmem [shape: f32[1,128], index: 11, kind: input, shape index: {}]
  %s12 = inlined_call_operand.hbm [shape: f32[128,128], index: 12, kind: input, shape index: {}]
  %s13 = inlined_call_operand.vmem [shape: f32[1,128], index: 13, kind: input, shape index: {}]
  %s14 = inlined_call_operand.hbm [shape: f32[512,128], index: 14, kind: output, shape index: {0}]
  %s15 = inlined_call_operand.hbm [shape: f32[512,256], index: 15, kind: output, shape index: {1}]
  %s16 = inlined_call_operand.hbm [shape: f32[512,128], index: 16, kind: output, shape index: {2}]
  %17 = xla_tuple %s14, %s15, %s16
  %s18 = sld [smem:[#allocation0]]
  $region137: #{tpu_custom_call.1} parent=0
    _
  %s20 = ssub.s32 1, %s18
  %s21 = scalar_select 0, %s20, %s18
  $region1: #{tpu_custom_call.1} parent=0
    #allocation2 [shape = 'u8[262144]{0}', space=vmem, size = 0x40000, scoped, tag = 'input window, operand 0']
    #allocation3 [shape = 's32[2]{0}', space=sflag, size = 0x8, scoped, tag = 'scoped memory for tpu_custom_call.1']
    #allocation4 [shape = 's32[2]{0}', space=sflag, size = 0x8, scoped, tag = 'scoped memory for tpu_custom_call.1']
    #allocation5 [shape = 'u8[262144]{0}', space=vmem, size = 0x40000, scoped, tag = 'input window, operand 1']
    #allocation6 [shape = 's32[2]{0}', space=sflag, size = 0x8, scoped, tag = 'scoped memory for tpu_custom_call.1']
    #allocation7 [shape = 'u8[65536]{0}', space=vmem, size = 0x10000, scoped, tag = 'input window, operand 2, single buffered']
    #allocation8 [shape = 'u8[131072]{0}', space=vmem, size = 0x20000, scoped, tag = 'input window, operand 4, single buffered']
    #allocation9 [shape = 's32[1]{0}', space=sflag, size = 0x4, scoped, tag = 'scoped memory for tpu_custom_call.1']
    #allocation10 [shape = 'u8[65536]{0}', space=vmem, size = 0x10000, scoped, tag = 'input window, operand 6, single buffered']
    #allocation11 [shape = 'u8[65536]{0}', space=vmem, size = 0x10000, scoped, tag = 'input window, operand 8, single buffered']
    #allocation12 [shape = 's32[1]{0}', space=sflag, size = 0x4, scoped, tag = 'scoped memory for tpu_custom_call.1']
    #allocation13 [shape = 'u8[65536]{0}', space=vmem, size = 0x10000, scoped, tag = 'input window, operand 10, single buffered']
    #allocation14 [shape = 'u8[65536]{0}', space=vmem, size = 0x10000, scoped, tag = 'input window, operand 12, single buffered']
    #allocation15 [shape = 's32[1]{0}', space=sflag, size = 0x4, scoped, tag = 'scoped memory for tpu_custom_call.1']
    #allocation16 [shape = 'u8[262144]{0}', space=vmem, size = 0x40000, scoped, tag = 'output window, operand 0']
    #allocation17 [shape = 'u8[524288]{0}', space=vmem, size = 0x80000, scoped, tag = 'output window, operand 1']
    #allocation18 [shape = 's32[2]{0}', space=sflag, size = 0x8, scoped, tag = 'scoped memory for tpu_custom_call.1']
    #allocation19 [shape = 'u8[262144]{0}', space=vmem, size = 0x40000, scoped, tag = 'output window, operand 2']
    %22 = vsyncpa [#allocation3], 0
    %s23 = scalar_lea.sflag [#allocation3], 1
    %24 = vsyncpa %s23, 0
    %25 = vsyncpa [#allocation6], 0
    %s26 = scalar_lea.sflag [#allocation6], 1
    %27 = vsyncpa %s26, 0
    %28 = vsyncpa [#allocation9], 0
    %29 = vsyncpa [#allocation12], 0
    %30 = vsyncpa [#allocation15], 0
    %31 = vsyncpa [#allocation4], 0
    %s32 = scalar_lea.sflag [#allocation4], 1
    %33 = vsyncpa %s32, 0
    %34 = vsyncpa [#allocation18], 0
    %s35 = scalar_lea.sflag [#allocation18], 1
    %36 = vsyncpa %s35, 0
    loop: start=0, step=1, limit=4
    $region2: #{tpu_custom_call.1} parent=1 // loop_pre_header
      _
    $region3: #{tpu_custom_call.1} parent=1 // loop_header
      %s38 = sphi 0, %s42
      %p39 = scmp.ge.s32.totalorder %s38, 4
      %s48 = sphi 0, %s50
      %s51 = sphi 0, %s48
      %s52 = sphi 0, %s51
      %s68 = sphi 0, %s52
      %s74 = sphi 0, %s76
      %s77 = sphi 0, %s74
      %s78 = sphi 0, %s77
      %s94 = sphi 0, %s78
      %s98 = sphi 0, %s98
      %s100 = sphi 0, %s98
      %s101 = sphi 0, %s100
      %s115 = sphi 0, %s101
      %s119 = sphi 0, %s119
      %s121 = sphi 0, %s119
      %s122 = sphi 0, %s121
      %s136 = sphi 0, %s122
      %s140 = sphi 0, %s140
      %s142 = sphi 0, %s140
      %s143 = sphi 0, %s142
      %s157 = sphi 0, %s143
      %s161 = sphi 0, %s161
      %s163 = sphi 0, %s161
      %s164 = sphi 0, %s163
      %s178 = sphi 0, %s164
      %s182 = sphi 0, %s182
      %s184 = sphi 0, %s182
      %s185 = sphi 0, %s184
      %s199 = sphi 0, %s185
      %s203 = sphi 0, %s203
      %s205 = sphi 0, %s203
      %s206 = sphi 0, %s205
      %s220 = sphi 0, %s206
      %s224 = sphi 0, %s224
      %s226 = sphi 0, %s224
      %s227 = sphi 0, %s226
      %s241 = sphi 0, %s227
      %s245 = sphi 0, %s245
      %s247 = sphi 0, %s245
      %s248 = sphi 0, %s247
      %s262 = sphi 0, %s248
      %s266 = sphi 0, %s266
      %s268 = sphi 0, %s266
      %s269 = sphi 0, %s268
      %s283 = sphi 0, %s269
      %s287 = sphi 0, %s287
      %s289 = sphi 0, %s287
      %s290 = sphi 0, %s289
      %s304 = sphi 0, %s290
      %s308 = sphi 0, %s308
      %s310 = sphi 0, %s308
      %s311 = sphi 0, %s310
      %s325 = sphi 0, %s311
      %s329 = sphi 0, %s329
      %s331 = sphi 0, %s329
      %s332 = sphi 0, %s331
      %s346 = sphi 0, %s332
      %s352 = sphi 0, %s354
      %s355 = sphi 0, %s352
      %s356 = sphi 0, %s355
      %s372 = sphi 0, %s356
      %s378 = sphi 0, %s380
      %s381 = sphi 0, %s378
      %s382 = sphi 0, %s381
      %s398 = sphi 0, %s382
      %s404 = sphi 0, %s406
      %s407 = sphi 0, %s404
      %s408 = sphi 0, %s407
      %s424 = sphi 0, %s408
    $region4: #{tpu_custom_call.1} parent=1 // loop_header_branch
      %41 = sbr.rel (%p39) target = $region8
    $region5: #{tpu_custom_call.1} parent=1 // loop_body
      %s43 = ssub.s32 %s38, 1
      %s44 = ssub.s32 %s38, 2
      %s45 = sadd.s32 %s38, 1
      %s46 = ssub.s32 %s38, %s45
      %p47 = scmp.eq.s32.totalorder %s46, 0
      %s49 = sadd.s32 %s48, 1
      %s50 = scalar_select %p47, %s48, %s49
      %p53 = pneg %p47
      %p54 = scmp.eq.s32.totalorder %s38, 1
      %p55 = por %p53, %p54
      %p56 = scmp.ne.s32.totalorder %s48, %s51
      %p57 = scmp.eq.s32.totalorder %s38, 0
      %p58 = por %p56, %p57
      %p59 = scmp.ne.s32.totalorder %s48, %s51
      %p60 = scmp.eq.s32.totalorder %s43, 1
      %p61 = por %p59, %p60
      %p62 = scmp.ne.s32.totalorder %s51, %s52
      %p63 = scmp.eq.s32.totalorder %s43, 0
      %p64 = por %p62, %p63
      %p65 = scmp.ne.s32.totalorder %s51, %s52
      %p66 = scmp.eq.s32.totalorder %s44, 1
      %p67 = por %p65, %p66
      %p69 = scmp.ne.s32.totalorder %s52, %s68
      %p70 = scmp.eq.s32.totalorder %s44, 0
      %p71 = por %p69, %p70
      %s72 = ssub.s32 %s38, %s45
      %p73 = scmp.eq.s32.totalorder %s72, 0
      %s75 = sadd.s32 %s74, 1
      %s76 = scalar_select %p73, %s74, %s75
      %p79 = pneg %p73
      %p80 = scmp.eq.s32.totalorder %s38, 1
      %p81 = por %p79, %p80
      %p82 = scmp.ne.s32.totalorder %s74, %s77
      %p83 = scmp.eq.s32.totalorder %s38, 0
      %p84 = por %p82, %p83
      %p85 = scmp.ne.s32.totalorder %s74, %s77
      %p86 = scmp.eq.s32.totalorder %s43, 1
      %p87 = por %p85, %p86
      %p88 = scmp.ne.s32.totalorder %s77, %s78
      %p89 = scmp.eq.s32.totalorder %s43, 0
      %p90 = por %p88, %p89
      %p91 = scmp.ne.s32.totalorder %s77, %s78
      %p92 = scmp.eq.s32.totalorder %s44, 1
      %p93 = por %p91, %p92
      %p95 = scmp.ne.s32.totalorder %s78, %s94
      %p96 = scmp.eq.s32.totalorder %s44, 0
      %p97 = por %p95, %p96
      %s99 = sadd.s32 %s98, 1
      %p102 = scmp.eq.s32.totalorder %s38, 1
      %p103 = scmp.ne.s32.totalorder %s98, %s100
      %p104 = scmp.eq.s32.totalorder %s38, 0
      %p105 = por %p103, %p104
      %p106 = scmp.ne.s32.totalorder %s98, %s100
      %p107 = scmp.eq.s32.totalorder %s43, 1
      %p108 = por %p106, %p107
      %p109 = scmp.ne.s32.totalorder %s100, %s101
      %p110 = scmp.eq.s32.totalorder %s43, 0
      %p111 = por %p109, %p110
      %p112 = scmp.ne.s32.totalorder %s100, %s101
      %p113 = scmp.eq.s32.totalorder %s44, 1
      %p114 = por %p112, %p113
      %p116 = scmp.ne.s32.totalorder %s101, %s115
      %p117 = scmp.eq.s32.totalorder %s44, 0
      %p118 = por %p116, %p117
      %s120 = sadd.s32 %s119, 1
      %p123 = scmp.eq.s32.totalorder %s38, 1
      %p124 = scmp.ne.s32.totalorder %s119, %s121
      %p125 = scmp.eq.s32.totalorder %s38, 0
      %p126 = por %p124, %p125
      %p127 = scmp.ne.s32.totalorder %s119, %s121
      %p128 = scmp.eq.s32.totalorder %s43, 1
      %p129 = por %p127, %p128
      %p130 = scmp.ne.s32.totalorder %s121, %s122
      %p131 = scmp.eq.s32.totalorder %s43, 0
      %p132 = por %p130, %p131
      %p133 = scmp.ne.s32.totalorder %s121, %s122
      %p134 = scmp.eq.s32.totalorder %s44, 1
      %p135 = por %p133, %p134
      %p137 = scmp.ne.s32.totalorder %s122, %s136
      %p138 = scmp.eq.s32.totalorder %s44, 0
      %p139 = por %p137, %p138
      %s141 = sadd.s32 %s140, 1
      %p144 = scmp.eq.s32.totalorder %s38, 1
      %p145 = scmp.ne.s32.totalorder %s140, %s142
      %p146 = scmp.eq.s32.totalorder %s38, 0
      %p147 = por %p145, %p146
      %p148 = scmp.ne.s32.totalorder %s140, %s142
      %p149 = scmp.eq.s32.totalorder %s43, 1
      %p150 = por %p148, %p149
      %p151 = scmp.ne.s32.totalorder %s142, %s143
      %p152 = scmp.eq.s32.totalorder %s43, 0
      %p153 = por %p151, %p152
      %p154 = scmp.ne.s32.totalorder %s142, %s143
      %p155 = scmp.eq.s32.totalorder %s44, 1
      %p156 = por %p154, %p155
      %p158 = scmp.ne.s32.totalorder %s143, %s157
      %p159 = scmp.eq.s32.totalorder %s44, 0
      %p160 = por %p158, %p159
      %s162 = sadd.s32 %s161, 1
      %p165 = scmp.eq.s32.totalorder %s38, 1
      %p166 = scmp.ne.s32.totalorder %s161, %s163
      %p167 = scmp.eq.s32.totalorder %s38, 0
      %p168 = por %p166, %p167
      %p169 = scmp.ne.s32.totalorder %s161, %s163
      %p170 = scmp.eq.s32.totalorder %s43, 1
      %p171 = por %p169, %p170
      %p172 = scmp.ne.s32.totalorder %s163, %s164
      %p173 = scmp.eq.s32.totalorder %s43, 0
      %p174 = por %p172, %p173
      %p175 = scmp.ne.s32.totalorder %s163, %s164
      %p176 = scmp.eq.s32.totalorder %s44, 1
      %p177 = por %p175, %p176
      %p179 = scmp.ne.s32.totalorder %s164, %s178
      %p180 = scmp.eq.s32.totalorder %s44, 0
      %p181 = por %p179, %p180
      %s183 = sadd.s32 %s182, 1
      %p186 = scmp.eq.s32.totalorder %s38, 1
      %p187 = scmp.ne.s32.totalorder %s182, %s184
      %p188 = scmp.eq.s32.totalorder %s38, 0
      %p189 = por %p187, %p188
      %p190 = scmp.ne.s32.totalorder %s182, %s184
      %p191 = scmp.eq.s32.totalorder %s43, 1
      %p192 = por %p190, %p191
      %p193 = scmp.ne.s32.totalorder %s184, %s185
      %p194 = scmp.eq.s32.totalorder %s43, 0
      %p195 = por %p193, %p194
      %p196 = scmp.ne.s32.totalorder %s184, %s185
      %p197 = scmp.eq.s32.totalorder %s44, 1
      %p198 = por %p196, %p197
      %p200 = scmp.ne.s32.totalorder %s185, %s199
      %p201 = scmp.eq.s32.totalorder %s44, 0
      %p202 = por %p200, %p201
      %s204 = sadd.s32 %s203, 1
      %p207 = scmp.eq.s32.totalorder %s38, 1
      %p208 = scmp.ne.s32.totalorder %s203, %s205
      %p209 = scmp.eq.s32.totalorder %s38, 0
      %p210 = por %p208, %p209
      %p211 = scmp.ne.s32.totalorder %s203, %s205
      %p212 = scmp.eq.s32.totalorder %s43, 1
      %p213 = por %p211, %p212
      %p214 = scmp.ne.s32.totalorder %s205, %s206
      %p215 = scmp.eq.s32.totalorder %s43, 0
      %p216 = por %p214, %p215
      %p217 = scmp.ne.s32.totalorder %s205, %s206
      %p218 = scmp.eq.s32.totalorder %s44, 1
      %p219 = por %p217, %p218
      %p221 = scmp.ne.s32.totalorder %s206, %s220
      %p222 = scmp.eq.s32.totalorder %s44, 0
      %p223 = por %p221, %p222
      %s225 = sadd.s32 %s224, 1
      %p228 = scmp.eq.s32.totalorder %s38, 1
      %p229 = scmp.ne.s32.totalorder %s224, %s226
      %p230 = scmp.eq.s32.totalorder %s38, 0
      %p231 = por %p229, %p230
      %p232 = scmp.ne.s32.totalorder %s224, %s226
      %p233 = scmp.eq.s32.totalorder %s43, 1
      %p234 = por %p232, %p233
      %p235 = scmp.ne.s32.totalorder %s226, %s227
      %p236 = scmp.eq.s32.totalorder %s43, 0
      %p237 = por %p235, %p236
      %p238 = scmp.ne.s32.totalorder %s226, %s227
      %p239 = scmp.eq.s32.totalorder %s44, 1
      %p240 = por %p238, %p239
      %p242 = scmp.ne.s32.totalorder %s227, %s241
      %p243 = scmp.eq.s32.totalorder %s44, 0
      %p244 = por %p242, %p243
      %s246 = sadd.s32 %s245, 1
      %p249 = scmp.eq.s32.totalorder %s38, 1
      %p250 = scmp.ne.s32.totalorder %s245, %s247
      %p251 = scmp.eq.s32.totalorder %s38, 0
      %p252 = por %p250, %p251
      %p253 = scmp.ne.s32.totalorder %s245, %s247
      %p254 = scmp.eq.s32.totalorder %s43, 1
      %p255 = por %p253, %p254
      %p256 = scmp.ne.s32.totalorder %s247, %s248
      %p257 = scmp.eq.s32.totalorder %s43, 0
      %p258 = por %p256, %p257
      %p259 = scmp.ne.s32.totalorder %s247, %s248
      %p260 = scmp.eq.s32.totalorder %s44, 1
      %p261 = por %p259, %p260
      %p263 = scmp.ne.s32.totalorder %s248, %s262
      %p264 = scmp.eq.s32.totalorder %s44, 0
      %p265 = por %p263, %p264
      %s267 = sadd.s32 %s266, 1
      %p270 = scmp.eq.s32.totalorder %s38, 1
      %p271 = scmp.ne.s32.totalorder %s266, %s268
      %p272 = scmp.eq.s32.totalorder %s38, 0
      %p273 = por %p271, %p272
      %p274 = scmp.ne.s32.totalorder %s266, %s268
      %p275 = scmp.eq.s32.totalorder %s43, 1
      %p276 = por %p274, %p275
      %p277 = scmp.ne.s32.totalorder %s268, %s269
      %p278 = scmp.eq.s32.totalorder %s43, 0
      %p279 = por %p277, %p278
      %p280 = scmp.ne.s32.totalorder %s268, %s269
      %p281 = scmp.eq.s32.totalorder %s44, 1
      %p282 = por %p280, %p281
      %p284 = scmp.ne.s32.totalorder %s269, %s283
      %p285 = scmp.eq.s32.totalorder %s44, 0
      %p286 = por %p284, %p285
      %s288 = sadd.s32 %s287, 1
      %p291 = scmp.eq.s32.totalorder %s38, 1
      %p292 = scmp.ne.s32.totalorder %s287, %s289
      %p293 = scmp.eq.s32.totalorder %s38, 0
      %p294 = por %p292, %p293
      %p295 = scmp.ne.s32.totalorder %s287, %s289
      %p296 = scmp.eq.s32.totalorder %s43, 1
      %p297 = por %p295, %p296
      %p298 = scmp.ne.s32.totalorder %s289, %s290
      %p299 = scmp.eq.s32.totalorder %s43, 0
      %p300 = por %p298, %p299
      %p301 = scmp.ne.s32.totalorder %s289, %s290
      %p302 = scmp.eq.s32.totalorder %s44, 1
      %p303 = por %p301, %p302
      %p305 = scmp.ne.s32.totalorder %s290, %s304
      %p306 = scmp.eq.s32.totalorder %s44, 0
      %p307 = por %p305, %p306
      %s309 = sadd.s32 %s308, 1
      %p312 = scmp.eq.s32.totalorder %s38, 1
      %p313 = scmp.ne.s32.totalorder %s308, %s310
      %p314 = scmp.eq.s32.totalorder %s38, 0
      %p315 = por %p313, %p314
      %p316 = scmp.ne.s32.totalorder %s308, %s310
      %p317 = scmp.eq.s32.totalorder %s43, 1
      %p318 = por %p316, %p317
      %p319 = scmp.ne.s32.totalorder %s310, %s311
      %p320 = scmp.eq.s32.totalorder %s43, 0
      %p321 = por %p319, %p320
      %p322 = scmp.ne.s32.totalorder %s310, %s311
      %p323 = scmp.eq.s32.totalorder %s44, 1
      %p324 = por %p322, %p323
      %p326 = scmp.ne.s32.totalorder %s311, %s325
      %p327 = scmp.eq.s32.totalorder %s44, 0
      %p328 = por %p326, %p327
      %s330 = sadd.s32 %s329, 1
      %p333 = scmp.eq.s32.totalorder %s38, 1
      %p334 = scmp.ne.s32.totalorder %s329, %s331
      %p335 = scmp.eq.s32.totalorder %s38, 0
      %p336 = por %p334, %p335
      %p337 = scmp.ne.s32.totalorder %s329, %s331
      %p338 = scmp.eq.s32.totalorder %s43, 1
      %p339 = por %p337, %p338
      %p340 = scmp.ne.s32.totalorder %s331, %s332
      %p341 = scmp.eq.s32.totalorder %s43, 0
      %p342 = por %p340, %p341
      %p343 = scmp.ne.s32.totalorder %s331, %s332
      %p344 = scmp.eq.s32.totalorder %s44, 1
      %p345 = por %p343, %p344
      %p347 = scmp.ne.s32.totalorder %s332, %s346
      %p348 = scmp.eq.s32.totalorder %s44, 0
      %p349 = por %p347, %p348
      %s350 = ssub.s32 %s38, %s45
      %p351 = scmp.eq.s32.totalorder %s350, 0
      %s353 = sadd.s32 %s352, 1
      %s354 = scalar_select %p351, %s352, %s353
      %p357 = pneg %p351
      %p358 = scmp.eq.s32.totalorder %s38, 1
      %p359 = por %p357, %p358
      %p360 = scmp.ne.s32.totalorder %s352, %s355
      %p361 = scmp.eq.s32.totalorder %s38, 0
      %p362 = por %p360, %p361
      %p363 = scmp.ne.s32.totalorder %s352, %s355
      %p364 = scmp.eq.s32.totalorder %s43, 1
      %p365 = por %p363, %p364
      %p366 = scmp.ne.s32.totalorder %s355, %s356
      %p367 = scmp.eq.s32.totalorder %s43, 0
      %p368 = por %p366, %p367
      %p369 = scmp.ne.s32.totalorder %s355, %s356
      %p370 = scmp.eq.s32.totalorder %s44, 1
      %p371 = por %p369, %p370
      %p373 = scmp.ne.s32.totalorder %s356, %s372
      %p374 = scmp.eq.s32.totalorder %s44, 0
      %p375 = por %p373, %p374
      %s376 = ssub.s32 %s38, %s45
      %p377 = scmp.eq.s32.totalorder %s376, 0
      %s379 = sadd.s32 %s378, 1
      %s380 = scalar_select %p377, %s378, %s379
      %p383 = pneg %p377
      %p384 = scmp.eq.s32.totalorder %s38, 1
      %p385 = por %p383, %p384
      %p386 = scmp.ne.s32.totalorder %s378, %s381
      %p387 = scmp.eq.s32.totalorder %s38, 0
      %p388 = por %p386, %p387
      %p389 = scmp.ne.s32.totalorder %s378, %s381
      %p390 = scmp.eq.s32.totalorder %s43, 1
      %p391 = por %p389, %p390
      %p392 = scmp.ne.s32.totalorder %s381, %s382
      %p393 = scmp.eq.s32.totalorder %s43, 0
      %p394 = por %p392, %p393
      %p395 = scmp.ne.s32.totalorder %s381, %s382
      %p396 = scmp.eq.s32.totalorder %s44, 1
      %p397 = por %p395, %p396
      %p399 = scmp.ne.s32.totalorder %s382, %s398
      %p400 = scmp.eq.s32.totalorder %s44, 0
      %p401 = por %p399, %p400
      %s402 = ssub.s32 %s38, %s45
      %p403 = scmp.eq.s32.totalorder %s402, 0
      %s405 = sadd.s32 %s404, 1
      %s406 = scalar_select %p403, %s404, %s405
      %p409 = pneg %p403
      %p410 = scmp.eq.s32.totalorder %s38, 1
      %p411 = por %p409, %p410
      %p412 = scmp.ne.s32.totalorder %s404, %s407
      %p413 = scmp.eq.s32.totalorder %s38, 0
      %p414 = por %p412, %p413
      %p415 = scmp.ne.s32.totalorder %s404, %s407
      %p416 = scmp.eq.s32.totalorder %s43, 1
      %p417 = por %p415, %p416
      %p418 = scmp.ne.s32.totalorder %s407, %s408
      %p419 = scmp.eq.s32.totalorder %s43, 0
      %p420 = por %p418, %p419
      %p421 = scmp.ne.s32.totalorder %s407, %s408
      %p422 = scmp.eq.s32.totalorder %s44, 1
      %p423 = por %p421, %p422
      %p425 = scmp.ne.s32.totalorder %s408, %s424
      %p426 = scmp.eq.s32.totalorder %s44, 0
      %p427 = por %p425, %p426
      %p428 = scmp.le.s32.totalorder 1, %s38
      %p429 = scmp.lt.s32.totalorder %s38, 3
      %p430 = pnand %p428, %p429
      %p431 = pneg %p430
      // Predicated region
      $region9: #{tpu_custom_call.1} parent=5 // pred_check
        _
      $region10: #{tpu_custom_call.1} parent=5 // pred_check_branch
        %433 = sbr.rel (%p430) target = $region12
      $region11: #{tpu_custom_call.1} parent=5 // pred_region
        %s434 = ssub.s32 %s38, 1
        // Predicated region
        $region13: #{tpu_custom_call.1} parent=11 // pred_check
          %p435 = pneg %p111
        $region14: #{tpu_custom_call.1} parent=11 // pred_check_branch
          %437 = sbr.rel (%p435) target = $region16
        $region15: #{tpu_custom_call.1} parent=11 // pred_region
          %s439 = ssub.s32 2048, 2048
          %440 = vsyncadd [#allocation6], %s439
          %s441 = sshll.u32 [#allocation7], 4
          %s442 = int_to_ptr.vmem [resolvable:$true] %s441
          %447 = dma.hbm_to_vmem [thread:$0]  %s2, 2048, %s442, [#allocation6], 128, 128, 8
        $region16: #{tpu_custom_call.1} parent=11 // pred_fallthru
          _
        // Predicated region
        $region17: #{tpu_custom_call.1} parent=11 // pred_check
          %p448 = pneg %p132
        $region18: #{tpu_custom_call.1} parent=11 // pred_check_branch
          %450 = sbr.rel (%p448) target = $region20
        $region19: #{tpu_custom_call.1} parent=11 // pred_region
          _
        $region20: #{tpu_custom_call.1} parent=11 // pred_fallthru
          _
        // Predicated region
        $region21: #{tpu_custom_call.1} parent=11 // pred_check
          %p451 = pneg %p153
        $region22: #{tpu_custom_call.1} parent=11 // pred_check_branch
          %453 = sbr.rel (%p451) target = $region24
        $region23: #{tpu_custom_call.1} parent=11 // pred_region
          %s455 = ssub.s32 4096, 4096
          %456 = vsyncadd [#allocation9], %s455
          %s457 = sshll.u32 [#allocation8], 4
          %s458 = int_to_ptr.vmem [resolvable:$true] %s457
          %463 = dma.hbm_to_vmem [thread:$0]  %s4, 4096, %s458, [#allocation9], 256, 256, 16
        $region24: #{tpu_custom_call.1} parent=11 // pred_fallthru
          _
        // Predicated region
        $region25: #{tpu_custom_call.1} parent=11 // pred_check
          %p464 = pneg %p174
        $region26: #{tpu_custom_call.1} parent=11 // pred_check_branch
          %466 = sbr.rel (%p464) target = $region28
        $region27: #{tpu_custom_call.1} parent=11 // pred_region
          _
        $region28: #{tpu_custom_call.1} parent=11 // pred_fallthru
          _
        // Predicated region
        $region29: #{tpu_custom_call.1} parent=11 // pred_check
          %p467 = pneg %p195
        $region30: #{tpu_custom_call.1} parent=11 // pred_check_branch
          %469 = sbr.rel (%p467) target = $region32
        $region31: #{tpu_custom_call.1} parent=11 // pred_region
          %s471 = ssub.s32 2048, 2048
          %472 = vsyncadd [#allocation9], %s471
          %s473 = sshll.u32 [#allocation10], 4
          %s474 = int_to_ptr.vmem [resolvable:$true] %s473
          %479 = dma.hbm_to_vmem [thread:$0]  %s6, 2048, %s474, [#allocation9], 128, 128, 8
        $region32: #{tpu_custom_call.1} parent=11 // pred_fallthru
          _
        // Predicated region
        $region33: #{tpu_custom_call.1} parent=11 // pred_check
          %p480 = pneg %p216
        $region34: #{tpu_custom_call.1} parent=11 // pred_check_branch
          %482 = sbr.rel (%p480) target = $region36
        $region35: #{tpu_custom_call.1} parent=11 // pred_region
          _
        $region36: #{tpu_custom_call.1} parent=11 // pred_fallthru
          _
        // Predicated region
        $region37: #{tpu_custom_call.1} parent=11 // pred_check
          %p483 = pneg %p237
        $region38: #{tpu_custom_call.1} parent=11 // pred_check_branch
          %485 = sbr.rel (%p483) target = $region40
        $region39: #{tpu_custom_call.1} parent=11 // pred_region
          %s487 = ssub.s32 2048, 2048
          %488 = vsyncadd [#allocation12], %s487
          %s489 = sshll.u32 [#allocation11], 4
          %s490 = int_to_ptr.vmem [resolvable:$true] %s489
          %495 = dma.hbm_to_vmem [thread:$0]  %s8, 2048, %s490, [#allocation12], 128, 128, 8
        $region40: #{tpu_custom_call.1} parent=11 // pred_fallthru
          _
        // Predicated region
        $region41: #{tpu_custom_call.1} parent=11 // pred_check
          %p496 = pneg %p258
        $region42: #{tpu_custom_call.1} parent=11 // pred_check_branch
          %498 = sbr.rel (%p496) target = $region44
        $region43: #{tpu_custom_call.1} parent=11 // pred_region
          _
        $region44: #{tpu_custom_call.1} parent=11 // pred_fallthru
          _
        // Predicated region
        $region45: #{tpu_custom_call.1} parent=11 // pred_check
          %p499 = pneg %p279
        $region46: #{tpu_custom_call.1} parent=11 // pred_check_branch
          %501 = sbr.rel (%p499) target = $region48
        $region47: #{tpu_custom_call.1} parent=11 // pred_region
          %s503 = ssub.s32 2048, 2048
          %504 = vsyncadd [#allocation12], %s503
          %s505 = sshll.u32 [#allocation13], 4
          %s506 = int_to_ptr.vmem [resolvable:$true] %s505
          %511 = dma.hbm_to_vmem [thread:$0]  %s10, 2048, %s506, [#allocation12], 128, 128, 8
        $region48: #{tpu_custom_call.1} parent=11 // pred_fallthru
          _
        // Predicated region
        $region49: #{tpu_custom_call.1} parent=11 // pred_check
          %p512 = pneg %p300
        $region50: #{tpu_custom_call.1} parent=11 // pred_check_branch
          %514 = sbr.rel (%p512) target = $region52
        $region51: #{tpu_custom_call.1} parent=11 // pred_region
          _
        $region52: #{tpu_custom_call.1} parent=11 // pred_fallthru
          _
        // Predicated region
        $region53: #{tpu_custom_call.1} parent=11 // pred_check
          %p515 = pneg %p321
        $region54: #{tpu_custom_call.1} parent=11 // pred_check_branch
          %517 = sbr.rel (%p515) target = $region56
        $region55: #{tpu_custom_call.1} parent=11 // pred_region
          %s519 = ssub.s32 2048, 2048
          %520 = vsyncadd [#allocation15], %s519
          %s521 = sshll.u32 [#allocation14], 4
          %s522 = int_to_ptr.vmem [resolvable:$true] %s521
          %527 = dma.hbm_to_vmem [thread:$0]  %s12, 2048, %s522, [#allocation15], 128, 128, 8
        $region56: #{tpu_custom_call.1} parent=11 // pred_fallthru
          _
        // Predicated region
        $region57: #{tpu_custom_call.1} parent=11 // pred_check
          %p528 = pneg %p342
        $region58: #{tpu_custom_call.1} parent=11 // pred_check_branch
          %530 = sbr.rel (%p528) target = $region60
        $region59: #{tpu_custom_call.1} parent=11 // pred_region
          _
        $region60: #{tpu_custom_call.1} parent=11 // pred_fallthru
          _
      $region12: #{tpu_custom_call.1} parent=5 // pred_fallthru
        _
      %p531 = scmp.lt.s32.totalorder %s38, 2
      // Predicated region
      $region61: #{tpu_custom_call.1} parent=5 // pred_check
        %p532 = pneg %p531
      $region62: #{tpu_custom_call.1} parent=5 // pred_check_branch
        %534 = sbr.rel (%p532) target = $region64
      $region63: #{tpu_custom_call.1} parent=5 // pred_region
        // Predicated region
        $region65: #{tpu_custom_call.1} parent=63 // pred_check
          %p535 = pneg %p58
        $region66: #{tpu_custom_call.1} parent=63 // pred_check_branch
          %537 = sbr.rel (%p535) target = $region68
        $region67: #{tpu_custom_call.1} parent=63 // pred_region
          %s538 = sand.u32 %s48, 1
          %s539 = scalar_lea.sflag [#allocation3], %s538
          %s540 = sand.u32 %s48, 1
          %s541 = smul.addr %s540, 256
          %s542 = scalar_lea.vmem [#allocation2], %s541
          %s543 = smul.u32 32, %s38
          %s545 = ssub.s32 4096, 4096
          %546 = vsyncadd %s539, %s545
          %s547 = smul.addr %s543, 128
          %s548 = scalar_lea.hbm %s0, %s547
          %s549 = sshll.u32 %s542, 4
          %s550 = int_to_ptr.vmem [resolvable:$true] %s549
          %555 = dma.hbm_to_vmem [thread:$0]  %s548, 4096, %s550, %s539, 128, 128, 8
        $region68: #{tpu_custom_call.1} parent=63 // pred_fallthru
          _
        // Predicated region
        $region69: #{tpu_custom_call.1} parent=63 // pred_check
          %p556 = pneg %p84
        $region70: #{tpu_custom_call.1} parent=63 // pred_check_branch
          %558 = sbr.rel (%p556) target = $region72
        $region71: #{tpu_custom_call.1} parent=63 // pred_region
          %s559 = sand.u32 %s38, 1
          %s560 = scalar_lea.sflag [#allocation6], %s559
          %s561 = sand.u32 %s74, 1
          %s562 = smul.addr %s561, 256
          %s563 = scalar_lea.vmem [#allocation5], %s562
          %s564 = smul.u32 32, %s38
          %s566 = ssub.s32 4096, 4096
          %567 = vsyncadd %s560, %s566
          %s568 = smul.addr %s564, 128
          %s569 = scalar_lea.hbm %s1, %s568
          %s570 = sshll.u32 %s563, 4
          %s571 = int_to_ptr.vmem [resolvable:$true] %s570
          %576 = dma.hbm_to_vmem [thread:$0]  %s569, 4096, %s571, %s560, 128, 128, 8
        $region72: #{tpu_custom_call.1} parent=63 // pred_fallthru
          _
      $region64: #{tpu_custom_call.1} parent=5 // pred_fallthru
        _
      %p577 = scmp.le.s32.totalorder 1, %s38
      %p578 = scmp.lt.s32.totalorder %s38, 3
      %p579 = pnand %p577, %p578
      %p580 = pneg %p579
      // Predicated region
      $region73: #{tpu_custom_call.1} parent=5 // pred_check
        _
      $region74: #{tpu_custom_call.1} parent=5 // pred_check_branch
        %582 = sbr.rel (%p579) target = $region76
      $region75: #{tpu_custom_call.1} parent=5 // pred_region
        %s583 = ssub.s32 %s38, 1
        %s584 = sand.u32 %s51, 1
        %s585 = scalar_lea.sflag [#allocation3], %s584
        %s586 = sand.u32 %s51, 1
        %s587 = smul.addr %s586, 256
        %s588 = scalar_lea.vmem [#allocation2], %s587
        // Predicated region
        $region77: #{tpu_custom_call.1} parent=75 // pred_check
          %p589 = pneg %p64
        $region78: #{tpu_custom_call.1} parent=75 // pred_check_branch
          %591 = sbr.rel (%p589) target = $region80
        $region79: #{tpu_custom_call.1} parent=75 // pred_region
          %592 = dma.done %s585, 4096
        $region80: #{tpu_custom_call.1} parent=75 // pred_fallthru
          _
        %s593 = sand.u32 %s43, 1
        %s594 = scalar_lea.sflag [#allocation6], %s593
        %s595 = sand.u32 %s77, 1
        %s596 = smul.addr %s595, 256
        %s597 = scalar_lea.vmem [#allocation5], %s596
        // Predicated region
        $region81: #{tpu_custom_call.1} parent=75 // pred_check
          %p598 = pneg %p90
        $region82: #{tpu_custom_call.1} parent=75 // pred_check_branch
          %600 = sbr.rel (%p598) target = $region84
        $region83: #{tpu_custom_call.1} parent=75 // pred_region
          %601 = dma.done %s594, 4096
        $region84: #{tpu_custom_call.1} parent=75 // pred_fallthru
          _
        // Predicated region
        $region85: #{tpu_custom_call.1} parent=75 // pred_check
          %p602 = pneg %p111
        $region86: #{tpu_custom_call.1} parent=75 // pred_check_branch
          %604 = sbr.rel (%p602) target = $region88
        $region87: #{tpu_custom_call.1} parent=75 // pred_region
          %605 = dma.done [#allocation6], 2048
        $region88: #{tpu_custom_call.1} parent=75 // pred_fallthru
          _
        // Predicated region
        $region89: #{tpu_custom_call.1} parent=75 // pred_check
          %p606 = pneg %p153
        $region90: #{tpu_custom_call.1} parent=75 // pred_check_branch
          %608 = sbr.rel (%p606) target = $region92
        $region91: #{tpu_custom_call.1} parent=75 // pred_region
          %609 = dma.done [#allocation9], 4096
        $region92: #{tpu_custom_call.1} parent=75 // pred_fallthru
          _
        // Predicated region
        $region93: #{tpu_custom_call.1} parent=75 // pred_check
          %p610 = pneg %p195
        $region94: #{tpu_custom_call.1} parent=75 // pred_check_branch
          %612 = sbr.rel (%p610) target = $region96
        $region95: #{tpu_custom_call.1} parent=75 // pred_region
          %613 = dma.done [#allocation9], 2048
        $region96: #{tpu_custom_call.1} parent=75 // pred_fallthru
          _
        // Predicated region
        $region97: #{tpu_custom_call.1} parent=75 // pred_check
          %p614 = pneg %p237
        $region98: #{tpu_custom_call.1} parent=75 // pred_check_branch
          %616 = sbr.rel (%p614) target = $region100
        $region99: #{tpu_custom_call.1} parent=75 // pred_region
          %617 = dma.done [#allocation12], 2048
        $region100: #{tpu_custom_call.1} parent=75 // pred_fallthru
          _
        // Predicated region
        $region101: #{tpu_custom_call.1} parent=75 // pred_check
          %p618 = pneg %p279
        $region102: #{tpu_custom_call.1} parent=75 // pred_check_branch
          %620 = sbr.rel (%p618) target = $region104
        $region103: #{tpu_custom_call.1} parent=75 // pred_region
          %621 = dma.done [#allocation12], 2048
        $region104: #{tpu_custom_call.1} parent=75 // pred_fallthru
          _
        // Predicated region
        $region105: #{tpu_custom_call.1} parent=75 // pred_check
          %p622 = pneg %p321
        $region106: #{tpu_custom_call.1} parent=75 // pred_check_branch
          %624 = sbr.rel (%p622) target = $region108
        $region107: #{tpu_custom_call.1} parent=75 // pred_region
          %625 = dma.done [#allocation15], 2048
        $region108: #{tpu_custom_call.1} parent=75 // pred_fallthru
          _
        %s626 = sand.u32 %s51, 1
        %s627 = scalar_lea.sflag [#allocation3], %s626
        %s628 = sand.u32 %s51, 1
        %s629 = smul.addr %s628, 256
        %s630 = scalar_lea.vmem [#allocation2], %s629
        %p631 = pneg %p64
        %p632 = pneg %p61
        %s633 = sand.u32 %s43, 1
        %s634 = scalar_lea.sflag [#allocation6], %s633
        %s635 = sand.u32 %s77, 1
        %s636 = smul.addr %s635, 256
        %s637 = scalar_lea.vmem [#allocation5], %s636
        %p638 = pneg %p90
        %p639 = pneg %p87
        %p640 = pneg %p111
        %p641 = pneg %p108
        %p642 = pneg %p132
        %p643 = pneg %p129
        %p644 = pneg %p153
        %p645 = pneg %p150
        %p646 = pneg %p174
        %p647 = pneg %p171
        %p648 = pneg %p195
        %p649 = pneg %p192
        %p650 = pneg %p216
        %p651 = pneg %p213
        %p652 = pneg %p237
        %p653 = pneg %p234
        %p654 = pneg %p258
        %p655 = pneg %p255
        %p656 = pneg %p279
        %p657 = pneg %p276
        %p658 = pneg %p300
        %p659 = pneg %p297
        %p660 = pneg %p321
        %p661 = pneg %p318
        %p662 = pneg %p342
        %p663 = pneg %p339
        %p664 = pneg %p368
        %p665 = pneg %p365
        %s666 = sand.u32 %s355, 1
        %s667 = scalar_lea.sflag [#allocation4], %s666
        %s668 = sand.u32 %s355, 1
        %s669 = smul.addr %s668, 256
        %s670 = scalar_lea.vmem [#allocation16], %s669
        %p671 = pneg %p394
        %p672 = pneg %p391
        %s673 = sand.u32 %s43, 1
        %s674 = scalar_lea.sflag [#allocation18], %s673
        %s675 = sand.u32 %s381, 1
        %s676 = smul.addr %s675, 512
        %s677 = scalar_lea.vmem [#allocation17], %s676
        %p678 = pneg %p420
        %p679 = pneg %p417
        %s680 = sand.u32 %s43, 1
        %s681 = scalar_lea.sflag [#allocation18], %s680
        %s682 = sand.u32 %s407, 1
        %s683 = smul.addr %s682, 256
        %s684 = scalar_lea.vmem [#allocation19], %s683
        %s685 = smul.u32 32, %s43
        %s686 = smul.u32 32, %s43
        %s687 = smul.u32 32, %s43
        %s688 = smul.u32 32, %s43
        %s689 = smul.u32 32, %s43
        %v690 = vld [vmem:[%s588] sm:$0xff]
        %v691 = vld [vmem:[%s588 + $0x8] sm:$0xff]
        %v692 = vld [vmem:[%s588 + $0x10] sm:$0xff]
        %v693 = vld [vmem:[%s588 + $0x18] sm:$0xff]
        %v694 = vld [vmem:[%s588 + $0x20] sm:$0xff]
        %v695 = vld [vmem:[%s588 + $0x28] sm:$0xff]
        %v696 = vld [vmem:[%s588 + $0x30] sm:$0xff]
        %v697 = vld [vmem:[%s588 + $0x38] sm:$0xff]
        %v698 = vld [vmem:[%s588 + $0x40] sm:$0xff]
        %v699 = vld [vmem:[%s588 + $0x48] sm:$0xff]
        %v700 = vld [vmem:[%s588 + $0x50] sm:$0xff]
        %v701 = vld [vmem:[%s588 + $0x58] sm:$0xff]
        %v702 = vld [vmem:[%s588 + $0x60] sm:$0xff]
        %v703 = vld [vmem:[%s588 + $0x68] sm:$0xff]
        %v704 = vld [vmem:[%s588 + $0x70] sm:$0xff]
        %v705 = vld [vmem:[%s588 + $0x78] sm:$0xff]
        %v706 = vld [vmem:[%s588 + $0x80] sm:$0xff]
        %v707 = vld [vmem:[%s588 + $0x88] sm:$0xff]
        %v708 = vld [vmem:[%s588 + $0x90] sm:$0xff]
        %v709 = vld [vmem:[%s588 + $0x98] sm:$0xff]
        %v710 = vld [vmem:[%s588 + $0xa0] sm:$0xff]
        %v711 = vld [vmem:[%s588 + $0xa8] sm:$0xff]
        %v712 = vld [vmem:[%s588 + $0xb0] sm:$0xff]
        %v713 = vld [vmem:[%s588 + $0xb8] sm:$0xff]
        %v714 = vld [vmem:[%s588 + $0xc0] sm:$0xff]
        %v715 = vld [vmem:[%s588 + $0xc8] sm:$0xff]
        %v716 = vld [vmem:[%s588 + $0xd0] sm:$0xff]
        %v717 = vld [vmem:[%s588 + $0xd8] sm:$0xff]
        %v718 = vld [vmem:[%s588 + $0xe0] sm:$0xff]
        %v719 = vld [vmem:[%s588 + $0xe8] sm:$0xff]
        %v720 = vld [vmem:[%s588 + $0xf0] sm:$0xff]
        %v721 = vld [vmem:[%s588 + $0xf8] sm:$0xff]
        %v722 = vld [vmem:[#allocation7] sm:$0xff]
        %v723 = vld [vmem:[#allocation7 + $0x8] sm:$0xff]
        %v724 = vld [vmem:[#allocation7 + $0x10] sm:$0xff]
        %v725 = vld [vmem:[#allocation7 + $0x18] sm:$0xff]
        %v726 = vld [vmem:[#allocation7 + $0x20] sm:$0xff]
        %v727 = vld [vmem:[#allocation7 + $0x28] sm:$0xff]
        %v728 = vld [vmem:[#allocation7 + $0x30] sm:$0xff]
        %v729 = vld [vmem:[#allocation7 + $0x38] sm:$0xff]
        %v730 = vld [vmem:[#allocation7 + $0x40] sm:$0xff]
        %v731 = vld [vmem:[#allocation7 + $0x48] sm:$0xff]
        %v732 = vld [vmem:[#allocation7 + $0x50] sm:$0xff]
        %v733 = vld [vmem:[#allocation7 + $0x58] sm:$0xff]
        %v734 = vld [vmem:[#allocation7 + $0x60] sm:$0xff]
        %v735 = vld [vmem:[#allocation7 + $0x68] sm:$0xff]
        %v736 = vld [vmem:[#allocation7 + $0x70] sm:$0xff]
        %v737 = vld [vmem:[#allocation7 + $0x78] sm:$0xff]
        %v738 = vld [vmem:[%s3] sm:$0x1]
        %v740 = vlaneseq
        %v741 = vshrl.u32 %v740, 7
        %v742 = vsub.s32 0, %v741
        %v743 = vrot.slane %v738, %v742
        %745 = vmatprep.subr.mxu0 0.0
        %746 = vmatpush1.msra.mxu0 %v737
        %747 = vmatprep.subr.mxu0 0.0
        %748 = vmatpush1.msra.mxu0 %v736
        %749 = vmatprep.subr.mxu0 0.0
        %750 = vmatpush1.msra.mxu0 %v735
        %751 = vmatprep.subr.mxu0 0.0
        %752 = vmatpush1.msra.mxu0 %v734
        %753 = vmatprep.subr.mxu0 0.0
        %754 = vmatpush1.msra.mxu0 %v733
        %755 = vmatprep.subr.mxu0 0.0
        %756 = vmatpush1.msra.mxu0 %v732
        %757 = vmatprep.subr.mxu0 0.0
        %758 = vmatpush1.msra.mxu0 %v731
        %759 = vmatprep.subr.mxu0 0.0
        %760 = vmatpush1.msra.mxu0 %v730
        %761 = vmatprep.subr.mxu0 0.0
        %762 = vmatpush1.msra.mxu0 %v729
        %763 = vmatprep.subr.mxu0 0.0
        %764 = vmatpush1.msra.mxu0 %v728
        %765 = vmatprep.subr.mxu0 0.0
        %766 = vmatpush1.msra.mxu0 %v727
        %767 = vmatprep.subr.mxu0 0.0
        %768 = vmatpush1.msra.mxu0 %v726
        %769 = vmatprep.subr.mxu0 0.0
        %770 = vmatpush1.msra.mxu0 %v725
        %771 = vmatprep.subr.mxu0 0.0
        %772 = vmatpush1.msra.mxu0 %v724
        %773 = vmatprep.subr.mxu0 0.0
        %774 = vmatpush1.msra.mxu0 %v723
        %775 = vmatprep.subr.mxu0 0.0
        %776 = vmatpush1.msra.mxu0 %v722
        %777 = vmatprep.subr.mxu0 0.0
        %778 = vmatpush2.msra.mxu0 0.0
        %779 = vmatprep.subr.mxu0 0.0
        %780 = vmatpush2.msra.mxu0 0.0
        %781 = vmatprep.subr.mxu0 0.0
        %782 = vmatpush2.msra.mxu0 0.0
        %783 = vmatprep.subr.mxu0 0.0
        %784 = vmatpush2.msra.mxu0 0.0
        %785 = vmatprep.subr.mxu0 0.0
        %786 = vmatpush2.msra.mxu0 0.0
        %787 = vmatprep.subr.mxu0 0.0
        %788 = vmatpush2.msra.mxu0 0.0
        %789 = vmatprep.subr.mxu0 0.0
        %790 = vmatpush2.msra.mxu0 0.0
        %791 = vmatprep.subr.mxu0 0.0
        %792 = vmatpush2.msra.mxu0 0.0
        %793 = vmatprep.subr.mxu0 0.0
        %794 = vmatpush2.msra.mxu0 0.0
        %795 = vmatprep.subr.mxu0 0.0
        %796 = vmatpush2.msra.mxu0 0.0
        %797 = vmatprep.subr.mxu0 0.0
        %798 = vmatpush2.msra.mxu0 0.0
        %799 = vmatprep.subr.mxu0 0.0
        %800 = vmatpush2.msra.mxu0 0.0
        %801 = vmatprep.subr.mxu0 0.0
        %802 = vmatpush2.msra.mxu0 0.0
        %803 = vmatprep.subr.mxu0 0.0
        %804 = vmatpush2.msra.mxu0 0.0
        %805 = vmatprep.subr.mxu0 0.0
        %806 = vmatpush2.msra.mxu0 0.0
        %807 = vmatprep.subr.mxu0 0.0
        %808 = vmatpush2.msra.mxu0 0.0
        %809 = vmatprep.mubr.f32.mxu0 0.0
        %810 = vmatmul.mubr.f32.gmra.mxu0 %v690
        %v811 = vpop.f32.mrf.mxu0
        %v812 = vadd.f32 %v743, %v811
        %v813 = vpop.f32.mrf.mxu0
        %814 = vmatprep.mubr.f32.mxu0 0.0
        %815 = vmatmul.mubr.f32.gmra.mxu0 %v691
        %v816 = vpop.f32.mrf.mxu0
        %v817 = vadd.f32 %v743, %v816
        %v818 = vpop.f32.mrf.mxu0
        %819 = vmatprep.mubr.f32.mxu0 0.0
        %820 = vmatmul.mubr.f32.gmra.mxu0 %v692
        %v821 = vpop.f32.mrf.mxu0
        %v822 = vadd.f32 %v743, %v821
        %v823 = vpop.f32.mrf.mxu0
        %824 = vmatprep.mubr.f32.mxu0 0.0
        %825 = vmatmul.mubr.f32.gmra.mxu0 %v693
        %v826 = vpop.f32.mrf.mxu0
        %v827 = vadd.f32 %v743, %v826
        %v828 = vpop.f32.mrf.mxu0
        %829 = vmatprep.mubr.f32.mxu0 0.0
        %830 = vmatmul.mubr.f32.gmra.mxu0 %v694
        %v831 = vpop.f32.mrf.mxu0
        %v832 = vadd.f32 %v743, %v831
        %v833 = vpop.f32.mrf.mxu0
        %834 = vmatprep.mubr.f32.mxu0 0.0
        %835 = vmatmul.mubr.f32.gmra.mxu0 %v695
        %v836 = vpop.f32.mrf.mxu0
        %v837 = vadd.f32 %v743, %v836
        %v838 = vpop.f32.mrf.mxu0
        %839 = vmatprep.mubr.f32.mxu0 0.0
        %840 = vmatmul.mubr.f32.gmra.mxu0 %v696
        %v841 = vpop.f32.mrf.mxu0
        %v842 = vadd.f32 %v743, %v841
        %v843 = vpop.f32.mrf.mxu0
        %844 = vmatprep.mubr.f32.mxu0 0.0
        %845 = vmatmul.mubr.f32.gmra.mxu0 %v697
        %v846 = vpop.f32.mrf.mxu0
        %v847 = vadd.f32 %v743, %v846
        %v848 = vpop.f32.mrf.mxu0
        %849 = vmatprep.mubr.f32.mxu0 0.0
        %850 = vmatmul.mubr.f32.gmra.mxu0 %v698
        %v851 = vpop.f32.mrf.mxu0
        %v852 = vadd.f32 %v743, %v851
        %v853 = vpop.f32.mrf.mxu0
        %854 = vmatprep.mubr.f32.mxu0 0.0
        %855 = vmatmul.mubr.f32.gmra.mxu0 %v699
        %v856 = vpop.f32.mrf.mxu0
        %v857 = vadd.f32 %v743, %v856
        %v858 = vpop.f32.mrf.mxu0
        %859 = vmatprep.mubr.f32.mxu0 0.0
        %860 = vmatmul.mubr.f32.gmra.mxu0 %v700
        %v861 = vpop.f32.mrf.mxu0
        %v862 = vadd.f32 %v743, %v861
        %v863 = vpop.f32.mrf.mxu0
        %864 = vmatprep.mubr.f32.mxu0 0.0
        %865 = vmatmul.mubr.f32.gmra.mxu0 %v701
        %v866 = vpop.f32.mrf.mxu0
        %v867 = vadd.f32 %v743, %v866
        %v868 = vpop.f32.mrf.mxu0
        %869 = vmatprep.mubr.f32.mxu0 0.0
        %870 = vmatmul.mubr.f32.gmra.mxu0 %v702
        %v871 = vpop.f32.mrf.mxu0
        %v872 = vadd.f32 %v743, %v871
        %v873 = vpop.f32.mrf.mxu0
        %874 = vmatprep.mubr.f32.mxu0 0.0
        %875 = vmatmul.mubr.f32.gmra.mxu0 %v703
        %v876 = vpop.f32.mrf.mxu0
        %v877 = vadd.f32 %v743, %v876
        %v878 = vpop.f32.mrf.mxu0
        %879 = vmatprep.mubr.f32.mxu0 0.0
        %880 = vmatmul.mubr.f32.gmra.mxu0 %v704
        %v881 = vpop.f32.mrf.mxu0
        %v882 = vadd.f32 %v743, %v881
        %v883 = vpop.f32.mrf.mxu0
        %884 = vmatprep.mubr.f32.mxu0 0.0
        %885 = vmatmul.mubr.f32.gmra.mxu0 %v705
        %v886 = vpop.f32.mrf.mxu0
        %v887 = vadd.f32 %v743, %v886
        %v888 = vpop.f32.mrf.mxu0
        %889 = vmatprep.mubr.f32.mxu0 0.0
        %890 = vmatmul.mubr.f32.gmra.mxu0 %v706
        %v891 = vpop.f32.mrf.mxu0
        %v892 = vadd.f32 %v743, %v891
        %v893 = vpop.f32.mrf.mxu0
        %894 = vmatprep.mubr.f32.mxu0 0.0
        %895 = vmatmul.mubr.f32.gmra.mxu0 %v707
        %v896 = vpop.f32.mrf.mxu0
        %v897 = vadd.f32 %v743, %v896
        %v898 = vpop.f32.mrf.mxu0
        %899 = vmatprep.mubr.f32.mxu0 0.0
        %900 = vmatmul.mubr.f32.gmra.mxu0 %v708
        %v901 = vpop.f32.mrf.mxu0
        %v902 = vadd.f32 %v743, %v901
        %v903 = vpop.f32.mrf.mxu0
        %904 = vmatprep.mubr.f32.mxu0 0.0
        %905 = vmatmul.mubr.f32.gmra.mxu0 %v709
        %v906 = vpop.f32.mrf.mxu0
        %v907 = vadd.f32 %v743, %v906
        %v908 = vpop.f32.mrf.mxu0
        %909 = vmatprep.mubr.f32.mxu0 0.0
        %910 = vmatmul.mubr.f32.gmra.mxu0 %v710
        %v911 = vpop.f32.mrf.mxu0
        %v912 = vadd.f32 %v743, %v911
        %v913 = vpop.f32.mrf.mxu0
        %914 = vmatprep.mubr.f32.mxu0 0.0
        %915 = vmatmul.mubr.f32.gmra.mxu0 %v711
        %v916 = vpop.f32.mrf.mxu0
        %v917 = vadd.f32 %v743, %v916
        %v918 = vpop.f32.mrf.mxu0
        %919 = vmatprep.mubr.f32.mxu0 0.0
        %920 = vmatmul.mubr.f32.gmra.mxu0 %v712
        %v921 = vpop.f32.mrf.mxu0
        %v922 = vadd.f32 %v743, %v921
        %v923 = vpop.f32.mrf.mxu0
        %924 = vmatprep.mubr.f32.mxu0 0.0
        %925 = vmatmul.mubr.f32.gmra.mxu0 %v713
        %v926 = vpop.f32.mrf.mxu0
        %v927 = vadd.f32 %v743, %v926
        %v928 = vpop.f32.mrf.mxu0
        %929 = vmatprep.mubr.f32.mxu0 0.0
        %930 = vmatmul.mubr.f32.gmra.mxu0 %v714
        %v931 = vpop.f32.mrf.mxu0
        %v932 = vadd.f32 %v743, %v931
        %v933 = vpop.f32.mrf.mxu0
        %934 = vmatprep.mubr.f32.mxu0 0.0
        %935 = vmatmul.mubr.f32.gmra.mxu0 %v715
        %v936 = vpop.f32.mrf.mxu0
        %v937 = vadd.f32 %v743, %v936
        %v938 = vpop.f32.mrf.mxu0
        %939 = vmatprep.mubr.f32.mxu0 0.0
        %940 = vmatmul.mubr.f32.gmra.mxu0 %v716
        %v941 = vpop.f32.mrf.mxu0
        %v942 = vadd.f32 %v743, %v941
        %v943 = vpop.f32.mrf.mxu0
        %944 = vmatprep.mubr.f32.mxu0 0.0
        %945 = vmatmul.mubr.f32.gmra.mxu0 %v717
        %v946 = vpop.f32.mrf.mxu0
        %v947 = vadd.f32 %v743, %v946
        %v948 = vpop.f32.mrf.mxu0
        %949 = vmatprep.mubr.f32.mxu0 0.0
        %950 = vmatmul.mubr.f32.gmra.mxu0 %v718
        %v951 = vpop.f32.mrf.mxu0
        %v952 = vadd.f32 %v743, %v951
        %v953 = vpop.f32.mrf.mxu0
        %954 = vmatprep.mubr.f32.mxu0 0.0
        %955 = vmatmul.mubr.f32.gmra.mxu0 %v719
        %v956 = vpop.f32.mrf.mxu0
        %v957 = vadd.f32 %v743, %v956
        %v958 = vpop.f32.mrf.mxu0
        %959 = vmatprep.mubr.f32.mxu0 0.0
        %960 = vmatmul.mubr.f32.gmra.mxu0 %v720
        %v961 = vpop.f32.mrf.mxu0
        %v962 = vadd.f32 %v743, %v961
        %v963 = vpop.f32.mrf.mxu0
        %964 = vmatprep.mubr.f32.mxu0 0.0
        %965 = vmatmul.mubr.f32.gmra.mxu0 %v721
        %v966 = vpop.f32.mrf.mxu0
        %v967 = vadd.f32 %v743, %v966
        %v968 = vpop.f32.mrf.mxu0
        %969 = vdwg.mxu0
        %v970 = vmax.f32 %v812, 0.0
        %v971 = vmax.f32 %v817, 0.0
        %v972 = vmax.f32 %v822, 0.0
        %v973 = vmax.f32 %v827, 0.0
        %v974 = vmax.f32 %v832, 0.0
        %v975 = vmax.f32 %v837, 0.0
        %v976 = vmax.f32 %v842, 0.0
        %v977 = vmax.f32 %v847, 0.0
        %v978 = vmax.f32 %v852, 0.0
        %v979 = vmax.f32 %v857, 0.0
        %v980 = vmax.f32 %v862, 0.0
        %v981 = vmax.f32 %v867, 0.0
        %v982 = vmax.f32 %v872, 0.0
        %v983 = vmax.f32 %v877, 0.0
        %v984 = vmax.f32 %v882, 0.0
        %v985 = vmax.f32 %v887, 0.0
        %v986 = vmax.f32 %v892, 0.0
        %v987 = vmax.f32 %v897, 0.0
        %v988 = vmax.f32 %v902, 0.0
        %v989 = vmax.f32 %v907, 0.0
        %v990 = vmax.f32 %v912, 0.0
        %v991 = vmax.f32 %v917, 0.0
        %v992 = vmax.f32 %v922, 0.0
        %v993 = vmax.f32 %v927, 0.0
        %v994 = vmax.f32 %v932, 0.0
        %v995 = vmax.f32 %v937, 0.0
        %v996 = vmax.f32 %v942, 0.0
        %v997 = vmax.f32 %v947, 0.0
        %v998 = vmax.f32 %v952, 0.0
        %v999 = vmax.f32 %v957, 0.0
        %v1000 = vmax.f32 %v962, 0.0
        %v1001 = vmax.f32 %v967, 0.0
        %v1002 = vld [vmem:[#allocation8] sm:$0xff]
        %v1003 = vld [vmem:[#allocation8 + $0x8] sm:$0xff]
        %v1004 = vld [vmem:[#allocation8 + $0x10] sm:$0xff]
        %v1005 = vld [vmem:[#allocation8 + $0x18] sm:$0xff]
        %v1006 = vld [vmem:[#allocation8 + $0x20] sm:$0xff]
        %v1007 = vld [vmem:[#allocation8 + $0x28] sm:$0xff]
        %v1008 = vld [vmem:[#allocation8 + $0x30] sm:$0xff]
        %v1009 = vld [vmem:[#allocation8 + $0x38] sm:$0xff]
        %v1010 = vld [vmem:[#allocation8 + $0x40] sm:$0xff]
        %v1011 = vld [vmem:[#allocation8 + $0x48] sm:$0xff]
        %v1012 = vld [vmem:[#allocation8 + $0x50] sm:$0xff]
        %v1013 = vld [vmem:[#allocation8 + $0x58] sm:$0xff]
        %v1014 = vld [vmem:[#allocation8 + $0x60] sm:$0xff]
        %v1015 = vld [vmem:[#allocation8 + $0x68] sm:$0xff]
        %v1016 = vld [vmem:[#allocation8 + $0x70] sm:$0xff]
        %v1017 = vld [vmem:[#allocation8 + $0x78] sm:$0xff]
        %v1018 = vld [vmem:[#allocation8 + $0x80] sm:$0xff]
        %v1019 = vld [vmem:[#allocation8 + $0x88] sm:$0xff]
        %v1020 = vld [vmem:[#allocation8 + $0x90] sm:$0xff]
        %v1021 = vld [vmem:[#allocation8 + $0x98] sm:$0xff]
        %v1022 = vld [vmem:[#allocation8 + $0xa0] sm:$0xff]
        %v1023 = vld [vmem:[#allocation8 + $0xa8] sm:$0xff]
        %v1024 = vld [vmem:[#allocation8 + $0xb0] sm:$0xff]
        %v1025 = vld [vmem:[#allocation8 + $0xb8] sm:$0xff]
        %v1026 = vld [vmem:[#allocation8 + $0xc0] sm:$0xff]
        %v1027 = vld [vmem:[#allocation8 + $0xc8] sm:$0xff]
        %v1028 = vld [vmem:[#allocation8 + $0xd0] sm:$0xff]
        %v1029 = vld [vmem:[#allocation8 + $0xd8] sm:$0xff]
        %v1030 = vld [vmem:[#allocation8 + $0xe0] sm:$0xff]
        %v1031 = vld [vmem:[#allocation8 + $0xe8] sm:$0xff]
        %v1032 = vld [vmem:[#allocation8 + $0xf0] sm:$0xff]
        %v1033 = vld [vmem:[#allocation8 + $0xf8] sm:$0xff]
        %v1034 = vld [vmem:[%s5] sm:$0x3]
        %v1036 = vlaneseq
        %v1037 = vshrl.u32 %v1036, 7
        %v1038 = vsub.s32 0, %v1037
        %v1039 = vrot.slane %v1034, %v1038
        %v1040 = vlaneseq
        %v1041 = vshrl.u32 %v1040, 7
        %v1042 = vsub.s32 1, %v1041
        %v1043 = vrot.slane %v1034, %v1042
        %1046 = vmatprep.subr.mxu0 %v1033
        %1047 = vmatpush1.msra.mxu0 %v1032
        %1048 = vmatprep.subr.mxu0 %v1031
        %1049 = vmatpush1.msra.mxu0 %v1030
        %1050 = vmatprep.subr.mxu0 %v1029
        %1051 = vmatpush1.msra.mxu0 %v1028
        %1052 = vmatprep.subr.mxu0 %v1027
        %1053 = vmatpush1.msra.mxu0 %v1026
        %1054 = vmatprep.subr.mxu0 %v1025
        %1055 = vmatpush1.msra.mxu0 %v1024
        %1056 = vmatprep.subr.mxu0 %v1023
        %1057 = vmatpush1.msra.mxu0 %v1022
        %1058 = vmatprep.subr.mxu0 %v1021
        %1059 = vmatpush1.msra.mxu0 %v1020
        %1060 = vmatprep.subr.mxu0 %v1019
        %1061 = vmatpush1.msra.mxu0 %v1018
        %1062 = vmatprep.subr.mxu0 %v1017
        %1063 = vmatpush1.msra.mxu0 %v1016
        %1064 = vmatprep.subr.mxu0 %v1015
        %1065 = vmatpush1.msra.mxu0 %v1014
        %1066 = vmatprep.subr.mxu0 %v1013
        %1067 = vmatpush1.msra.mxu0 %v1012
        %1068 = vmatprep.subr.mxu0 %v1011
        %1069 = vmatpush1.msra.mxu0 %v1010
        %1070 = vmatprep.subr.mxu0 %v1009
        %1071 = vmatpush1.msra.mxu0 %v1008
        %1072 = vmatprep.subr.mxu0 %v1007
        %1073 = vmatpush1.msra.mxu0 %v1006
        %1074 = vmatprep.subr.mxu0 %v1005
        %1075 = vmatpush1.msra.mxu0 %v1004
        %1076 = vmatprep.subr.mxu0 %v1003
        %1077 = vmatpush1.msra.mxu0 %v1002
        %1078 = vmatprep.subr.mxu0 0.0
        %1079 = vmatpush2.msra.mxu0 0.0
        %1080 = vmatprep.subr.mxu0 0.0
        %1081 = vmatpush2.msra.mxu0 0.0
        %1082 = vmatprep.subr.mxu0 0.0
        %1083 = vmatpush2.msra.mxu0 0.0
        %1084 = vmatprep.subr.mxu0 0.0
        %1085 = vmatpush2.msra.mxu0 0.0
        %1086 = vmatprep.subr.mxu0 0.0
        %1087 = vmatpush2.msra.mxu0 0.0
        %1088 = vmatprep.subr.mxu0 0.0
        %1089 = vmatpush2.msra.mxu0 0.0
        %1090 = vmatprep.subr.mxu0 0.0
        %1091 = vmatpush2.msra.mxu0 0.0
        %1092 = vmatprep.subr.mxu0 0.0
        %1093 = vmatpush2.msra.mxu0 0.0
        %1094 = vmatprep.subr.mxu0 0.0
        %1095 = vmatpush2.msra.mxu0 0.0
        %1096 = vmatprep.subr.mxu0 0.0
        %1097 = vmatpush2.msra.mxu0 0.0
        %1098 = vmatprep.subr.mxu0 0.0
        %1099 = vmatpush2.msra.mxu0 0.0
        %1100 = vmatprep.subr.mxu0 0.0
        %1101 = vmatpush2.msra.mxu0 0.0
        %1102 = vmatprep.subr.mxu0 0.0
        %1103 = vmatpush2.msra.mxu0 0.0
        %1104 = vmatprep.subr.mxu0 0.0
        %1105 = vmatpush2.msra.mxu0 0.0
        %1106 = vmatprep.subr.mxu0 0.0
        %1107 = vmatpush2.msra.mxu0 0.0
        %1108 = vmatprep.subr.mxu0 0.0
        %1109 = vmatpush2.msra.mxu0 0.0
        %1110 = vmatprep.mubr.f32.mxu0 0.0
        %1111 = vmatmul.mubr.f32.gmra.mxu0 %v970
        %v1112 = vpop.f32.mrf.mxu0
        %v1113 = vadd.f32 %v1039, %v1112
        %v1114 = vpop.f32.mrf.mxu0
        %v1115 = vadd.f32 %v1043, %v1114
        %1116 = vmatprep.mubr.f32.mxu0 0.0
        %1117 = vmatmul.mubr.f32.gmra.mxu0 %v971
        %v1118 = vpop.f32.mrf.mxu0
        %v1119 = vadd.f32 %v1039, %v1118
        %v1120 = vpop.f32.mrf.mxu0
        %v1121 = vadd.f32 %v1043, %v1120
        %1122 = vmatprep.mubr.f32.mxu0 0.0
        %1123 = vmatmul.mubr.f32.gmra.mxu0 %v972
        %v1124 = vpop.f32.mrf.mxu0
        %v1125 = vadd.f32 %v1039, %v1124
        %v1126 = vpop.f32.mrf.mxu0
        %v1127 = vadd.f32 %v1043, %v1126
        %1128 = vmatprep.mubr.f32.mxu0 0.0
        %1129 = vmatmul.mubr.f32.gmra.mxu0 %v973
        %v1130 = vpop.f32.mrf.mxu0
        %v1131 = vadd.f32 %v1039, %v1130
        %v1132 = vpop.f32.mrf.mxu0
        %v1133 = vadd.f32 %v1043, %v1132
        %1134 = vmatprep.mubr.f32.mxu0 0.0
        %1135 = vmatmul.mubr.f32.gmra.mxu0 %v974
        %v1136 = vpop.f32.mrf.mxu0
        %v1137 = vadd.f32 %v1039, %v1136
        %v1138 = vpop.f32.mrf.mxu0
        %v1139 = vadd.f32 %v1043, %v1138
        %1140 = vmatprep.mubr.f32.mxu0 0.0
        %1141 = vmatmul.mubr.f32.gmra.mxu0 %v975
        %v1142 = vpop.f32.mrf.mxu0
        %v1143 = vadd.f32 %v1039, %v1142
        %v1144 = vpop.f32.mrf.mxu0
        %v1145 = vadd.f32 %v1043, %v1144
        %1146 = vmatprep.mubr.f32.mxu0 0.0
        %1147 = vmatmul.mubr.f32.gmra.mxu0 %v976
        %v1148 = vpop.f32.mrf.mxu0
        %v1149 = vadd.f32 %v1039, %v1148
        %v1150 = vpop.f32.mrf.mxu0
        %v1151 = vadd.f32 %v1043, %v1150
        %1152 = vmatprep.mubr.f32.mxu0 0.0
        %1153 = vmatmul.mubr.f32.gmra.mxu0 %v977
        %v1154 = vpop.f32.mrf.mxu0
        %v1155 = vadd.f32 %v1039, %v1154
        %v1156 = vpop.f32.mrf.mxu0
        %v1157 = vadd.f32 %v1043, %v1156
        %1158 = vmatprep.mubr.f32.mxu0 0.0
        %1159 = vmatmul.mubr.f32.gmra.mxu0 %v978
        %v1160 = vpop.f32.mrf.mxu0
        %v1161 = vadd.f32 %v1039, %v1160
        %v1162 = vpop.f32.mrf.mxu0
        %v1163 = vadd.f32 %v1043, %v1162
        %1164 = vmatprep.mubr.f32.mxu0 0.0
        %1165 = vmatmul.mubr.f32.gmra.mxu0 %v979
        %v1166 = vpop.f32.mrf.mxu0
        %v1167 = vadd.f32 %v1039, %v1166
        %v1168 = vpop.f32.mrf.mxu0
        %v1169 = vadd.f32 %v1043, %v1168
        %1170 = vmatprep.mubr.f32.mxu0 0.0
        %1171 = vmatmul.mubr.f32.gmra.mxu0 %v980
        %v1172 = vpop.f32.mrf.mxu0
        %v1173 = vadd.f32 %v1039, %v1172
        %v1174 = vpop.f32.mrf.mxu0
        %v1175 = vadd.f32 %v1043, %v1174
        %1176 = vmatprep.mubr.f32.mxu0 0.0
        %1177 = vmatmul.mubr.f32.gmra.mxu0 %v981
        %v1178 = vpop.f32.mrf.mxu0
        %v1179 = vadd.f32 %v1039, %v1178
        %v1180 = vpop.f32.mrf.mxu0
        %v1181 = vadd.f32 %v1043, %v1180
        %1182 = vmatprep.mubr.f32.mxu0 0.0
        %1183 = vmatmul.mubr.f32.gmra.mxu0 %v982
        %v1184 = vpop.f32.mrf.mxu0
        %v1185 = vadd.f32 %v1039, %v1184
        %v1186 = vpop.f32.mrf.mxu0
        %v1187 = vadd.f32 %v1043, %v1186
        %1188 = vmatprep.mubr.f32.mxu0 0.0
        %1189 = vmatmul.mubr.f32.gmra.mxu0 %v983
        %v1190 = vpop.f32.mrf.mxu0
        %v1191 = vadd.f32 %v1039, %v1190
        %v1192 = vpop.f32.mrf.mxu0
        %v1193 = vadd.f32 %v1043, %v1192
        %1194 = vmatprep.mubr.f32.mxu0 0.0
        %1195 = vmatmul.mubr.f32.gmra.mxu0 %v984
        %v1196 = vpop.f32.mrf.mxu0
        %v1197 = vadd.f32 %v1039, %v1196
        %v1198 = vpop.f32.mrf.mxu0
        %v1199 = vadd.f32 %v1043, %v1198
        %1200 = vmatprep.mubr.f32.mxu0 0.0
        %1201 = vmatmul.mubr.f32.gmra.mxu0 %v985
        %v1202 = vpop.f32.mrf.mxu0
        %v1203 = vadd.f32 %v1039, %v1202
        %v1204 = vpop.f32.mrf.mxu0
        %v1205 = vadd.f32 %v1043, %v1204
        %1206 = vmatprep.mubr.f32.mxu0 0.0
        %1207 = vmatmul.mubr.f32.gmra.mxu0 %v986
        %v1208 = vpop.f32.mrf.mxu0
        %v1209 = vadd.f32 %v1039, %v1208
        %v1210 = vpop.f32.mrf.mxu0
        %v1211 = vadd.f32 %v1043, %v1210
        %1212 = vmatprep.mubr.f32.mxu0 0.0
        %1213 = vmatmul.mubr.f32.gmra.mxu0 %v987
        %v1214 = vpop.f32.mrf.mxu0
        %v1215 = vadd.f32 %v1039, %v1214
        %v1216 = vpop.f32.mrf.mxu0
        %v1217 = vadd.f32 %v1043, %v1216
        %1218 = vmatprep.mubr.f32.mxu0 0.0
        %1219 = vmatmul.mubr.f32.gmra.mxu0 %v988
        %v1220 = vpop.f32.mrf.mxu0
        %v1221 = vadd.f32 %v1039, %v1220
        %v1222 = vpop.f32.mrf.mxu0
        %v1223 = vadd.f32 %v1043, %v1222
        %1224 = vmatprep.mubr.f32.mxu0 0.0
        %1225 = vmatmul.mubr.f32.gmra.mxu0 %v989
        %v1226 = vpop.f32.mrf.mxu0
        %v1227 = vadd.f32 %v1039, %v1226
        %v1228 = vpop.f32.mrf.mxu0
        %v1229 = vadd.f32 %v1043, %v1228
        %1230 = vmatprep.mubr.f32.mxu0 0.0
        %1231 = vmatmul.mubr.f32.gmra.mxu0 %v990
        %v1232 = vpop.f32.mrf.mxu0
        %v1233 = vadd.f32 %v1039, %v1232
        %v1234 = vpop.f32.mrf.mxu0
        %v1235 = vadd.f32 %v1043, %v1234
        %1236 = vmatprep.mubr.f32.mxu0 0.0
        %1237 = vmatmul.mubr.f32.gmra.mxu0 %v991
        %v1238 = vpop.f32.mrf.mxu0
        %v1239 = vadd.f32 %v1039, %v1238
        %v1240 = vpop.f32.mrf.mxu0
        %v1241 = vadd.f32 %v1043, %v1240
        %1242 = vmatprep.mubr.f32.mxu0 0.0
        %1243 = vmatmul.mubr.f32.gmra.mxu0 %v992
        %v1244 = vpop.f32.mrf.mxu0
        %v1245 = vadd.f32 %v1039, %v1244
        %v1246 = vpop.f32.mrf.mxu0
        %v1247 = vadd.f32 %v1043, %v1246
        %1248 = vmatprep.mubr.f32.mxu0 0.0
        %1249 = vmatmul.mubr.f32.gmra.mxu0 %v993
        %v1250 = vpop.f32.mrf.mxu0
        %v1251 = vadd.f32 %v1039, %v1250
        %v1252 = vpop.f32.mrf.mxu0
        %v1253 = vadd.f32 %v1043, %v1252
        %1254 = vmatprep.mubr.f32.mxu0 0.0
        %1255 = vmatmul.mubr.f32.gmra.mxu0 %v994
        %v1256 = vpop.f32.mrf.mxu0
        %v1257 = vadd.f32 %v1039, %v1256
        %v1258 = vpop.f32.mrf.mxu0
        %v1259 = vadd.f32 %v1043, %v1258
        %1260 = vmatprep.mubr.f32.mxu0 0.0
        %1261 = vmatmul.mubr.f32.gmra.mxu0 %v995
        %v1262 = vpop.f32.mrf.mxu0
        %v1263 = vadd.f32 %v1039, %v1262
        %v1264 = vpop.f32.mrf.mxu0
        %v1265 = vadd.f32 %v1043, %v1264
        %1266 = vmatprep.mubr.f32.mxu0 0.0
        %1267 = vmatmul.mubr.f32.gmra.mxu0 %v996
        %v1268 = vpop.f32.mrf.mxu0
        %v1269 = vadd.f32 %v1039, %v1268
        %v1270 = vpop.f32.mrf.mxu0
        %v1271 = vadd.f32 %v1043, %v1270
        %1272 = vmatprep.mubr.f32.mxu0 0.0
        %1273 = vmatmul.mubr.f32.gmra.mxu0 %v997
        %v1274 = vpop.f32.mrf.mxu0
        %v1275 = vadd.f32 %v1039, %v1274
        %v1276 = vpop.f32.mrf.mxu0
        %v1277 = vadd.f32 %v1043, %v1276
        %1278 = vmatprep.mubr.f32.mxu0 0.0
        %1279 = vmatmul.mubr.f32.gmra.mxu0 %v998
        %v1280 = vpop.f32.mrf.mxu0
        %v1281 = vadd.f32 %v1039, %v1280
        %v1282 = vpop.f32.mrf.mxu0
        %v1283 = vadd.f32 %v1043, %v1282
        %1284 = vmatprep.mubr.f32.mxu0 0.0
        %1285 = vmatmul.mubr.f32.gmra.mxu0 %v999
        %v1286 = vpop.f32.mrf.mxu0
        %v1287 = vadd.f32 %v1039, %v1286
        %v1288 = vpop.f32.mrf.mxu0
        %v1289 = vadd.f32 %v1043, %v1288
        %1290 = vmatprep.mubr.f32.mxu0 0.0
        %1291 = vmatmul.mubr.f32.gmra.mxu0 %v1000
        %v1292 = vpop.f32.mrf.mxu0
        %v1293 = vadd.f32 %v1039, %v1292
        %v1294 = vpop.f32.mrf.mxu0
        %v1295 = vadd.f32 %v1043, %v1294
        %1296 = vmatprep.mubr.f32.mxu0 0.0
        %1297 = vmatmul.mubr.f32.gmra.mxu0 %v1001
        %v1298 = vpop.f32.mrf.mxu0
        %v1299 = vadd.f32 %v1039, %v1298
        %v1300 = vpop.f32.mrf.mxu0
        %v1301 = vadd.f32 %v1043, %v1300
        %1302 = vdwg.mxu0
        %1303 = vst [vmem:[%s677] sm:$0xff] %v1113
        %1304 = vst [vmem:[%s677 + $0x8] sm:$0xff] %v1115
        %1305 = vst [vmem:[%s677 + $0x10] sm:$0xff] %v1119
        %1306 = vst [vmem:[%s677 + $0x18] sm:$0xff] %v1121
        %1307 = vst [vmem:[%s677 + $0x20] sm:$0xff] %v1125
        %1308 = vst [vmem:[%s677 + $0x28] sm:$0xff] %v1127
        %1309 = vst [vmem:[%s677 + $0x30] sm:$0xff] %v1131
        %1310 = vst [vmem:[%s677 + $0x38] sm:$0xff] %v1133
        %1311 = vst [vmem:[%s677 + $0x40] sm:$0xff] %v1137
        %1312 = vst [vmem:[%s677 + $0x48] sm:$0xff] %v1139
        %1313 = vst [vmem:[%s677 + $0x50] sm:$0xff] %v1143
        %1314 = vst [vmem:[%s677 + $0x58] sm:$0xff] %v1145
        %1315 = vst [vmem:[%s677 + $0x60] sm:$0xff] %v1149
        %1316 = vst [vmem:[%s677 + $0x68] sm:$0xff] %v1151
        %1317 = vst [vmem:[%s677 + $0x70] sm:$0xff] %v1155
        %1318 = vst [vmem:[%s677 + $0x78] sm:$0xff] %v1157
        %1319 = vst [vmem:[%s677 + $0x80] sm:$0xff] %v1161
        %1320 = vst [vmem:[%s677 + $0x88] sm:$0xff] %v1163
        %1321 = vst [vmem:[%s677 + $0x90] sm:$0xff] %v1167
        %1322 = vst [vmem:[%s677 + $0x98] sm:$0xff] %v1169
        %1323 = vst [vmem:[%s677 + $0xa0] sm:$0xff] %v1173
        %1324 = vst [vmem:[%s677 + $0xa8] sm:$0xff] %v1175
        %1325 = vst [vmem:[%s677 + $0xb0] sm:$0xff] %v1179
        %1326 = vst [vmem:[%s677 + $0xb8] sm:$0xff] %v1181
        %1327 = vst [vmem:[%s677 + $0xc0] sm:$0xff] %v1185
        %1328 = vst [vmem:[%s677 + $0xc8] sm:$0xff] %v1187
        %1329 = vst [vmem:[%s677 + $0xd0] sm:$0xff] %v1191
        %1330 = vst [vmem:[%s677 + $0xd8] sm:$0xff] %v1193
        %1331 = vst [vmem:[%s677 + $0xe0] sm:$0xff] %v1197
        %1332 = vst [vmem:[%s677 + $0xe8] sm:$0xff] %v1199
        %1333 = vst [vmem:[%s677 + $0xf0] sm:$0xff] %v1203
        %1334 = vst [vmem:[%s677 + $0xf8] sm:$0xff] %v1205
        %1335 = vst [vmem:[%s677 + $0x100] sm:$0xff] %v1209
        %1336 = vst [vmem:[%s677 + $0x108] sm:$0xff] %v1211
        %1337 = vst [vmem:[%s677 + $0x110] sm:$0xff] %v1215
        %1338 = vst [vmem:[%s677 + $0x118] sm:$0xff] %v1217
        %1339 = vst [vmem:[%s677 + $0x120] sm:$0xff] %v1221
        %1340 = vst [vmem:[%s677 + $0x128] sm:$0xff] %v1223
        %1341 = vst [vmem:[%s677 + $0x130] sm:$0xff] %v1227
        %1342 = vst [vmem:[%s677 + $0x138] sm:$0xff] %v1229
        %1343 = vst [vmem:[%s677 + $0x140] sm:$0xff] %v1233
        %1344 = vst [vmem:[%s677 + $0x148] sm:$0xff] %v1235
        %1345 = vst [vmem:[%s677 + $0x150] sm:$0xff] %v1239
        %1346 = vst [vmem:[%s677 + $0x158] sm:$0xff] %v1241
        %1347 = vst [vmem:[%s677 + $0x160] sm:$0xff] %v1245
        %1348 = vst [vmem:[%s677 + $0x168] sm:$0xff] %v1247
        %1349 = vst [vmem:[%s677 + $0x170] sm:$0xff] %v1251
        %1350 = vst [vmem:[%s677 + $0x178] sm:$0xff] %v1253
        %1351 = vst [vmem:[%s677 + $0x180] sm:$0xff] %v1257
        %1352 = vst [vmem:[%s677 + $0x188] sm:$0xff] %v1259
        %1353 = vst [vmem:[%s677 + $0x190] sm:$0xff] %v1263
        %1354 = vst [vmem:[%s677 + $0x198] sm:$0xff] %v1265
        %1355 = vst [vmem:[%s677 + $0x1a0] sm:$0xff] %v1269
        %1356 = vst [vmem:[%s677 + $0x1a8] sm:$0xff] %v1271
        %1357 = vst [vmem:[%s677 + $0x1b0] sm:$0xff] %v1275
        %1358 = vst [vmem:[%s677 + $0x1b8] sm:$0xff] %v1277
        %1359 = vst [vmem:[%s677 + $0x1c0] sm:$0xff] %v1281
        %1360 = vst [vmem:[%s677 + $0x1c8] sm:$0xff] %v1283
        %1361 = vst [vmem:[%s677 + $0x1d0] sm:$0xff] %v1287
        %1362 = vst [vmem:[%s677 + $0x1d8] sm:$0xff] %v1289
        %1363 = vst [vmem:[%s677 + $0x1e0] sm:$0xff] %v1293
        %1364 = vst [vmem:[%s677 + $0x1e8] sm:$0xff] %v1295
        %1365 = vst [vmem:[%s677 + $0x1f0] sm:$0xff] %v1299
        %1366 = vst [vmem:[%s677 + $0x1f8] sm:$0xff] %v1301
        %v1367 = vld [vmem:[%s597] sm:$0xff]
        %v1368 = vld [vmem:[%s597 + $0x8] sm:$0xff]
        %v1369 = vld [vmem:[%s597 + $0x10] sm:$0xff]
        %v1370 = vld [vmem:[%s597 + $0x18] sm:$0xff]
        %v1371 = vld [vmem:[%s597 + $0x20] sm:$0xff]
        %v1372 = vld [vmem:[%s597 + $0x28] sm:$0xff]
        %v1373 = vld [vmem:[%s597 + $0x30] sm:$0xff]
        %v1374 = vld [vmem:[%s597 + $0x38] sm:$0xff]
        %v1375 = vld [vmem:[%s597 + $0x40] sm:$0xff]
        %v1376 = vld [vmem:[%s597 + $0x48] sm:$0xff]
        %v1377 = vld [vmem:[%s597 + $0x50] sm:$0xff]
        %v1378 = vld [vmem:[%s597 + $0x58] sm:$0xff]
        %v1379 = vld [vmem:[%s597 + $0x60] sm:$0xff]
        %v1380 = vld [vmem:[%s597 + $0x68] sm:$0xff]
        %v1381 = vld [vmem:[%s597 + $0x70] sm:$0xff]
        %v1382 = vld [vmem:[%s597 + $0x78] sm:$0xff]
        %v1383 = vld [vmem:[%s597 + $0x80] sm:$0xff]
        %v1384 = vld [vmem:[%s597 + $0x88] sm:$0xff]
        %v1385 = vld [vmem:[%s597 + $0x90] sm:$0xff]
        %v1386 = vld [vmem:[%s597 + $0x98] sm:$0xff]
        %v1387 = vld [vmem:[%s597 + $0xa0] sm:$0xff]
        %v1388 = vld [vmem:[%s597 + $0xa8] sm:$0xff]
        %v1389 = vld [vmem:[%s597 + $0xb0] sm:$0xff]
        %v1390 = vld [vmem:[%s597 + $0xb8] sm:$0xff]
        %v1391 = vld [vmem:[%s597 + $0xc0] sm:$0xff]
        %v1392 = vld [vmem:[%s597 + $0xc8] sm:$0xff]
        %v1393 = vld [vmem:[%s597 + $0xd0] sm:$0xff]
        %v1394 = vld [vmem:[%s597 + $0xd8] sm:$0xff]
        %v1395 = vld [vmem:[%s597 + $0xe0] sm:$0xff]
        %v1396 = vld [vmem:[%s597 + $0xe8] sm:$0xff]
        %v1397 = vld [vmem:[%s597 + $0xf0] sm:$0xff]
        %v1398 = vld [vmem:[%s597 + $0xf8] sm:$0xff]
        %v1399 = vmul.f32 %v1115, 0.5
        %v1400 = vmul.f32 %v1121, 0.5
        %v1401 = vmul.f32 %v1127, 0.5
        %v1402 = vmul.f32 %v1133, 0.5
        %v1403 = vmul.f32 %v1139, 0.5
        %v1404 = vmul.f32 %v1145, 0.5
        %v1405 = vmul.f32 %v1151, 0.5
        %v1406 = vmul.f32 %v1157, 0.5
        %v1407 = vmul.f32 %v1163, 0.5
        %v1408 = vmul.f32 %v1169, 0.5
        %v1409 = vmul.f32 %v1175, 0.5
        %v1410 = vmul.f32 %v1181, 0.5
        %v1411 = vmul.f32 %v1187, 0.5
        %v1412 = vmul.f32 %v1193, 0.5
        %v1413 = vmul.f32 %v1199, 0.5
        %v1414 = vmul.f32 %v1205, 0.5
        %v1415 = vmul.f32 %v1211, 0.5
        %v1416 = vmul.f32 %v1217, 0.5
        %v1417 = vmul.f32 %v1223, 0.5
        %v1418 = vmul.f32 %v1229, 0.5
        %v1419 = vmul.f32 %v1235, 0.5
        %v1420 = vmul.f32 %v1241, 0.5
        %v1421 = vmul.f32 %v1247, 0.5
        %v1422 = vmul.f32 %v1253, 0.5
        %v1423 = vmul.f32 %v1259, 0.5
        %v1424 = vmul.f32 %v1265, 0.5
        %v1425 = vmul.f32 %v1271, 0.5
        %v1426 = vmul.f32 %v1277, 0.5
        %v1427 = vmul.f32 %v1283, 0.5
        %v1428 = vmul.f32 %v1289, 0.5
        %v1429 = vmul.f32 %v1295, 0.5
        %v1430 = vmul.f32 %v1301, 0.5
        %v1431 = vmul.f32 %v1399, 1.442695
        %v1432 = vpow.pop %v1431
        %v1433 = vmul.f32 %v1400, 1.442695
        %v1434 = vpow.pop %v1433
        %v1435 = vmul.f32 %v1401, 1.442695
        %v1436 = vpow.pop %v1435
        %v1437 = vmul.f32 %v1402, 1.442695
        %v1438 = vpow.pop %v1437
        %v1439 = vmul.f32 %v1403, 1.442695
        %v1440 = vpow.pop %v1439
        %v1441 = vmul.f32 %v1404, 1.442695
        %v1442 = vpow.pop %v1441
        %v1443 = vmul.f32 %v1405, 1.442695
        %v1444 = vpow.pop %v1443
        %v1445 = vmul.f32 %v1406, 1.442695
        %v1446 = vpow.pop %v1445
        %v1447 = vmul.f32 %v1407, 1.442695
        %v1448 = vpow.pop %v1447
        %v1449 = vmul.f32 %v1408, 1.442695
        %v1450 = vpow.pop %v1449
        %v1451 = vmul.f32 %v1409, 1.442695
        %v1452 = vpow.pop %v1451
        %v1453 = vmul.f32 %v1410, 1.442695
        %v1454 = vpow.pop %v1453
        %v1455 = vmul.f32 %v1411, 1.442695
        %v1456 = vpow.pop %v1455
        %v1457 = vmul.f32 %v1412, 1.442695
        %v1458 = vpow.pop %v1457
        %v1459 = vmul.f32 %v1413, 1.442695
        %v1460 = vpow.pop %v1459
        %v1461 = vmul.f32 %v1414, 1.442695
        %v1462 = vpow.pop %v1461
        %v1463 = vmul.f32 %v1415, 1.442695
        %v1464 = vpow.pop %v1463
        %v1465 = vmul.f32 %v1416, 1.442695
        %v1466 = vpow.pop %v1465
        %v1467 = vmul.f32 %v1417, 1.442695
        %v1468 = vpow.pop %v1467
        %v1469 = vmul.f32 %v1418, 1.442695
        %v1470 = vpow.pop %v1469
        %v1471 = vmul.f32 %v1419, 1.442695
        %v1472 = vpow.pop %v1471
        %v1473 = vmul.f32 %v1420, 1.442695
        %v1474 = vpow.pop %v1473
        %v1475 = vmul.f32 %v1421, 1.442695
        %v1476 = vpow.pop %v1475
        %v1477 = vmul.f32 %v1422, 1.442695
        %v1478 = vpow.pop %v1477
        %v1479 = vmul.f32 %v1423, 1.442695
        %v1480 = vpow.pop %v1479
        %v1481 = vmul.f32 %v1424, 1.442695
        %v1482 = vpow.pop %v1481
        %v1483 = vmul.f32 %v1425, 1.442695
        %v1484 = vpow.pop %v1483
        %v1485 = vmul.f32 %v1426, 1.442695
        %v1486 = vpow.pop %v1485
        %v1487 = vmul.f32 %v1427, 1.442695
        %v1488 = vpow.pop %v1487
        %v1489 = vmul.f32 %v1428, 1.442695
        %v1490 = vpow.pop %v1489
        %v1491 = vmul.f32 %v1429, 1.442695
        %v1492 = vpow.pop %v1491
        %v1493 = vmul.f32 %v1430, 1.442695
        %v1494 = vpow.pop %v1493
        %v1495 = vmul.f32 %v1367, %v1432
        %v1496 = vmul.f32 %v1368, %v1434
        %v1497 = vmul.f32 %v1369, %v1436
        %v1498 = vmul.f32 %v1370, %v1438
        %v1499 = vmul.f32 %v1371, %v1440
        %v1500 = vmul.f32 %v1372, %v1442
        %v1501 = vmul.f32 %v1373, %v1444
        %v1502 = vmul.f32 %v1374, %v1446
        %v1503 = vmul.f32 %v1375, %v1448
        %v1504 = vmul.f32 %v1376, %v1450
        %v1505 = vmul.f32 %v1377, %v1452
        %v1506 = vmul.f32 %v1378, %v1454
        %v1507 = vmul.f32 %v1379, %v1456
        %v1508 = vmul.f32 %v1380, %v1458
        %v1509 = vmul.f32 %v1381, %v1460
        %v1510 = vmul.f32 %v1382, %v1462
        %v1511 = vmul.f32 %v1383, %v1464
        %v1512 = vmul.f32 %v1384, %v1466
        %v1513 = vmul.f32 %v1385, %v1468
        %v1514 = vmul.f32 %v1386, %v1470
        %v1515 = vmul.f32 %v1387, %v1472
        %v1516 = vmul.f32 %v1388, %v1474
        %v1517 = vmul.f32 %v1389, %v1476
        %v1518 = vmul.f32 %v1390, %v1478
        %v1519 = vmul.f32 %v1391, %v1480
        %v1520 = vmul.f32 %v1392, %v1482
        %v1521 = vmul.f32 %v1393, %v1484
        %v1522 = vmul.f32 %v1394, %v1486
        %v1523 = vmul.f32 %v1395, %v1488
        %v1524 = vmul.f32 %v1396, %v1490
        %v1525 = vmul.f32 %v1397, %v1492
        %v1526 = vmul.f32 %v1398, %v1494
        %v1527 = vadd.f32 %v1113, %v1495
        %v1528 = vadd.f32 %v1119, %v1496
        %v1529 = vadd.f32 %v1125, %v1497
        %v1530 = vadd.f32 %v1131, %v1498
        %v1531 = vadd.f32 %v1137, %v1499
        %v1532 = vadd.f32 %v1143, %v1500
        %v1533 = vadd.f32 %v1149, %v1501
        %v1534 = vadd.f32 %v1155, %v1502
        %v1535 = vadd.f32 %v1161, %v1503
        %v1536 = vadd.f32 %v1167, %v1504
        %v1537 = vadd.f32 %v1173, %v1505
        %v1538 = vadd.f32 %v1179, %v1506
        %v1539 = vadd.f32 %v1185, %v1507
        %v1540 = vadd.f32 %v1191, %v1508
        %v1541 = vadd.f32 %v1197, %v1509
        %v1542 = vadd.f32 %v1203, %v1510
        %v1543 = vadd.f32 %v1209, %v1511
        %v1544 = vadd.f32 %v1215, %v1512
        %v1545 = vadd.f32 %v1221, %v1513
        %v1546 = vadd.f32 %v1227, %v1514
        %v1547 = vadd.f32 %v1233, %v1515
        %v1548 = vadd.f32 %v1239, %v1516
        %v1549 = vadd.f32 %v1245, %v1517
        %v1550 = vadd.f32 %v1251, %v1518
        %v1551 = vadd.f32 %v1257, %v1519
        %v1552 = vadd.f32 %v1263, %v1520
        %v1553 = vadd.f32 %v1269, %v1521
        %v1554 = vadd.f32 %v1275, %v1522
        %v1555 = vadd.f32 %v1281, %v1523
        %v1556 = vadd.f32 %v1287, %v1524
        %v1557 = vadd.f32 %v1293, %v1525
        %v1558 = vadd.f32 %v1299, %v1526
        %v1559 = vld [vmem:[#allocation13] sm:$0xff]
        %v1560 = vld [vmem:[#allocation13 + $0x8] sm:$0xff]
        %v1561 = vld [vmem:[#allocation13 + $0x10] sm:$0xff]
        %v1562 = vld [vmem:[#allocation13 + $0x18] sm:$0xff]
        %v1563 = vld [vmem:[#allocation13 + $0x20] sm:$0xff]
        %v1564 = vld [vmem:[#allocation13 + $0x28] sm:$0xff]
        %v1565 = vld [vmem:[#allocation13 + $0x30] sm:$0xff]
        %v1566 = vld [vmem:[#allocation13 + $0x38] sm:$0xff]
        %v1567 = vld [vmem:[#allocation13 + $0x40] sm:$0xff]
        %v1568 = vld [vmem:[#allocation13 + $0x48] sm:$0xff]
        %v1569 = vld [vmem:[#allocation13 + $0x50] sm:$0xff]
        %v1570 = vld [vmem:[#allocation13 + $0x58] sm:$0xff]
        %v1571 = vld [vmem:[#allocation13 + $0x60] sm:$0xff]
        %v1572 = vld [vmem:[#allocation13 + $0x68] sm:$0xff]
        %v1573 = vld [vmem:[#allocation13 + $0x70] sm:$0xff]
        %v1574 = vld [vmem:[#allocation13 + $0x78] sm:$0xff]
        %v1575 = vld [vmem:[%s11] sm:$0x1]
        %v1577 = vlaneseq
        %v1578 = vshrl.u32 %v1577, 7
        %v1579 = vsub.s32 0, %v1578
        %v1580 = vrot.slane %v1575, %v1579
        %1582 = vmatprep.subr.mxu0 0.0
        %1583 = vmatpush1.msra.mxu0 %v1574
        %1584 = vmatprep.subr.mxu0 0.0
        %1585 = vmatpush1.msra.mxu0 %v1573
        %1586 = vmatprep.subr.mxu0 0.0
        %1587 = vmatpush1.msra.mxu0 %v1572
        %1588 = vmatprep.subr.mxu0 0.0
        %1589 = vmatpush1.msra.mxu0 %v1571
        %1590 = vmatprep.subr.mxu0 0.0
        %1591 = vmatpush1.msra.mxu0 %v1570
        %1592 = vmatprep.subr.mxu0 0.0
        %1593 = vmatpush1.msra.mxu0 %v1569
        %1594 = vmatprep.subr.mxu0 0.0
        %1595 = vmatpush1.msra.mxu0 %v1568
        %1596 = vmatprep.subr.mxu0 0.0
        %1597 = vmatpush1.msra.mxu0 %v1567
        %1598 = vmatprep.subr.mxu0 0.0
        %1599 = vmatpush1.msra.mxu0 %v1566
        %1600 = vmatprep.subr.mxu0 0.0
        %1601 = vmatpush1.msra.mxu0 %v1565
        %1602 = vmatprep.subr.mxu0 0.0
        %1603 = vmatpush1.msra.mxu0 %v1564
        %1604 = vmatprep.subr.mxu0 0.0
        %1605 = vmatpush1.msra.mxu0 %v1563
        %1606 = vmatprep.subr.mxu0 0.0
        %1607 = vmatpush1.msra.mxu0 %v1562
        %1608 = vmatprep.subr.mxu0 0.0
        %1609 = vmatpush1.msra.mxu0 %v1561
        %1610 = vmatprep.subr.mxu0 0.0
        %1611 = vmatpush1.msra.mxu0 %v1560
        %1612 = vmatprep.subr.mxu0 0.0
        %1613 = vmatpush1.msra.mxu0 %v1559
        %1614 = vmatprep.subr.mxu0 0.0
        %1615 = vmatpush2.msra.mxu0 0.0
        %1616 = vmatprep.subr.mxu0 0.0
        %1617 = vmatpush2.msra.mxu0 0.0
        %1618 = vmatprep.subr.mxu0 0.0
        %1619 = vmatpush2.msra.mxu0 0.0
        %1620 = vmatprep.subr.mxu0 0.0
        %1621 = vmatpush2.msra.mxu0 0.0
        %1622 = vmatprep.subr.mxu0 0.0
        %1623 = vmatpush2.msra.mxu0 0.0
        %1624 = vmatprep.subr.mxu0 0.0
        %1625 = vmatpush2.msra.mxu0 0.0
        %1626 = vmatprep.subr.mxu0 0.0
        %1627 = vmatpush2.msra.mxu0 0.0
        %1628 = vmatprep.subr.mxu0 0.0
        %1629 = vmatpush2.msra.mxu0 0.0
        %1630 = vmatprep.subr.mxu0 0.0
        %1631 = vmatpush2.msra.mxu0 0.0
        %1632 = vmatprep.subr.mxu0 0.0
        %1633 = vmatpush2.msra.mxu0 0.0
        %1634 = vmatprep.subr.mxu0 0.0
        %1635 = vmatpush2.msra.mxu0 0.0
        %1636 = vmatprep.subr.mxu0 0.0
        %1637 = vmatpush2.msra.mxu0 0.0
        %1638 = vmatprep.subr.mxu0 0.0
        %1639 = vmatpush2.msra.mxu0 0.0
        %1640 = vmatprep.subr.mxu0 0.0
        %1641 = vmatpush2.msra.mxu0 0.0
        %1642 = vmatprep.subr.mxu0 0.0
        %1643 = vmatpush2.msra.mxu0 0.0
        %1644 = vmatprep.subr.mxu0 0.0
        %1645 = vmatpush2.msra.mxu0 0.0
        %1646 = vmatprep.mubr.f32.mxu0 0.0
        %1647 = vmatmul.mubr.f32.gmra.mxu0 %v1527
        %v1648 = vpop.f32.mrf.mxu0
        %v1649 = vadd.f32 %v1580, %v1648
        %v1650 = vpop.f32.mrf.mxu0
        %1651 = vmatprep.mubr.f32.mxu0 0.0
        %1652 = vmatmul.mubr.f32.gmra.mxu0 %v1528
        %v1653 = vpop.f32.mrf.mxu0
        %v1654 = vadd.f32 %v1580, %v1653
        %v1655 = vpop.f32.mrf.mxu0
        %1656 = vmatprep.mubr.f32.mxu0 0.0
        %1657 = vmatmul.mubr.f32.gmra.mxu0 %v1529
        %v1658 = vpop.f32.mrf.mxu0
        %v1659 = vadd.f32 %v1580, %v1658
        %v1660 = vpop.f32.mrf.mxu0
        %1661 = vmatprep.mubr.f32.mxu0 0.0
        %1662 = vmatmul.mubr.f32.gmra.mxu0 %v1530
        %v1663 = vpop.f32.mrf.mxu0
        %v1664 = vadd.f32 %v1580, %v1663
        %v1665 = vpop.f32.mrf.mxu0
        %1666 = vmatprep.mubr.f32.mxu0 0.0
        %1667 = vmatmul.mubr.f32.gmra.mxu0 %v1531
        %v1668 = vpop.f32.mrf.mxu0
        %v1669 = vadd.f32 %v1580, %v1668
        %v1670 = vpop.f32.mrf.mxu0
        %1671 = vmatprep.mubr.f32.mxu0 0.0
        %1672 = vmatmul.mubr.f32.gmra.mxu0 %v1532
        %v1673 = vpop.f32.mrf.mxu0
        %v1674 = vadd.f32 %v1580, %v1673
        %v1675 = vpop.f32.mrf.mxu0
        %1676 = vmatprep.mubr.f32.mxu0 0.0
        %1677 = vmatmul.mubr.f32.gmra.mxu0 %v1533
        %v1678 = vpop.f32.mrf.mxu0
        %v1679 = vadd.f32 %v1580, %v1678
        %v1680 = vpop.f32.mrf.mxu0
        %1681 = vmatprep.mubr.f32.mxu0 0.0
        %1682 = vmatmul.mubr.f32.gmra.mxu0 %v1534
        %v1683 = vpop.f32.mrf.mxu0
        %v1684 = vadd.f32 %v1580, %v1683
        %v1685 = vpop.f32.mrf.mxu0
        %1686 = vmatprep.mubr.f32.mxu0 0.0
        %1687 = vmatmul.mubr.f32.gmra.mxu0 %v1535
        %v1688 = vpop.f32.mrf.mxu0
        %v1689 = vadd.f32 %v1580, %v1688
        %v1690 = vpop.f32.mrf.mxu0
        %1691 = vmatprep.mubr.f32.mxu0 0.0
        %1692 = vmatmul.mubr.f32.gmra.mxu0 %v1536
        %v1693 = vpop.f32.mrf.mxu0
        %v1694 = vadd.f32 %v1580, %v1693
        %v1695 = vpop.f32.mrf.mxu0
        %1696 = vmatprep.mubr.f32.mxu0 0.0
        %1697 = vmatmul.mubr.f32.gmra.mxu0 %v1537
        %v1698 = vpop.f32.mrf.mxu0
        %v1699 = vadd.f32 %v1580, %v1698
        %v1700 = vpop.f32.mrf.mxu0
        %1701 = vmatprep.mubr.f32.mxu0 0.0
        %1702 = vmatmul.mubr.f32.gmra.mxu0 %v1538
        %v1703 = vpop.f32.mrf.mxu0
        %v1704 = vadd.f32 %v1580, %v1703
        %v1705 = vpop.f32.mrf.mxu0
        %1706 = vmatprep.mubr.f32.mxu0 0.0
        %1707 = vmatmul.mubr.f32.gmra.mxu0 %v1539
        %v1708 = vpop.f32.mrf.mxu0
        %v1709 = vadd.f32 %v1580, %v1708
        %v1710 = vpop.f32.mrf.mxu0
        %1711 = vmatprep.mubr.f32.mxu0 0.0
        %1712 = vmatmul.mubr.f32.gmra.mxu0 %v1540
        %v1713 = vpop.f32.mrf.mxu0
        %v1714 = vadd.f32 %v1580, %v1713
        %v1715 = vpop.f32.mrf.mxu0
        %1716 = vmatprep.mubr.f32.mxu0 0.0
        %1717 = vmatmul.mubr.f32.gmra.mxu0 %v1541
        %v1718 = vpop.f32.mrf.mxu0
        %v1719 = vadd.f32 %v1580, %v1718
        %v1720 = vpop.f32.mrf.mxu0
        %1721 = vmatprep.mubr.f32.mxu0 0.0
        %1722 = vmatmul.mubr.f32.gmra.mxu0 %v1542
        %v1723 = vpop.f32.mrf.mxu0
        %v1724 = vadd.f32 %v1580, %v1723
        %v1725 = vpop.f32.mrf.mxu0
        %1726 = vmatprep.mubr.f32.mxu0 0.0
        %1727 = vmatmul.mubr.f32.gmra.mxu0 %v1543
        %v1728 = vpop.f32.mrf.mxu0
        %v1729 = vadd.f32 %v1580, %v1728
        %v1730 = vpop.f32.mrf.mxu0
        %1731 = vmatprep.mubr.f32.mxu0 0.0
        %1732 = vmatmul.mubr.f32.gmra.mxu0 %v1544
        %v1733 = vpop.f32.mrf.mxu0
        %v1734 = vadd.f32 %v1580, %v1733
        %v1735 = vpop.f32.mrf.mxu0
        %1736 = vmatprep.mubr.f32.mxu0 0.0
        %1737 = vmatmul.mubr.f32.gmra.mxu0 %v1545
        %v1738 = vpop.f32.mrf.mxu0
        %v1739 = vadd.f32 %v1580, %v1738
        %v1740 = vpop.f32.mrf.mxu0
        %1741 = vmatprep.mubr.f32.mxu0 0.0
        %1742 = vmatmul.mubr.f32.gmra.mxu0 %v1546
        %v1743 = vpop.f32.mrf.mxu0
        %v1744 = vadd.f32 %v1580, %v1743
        %v1745 = vpop.f32.mrf.mxu0
        %1746 = vmatprep.mubr.f32.mxu0 0.0
        %1747 = vmatmul.mubr.f32.gmra.mxu0 %v1547
        %v1748 = vpop.f32.mrf.mxu0
        %v1749 = vadd.f32 %v1580, %v1748
        %v1750 = vpop.f32.mrf.mxu0
        %1751 = vmatprep.mubr.f32.mxu0 0.0
        %1752 = vmatmul.mubr.f32.gmra.mxu0 %v1548
        %v1753 = vpop.f32.mrf.mxu0
        %v1754 = vadd.f32 %v1580, %v1753
        %v1755 = vpop.f32.mrf.mxu0
        %1756 = vmatprep.mubr.f32.mxu0 0.0
        %1757 = vmatmul.mubr.f32.gmra.mxu0 %v1549
        %v1758 = vpop.f32.mrf.mxu0
        %v1759 = vadd.f32 %v1580, %v1758
        %v1760 = vpop.f32.mrf.mxu0
        %1761 = vmatprep.mubr.f32.mxu0 0.0
        %1762 = vmatmul.mubr.f32.gmra.mxu0 %v1550
        %v1763 = vpop.f32.mrf.mxu0
        %v1764 = vadd.f32 %v1580, %v1763
        %v1765 = vpop.f32.mrf.mxu0
        %1766 = vmatprep.mubr.f32.mxu0 0.0
        %1767 = vmatmul.mubr.f32.gmra.mxu0 %v1551
        %v1768 = vpop.f32.mrf.mxu0
        %v1769 = vadd.f32 %v1580, %v1768
        %v1770 = vpop.f32.mrf.mxu0
        %1771 = vmatprep.mubr.f32.mxu0 0.0
        %1772 = vmatmul.mubr.f32.gmra.mxu0 %v1552
        %v1773 = vpop.f32.mrf.mxu0
        %v1774 = vadd.f32 %v1580, %v1773
        %v1775 = vpop.f32.mrf.mxu0
        %1776 = vmatprep.mubr.f32.mxu0 0.0
        %1777 = vmatmul.mubr.f32.gmra.mxu0 %v1553
        %v1778 = vpop.f32.mrf.mxu0
        %v1779 = vadd.f32 %v1580, %v1778
        %v1780 = vpop.f32.mrf.mxu0
        %1781 = vmatprep.mubr.f32.mxu0 0.0
        %1782 = vmatmul.mubr.f32.gmra.mxu0 %v1554
        %v1783 = vpop.f32.mrf.mxu0
        %v1784 = vadd.f32 %v1580, %v1783
        %v1785 = vpop.f32.mrf.mxu0
        %1786 = vmatprep.mubr.f32.mxu0 0.0
        %1787 = vmatmul.mubr.f32.gmra.mxu0 %v1555
        %v1788 = vpop.f32.mrf.mxu0
        %v1789 = vadd.f32 %v1580, %v1788
        %v1790 = vpop.f32.mrf.mxu0
        %1791 = vmatprep.mubr.f32.mxu0 0.0
        %1792 = vmatmul.mubr.f32.gmra.mxu0 %v1556
        %v1793 = vpop.f32.mrf.mxu0
        %v1794 = vadd.f32 %v1580, %v1793
        %v1795 = vpop.f32.mrf.mxu0
        %1796 = vmatprep.mubr.f32.mxu0 0.0
        %1797 = vmatmul.mubr.f32.gmra.mxu0 %v1557
        %v1798 = vpop.f32.mrf.mxu0
        %v1799 = vadd.f32 %v1580, %v1798
        %v1800 = vpop.f32.mrf.mxu0
        %1801 = vmatprep.mubr.f32.mxu0 0.0
        %1802 = vmatmul.mubr.f32.gmra.mxu0 %v1558
        %v1803 = vpop.f32.mrf.mxu0
        %v1804 = vadd.f32 %v1580, %v1803
        %v1805 = vpop.f32.mrf.mxu0
        %1806 = vdwg.mxu0
        %v1807 = vmax.f32 %v1649, 0.0
        %v1808 = vmax.f32 %v1654, 0.0
        %v1809 = vmax.f32 %v1659, 0.0
        %v1810 = vmax.f32 %v1664, 0.0
        %v1811 = vmax.f32 %v1669, 0.0
        %v1812 = vmax.f32 %v1674, 0.0
        %v1813 = vmax.f32 %v1679, 0.0
        %v1814 = vmax.f32 %v1684, 0.0
        %v1815 = vmax.f32 %v1689, 0.0
        %v1816 = vmax.f32 %v1694, 0.0
        %v1817 = vmax.f32 %v1699, 0.0
        %v1818 = vmax.f32 %v1704, 0.0
        %v1819 = vmax.f32 %v1709, 0.0
        %v1820 = vmax.f32 %v1714, 0.0
        %v1821 = vmax.f32 %v1719, 0.0
        %v1822 = vmax.f32 %v1724, 0.0
        %v1823 = vmax.f32 %v1729, 0.0
        %v1824 = vmax.f32 %v1734, 0.0
        %v1825 = vmax.f32 %v1739, 0.0
        %v1826 = vmax.f32 %v1744, 0.0
        %v1827 = vmax.f32 %v1749, 0.0
        %v1828 = vmax.f32 %v1754, 0.0
        %v1829 = vmax.f32 %v1759, 0.0
        %v1830 = vmax.f32 %v1764, 0.0
        %v1831 = vmax.f32 %v1769, 0.0
        %v1832 = vmax.f32 %v1774, 0.0
        %v1833 = vmax.f32 %v1779, 0.0
        %v1834 = vmax.f32 %v1784, 0.0
        %v1835 = vmax.f32 %v1789, 0.0
        %v1836 = vmax.f32 %v1794, 0.0
        %v1837 = vmax.f32 %v1799, 0.0
        %v1838 = vmax.f32 %v1804, 0.0
        %v1839 = vld [vmem:[#allocation14] sm:$0xff]
        %v1840 = vld [vmem:[#allocation14 + $0x8] sm:$0xff]
        %v1841 = vld [vmem:[#allocation14 + $0x10] sm:$0xff]
        %v1842 = vld [vmem:[#allocation14 + $0x18] sm:$0xff]
        %v1843 = vld [vmem:[#allocation14 + $0x20] sm:$0xff]
        %v1844 = vld [vmem:[#allocation14 + $0x28] sm:$0xff]
        %v1845 = vld [vmem:[#allocation14 + $0x30] sm:$0xff]
        %v1846 = vld [vmem:[#allocation14 + $0x38] sm:$0xff]
        %v1847 = vld [vmem:[#allocation14 + $0x40] sm:$0xff]
        %v1848 = vld [vmem:[#allocation14 + $0x48] sm:$0xff]
        %v1849 = vld [vmem:[#allocation14 + $0x50] sm:$0xff]
        %v1850 = vld [vmem:[#allocation14 + $0x58] sm:$0xff]
        %v1851 = vld [vmem:[#allocation14 + $0x60] sm:$0xff]
        %v1852 = vld [vmem:[#allocation14 + $0x68] sm:$0xff]
        %v1853 = vld [vmem:[#allocation14 + $0x70] sm:$0xff]
        %v1854 = vld [vmem:[#allocation14 + $0x78] sm:$0xff]
        %v1855 = vld [vmem:[%s13] sm:$0x1]
        %v1857 = vlaneseq
        %v1858 = vshrl.u32 %v1857, 7
        %v1859 = vsub.s32 0, %v1858
        %v1860 = vrot.slane %v1855, %v1859
        %1862 = vmatprep.subr.mxu0 0.0
        %1863 = vmatpush1.msra.mxu0 %v1854
        %1864 = vmatprep.subr.mxu0 0.0
        %1865 = vmatpush1.msra.mxu0 %v1853
        %1866 = vmatprep.subr.mxu0 0.0
        %1867 = vmatpush1.msra.mxu0 %v1852
        %1868 = vmatprep.subr.mxu0 0.0
        %1869 = vmatpush1.msra.mxu0 %v1851
        %1870 = vmatprep.subr.mxu0 0.0
        %1871 = vmatpush1.msra.mxu0 %v1850
        %1872 = vmatprep.subr.mxu0 0.0
        %1873 = vmatpush1.msra.mxu0 %v1849
        %1874 = vmatprep.subr.mxu0 0.0
        %1875 = vmatpush1.msra.mxu0 %v1848
        %1876 = vmatprep.subr.mxu0 0.0
        %1877 = vmatpush1.msra.mxu0 %v1847
        %1878 = vmatprep.subr.mxu0 0.0
        %1879 = vmatpush1.msra.mxu0 %v1846
        %1880 = vmatprep.subr.mxu0 0.0
        %1881 = vmatpush1.msra.mxu0 %v1845
        %1882 = vmatprep.subr.mxu0 0.0
        %1883 = vmatpush1.msra.mxu0 %v1844
        %1884 = vmatprep.subr.mxu0 0.0
        %1885 = vmatpush1.msra.mxu0 %v1843
        %1886 = vmatprep.subr.mxu0 0.0
        %1887 = vmatpush1.msra.mxu0 %v1842
        %1888 = vmatprep.subr.mxu0 0.0
        %1889 = vmatpush1.msra.mxu0 %v1841
        %1890 = vmatprep.subr.mxu0 0.0
        %1891 = vmatpush1.msra.mxu0 %v1840
        %1892 = vmatprep.subr.mxu0 0.0
        %1893 = vmatpush1.msra.mxu0 %v1839
        %1894 = vmatprep.subr.mxu0 0.0
        %1895 = vmatpush2.msra.mxu0 0.0
        %1896 = vmatprep.subr.mxu0 0.0
        %1897 = vmatpush2.msra.mxu0 0.0
        %1898 = vmatprep.subr.mxu0 0.0
        %1899 = vmatpush2.msra.mxu0 0.0
        %1900 = vmatprep.subr.mxu0 0.0
        %1901 = vmatpush2.msra.mxu0 0.0
        %1902 = vmatprep.subr.mxu0 0.0
        %1903 = vmatpush2.msra.mxu0 0.0
        %1904 = vmatprep.subr.mxu0 0.0
        %1905 = vmatpush2.msra.mxu0 0.0
        %1906 = vmatprep.subr.mxu0 0.0
        %1907 = vmatpush2.msra.mxu0 0.0
        %1908 = vmatprep.subr.mxu0 0.0
        %1909 = vmatpush2.msra.mxu0 0.0
        %1910 = vmatprep.subr.mxu0 0.0
        %1911 = vmatpush2.msra.mxu0 0.0
        %1912 = vmatprep.subr.mxu0 0.0
        %1913 = vmatpush2.msra.mxu0 0.0
        %1914 = vmatprep.subr.mxu0 0.0
        %1915 = vmatpush2.msra.mxu0 0.0
        %1916 = vmatprep.subr.mxu0 0.0
        %1917 = vmatpush2.msra.mxu0 0.0
        %1918 = vmatprep.subr.mxu0 0.0
        %1919 = vmatpush2.msra.mxu0 0.0
        %1920 = vmatprep.subr.mxu0 0.0
        %1921 = vmatpush2.msra.mxu0 0.0
        %1922 = vmatprep.subr.mxu0 0.0
        %1923 = vmatpush2.msra.mxu0 0.0
        %1924 = vmatprep.subr.mxu0 0.0
        %1925 = vmatpush2.msra.mxu0 0.0
        %1926 = vmatprep.mubr.f32.mxu0 0.0
        %1927 = vmatmul.mubr.f32.gmra.mxu0 %v1807
        %v1928 = vpop.f32.mrf.mxu0
        %v1929 = vadd.f32 %v1860, %v1928
        %v1930 = vpop.f32.mrf.mxu0
        %1931 = vmatprep.mubr.f32.mxu0 0.0
        %1932 = vmatmul.mubr.f32.gmra.mxu0 %v1808
        %v1933 = vpop.f32.mrf.mxu0
        %v1934 = vadd.f32 %v1860, %v1933
        %v1935 = vpop.f32.mrf.mxu0
        %1936 = vmatprep.mubr.f32.mxu0 0.0
        %1937 = vmatmul.mubr.f32.gmra.mxu0 %v1809
        %v1938 = vpop.f32.mrf.mxu0
        %v1939 = vadd.f32 %v1860, %v1938
        %v1940 = vpop.f32.mrf.mxu0
        %1941 = vmatprep.mubr.f32.mxu0 0.0
        %1942 = vmatmul.mubr.f32.gmra.mxu0 %v1810
        %v1943 = vpop.f32.mrf.mxu0
        %v1944 = vadd.f32 %v1860, %v1943
        %v1945 = vpop.f32.mrf.mxu0
        %1946 = vmatprep.mubr.f32.mxu0 0.0
        %1947 = vmatmul.mubr.f32.gmra.mxu0 %v1811
        %v1948 = vpop.f32.mrf.mxu0
        %v1949 = vadd.f32 %v1860, %v1948
        %v1950 = vpop.f32.mrf.mxu0
        %1951 = vmatprep.mubr.f32.mxu0 0.0
        %1952 = vmatmul.mubr.f32.gmra.mxu0 %v1812
        %v1953 = vpop.f32.mrf.mxu0
        %v1954 = vadd.f32 %v1860, %v1953
        %v1955 = vpop.f32.mrf.mxu0
        %1956 = vmatprep.mubr.f32.mxu0 0.0
        %1957 = vmatmul.mubr.f32.gmra.mxu0 %v1813
        %v1958 = vpop.f32.mrf.mxu0
        %v1959 = vadd.f32 %v1860, %v1958
        %v1960 = vpop.f32.mrf.mxu0
        %1961 = vmatprep.mubr.f32.mxu0 0.0
        %1962 = vmatmul.mubr.f32.gmra.mxu0 %v1814
        %v1963 = vpop.f32.mrf.mxu0
        %v1964 = vadd.f32 %v1860, %v1963
        %v1965 = vpop.f32.mrf.mxu0
        %1966 = vmatprep.mubr.f32.mxu0 0.0
        %1967 = vmatmul.mubr.f32.gmra.mxu0 %v1815
        %v1968 = vpop.f32.mrf.mxu0
        %v1969 = vadd.f32 %v1860, %v1968
        %v1970 = vpop.f32.mrf.mxu0
        %1971 = vmatprep.mubr.f32.mxu0 0.0
        %1972 = vmatmul.mubr.f32.gmra.mxu0 %v1816
        %v1973 = vpop.f32.mrf.mxu0
        %v1974 = vadd.f32 %v1860, %v1973
        %v1975 = vpop.f32.mrf.mxu0
        %1976 = vmatprep.mubr.f32.mxu0 0.0
        %1977 = vmatmul.mubr.f32.gmra.mxu0 %v1817
        %v1978 = vpop.f32.mrf.mxu0
        %v1979 = vadd.f32 %v1860, %v1978
        %v1980 = vpop.f32.mrf.mxu0
        %1981 = vmatprep.mubr.f32.mxu0 0.0
        %1982 = vmatmul.mubr.f32.gmra.mxu0 %v1818
        %v1983 = vpop.f32.mrf.mxu0
        %v1984 = vadd.f32 %v1860, %v1983
        %v1985 = vpop.f32.mrf.mxu0
        %1986 = vmatprep.mubr.f32.mxu0 0.0
        %1987 = vmatmul.mubr.f32.gmra.mxu0 %v1819
        %v1988 = vpop.f32.mrf.mxu0
        %v1989 = vadd.f32 %v1860, %v1988
        %v1990 = vpop.f32.mrf.mxu0
        %1991 = vmatprep.mubr.f32.mxu0 0.0
        %1992 = vmatmul.mubr.f32.gmra.mxu0 %v1820
        %v1993 = vpop.f32.mrf.mxu0
        %v1994 = vadd.f32 %v1860, %v1993
        %v1995 = vpop.f32.mrf.mxu0
        %1996 = vmatprep.mubr.f32.mxu0 0.0
        %1997 = vmatmul.mubr.f32.gmra.mxu0 %v1821
        %v1998 = vpop.f32.mrf.mxu0
        %v1999 = vadd.f32 %v1860, %v1998
        %v2000 = vpop.f32.mrf.mxu0
        %2001 = vmatprep.mubr.f32.mxu0 0.0
        %2002 = vmatmul.mubr.f32.gmra.mxu0 %v1822
        %v2003 = vpop.f32.mrf.mxu0
        %v2004 = vadd.f32 %v1860, %v2003
        %v2005 = vpop.f32.mrf.mxu0
        %2006 = vmatprep.mubr.f32.mxu0 0.0
        %2007 = vmatmul.mubr.f32.gmra.mxu0 %v1823
        %v2008 = vpop.f32.mrf.mxu0
        %v2009 = vadd.f32 %v1860, %v2008
        %v2010 = vpop.f32.mrf.mxu0
        %2011 = vmatprep.mubr.f32.mxu0 0.0
        %2012 = vmatmul.mubr.f32.gmra.mxu0 %v1824
        %v2013 = vpop.f32.mrf.mxu0
        %v2014 = vadd.f32 %v1860, %v2013
        %v2015 = vpop.f32.mrf.mxu0
        %2016 = vmatprep.mubr.f32.mxu0 0.0
        %2017 = vmatmul.mubr.f32.gmra.mxu0 %v1825
        %v2018 = vpop.f32.mrf.mxu0
        %v2019 = vadd.f32 %v1860, %v2018
        %v2020 = vpop.f32.mrf.mxu0
        %2021 = vmatprep.mubr.f32.mxu0 0.0
        %2022 = vmatmul.mubr.f32.gmra.mxu0 %v1826
        %v2023 = vpop.f32.mrf.mxu0
        %v2024 = vadd.f32 %v1860, %v2023
        %v2025 = vpop.f32.mrf.mxu0
        %2026 = vmatprep.mubr.f32.mxu0 0.0
        %2027 = vmatmul.mubr.f32.gmra.mxu0 %v1827
        %v2028 = vpop.f32.mrf.mxu0
        %v2029 = vadd.f32 %v1860, %v2028
        %v2030 = vpop.f32.mrf.mxu0
        %2031 = vmatprep.mubr.f32.mxu0 0.0
        %2032 = vmatmul.mubr.f32.gmra.mxu0 %v1828
        %v2033 = vpop.f32.mrf.mxu0
        %v2034 = vadd.f32 %v1860, %v2033
        %v2035 = vpop.f32.mrf.mxu0
        %2036 = vmatprep.mubr.f32.mxu0 0.0
        %2037 = vmatmul.mubr.f32.gmra.mxu0 %v1829
        %v2038 = vpop.f32.mrf.mxu0
        %v2039 = vadd.f32 %v1860, %v2038
        %v2040 = vpop.f32.mrf.mxu0
        %2041 = vmatprep.mubr.f32.mxu0 0.0
        %2042 = vmatmul.mubr.f32.gmra.mxu0 %v1830
        %v2043 = vpop.f32.mrf.mxu0
        %v2044 = vadd.f32 %v1860, %v2043
        %v2045 = vpop.f32.mrf.mxu0
        %2046 = vmatprep.mubr.f32.mxu0 0.0
        %2047 = vmatmul.mubr.f32.gmra.mxu0 %v1831
        %v2048 = vpop.f32.mrf.mxu0
        %v2049 = vadd.f32 %v1860, %v2048
        %v2050 = vpop.f32.mrf.mxu0
        %2051 = vmatprep.mubr.f32.mxu0 0.0
        %2052 = vmatmul.mubr.f32.gmra.mxu0 %v1832
        %v2053 = vpop.f32.mrf.mxu0
        %v2054 = vadd.f32 %v1860, %v2053
        %v2055 = vpop.f32.mrf.mxu0
        %2056 = vmatprep.mubr.f32.mxu0 0.0
        %2057 = vmatmul.mubr.f32.gmra.mxu0 %v1833
        %v2058 = vpop.f32.mrf.mxu0
        %v2059 = vadd.f32 %v1860, %v2058
        %v2060 = vpop.f32.mrf.mxu0
        %2061 = vmatprep.mubr.f32.mxu0 0.0
        %2062 = vmatmul.mubr.f32.gmra.mxu0 %v1834
        %v2063 = vpop.f32.mrf.mxu0
        %v2064 = vadd.f32 %v1860, %v2063
        %v2065 = vpop.f32.mrf.mxu0
        %2066 = vmatprep.mubr.f32.mxu0 0.0
        %2067 = vmatmul.mubr.f32.gmra.mxu0 %v1835
        %v2068 = vpop.f32.mrf.mxu0
        %v2069 = vadd.f32 %v1860, %v2068
        %v2070 = vpop.f32.mrf.mxu0
        %2071 = vmatprep.mubr.f32.mxu0 0.0
        %2072 = vmatmul.mubr.f32.gmra.mxu0 %v1836
        %v2073 = vpop.f32.mrf.mxu0
        %v2074 = vadd.f32 %v1860, %v2073
        %v2075 = vpop.f32.mrf.mxu0
        %2076 = vmatprep.mubr.f32.mxu0 0.0
        %2077 = vmatmul.mubr.f32.gmra.mxu0 %v1837
        %v2078 = vpop.f32.mrf.mxu0
        %v2079 = vadd.f32 %v1860, %v2078
        %v2080 = vpop.f32.mrf.mxu0
        %2081 = vmatprep.mubr.f32.mxu0 0.0
        %2082 = vmatmul.mubr.f32.gmra.mxu0 %v1838
        %v2083 = vpop.f32.mrf.mxu0
        %v2084 = vadd.f32 %v1860, %v2083
        %v2085 = vpop.f32.mrf.mxu0
        %2086 = vdwg.mxu0
        %v2087 = vld [vmem:[#allocation10] sm:$0xff]
        %v2088 = vld [vmem:[#allocation10 + $0x8] sm:$0xff]
        %v2089 = vld [vmem:[#allocation10 + $0x10] sm:$0xff]
        %v2090 = vld [vmem:[#allocation10 + $0x18] sm:$0xff]
        %v2091 = vld [vmem:[#allocation10 + $0x20] sm:$0xff]
        %v2092 = vld [vmem:[#allocation10 + $0x28] sm:$0xff]
        %v2093 = vld [vmem:[#allocation10 + $0x30] sm:$0xff]
        %v2094 = vld [vmem:[#allocation10 + $0x38] sm:$0xff]
        %v2095 = vld [vmem:[#allocation10 + $0x40] sm:$0xff]
        %v2096 = vld [vmem:[#allocation10 + $0x48] sm:$0xff]
        %v2097 = vld [vmem:[#allocation10 + $0x50] sm:$0xff]
        %v2098 = vld [vmem:[#allocation10 + $0x58] sm:$0xff]
        %v2099 = vld [vmem:[#allocation10 + $0x60] sm:$0xff]
        %v2100 = vld [vmem:[#allocation10 + $0x68] sm:$0xff]
        %v2101 = vld [vmem:[#allocation10 + $0x70] sm:$0xff]
        %v2102 = vld [vmem:[#allocation10 + $0x78] sm:$0xff]
        %v2103 = vld [vmem:[%s7] sm:$0x1]
        %v2105 = vlaneseq
        %v2106 = vshrl.u32 %v2105, 7
        %v2107 = vsub.s32 0, %v2106
        %v2108 = vrot.slane %v2103, %v2107
        %2110 = vmatprep.subr.mxu0 0.0
        %2111 = vmatpush1.msra.mxu0 %v2102
        %2112 = vmatprep.subr.mxu0 0.0
        %2113 = vmatpush1.msra.mxu0 %v2101
        %2114 = vmatprep.subr.mxu0 0.0
        %2115 = vmatpush1.msra.mxu0 %v2100
        %2116 = vmatprep.subr.mxu0 0.0
        %2117 = vmatpush1.msra.mxu0 %v2099
        %2118 = vmatprep.subr.mxu0 0.0
        %2119 = vmatpush1.msra.mxu0 %v2098
        %2120 = vmatprep.subr.mxu0 0.0
        %2121 = vmatpush1.msra.mxu0 %v2097
        %2122 = vmatprep.subr.mxu0 0.0
        %2123 = vmatpush1.msra.mxu0 %v2096
        %2124 = vmatprep.subr.mxu0 0.0
        %2125 = vmatpush1.msra.mxu0 %v2095
        %2126 = vmatprep.subr.mxu0 0.0
        %2127 = vmatpush1.msra.mxu0 %v2094
        %2128 = vmatprep.subr.mxu0 0.0
        %2129 = vmatpush1.msra.mxu0 %v2093
        %2130 = vmatprep.subr.mxu0 0.0
        %2131 = vmatpush1.msra.mxu0 %v2092
        %2132 = vmatprep.subr.mxu0 0.0
        %2133 = vmatpush1.msra.mxu0 %v2091
        %2134 = vmatprep.subr.mxu0 0.0
        %2135 = vmatpush1.msra.mxu0 %v2090
        %2136 = vmatprep.subr.mxu0 0.0
        %2137 = vmatpush1.msra.mxu0 %v2089
        %2138 = vmatprep.subr.mxu0 0.0
        %2139 = vmatpush1.msra.mxu0 %v2088
        %2140 = vmatprep.subr.mxu0 0.0
        %2141 = vmatpush1.msra.mxu0 %v2087
        %2142 = vmatprep.subr.mxu0 0.0
        %2143 = vmatpush2.msra.mxu0 0.0
        %2144 = vmatprep.subr.mxu0 0.0
        %2145 = vmatpush2.msra.mxu0 0.0
        %2146 = vmatprep.subr.mxu0 0.0
        %2147 = vmatpush2.msra.mxu0 0.0
        %2148 = vmatprep.subr.mxu0 0.0
        %2149 = vmatpush2.msra.mxu0 0.0
        %2150 = vmatprep.subr.mxu0 0.0
        %2151 = vmatpush2.msra.mxu0 0.0
        %2152 = vmatprep.subr.mxu0 0.0
        %2153 = vmatpush2.msra.mxu0 0.0
        %2154 = vmatprep.subr.mxu0 0.0
        %2155 = vmatpush2.msra.mxu0 0.0
        %2156 = vmatprep.subr.mxu0 0.0
        %2157 = vmatpush2.msra.mxu0 0.0
        %2158 = vmatprep.subr.mxu0 0.0
        %2159 = vmatpush2.msra.mxu0 0.0
        %2160 = vmatprep.subr.mxu0 0.0
        %2161 = vmatpush2.msra.mxu0 0.0
        %2162 = vmatprep.subr.mxu0 0.0
        %2163 = vmatpush2.msra.mxu0 0.0
        %2164 = vmatprep.subr.mxu0 0.0
        %2165 = vmatpush2.msra.mxu0 0.0
        %2166 = vmatprep.subr.mxu0 0.0
        %2167 = vmatpush2.msra.mxu0 0.0
        %2168 = vmatprep.subr.mxu0 0.0
        %2169 = vmatpush2.msra.mxu0 0.0
        %2170 = vmatprep.subr.mxu0 0.0
        %2171 = vmatpush2.msra.mxu0 0.0
        %2172 = vmatprep.subr.mxu0 0.0
        %2173 = vmatpush2.msra.mxu0 0.0
        %2174 = vmatprep.mubr.f32.mxu0 0.0
        %2175 = vmatmul.mubr.f32.gmra.mxu0 %v1527
        %v2176 = vpop.f32.mrf.mxu0
        %v2177 = vadd.f32 %v2108, %v2176
        %v2178 = vpop.f32.mrf.mxu0
        %2179 = vmatprep.mubr.f32.mxu0 0.0
        %2180 = vmatmul.mubr.f32.gmra.mxu0 %v1528
        %v2181 = vpop.f32.mrf.mxu0
        %v2182 = vadd.f32 %v2108, %v2181
        %v2183 = vpop.f32.mrf.mxu0
        %2184 = vmatprep.mubr.f32.mxu0 0.0
        %2185 = vmatmul.mubr.f32.gmra.mxu0 %v1529
        %v2186 = vpop.f32.mrf.mxu0
        %v2187 = vadd.f32 %v2108, %v2186
        %v2188 = vpop.f32.mrf.mxu0
        %2189 = vmatprep.mubr.f32.mxu0 0.0
        %2190 = vmatmul.mubr.f32.gmra.mxu0 %v1530
        %v2191 = vpop.f32.mrf.mxu0
        %v2192 = vadd.f32 %v2108, %v2191
        %v2193 = vpop.f32.mrf.mxu0
        %2194 = vmatprep.mubr.f32.mxu0 0.0
        %2195 = vmatmul.mubr.f32.gmra.mxu0 %v1531
        %v2196 = vpop.f32.mrf.mxu0
        %v2197 = vadd.f32 %v2108, %v2196
        %v2198 = vpop.f32.mrf.mxu0
        %2199 = vmatprep.mubr.f32.mxu0 0.0
        %2200 = vmatmul.mubr.f32.gmra.mxu0 %v1532
        %v2201 = vpop.f32.mrf.mxu0
        %v2202 = vadd.f32 %v2108, %v2201
        %v2203 = vpop.f32.mrf.mxu0
        %2204 = vmatprep.mubr.f32.mxu0 0.0
        %2205 = vmatmul.mubr.f32.gmra.mxu0 %v1533
        %v2206 = vpop.f32.mrf.mxu0
        %v2207 = vadd.f32 %v2108, %v2206
        %v2208 = vpop.f32.mrf.mxu0
        %2209 = vmatprep.mubr.f32.mxu0 0.0
        %2210 = vmatmul.mubr.f32.gmra.mxu0 %v1534
        %v2211 = vpop.f32.mrf.mxu0
        %v2212 = vadd.f32 %v2108, %v2211
        %v2213 = vpop.f32.mrf.mxu0
        %2214 = vmatprep.mubr.f32.mxu0 0.0
        %2215 = vmatmul.mubr.f32.gmra.mxu0 %v1535
        %v2216 = vpop.f32.mrf.mxu0
        %v2217 = vadd.f32 %v2108, %v2216
        %v2218 = vpop.f32.mrf.mxu0
        %2219 = vmatprep.mubr.f32.mxu0 0.0
        %2220 = vmatmul.mubr.f32.gmra.mxu0 %v1536
        %v2221 = vpop.f32.mrf.mxu0
        %v2222 = vadd.f32 %v2108, %v2221
        %v2223 = vpop.f32.mrf.mxu0
        %2224 = vmatprep.mubr.f32.mxu0 0.0
        %2225 = vmatmul.mubr.f32.gmra.mxu0 %v1537
        %v2226 = vpop.f32.mrf.mxu0
        %v2227 = vadd.f32 %v2108, %v2226
        %v2228 = vpop.f32.mrf.mxu0
        %2229 = vmatprep.mubr.f32.mxu0 0.0
        %2230 = vmatmul.mubr.f32.gmra.mxu0 %v1538
        %v2231 = vpop.f32.mrf.mxu0
        %v2232 = vadd.f32 %v2108, %v2231
        %v2233 = vpop.f32.mrf.mxu0
        %2234 = vmatprep.mubr.f32.mxu0 0.0
        %2235 = vmatmul.mubr.f32.gmra.mxu0 %v1539
        %v2236 = vpop.f32.mrf.mxu0
        %v2237 = vadd.f32 %v2108, %v2236
        %v2238 = vpop.f32.mrf.mxu0
        %2239 = vmatprep.mubr.f32.mxu0 0.0
        %2240 = vmatmul.mubr.f32.gmra.mxu0 %v1540
        %v2241 = vpop.f32.mrf.mxu0
        %v2242 = vadd.f32 %v2108, %v2241
        %v2243 = vpop.f32.mrf.mxu0
        %2244 = vmatprep.mubr.f32.mxu0 0.0
        %2245 = vmatmul.mubr.f32.gmra.mxu0 %v1541
        %v2246 = vpop.f32.mrf.mxu0
        %v2247 = vadd.f32 %v2108, %v2246
        %v2248 = vpop.f32.mrf.mxu0
        %2249 = vmatprep.mubr.f32.mxu0 0.0
        %2250 = vmatmul.mubr.f32.gmra.mxu0 %v1542
        %v2251 = vpop.f32.mrf.mxu0
        %v2252 = vadd.f32 %v2108, %v2251
        %v2253 = vpop.f32.mrf.mxu0
        %2254 = vmatprep.mubr.f32.mxu0 0.0
        %2255 = vmatmul.mubr.f32.gmra.mxu0 %v1543
        %v2256 = vpop.f32.mrf.mxu0
        %v2257 = vadd.f32 %v2108, %v2256
        %v2258 = vpop.f32.mrf.mxu0
        %2259 = vmatprep.mubr.f32.mxu0 0.0
        %2260 = vmatmul.mubr.f32.gmra.mxu0 %v1544
        %v2261 = vpop.f32.mrf.mxu0
        %v2262 = vadd.f32 %v2108, %v2261
        %v2263 = vpop.f32.mrf.mxu0
        %2264 = vmatprep.mubr.f32.mxu0 0.0
        %2265 = vmatmul.mubr.f32.gmra.mxu0 %v1545
        %v2266 = vpop.f32.mrf.mxu0
        %v2267 = vadd.f32 %v2108, %v2266
        %v2268 = vpop.f32.mrf.mxu0
        %2269 = vmatprep.mubr.f32.mxu0 0.0
        %2270 = vmatmul.mubr.f32.gmra.mxu0 %v1546
        %v2271 = vpop.f32.mrf.mxu0
        %v2272 = vadd.f32 %v2108, %v2271
        %v2273 = vpop.f32.mrf.mxu0
        %2274 = vmatprep.mubr.f32.mxu0 0.0
        %2275 = vmatmul.mubr.f32.gmra.mxu0 %v1547
        %v2276 = vpop.f32.mrf.mxu0
        %v2277 = vadd.f32 %v2108, %v2276
        %v2278 = vpop.f32.mrf.mxu0
        %2279 = vmatprep.mubr.f32.mxu0 0.0
        %2280 = vmatmul.mubr.f32.gmra.mxu0 %v1548
        %v2281 = vpop.f32.mrf.mxu0
        %v2282 = vadd.f32 %v2108, %v2281
        %v2283 = vpop.f32.mrf.mxu0
        %2284 = vmatprep.mubr.f32.mxu0 0.0
        %2285 = vmatmul.mubr.f32.gmra.mxu0 %v1549
        %v2286 = vpop.f32.mrf.mxu0
        %v2287 = vadd.f32 %v2108, %v2286
        %v2288 = vpop.f32.mrf.mxu0
        %2289 = vmatprep.mubr.f32.mxu0 0.0
        %2290 = vmatmul.mubr.f32.gmra.mxu0 %v1550
        %v2291 = vpop.f32.mrf.mxu0
        %v2292 = vadd.f32 %v2108, %v2291
        %v2293 = vpop.f32.mrf.mxu0
        %2294 = vmatprep.mubr.f32.mxu0 0.0
        %2295 = vmatmul.mubr.f32.gmra.mxu0 %v1551
        %v2296 = vpop.f32.mrf.mxu0
        %v2297 = vadd.f32 %v2108, %v2296
        %v2298 = vpop.f32.mrf.mxu0
        %2299 = vmatprep.mubr.f32.mxu0 0.0
        %2300 = vmatmul.mubr.f32.gmra.mxu0 %v1552
        %v2301 = vpop.f32.mrf.mxu0
        %v2302 = vadd.f32 %v2108, %v2301
        %v2303 = vpop.f32.mrf.mxu0
        %2304 = vmatprep.mubr.f32.mxu0 0.0
        %2305 = vmatmul.mubr.f32.gmra.mxu0 %v1553
        %v2306 = vpop.f32.mrf.mxu0
        %v2307 = vadd.f32 %v2108, %v2306
        %v2308 = vpop.f32.mrf.mxu0
        %2309 = vmatprep.mubr.f32.mxu0 0.0
        %2310 = vmatmul.mubr.f32.gmra.mxu0 %v1554
        %v2311 = vpop.f32.mrf.mxu0
        %v2312 = vadd.f32 %v2108, %v2311
        %v2313 = vpop.f32.mrf.mxu0
        %2314 = vmatprep.mubr.f32.mxu0 0.0
        %2315 = vmatmul.mubr.f32.gmra.mxu0 %v1555
        %v2316 = vpop.f32.mrf.mxu0
        %v2317 = vadd.f32 %v2108, %v2316
        %v2318 = vpop.f32.mrf.mxu0
        %2319 = vmatprep.mubr.f32.mxu0 0.0
        %2320 = vmatmul.mubr.f32.gmra.mxu0 %v1556
        %v2321 = vpop.f32.mrf.mxu0
        %v2322 = vadd.f32 %v2108, %v2321
        %v2323 = vpop.f32.mrf.mxu0
        %2324 = vmatprep.mubr.f32.mxu0 0.0
        %2325 = vmatmul.mubr.f32.gmra.mxu0 %v1557
        %v2326 = vpop.f32.mrf.mxu0
        %v2327 = vadd.f32 %v2108, %v2326
        %v2328 = vpop.f32.mrf.mxu0
        %2329 = vmatprep.mubr.f32.mxu0 0.0
        %2330 = vmatmul.mubr.f32.gmra.mxu0 %v1558
        %v2331 = vpop.f32.mrf.mxu0
        %v2332 = vadd.f32 %v2108, %v2331
        %v2333 = vpop.f32.mrf.mxu0
        %2334 = vmatprep.mubr.f32.mxu0 0.0
        %2335 = vmatmul.mubr.f32.gmra.mxu0 %v1929
        %v2336 = vpop.f32.mrf.mxu0
        %v2337 = vadd.f32 %v2108, %v2336
        %v2338 = vpop.f32.mrf.mxu0
        %2339 = vmatprep.mubr.f32.mxu0 0.0
        %2340 = vmatmul.mubr.f32.gmra.mxu0 %v1934
        %v2341 = vpop.f32.mrf.mxu0
        %v2342 = vadd.f32 %v2108, %v2341
        %v2343 = vpop.f32.mrf.mxu0
        %2344 = vmatprep.mubr.f32.mxu0 0.0
        %2345 = vmatmul.mubr.f32.gmra.mxu0 %v1939
        %v2346 = vpop.f32.mrf.mxu0
        %v2347 = vadd.f32 %v2108, %v2346
        %v2348 = vpop.f32.mrf.mxu0
        %2349 = vmatprep.mubr.f32.mxu0 0.0
        %2350 = vmatmul.mubr.f32.gmra.mxu0 %v1944
        %v2351 = vpop.f32.mrf.mxu0
        %v2352 = vadd.f32 %v2108, %v2351
        %v2353 = vpop.f32.mrf.mxu0
        %2354 = vmatprep.mubr.f32.mxu0 0.0
        %2355 = vmatmul.mubr.f32.gmra.mxu0 %v1949
        %v2356 = vpop.f32.mrf.mxu0
        %v2357 = vadd.f32 %v2108, %v2356
        %v2358 = vpop.f32.mrf.mxu0
        %2359 = vmatprep.mubr.f32.mxu0 0.0
        %2360 = vmatmul.mubr.f32.gmra.mxu0 %v1954
        %v2361 = vpop.f32.mrf.mxu0
        %v2362 = vadd.f32 %v2108, %v2361
        %v2363 = vpop.f32.mrf.mxu0
        %2364 = vmatprep.mubr.f32.mxu0 0.0
        %2365 = vmatmul.mubr.f32.gmra.mxu0 %v1959
        %v2366 = vpop.f32.mrf.mxu0
        %v2367 = vadd.f32 %v2108, %v2366
        %v2368 = vpop.f32.mrf.mxu0
        %2369 = vmatprep.mubr.f32.mxu0 0.0
        %2370 = vmatmul.mubr.f32.gmra.mxu0 %v1964
        %v2371 = vpop.f32.mrf.mxu0
        %v2372 = vadd.f32 %v2108, %v2371
        %v2373 = vpop.f32.mrf.mxu0
        %2374 = vmatprep.mubr.f32.mxu0 0.0
        %2375 = vmatmul.mubr.f32.gmra.mxu0 %v1969
        %v2376 = vpop.f32.mrf.mxu0
        %v2377 = vadd.f32 %v2108, %v2376
        %v2378 = vpop.f32.mrf.mxu0
        %2379 = vmatprep.mubr.f32.mxu0 0.0
        %2380 = vmatmul.mubr.f32.gmra.mxu0 %v1974
        %v2381 = vpop.f32.mrf.mxu0
        %v2382 = vadd.f32 %v2108, %v2381
        %v2383 = vpop.f32.mrf.mxu0
        %2384 = vmatprep.mubr.f32.mxu0 0.0
        %2385 = vmatmul.mubr.f32.gmra.mxu0 %v1979
        %v2386 = vpop.f32.mrf.mxu0
        %v2387 = vadd.f32 %v2108, %v2386
        %v2388 = vpop.f32.mrf.mxu0
        %2389 = vmatprep.mubr.f32.mxu0 0.0
        %2390 = vmatmul.mubr.f32.gmra.mxu0 %v1984
        %v2391 = vpop.f32.mrf.mxu0
        %v2392 = vadd.f32 %v2108, %v2391
        %v2393 = vpop.f32.mrf.mxu0
        %2394 = vmatprep.mubr.f32.mxu0 0.0
        %2395 = vmatmul.mubr.f32.gmra.mxu0 %v1989
        %v2396 = vpop.f32.mrf.mxu0
        %v2397 = vadd.f32 %v2108, %v2396
        %v2398 = vpop.f32.mrf.mxu0
        %2399 = vmatprep.mubr.f32.mxu0 0.0
        %2400 = vmatmul.mubr.f32.gmra.mxu0 %v1994
        %v2401 = vpop.f32.mrf.mxu0
        %v2402 = vadd.f32 %v2108, %v2401
        %v2403 = vpop.f32.mrf.mxu0
        %2404 = vmatprep.mubr.f32.mxu0 0.0
        %2405 = vmatmul.mubr.f32.gmra.mxu0 %v1999
        %v2406 = vpop.f32.mrf.mxu0
        %v2407 = vadd.f32 %v2108, %v2406
        %v2408 = vpop.f32.mrf.mxu0
        %2409 = vmatprep.mubr.f32.mxu0 0.0
        %2410 = vmatmul.mubr.f32.gmra.mxu0 %v2004
        %v2411 = vpop.f32.mrf.mxu0
        %v2412 = vadd.f32 %v2108, %v2411
        %v2413 = vpop.f32.mrf.mxu0
        %2414 = vmatprep.mubr.f32.mxu0 0.0
        %2415 = vmatmul.mubr.f32.gmra.mxu0 %v2009
        %v2416 = vpop.f32.mrf.mxu0
        %v2417 = vadd.f32 %v2108, %v2416
        %v2418 = vpop.f32.mrf.mxu0
        %2419 = vmatprep.mubr.f32.mxu0 0.0
        %2420 = vmatmul.mubr.f32.gmra.mxu0 %v2014
        %v2421 = vpop.f32.mrf.mxu0
        %v2422 = vadd.f32 %v2108, %v2421
        %v2423 = vpop.f32.mrf.mxu0
        %2424 = vmatprep.mubr.f32.mxu0 0.0
        %2425 = vmatmul.mubr.f32.gmra.mxu0 %v2019
        %v2426 = vpop.f32.mrf.mxu0
        %v2427 = vadd.f32 %v2108, %v2426
        %v2428 = vpop.f32.mrf.mxu0
        %2429 = vmatprep.mubr.f32.mxu0 0.0
        %2430 = vmatmul.mubr.f32.gmra.mxu0 %v2024
        %v2431 = vpop.f32.mrf.mxu0
        %v2432 = vadd.f32 %v2108, %v2431
        %v2433 = vpop.f32.mrf.mxu0
        %2434 = vmatprep.mubr.f32.mxu0 0.0
        %2435 = vmatmul.mubr.f32.gmra.mxu0 %v2029
        %v2436 = vpop.f32.mrf.mxu0
        %v2437 = vadd.f32 %v2108, %v2436
        %v2438 = vpop.f32.mrf.mxu0
        %2439 = vmatprep.mubr.f32.mxu0 0.0
        %2440 = vmatmul.mubr.f32.gmra.mxu0 %v2034
        %v2441 = vpop.f32.mrf.mxu0
        %v2442 = vadd.f32 %v2108, %v2441
        %v2443 = vpop.f32.mrf.mxu0
        %2444 = vmatprep.mubr.f32.mxu0 0.0
        %2445 = vmatmul.mubr.f32.gmra.mxu0 %v2039
        %v2446 = vpop.f32.mrf.mxu0
        %v2447 = vadd.f32 %v2108, %v2446
        %v2448 = vpop.f32.mrf.mxu0
        %2449 = vmatprep.mubr.f32.mxu0 0.0
        %2450 = vmatmul.mubr.f32.gmra.mxu0 %v2044
        %v2451 = vpop.f32.mrf.mxu0
        %v2452 = vadd.f32 %v2108, %v2451
        %v2453 = vpop.f32.mrf.mxu0
        %2454 = vmatprep.mubr.f32.mxu0 0.0
        %2455 = vmatmul.mubr.f32.gmra.mxu0 %v2049
        %v2456 = vpop.f32.mrf.mxu0
        %v2457 = vadd.f32 %v2108, %v2456
        %v2458 = vpop.f32.mrf.mxu0
        %2459 = vmatprep.mubr.f32.mxu0 0.0
        %2460 = vmatmul.mubr.f32.gmra.mxu0 %v2054
        %v2461 = vpop.f32.mrf.mxu0
        %v2462 = vadd.f32 %v2108, %v2461
        %v2463 = vpop.f32.mrf.mxu0
        %2464 = vmatprep.mubr.f32.mxu0 0.0
        %2465 = vmatmul.mubr.f32.gmra.mxu0 %v2059
        %v2466 = vpop.f32.mrf.mxu0
        %v2467 = vadd.f32 %v2108, %v2466
        %v2468 = vpop.f32.mrf.mxu0
        %2469 = vmatprep.mubr.f32.mxu0 0.0
        %2470 = vmatmul.mubr.f32.gmra.mxu0 %v2064
        %v2471 = vpop.f32.mrf.mxu0
        %v2472 = vadd.f32 %v2108, %v2471
        %v2473 = vpop.f32.mrf.mxu0
        %2474 = vmatprep.mubr.f32.mxu0 0.0
        %2475 = vmatmul.mubr.f32.gmra.mxu0 %v2069
        %v2476 = vpop.f32.mrf.mxu0
        %v2477 = vadd.f32 %v2108, %v2476
        %v2478 = vpop.f32.mrf.mxu0
        %2479 = vmatprep.mubr.f32.mxu0 0.0
        %2480 = vmatmul.mubr.f32.gmra.mxu0 %v2074
        %v2481 = vpop.f32.mrf.mxu0
        %v2482 = vadd.f32 %v2108, %v2481
        %v2483 = vpop.f32.mrf.mxu0
        %2484 = vmatprep.mubr.f32.mxu0 0.0
        %2485 = vmatmul.mubr.f32.gmra.mxu0 %v2079
        %v2486 = vpop.f32.mrf.mxu0
        %v2487 = vadd.f32 %v2108, %v2486
        %v2488 = vpop.f32.mrf.mxu0
        %2489 = vmatprep.mubr.f32.mxu0 0.0
        %2490 = vmatmul.mubr.f32.gmra.mxu0 %v2084
        %v2491 = vpop.f32.mrf.mxu0
        %v2492 = vadd.f32 %v2108, %v2491
        %v2493 = vpop.f32.mrf.mxu0
        %2494 = vdwg.mxu0
        %v2495 = vmax.f32 %v2177, 0.0
        %v2496 = vmax.f32 %v2182, 0.0
        %v2497 = vmax.f32 %v2187, 0.0
        %v2498 = vmax.f32 %v2192, 0.0
        %v2499 = vmax.f32 %v2197, 0.0
        %v2500 = vmax.f32 %v2202, 0.0
        %v2501 = vmax.f32 %v2207, 0.0
        %v2502 = vmax.f32 %v2212, 0.0
        %v2503 = vmax.f32 %v2217, 0.0
        %v2504 = vmax.f32 %v2222, 0.0
        %v2505 = vmax.f32 %v2227, 0.0
        %v2506 = vmax.f32 %v2232, 0.0
        %v2507 = vmax.f32 %v2237, 0.0
        %v2508 = vmax.f32 %v2242, 0.0
        %v2509 = vmax.f32 %v2247, 0.0
        %v2510 = vmax.f32 %v2252, 0.0
        %v2511 = vmax.f32 %v2257, 0.0
        %v2512 = vmax.f32 %v2262, 0.0
        %v2513 = vmax.f32 %v2267, 0.0
        %v2514 = vmax.f32 %v2272, 0.0
        %v2515 = vmax.f32 %v2277, 0.0
        %v2516 = vmax.f32 %v2282, 0.0
        %v2517 = vmax.f32 %v2287, 0.0
        %v2518 = vmax.f32 %v2292, 0.0
        %v2519 = vmax.f32 %v2297, 0.0
        %v2520 = vmax.f32 %v2302, 0.0
        %v2521 = vmax.f32 %v2307, 0.0
        %v2522 = vmax.f32 %v2312, 0.0
        %v2523 = vmax.f32 %v2317, 0.0
        %v2524 = vmax.f32 %v2322, 0.0
        %v2525 = vmax.f32 %v2327, 0.0
        %v2526 = vmax.f32 %v2332, 0.0
        %v2527 = vmax.f32 %v2337, 0.0
        %v2528 = vmax.f32 %v2342, 0.0
        %v2529 = vmax.f32 %v2347, 0.0
        %v2530 = vmax.f32 %v2352, 0.0
        %v2531 = vmax.f32 %v2357, 0.0
        %v2532 = vmax.f32 %v2362, 0.0
        %v2533 = vmax.f32 %v2367, 0.0
        %v2534 = vmax.f32 %v2372, 0.0
        %v2535 = vmax.f32 %v2377, 0.0
        %v2536 = vmax.f32 %v2382, 0.0
        %v2537 = vmax.f32 %v2387, 0.0
        %v2538 = vmax.f32 %v2392, 0.0
        %v2539 = vmax.f32 %v2397, 0.0
        %v2540 = vmax.f32 %v2402, 0.0
        %v2541 = vmax.f32 %v2407, 0.0
        %v2542 = vmax.f32 %v2412, 0.0
        %v2543 = vmax.f32 %v2417, 0.0
        %v2544 = vmax.f32 %v2422, 0.0
        %v2545 = vmax.f32 %v2427, 0.0
        %v2546 = vmax.f32 %v2432, 0.0
        %v2547 = vmax.f32 %v2437, 0.0
        %v2548 = vmax.f32 %v2442, 0.0
        %v2549 = vmax.f32 %v2447, 0.0
        %v2550 = vmax.f32 %v2452, 0.0
        %v2551 = vmax.f32 %v2457, 0.0
        %v2552 = vmax.f32 %v2462, 0.0
        %v2553 = vmax.f32 %v2467, 0.0
        %v2554 = vmax.f32 %v2472, 0.0
        %v2555 = vmax.f32 %v2477, 0.0
        %v2556 = vmax.f32 %v2482, 0.0
        %v2557 = vmax.f32 %v2487, 0.0
        %v2558 = vmax.f32 %v2492, 0.0
        %v2559 = vld [vmem:[#allocation11] sm:$0xff]
        %v2560 = vld [vmem:[#allocation11 + $0x8] sm:$0xff]
        %v2561 = vld [vmem:[#allocation11 + $0x10] sm:$0xff]
        %v2562 = vld [vmem:[#allocation11 + $0x18] sm:$0xff]
        %v2563 = vld [vmem:[#allocation11 + $0x20] sm:$0xff]
        %v2564 = vld [vmem:[#allocation11 + $0x28] sm:$0xff]
        %v2565 = vld [vmem:[#allocation11 + $0x30] sm:$0xff]
        %v2566 = vld [vmem:[#allocation11 + $0x38] sm:$0xff]
        %v2567 = vld [vmem:[#allocation11 + $0x40] sm:$0xff]
        %v2568 = vld [vmem:[#allocation11 + $0x48] sm:$0xff]
        %v2569 = vld [vmem:[#allocation11 + $0x50] sm:$0xff]
        %v2570 = vld [vmem:[#allocation11 + $0x58] sm:$0xff]
        %v2571 = vld [vmem:[#allocation11 + $0x60] sm:$0xff]
        %v2572 = vld [vmem:[#allocation11 + $0x68] sm:$0xff]
        %v2573 = vld [vmem:[#allocation11 + $0x70] sm:$0xff]
        %v2574 = vld [vmem:[#allocation11 + $0x78] sm:$0xff]
        %v2575 = vld [vmem:[%s9] sm:$0x1]
        %v2577 = vlaneseq
        %v2578 = vshrl.u32 %v2577, 7
        %v2579 = vsub.s32 0, %v2578
        %v2580 = vrot.slane %v2575, %v2579
        %2582 = vmatprep.subr.mxu0 0.0
        %2583 = vmatpush1.msra.mxu0 %v2574
        %2584 = vmatprep.subr.mxu0 0.0
        %2585 = vmatpush1.msra.mxu0 %v2573
        %2586 = vmatprep.subr.mxu0 0.0
        %2587 = vmatpush1.msra.mxu0 %v2572
        %2588 = vmatprep.subr.mxu0 0.0
        %2589 = vmatpush1.msra.mxu0 %v2571
        %2590 = vmatprep.subr.mxu0 0.0
        %2591 = vmatpush1.msra.mxu0 %v2570
        %2592 = vmatprep.subr.mxu0 0.0
        %2593 = vmatpush1.msra.mxu0 %v2569
        %2594 = vmatprep.subr.mxu0 0.0
        %2595 = vmatpush1.msra.mxu0 %v2568
        %2596 = vmatprep.subr.mxu0 0.0
        %2597 = vmatpush1.msra.mxu0 %v2567
        %2598 = vmatprep.subr.mxu0 0.0
        %2599 = vmatpush1.msra.mxu0 %v2566
        %2600 = vmatprep.subr.mxu0 0.0
        %2601 = vmatpush1.msra.mxu0 %v2565
        %2602 = vmatprep.subr.mxu0 0.0
        %2603 = vmatpush1.msra.mxu0 %v2564
        %2604 = vmatprep.subr.mxu0 0.0
        %2605 = vmatpush1.msra.mxu0 %v2563
        %2606 = vmatprep.subr.mxu0 0.0
        %2607 = vmatpush1.msra.mxu0 %v2562
        %2608 = vmatprep.subr.mxu0 0.0
        %2609 = vmatpush1.msra.mxu0 %v2561
        %2610 = vmatprep.subr.mxu0 0.0
        %2611 = vmatpush1.msra.mxu0 %v2560
        %2612 = vmatprep.subr.mxu0 0.0
        %2613 = vmatpush1.msra.mxu0 %v2559
        %2614 = vmatprep.subr.mxu0 0.0
        %2615 = vmatpush2.msra.mxu0 0.0
        %2616 = vmatprep.subr.mxu0 0.0
        %2617 = vmatpush2.msra.mxu0 0.0
        %2618 = vmatprep.subr.mxu0 0.0
        %2619 = vmatpush2.msra.mxu0 0.0
        %2620 = vmatprep.subr.mxu0 0.0
        %2621 = vmatpush2.msra.mxu0 0.0
        %2622 = vmatprep.subr.mxu0 0.0
        %2623 = vmatpush2.msra.mxu0 0.0
        %2624 = vmatprep.subr.mxu0 0.0
        %2625 = vmatpush2.msra.mxu0 0.0
        %2626 = vmatprep.subr.mxu0 0.0
        %2627 = vmatpush2.msra.mxu0 0.0
        %2628 = vmatprep.subr.mxu0 0.0
        %2629 = vmatpush2.msra.mxu0 0.0
        %2630 = vmatprep.subr.mxu0 0.0
        %2631 = vmatpush2.msra.mxu0 0.0
        %2632 = vmatprep.subr.mxu0 0.0
        %2633 = vmatpush2.msra.mxu0 0.0
        %2634 = vmatprep.subr.mxu0 0.0
        %2635 = vmatpush2.msra.mxu0 0.0
        %2636 = vmatprep.subr.mxu0 0.0
        %2637 = vmatpush2.msra.mxu0 0.0
        %2638 = vmatprep.subr.mxu0 0.0
        %2639 = vmatpush2.msra.mxu0 0.0
        %2640 = vmatprep.subr.mxu0 0.0
        %2641 = vmatpush2.msra.mxu0 0.0
        %2642 = vmatprep.subr.mxu0 0.0
        %2643 = vmatpush2.msra.mxu0 0.0
        %2644 = vmatprep.subr.mxu0 0.0
        %2645 = vmatpush2.msra.mxu0 0.0
        %2646 = vmatprep.mubr.f32.mxu0 0.0
        %2647 = vmatmul.mubr.f32.gmra.mxu0 %v2495
        %v2648 = vpop.f32.mrf.mxu0
        %v2649 = vadd.f32 %v2580, %v2648
        %v2650 = vpop.f32.mrf.mxu0
        %2651 = vmatprep.mubr.f32.mxu0 0.0
        %2652 = vmatmul.mubr.f32.gmra.mxu0 %v2496
        %v2653 = vpop.f32.mrf.mxu0
        %v2654 = vadd.f32 %v2580, %v2653
        %v2655 = vpop.f32.mrf.mxu0
        %2656 = vmatprep.mubr.f32.mxu0 0.0
        %2657 = vmatmul.mubr.f32.gmra.mxu0 %v2497
        %v2658 = vpop.f32.mrf.mxu0
        %v2659 = vadd.f32 %v2580, %v2658
        %v2660 = vpop.f32.mrf.mxu0
        %2661 = vmatprep.mubr.f32.mxu0 0.0
        %2662 = vmatmul.mubr.f32.gmra.mxu0 %v2498
        %v2663 = vpop.f32.mrf.mxu0
        %v2664 = vadd.f32 %v2580, %v2663
        %v2665 = vpop.f32.mrf.mxu0
        %2666 = vmatprep.mubr.f32.mxu0 0.0
        %2667 = vmatmul.mubr.f32.gmra.mxu0 %v2499
        %v2668 = vpop.f32.mrf.mxu0
        %v2669 = vadd.f32 %v2580, %v2668
        %v2670 = vpop.f32.mrf.mxu0
        %2671 = vmatprep.mubr.f32.mxu0 0.0
        %2672 = vmatmul.mubr.f32.gmra.mxu0 %v2500
        %v2673 = vpop.f32.mrf.mxu0
        %v2674 = vadd.f32 %v2580, %v2673
        %v2675 = vpop.f32.mrf.mxu0
        %2676 = vmatprep.mubr.f32.mxu0 0.0
        %2677 = vmatmul.mubr.f32.gmra.mxu0 %v2501
        %v2678 = vpop.f32.mrf.mxu0
        %v2679 = vadd.f32 %v2580, %v2678
        %v2680 = vpop.f32.mrf.mxu0
        %2681 = vmatprep.mubr.f32.mxu0 0.0
        %2682 = vmatmul.mubr.f32.gmra.mxu0 %v2502
        %v2683 = vpop.f32.mrf.mxu0
        %v2684 = vadd.f32 %v2580, %v2683
        %v2685 = vpop.f32.mrf.mxu0
        %2686 = vmatprep.mubr.f32.mxu0 0.0
        %2687 = vmatmul.mubr.f32.gmra.mxu0 %v2503
        %v2688 = vpop.f32.mrf.mxu0
        %v2689 = vadd.f32 %v2580, %v2688
        %v2690 = vpop.f32.mrf.mxu0
        %2691 = vmatprep.mubr.f32.mxu0 0.0
        %2692 = vmatmul.mubr.f32.gmra.mxu0 %v2504
        %v2693 = vpop.f32.mrf.mxu0
        %v2694 = vadd.f32 %v2580, %v2693
        %v2695 = vpop.f32.mrf.mxu0
        %2696 = vmatprep.mubr.f32.mxu0 0.0
        %2697 = vmatmul.mubr.f32.gmra.mxu0 %v2505
        %v2698 = vpop.f32.mrf.mxu0
        %v2699 = vadd.f32 %v2580, %v2698
        %v2700 = vpop.f32.mrf.mxu0
        %2701 = vmatprep.mubr.f32.mxu0 0.0
        %2702 = vmatmul.mubr.f32.gmra.mxu0 %v2506
        %v2703 = vpop.f32.mrf.mxu0
        %v2704 = vadd.f32 %v2580, %v2703
        %v2705 = vpop.f32.mrf.mxu0
        %2706 = vmatprep.mubr.f32.mxu0 0.0
        %2707 = vmatmul.mubr.f32.gmra.mxu0 %v2507
        %v2708 = vpop.f32.mrf.mxu0
        %v2709 = vadd.f32 %v2580, %v2708
        %v2710 = vpop.f32.mrf.mxu0
        %2711 = vmatprep.mubr.f32.mxu0 0.0
        %2712 = vmatmul.mubr.f32.gmra.mxu0 %v2508
        %v2713 = vpop.f32.mrf.mxu0
        %v2714 = vadd.f32 %v2580, %v2713
        %v2715 = vpop.f32.mrf.mxu0
        %2716 = vmatprep.mubr.f32.mxu0 0.0
        %2717 = vmatmul.mubr.f32.gmra.mxu0 %v2509
        %v2718 = vpop.f32.mrf.mxu0
        %v2719 = vadd.f32 %v2580, %v2718
        %v2720 = vpop.f32.mrf.mxu0
        %2721 = vmatprep.mubr.f32.mxu0 0.0
        %2722 = vmatmul.mubr.f32.gmra.mxu0 %v2510
        %v2723 = vpop.f32.mrf.mxu0
        %v2724 = vadd.f32 %v2580, %v2723
        %v2725 = vpop.f32.mrf.mxu0
        %2726 = vmatprep.mubr.f32.mxu0 0.0
        %2727 = vmatmul.mubr.f32.gmra.mxu0 %v2511
        %v2728 = vpop.f32.mrf.mxu0
        %v2729 = vadd.f32 %v2580, %v2728
        %v2730 = vpop.f32.mrf.mxu0
        %2731 = vmatprep.mubr.f32.mxu0 0.0
        %2732 = vmatmul.mubr.f32.gmra.mxu0 %v2512
        %v2733 = vpop.f32.mrf.mxu0
        %v2734 = vadd.f32 %v2580, %v2733
        %v2735 = vpop.f32.mrf.mxu0
        %2736 = vmatprep.mubr.f32.mxu0 0.0
        %2737 = vmatmul.mubr.f32.gmra.mxu0 %v2513
        %v2738 = vpop.f32.mrf.mxu0
        %v2739 = vadd.f32 %v2580, %v2738
        %v2740 = vpop.f32.mrf.mxu0
        %2741 = vmatprep.mubr.f32.mxu0 0.0
        %2742 = vmatmul.mubr.f32.gmra.mxu0 %v2514
        %v2743 = vpop.f32.mrf.mxu0
        %v2744 = vadd.f32 %v2580, %v2743
        %v2745 = vpop.f32.mrf.mxu0
        %2746 = vmatprep.mubr.f32.mxu0 0.0
        %2747 = vmatmul.mubr.f32.gmra.mxu0 %v2515
        %v2748 = vpop.f32.mrf.mxu0
        %v2749 = vadd.f32 %v2580, %v2748
        %v2750 = vpop.f32.mrf.mxu0
        %2751 = vmatprep.mubr.f32.mxu0 0.0
        %2752 = vmatmul.mubr.f32.gmra.mxu0 %v2516
        %v2753 = vpop.f32.mrf.mxu0
        %v2754 = vadd.f32 %v2580, %v2753
        %v2755 = vpop.f32.mrf.mxu0
        %2756 = vmatprep.mubr.f32.mxu0 0.0
        %2757 = vmatmul.mubr.f32.gmra.mxu0 %v2517
        %v2758 = vpop.f32.mrf.mxu0
        %v2759 = vadd.f32 %v2580, %v2758
        %v2760 = vpop.f32.mrf.mxu0
        %2761 = vmatprep.mubr.f32.mxu0 0.0
        %2762 = vmatmul.mubr.f32.gmra.mxu0 %v2518
        %v2763 = vpop.f32.mrf.mxu0
        %v2764 = vadd.f32 %v2580, %v2763
        %v2765 = vpop.f32.mrf.mxu0
        %2766 = vmatprep.mubr.f32.mxu0 0.0
        %2767 = vmatmul.mubr.f32.gmra.mxu0 %v2519
        %v2768 = vpop.f32.mrf.mxu0
        %v2769 = vadd.f32 %v2580, %v2768
        %v2770 = vpop.f32.mrf.mxu0
        %2771 = vmatprep.mubr.f32.mxu0 0.0
        %2772 = vmatmul.mubr.f32.gmra.mxu0 %v2520
        %v2773 = vpop.f32.mrf.mxu0
        %v2774 = vadd.f32 %v2580, %v2773
        %v2775 = vpop.f32.mrf.mxu0
        %2776 = vmatprep.mubr.f32.mxu0 0.0
        %2777 = vmatmul.mubr.f32.gmra.mxu0 %v2521
        %v2778 = vpop.f32.mrf.mxu0
        %v2779 = vadd.f32 %v2580, %v2778
        %v2780 = vpop.f32.mrf.mxu0
        %2781 = vmatprep.mubr.f32.mxu0 0.0
        %2782 = vmatmul.mubr.f32.gmra.mxu0 %v2522
        %v2783 = vpop.f32.mrf.mxu0
        %v2784 = vadd.f32 %v2580, %v2783
        %v2785 = vpop.f32.mrf.mxu0
        %2786 = vmatprep.mubr.f32.mxu0 0.0
        %2787 = vmatmul.mubr.f32.gmra.mxu0 %v2523
        %v2788 = vpop.f32.mrf.mxu0
        %v2789 = vadd.f32 %v2580, %v2788
        %v2790 = vpop.f32.mrf.mxu0
        %2791 = vmatprep.mubr.f32.mxu0 0.0
        %2792 = vmatmul.mubr.f32.gmra.mxu0 %v2524
        %v2793 = vpop.f32.mrf.mxu0
        %v2794 = vadd.f32 %v2580, %v2793
        %v2795 = vpop.f32.mrf.mxu0
        %2796 = vmatprep.mubr.f32.mxu0 0.0
        %2797 = vmatmul.mubr.f32.gmra.mxu0 %v2525
        %v2798 = vpop.f32.mrf.mxu0
        %v2799 = vadd.f32 %v2580, %v2798
        %v2800 = vpop.f32.mrf.mxu0
        %2801 = vmatprep.mubr.f32.mxu0 0.0
        %2802 = vmatmul.mubr.f32.gmra.mxu0 %v2526
        %v2803 = vpop.f32.mrf.mxu0
        %v2804 = vadd.f32 %v2580, %v2803
        %v2805 = vpop.f32.mrf.mxu0
        %2806 = vmatprep.mubr.f32.mxu0 0.0
        %2807 = vmatmul.mubr.f32.gmra.mxu0 %v2527
        %v2808 = vpop.f32.mrf.mxu0
        %v2809 = vadd.f32 %v2580, %v2808
        %v2810 = vpop.f32.mrf.mxu0
        %2811 = vmatprep.mubr.f32.mxu0 0.0
        %2812 = vmatmul.mubr.f32.gmra.mxu0 %v2528
        %v2813 = vpop.f32.mrf.mxu0
        %v2814 = vadd.f32 %v2580, %v2813
        %v2815 = vpop.f32.mrf.mxu0
        %2816 = vmatprep.mubr.f32.mxu0 0.0
        %2817 = vmatmul.mubr.f32.gmra.mxu0 %v2529
        %v2818 = vpop.f32.mrf.mxu0
        %v2819 = vadd.f32 %v2580, %v2818
        %v2820 = vpop.f32.mrf.mxu0
        %2821 = vmatprep.mubr.f32.mxu0 0.0
        %2822 = vmatmul.mubr.f32.gmra.mxu0 %v2530
        %v2823 = vpop.f32.mrf.mxu0
        %v2824 = vadd.f32 %v2580, %v2823
        %v2825 = vpop.f32.mrf.mxu0
        %2826 = vmatprep.mubr.f32.mxu0 0.0
        %2827 = vmatmul.mubr.f32.gmra.mxu0 %v2531
        %v2828 = vpop.f32.mrf.mxu0
        %v2829 = vadd.f32 %v2580, %v2828
        %v2830 = vpop.f32.mrf.mxu0
        %2831 = vmatprep.mubr.f32.mxu0 0.0
        %2832 = vmatmul.mubr.f32.gmra.mxu0 %v2532
        %v2833 = vpop.f32.mrf.mxu0
        %v2834 = vadd.f32 %v2580, %v2833
        %v2835 = vpop.f32.mrf.mxu0
        %2836 = vmatprep.mubr.f32.mxu0 0.0
        %2837 = vmatmul.mubr.f32.gmra.mxu0 %v2533
        %v2838 = vpop.f32.mrf.mxu0
        %v2839 = vadd.f32 %v2580, %v2838
        %v2840 = vpop.f32.mrf.mxu0
        %2841 = vmatprep.mubr.f32.mxu0 0.0
        %2842 = vmatmul.mubr.f32.gmra.mxu0 %v2534
        %v2843 = vpop.f32.mrf.mxu0
        %v2844 = vadd.f32 %v2580, %v2843
        %v2845 = vpop.f32.mrf.mxu0
        %2846 = vmatprep.mubr.f32.mxu0 0.0
        %2847 = vmatmul.mubr.f32.gmra.mxu0 %v2535
        %v2848 = vpop.f32.mrf.mxu0
        %v2849 = vadd.f32 %v2580, %v2848
        %v2850 = vpop.f32.mrf.mxu0
        %2851 = vmatprep.mubr.f32.mxu0 0.0
        %2852 = vmatmul.mubr.f32.gmra.mxu0 %v2536
        %v2853 = vpop.f32.mrf.mxu0
        %v2854 = vadd.f32 %v2580, %v2853
        %v2855 = vpop.f32.mrf.mxu0
        %2856 = vmatprep.mubr.f32.mxu0 0.0
        %2857 = vmatmul.mubr.f32.gmra.mxu0 %v2537
        %v2858 = vpop.f32.mrf.mxu0
        %v2859 = vadd.f32 %v2580, %v2858
        %v2860 = vpop.f32.mrf.mxu0
        %2861 = vmatprep.mubr.f32.mxu0 0.0
        %2862 = vmatmul.mubr.f32.gmra.mxu0 %v2538
        %v2863 = vpop.f32.mrf.mxu0
        %v2864 = vadd.f32 %v2580, %v2863
        %v2865 = vpop.f32.mrf.mxu0
        %2866 = vmatprep.mubr.f32.mxu0 0.0
        %2867 = vmatmul.mubr.f32.gmra.mxu0 %v2539
        %v2868 = vpop.f32.mrf.mxu0
        %v2869 = vadd.f32 %v2580, %v2868
        %v2870 = vpop.f32.mrf.mxu0
        %2871 = vmatprep.mubr.f32.mxu0 0.0
        %2872 = vmatmul.mubr.f32.gmra.mxu0 %v2540
        %v2873 = vpop.f32.mrf.mxu0
        %v2874 = vadd.f32 %v2580, %v2873
        %v2875 = vpop.f32.mrf.mxu0
        %2876 = vmatprep.mubr.f32.mxu0 0.0
        %2877 = vmatmul.mubr.f32.gmra.mxu0 %v2541
        %v2878 = vpop.f32.mrf.mxu0
        %v2879 = vadd.f32 %v2580, %v2878
        %v2880 = vpop.f32.mrf.mxu0
        %2881 = vmatprep.mubr.f32.mxu0 0.0
        %2882 = vmatmul.mubr.f32.gmra.mxu0 %v2542
        %v2883 = vpop.f32.mrf.mxu0
        %v2884 = vadd.f32 %v2580, %v2883
        %v2885 = vpop.f32.mrf.mxu0
        %2886 = vmatprep.mubr.f32.mxu0 0.0
        %2887 = vmatmul.mubr.f32.gmra.mxu0 %v2543
        %v2888 = vpop.f32.mrf.mxu0
        %v2889 = vadd.f32 %v2580, %v2888
        %v2890 = vpop.f32.mrf.mxu0
        %2891 = vmatprep.mubr.f32.mxu0 0.0
        %2892 = vmatmul.mubr.f32.gmra.mxu0 %v2544
        %v2893 = vpop.f32.mrf.mxu0
        %v2894 = vadd.f32 %v2580, %v2893
        %v2895 = vpop.f32.mrf.mxu0
        %2896 = vmatprep.mubr.f32.mxu0 0.0
        %2897 = vmatmul.mubr.f32.gmra.mxu0 %v2545
        %v2898 = vpop.f32.mrf.mxu0
        %v2899 = vadd.f32 %v2580, %v2898
        %v2900 = vpop.f32.mrf.mxu0
        %2901 = vmatprep.mubr.f32.mxu0 0.0
        %2902 = vmatmul.mubr.f32.gmra.mxu0 %v2546
        %v2903 = vpop.f32.mrf.mxu0
        %v2904 = vadd.f32 %v2580, %v2903
        %v2905 = vpop.f32.mrf.mxu0
        %2906 = vmatprep.mubr.f32.mxu0 0.0
        %2907 = vmatmul.mubr.f32.gmra.mxu0 %v2547
        %v2908 = vpop.f32.mrf.mxu0
        %v2909 = vadd.f32 %v2580, %v2908
        %v2910 = vpop.f32.mrf.mxu0
        %2911 = vmatprep.mubr.f32.mxu0 0.0
        %2912 = vmatmul.mubr.f32.gmra.mxu0 %v2548
        %v2913 = vpop.f32.mrf.mxu0
        %v2914 = vadd.f32 %v2580, %v2913
        %v2915 = vpop.f32.mrf.mxu0
        %2916 = vmatprep.mubr.f32.mxu0 0.0
        %2917 = vmatmul.mubr.f32.gmra.mxu0 %v2549
        %v2918 = vpop.f32.mrf.mxu0
        %v2919 = vadd.f32 %v2580, %v2918
        %v2920 = vpop.f32.mrf.mxu0
        %2921 = vmatprep.mubr.f32.mxu0 0.0
        %2922 = vmatmul.mubr.f32.gmra.mxu0 %v2550
        %v2923 = vpop.f32.mrf.mxu0
        %v2924 = vadd.f32 %v2580, %v2923
        %v2925 = vpop.f32.mrf.mxu0
        %2926 = vmatprep.mubr.f32.mxu0 0.0
        %2927 = vmatmul.mubr.f32.gmra.mxu0 %v2551
        %v2928 = vpop.f32.mrf.mxu0
        %v2929 = vadd.f32 %v2580, %v2928
        %v2930 = vpop.f32.mrf.mxu0
        %2931 = vmatprep.mubr.f32.mxu0 0.0
        %2932 = vmatmul.mubr.f32.gmra.mxu0 %v2552
        %v2933 = vpop.f32.mrf.mxu0
        %v2934 = vadd.f32 %v2580, %v2933
        %v2935 = vpop.f32.mrf.mxu0
        %2936 = vmatprep.mubr.f32.mxu0 0.0
        %2937 = vmatmul.mubr.f32.gmra.mxu0 %v2553
        %v2938 = vpop.f32.mrf.mxu0
        %v2939 = vadd.f32 %v2580, %v2938
        %v2940 = vpop.f32.mrf.mxu0
        %2941 = vmatprep.mubr.f32.mxu0 0.0
        %2942 = vmatmul.mubr.f32.gmra.mxu0 %v2554
        %v2943 = vpop.f32.mrf.mxu0
        %v2944 = vadd.f32 %v2580, %v2943
        %v2945 = vpop.f32.mrf.mxu0
        %2946 = vmatprep.mubr.f32.mxu0 0.0
        %2947 = vmatmul.mubr.f32.gmra.mxu0 %v2555
        %v2948 = vpop.f32.mrf.mxu0
        %v2949 = vadd.f32 %v2580, %v2948
        %v2950 = vpop.f32.mrf.mxu0
        %2951 = vmatprep.mubr.f32.mxu0 0.0
        %2952 = vmatmul.mubr.f32.gmra.mxu0 %v2556
        %v2953 = vpop.f32.mrf.mxu0
        %v2954 = vadd.f32 %v2580, %v2953
        %v2955 = vpop.f32.mrf.mxu0
        %2956 = vmatprep.mubr.f32.mxu0 0.0
        %2957 = vmatmul.mubr.f32.gmra.mxu0 %v2557
        %v2958 = vpop.f32.mrf.mxu0
        %v2959 = vadd.f32 %v2580, %v2958
        %v2960 = vpop.f32.mrf.mxu0
        %2961 = vmatprep.mubr.f32.mxu0 0.0
        %2962 = vmatmul.mubr.f32.gmra.mxu0 %v2558
        %v2963 = vpop.f32.mrf.mxu0
        %v2964 = vadd.f32 %v2580, %v2963
        %v2965 = vpop.f32.mrf.mxu0
        %2966 = vdwg.mxu0
        %2967 = vst [vmem:[%s670] sm:$0xff] %v2649
        %2968 = vst [vmem:[%s670 + $0x8] sm:$0xff] %v2654
        %2969 = vst [vmem:[%s670 + $0x10] sm:$0xff] %v2659
        %2970 = vst [vmem:[%s670 + $0x18] sm:$0xff] %v2664
        %2971 = vst [vmem:[%s670 + $0x20] sm:$0xff] %v2669
        %2972 = vst [vmem:[%s670 + $0x28] sm:$0xff] %v2674
        %2973 = vst [vmem:[%s670 + $0x30] sm:$0xff] %v2679
        %2974 = vst [vmem:[%s670 + $0x38] sm:$0xff] %v2684
        %2975 = vst [vmem:[%s670 + $0x40] sm:$0xff] %v2689
        %2976 = vst [vmem:[%s670 + $0x48] sm:$0xff] %v2694
        %2977 = vst [vmem:[%s670 + $0x50] sm:$0xff] %v2699
        %2978 = vst [vmem:[%s670 + $0x58] sm:$0xff] %v2704
        %2979 = vst [vmem:[%s670 + $0x60] sm:$0xff] %v2709
        %2980 = vst [vmem:[%s670 + $0x68] sm:$0xff] %v2714
        %2981 = vst [vmem:[%s670 + $0x70] sm:$0xff] %v2719
        %2982 = vst [vmem:[%s670 + $0x78] sm:$0xff] %v2724
        %2983 = vst [vmem:[%s670 + $0x80] sm:$0xff] %v2729
        %2984 = vst [vmem:[%s670 + $0x88] sm:$0xff] %v2734
        %2985 = vst [vmem:[%s670 + $0x90] sm:$0xff] %v2739
        %2986 = vst [vmem:[%s670 + $0x98] sm:$0xff] %v2744
        %2987 = vst [vmem:[%s670 + $0xa0] sm:$0xff] %v2749
        %2988 = vst [vmem:[%s670 + $0xa8] sm:$0xff] %v2754
        %2989 = vst [vmem:[%s670 + $0xb0] sm:$0xff] %v2759
        %2990 = vst [vmem:[%s670 + $0xb8] sm:$0xff] %v2764
        %2991 = vst [vmem:[%s670 + $0xc0] sm:$0xff] %v2769
        %2992 = vst [vmem:[%s670 + $0xc8] sm:$0xff] %v2774
        %2993 = vst [vmem:[%s670 + $0xd0] sm:$0xff] %v2779
        %2994 = vst [vmem:[%s670 + $0xd8] sm:$0xff] %v2784
        %2995 = vst [vmem:[%s670 + $0xe0] sm:$0xff] %v2789
        %2996 = vst [vmem:[%s670 + $0xe8] sm:$0xff] %v2794
        %2997 = vst [vmem:[%s670 + $0xf0] sm:$0xff] %v2799
        %2998 = vst [vmem:[%s670 + $0xf8] sm:$0xff] %v2804
        %2999 = vst [vmem:[%s684] sm:$0xff] %v2809
        %3000 = vst [vmem:[%s684 + $0x8] sm:$0xff] %v2814
        %3001 = vst [vmem:[%s684 + $0x10] sm:$0xff] %v2819
        %3002 = vst [vmem:[%s684 + $0x18] sm:$0xff] %v2824
        %3003 = vst [vmem:[%s684 + $0x20] sm:$0xff] %v2829
        %3004 = vst [vmem:[%s684 + $0x28] sm:$0xff] %v2834
        %3005 = vst [vmem:[%s684 + $0x30] sm:$0xff] %v2839
        %3006 = vst [vmem:[%s684 + $0x38] sm:$0xff] %v2844
        %3007 = vst [vmem:[%s684 + $0x40] sm:$0xff] %v2849
        %3008 = vst [vmem:[%s684 + $0x48] sm:$0xff] %v2854
        %3009 = vst [vmem:[%s684 + $0x50] sm:$0xff] %v2859
        %3010 = vst [vmem:[%s684 + $0x58] sm:$0xff] %v2864
        %3011 = vst [vmem:[%s684 + $0x60] sm:$0xff] %v2869
        %3012 = vst [vmem:[%s684 + $0x68] sm:$0xff] %v2874
        %3013 = vst [vmem:[%s684 + $0x70] sm:$0xff] %v2879
        %3014 = vst [vmem:[%s684 + $0x78] sm:$0xff] %v2884
        %3015 = vst [vmem:[%s684 + $0x80] sm:$0xff] %v2889
        %3016 = vst [vmem:[%s684 + $0x88] sm:$0xff] %v2894
        %3017 = vst [vmem:[%s684 + $0x90] sm:$0xff] %v2899
        %3018 = vst [vmem:[%s684 + $0x98] sm:$0xff] %v2904
        %3019 = vst [vmem:[%s684 + $0xa0] sm:$0xff] %v2909
        %3020 = vst [vmem:[%s684 + $0xa8] sm:$0xff] %v2914
        %3021 = vst [vmem:[%s684 + $0xb0] sm:$0xff] %v2919
        %3022 = vst [vmem:[%s684 + $0xb8] sm:$0xff] %v2924
        %3023 = vst [vmem:[%s684 + $0xc0] sm:$0xff] %v2929
        %3024 = vst [vmem:[%s684 + $0xc8] sm:$0xff] %v2934
        %3025 = vst [vmem:[%s684 + $0xd0] sm:$0xff] %v2939
        %3026 = vst [vmem:[%s684 + $0xd8] sm:$0xff] %v2944
        %3027 = vst [vmem:[%s684 + $0xe0] sm:$0xff] %v2949
        %3028 = vst [vmem:[%s684 + $0xe8] sm:$0xff] %v2954
        %3029 = vst [vmem:[%s684 + $0xf0] sm:$0xff] %v2959
        %3030 = vst [vmem:[%s684 + $0xf8] sm:$0xff] %v2964
        %s3031 = sand.u32 %s355, 1
        %s3032 = scalar_lea.sflag [#allocation4], %s3031
        %s3033 = sand.u32 %s355, 1
        %s3034 = smul.addr %s3033, 256
        %s3035 = scalar_lea.vmem [#allocation16], %s3034
        %s3036 = sand.u32 %s43, 1
        %s3037 = scalar_lea.sflag [#allocation18], %s3036
        %s3038 = sand.u32 %s381, 1
        %s3039 = smul.addr %s3038, 512
        %s3040 = scalar_lea.vmem [#allocation17], %s3039
        %s3041 = sand.u32 %s43, 1
        %s3042 = scalar_lea.sflag [#allocation18], %s3041
        %s3043 = sand.u32 %s407, 1
        %s3044 = smul.addr %s3043, 256
        %s3045 = scalar_lea.vmem [#allocation19], %s3044
        // Predicated region
        $region109: #{tpu_custom_call.1} parent=75 // pred_check
          %p3046 = pneg %p365
        $region110: #{tpu_custom_call.1} parent=75 // pred_check_branch
          %3048 = sbr.rel (%p3046) target = $region112
        $region111: #{tpu_custom_call.1} parent=75 // pred_region
          %s3049 = smul.u32 32, %s43
          %s3051 = ssub.s32 4096, 4096
          %3052 = vsyncadd %s3032, %s3051
          %s3053 = smul.addr %s3049, 128
          %s3054 = scalar_lea.hbm %s14, %s3053
          %s3055 = sshll.u32 %s3035, 4
          %s3056 = int_to_ptr.vmem [resolvable:$true] %s3055
          %3061 = dma.vmem_to_hbm [thread:$0]  %s3056, 4096, %s3054, %s3032, 128, 128, 8
        $region112: #{tpu_custom_call.1} parent=75 // pred_fallthru
          _
        // Predicated region
        $region113: #{tpu_custom_call.1} parent=75 // pred_check
          %p3062 = pneg %p391
        $region114: #{tpu_custom_call.1} parent=75 // pred_check_branch
          %3064 = sbr.rel (%p3062) target = $region116
        $region115: #{tpu_custom_call.1} parent=75 // pred_region
          %s3065 = smul.u32 32, %s43
          %s3067 = ssub.s32 8192, 8192
          %3068 = vsyncadd %s3037, %s3067
          %s3069 = smul.addr %s3065, 2
          %s3070 = smul.addr %s3069, 128
          %s3071 = scalar_lea.hbm %s15, %s3070
          %s3072 = sshll.u32 %s3040, 4
          %s3073 = int_to_ptr.vmem [resolvable:$true] %s3072
          %3078 = dma.vmem_to_hbm [thread:$0]  %s3073, 8192, %s3071, %s3037, 256, 256, 16
        $region116: #{tpu_custom_call.1} parent=75 // pred_fallthru
          _
        // Predicated region
        $region117: #{tpu_custom_call.1} parent=75 // pred_check
          %p3079 = pneg %p417
        $region118: #{tpu_custom_call.1} parent=75 // pred_check_branch
          %3081 = sbr.rel (%p3079) target = $region120
        $region119: #{tpu_custom_call.1} parent=75 // pred_region
          %s3082 = smul.u32 32, %s43
          %s3084 = ssub.s32 4096, 4096
          %3085 = vsyncadd %s3042, %s3084
          %s3086 = smul.addr %s3082, 128
          %s3087 = scalar_lea.hbm %s16, %s3086
          %s3088 = sshll.u32 %s3045, 4
          %s3089 = int_to_ptr.vmem [resolvable:$true] %s3088
          %3094 = dma.vmem_to_hbm [thread:$0]  %s3089, 4096, %s3087, %s3042, 128, 128, 8
        $region120: #{tpu_custom_call.1} parent=75 // pred_fallthru
          _
      $region76: #{tpu_custom_call.1} parent=5 // pred_fallthru
        _
      %p3095 = scmp.le.s32.totalorder 2, %s38
      // Predicated region
      $region121: #{tpu_custom_call.1} parent=5 // pred_check
        %p3096 = pneg %p3095
      $region122: #{tpu_custom_call.1} parent=5 // pred_check_branch
        %3098 = sbr.rel (%p3096) target = $region124
      $region123: #{tpu_custom_call.1} parent=5 // pred_region
        %s3099 = ssub.s32 %s38, 2
        // Predicated region
        $region125: #{tpu_custom_call.1} parent=123 // pred_check
          %p3100 = pneg %p371
        $region126: #{tpu_custom_call.1} parent=123 // pred_check_branch
          %3102 = sbr.rel (%p3100) target = $region128
        $region127: #{tpu_custom_call.1} parent=123 // pred_region
          %s3103 = sand.u32 %s356, 1
          %s3104 = scalar_lea.sflag [#allocation4], %s3103
          %s3105 = sand.u32 %s356, 1
          %s3106 = smul.addr %s3105, 256
          %s3107 = scalar_lea.vmem [#allocation16], %s3106
          %3108 = dma.done %s3104, 4096
        $region128: #{tpu_custom_call.1} parent=123 // pred_fallthru
          _
        // Predicated region
        $region129: #{tpu_custom_call.1} parent=123 // pred_check
          %p3109 = pneg %p397
        $region130: #{tpu_custom_call.1} parent=123 // pred_check_branch
          %3111 = sbr.rel (%p3109) target = $region132
        $region131: #{tpu_custom_call.1} parent=123 // pred_region
          %s3112 = sand.u32 %s44, 1
          %s3113 = scalar_lea.sflag [#allocation18], %s3112
          %s3114 = sand.u32 %s382, 1
          %s3115 = smul.addr %s3114, 512
          %s3116 = scalar_lea.vmem [#allocation17], %s3115
          %3117 = dma.done %s3113, 8192
        $region132: #{tpu_custom_call.1} parent=123 // pred_fallthru
          _
        // Predicated region
        $region133: #{tpu_custom_call.1} parent=123 // pred_check
          %p3118 = pneg %p423
        $region134: #{tpu_custom_call.1} parent=123 // pred_check_branch
          %3120 = sbr.rel (%p3118) target = $region136
        $region135: #{tpu_custom_call.1} parent=123 // pred_region
          %s3121 = sand.u32 %s44, 1
          %s3122 = scalar_lea.sflag [#allocation18], %s3121
          %s3123 = sand.u32 %s408, 1
          %s3124 = smul.addr %s3123, 256
          %s3125 = scalar_lea.vmem [#allocation19], %s3124
          %3126 = dma.done %s3122, 4096
        $region136: #{tpu_custom_call.1} parent=123 // pred_fallthru
          _
      $region124: #{tpu_custom_call.1} parent=5 // pred_fallthru
        _
    $region6: #{tpu_custom_call.1} parent=1 // loop_footer
      %s42 = sadd.s32 1, %s38
    $region7: #{tpu_custom_call.1} parent=1 // loop_footer_branch
      %37 = sbr.rel target = $region3
    $region8: #{tpu_custom_call.1} parent=1 // loop_exit
      _
    %3127 = vsyncpa [#allocation3], 1
    %s3128 = scalar_lea.sflag [#allocation3], 1
    %3129 = vsyncpa %s3128, 1
    %3130 = vsyncpa [#allocation6], 1
    %s3131 = scalar_lea.sflag [#allocation6], 1
    %3132 = vsyncpa %s3131, 1
    %3133 = vsyncpa [#allocation9], 1
    %3134 = vsyncpa [#allocation12], 1
    %3135 = vsyncpa [#allocation15], 1
    %3136 = vsyncpa [#allocation4], 1
    %s3137 = scalar_lea.sflag [#allocation4], 1
    %3138 = vsyncpa %s3137, 1
    %3139 = vsyncpa [#allocation18], 1
    %s3140 = scalar_lea.sflag [#allocation18], 1
    %3141 = vsyncpa %s3140, 1

</llo_original>
